<compile_context>
chip_gen: v7x
topology: tpu7x:2x2x1
jax: 0.10.0
libtpu: 0.0.40
codegen_flags: <defaults>
</compile_context>

<pallas_src>
import functools
import math

import numpy as np
import jax
import jax.numpy as jnp
from jax.experimental import pallas as pl
from jax.experimental.pallas import tpu as pltpu


# MXU operand dtype. f32 keeps exact parity with the fp32 PyTorch reference; set to
# jnp.bfloat16 on v6e/v7x for the wide bf16 MXUs when the model is scaled up
# (accumulation stays f32 via preferred_element_type below).
MXU_DTYPE = jnp.float32

_VMEM_LIMIT = 32 * 1024 * 1024  # explicit scoped-VMEM limit (safe on v5e/v6e/v7x)


# ----------------------------- in-kernel helpers ------------------------------

def _mm(a, b):
    """MXU matmul with f32 accumulation."""
    return jnp.dot(a.astype(MXU_DTYPE), b.astype(MXU_DTYPE),
                   preferred_element_type=jnp.float32)


def _qk(q, k):
    """q @ k.T (contract last dims) with f32 accumulation."""
    return jax.lax.dot_general(
        q.astype(MXU_DTYPE), k.astype(MXU_DTYPE),
        (((1,), (1,)), ((), ())), preferred_element_type=jnp.float32)


def _attend(q, k, v, scale, causal):
    """Single-head attention: q (Sq, dh), k/v (Sk, dh) -> (Sq, dh)."""
    s = _qk(q, k) * scale
    if causal:  # matches get_mask(): additive mask above the diagonal (finite, NaN-safe)
        sq, sk = s.shape
        row = jax.lax.broadcasted_iota(jnp.int32, (sq, sk), 0)
        col = jax.lax.broadcasted_iota(jnp.int32, (sq, sk), 1)
        s = jnp.where(col <= row, s, -1e30)
    m = jnp.max(s, axis=-1, keepdims=True)
    p = jnp.exp(s - m)
    l = jnp.sum(p, axis=-1, keepdims=True)
    p = p * pl.reciprocal(l, approx=True)   # divide on the EUP slot
    return _mm(p, v)


def _mha(q, k, v, wo, bo, n_heads, causal):
    """Multi-head attention + output projection, all in VMEM.

    concat_h(head_h) @ W_O == sum_h head_h @ W_O[h*dh:(h+1)*dh, :], which avoids any
    lane-axis concatenation / head transposes inside the kernel.
    """
    D = q.shape[-1]
    dh = D // n_heads
    scale = 1.0 / math.sqrt(dh)
    acc = None
    for h in range(n_heads):
        sl = slice(h * dh, (h + 1) * dh)
        oh = _attend(q[:, sl], k[:, sl], v[:, sl], scale, causal)
        contrib = _mm(oh, wo[sl, :])
        acc = contrib if acc is None else acc + contrib
    return acc + bo


def _add_ln(x, r, g, b, eps):
    """Post-norm residual: LayerNorm(x + r) with PyTorch eps=1e-5."""
    y = x + r
    mu = jnp.mean(y, axis=-1, keepdims=True)
    var = jnp.mean((y - mu) ** 2, axis=-1, keepdims=True)
    return (y - mu) * jax.lax.rsqrt(var + eps) * g + b


# ----------------------------- Pallas kernels ------------------------------

def _img_encoder_kernel(x_ref, w_ref, b_ref, o_ref):
    # TODO(synk): EncoderImg source is not provided in the reference file; stand-in is a
    # per-pixel linear projection C -> d_model of the flattened image tokens.
    o_ref[0] = _mm(x_ref[0], w_ref[...]) + b_ref[...]


def _decoder_layer_kernel(
    x_ref, mem_ref,
    sa_wqkv_ref, sa_bqkv_ref, sa_wo_ref, sa_bo_ref, ln1_g_ref, ln1_b_ref,
    ca_wq_ref, ca_bq_ref, ca_wkv_ref, ca_bkv_ref, ca_wo_ref, ca_bo_ref, ln2_g_ref, ln2_b_ref,
    w1_ref, b1_ref, w2_ref, b2_ref, ln3_g_ref, ln3_b_ref,
    o_ref, *, n_heads, causal, eps):
    """One fused nn.TransformerDecoderLayer (post-norm, relu, dropout=identity)."""
    x = x_ref[0]      # (S, D)
    mem = mem_ref[0]  # (M, D)
    D = x.shape[-1]

    # --- self-attention (fused QKV projection) ---
    qkv = _mm(x, sa_wqkv_ref[...]) + sa_bqkv_ref[...]
    q, k, v = qkv[:, :D], qkv[:, D:2 * D], qkv[:, 2 * D:]
    sa = _mha(q, k, v, sa_wo_ref[...], sa_bo_ref[...], n_heads, causal)
    x = _add_ln(x, sa, ln1_g_ref[...], ln1_b_ref[...], eps)

    # --- cross-attention over image memory (fused KV projection) ---
    qc = _mm(x, ca_wq_ref[...]) + ca_bq_ref[...]
    kvm = _mm(mem, ca_wkv_ref[...]) + ca_bkv_ref[...]
    kc, vc = kvm[:, :D], kvm[:, D:]
    ca = _mha(qc, kc, vc, ca_wo_ref[...], ca_bo_ref[...], n_heads, False)
    x = _add_ln(x, ca, ln2_g_ref[...], ln2_b_ref[...], eps)

    # --- feed-forward (relu, nn.TransformerDecoderLayer default) ---
    hdn = jnp.maximum(_mm(x, w1_ref[...]) + b1_ref[...], 0.0)
    ff = _mm(hdn, w2_ref[...]) + b2_ref[...]
    x = _add_ln(x, ff, ln3_g_ref[...], ln3_b_ref[...], eps)

    o_ref[0] = x


def _projection_kernel(x_ref, w_ref, o_ref):
    # trg_word_prj (bias=False); vocab dim is padded to a multiple of 128 for lane-dense stores.
    o_ref[0] = _mm(x_ref[0], w_ref[...])


# ----------------------------- kernel wrappers ------------------------------

_PARAMS_1D = pltpu.CompilerParams(dimension_semantics=("parallel",),
                                  vmem_limit_bytes=_VMEM_LIMIT)


def pallas_img_encoder(tokens, w, b):
    B, N, C = tokens.shape
    D = w.shape[1]
    return pl.pallas_call(
        _img_encoder_kernel,
        out_shape=jax.ShapeDtypeStruct((B, N, D), jnp.float32),
        grid=(B,),
        in_specs=[pl.BlockSpec((1, N, C), lambda i: (i, 0, 0)),
                  pl.BlockSpec(w.shape, lambda i: (0, 0)),
                  pl.BlockSpec(b.shape, lambda i: (0, 0))],
        out_specs=pl.BlockSpec((1, N, D), lambda i: (i, 0, 0)),
        compiler_params=_PARAMS_1D,
    )(tokens, w, b)


_LAYER_WEIGHT_ORDER = (
    "sa_wqkv", "sa_bqkv", "sa_wo", "sa_bo", "ln1_g", "ln1_b",
    "ca_wq", "ca_bq", "ca_wkv", "ca_bkv", "ca_wo", "ca_bo", "ln2_g", "ln2_b",
    "w1", "b1", "w2", "b2", "ln3_g", "ln3_b",
)


def pallas_decoder_layer(x, mem, p, n_heads, causal):
    # One fused kernel per decoder layer, gridded over batch (parallel -> both TCs on v7x).
    # TODO(synk): at these toy shapes all operands/activations fit VMEM whole; for a scaled
    # model this kernel should be tiled over tokens / d_hidden with BlockSpecs.
    B, S, D = x.shape
    M = mem.shape[1]
    weights = [p[name] for name in _LAYER_WEIGHT_ORDER]
    w_specs = [pl.BlockSpec(w.shape, lambda b: (0, 0)) for w in weights]
    return pl.pallas_call(
        functools.partial(_decoder_layer_kernel, n_heads=n_heads, causal=causal, eps=1e-5),
        out_shape=jax.ShapeDtypeStruct((B, S, D), jnp.float32),
        grid=(B,),
        in_specs=[pl.BlockSpec((1, S, D), lambda b: (b, 0, 0)),
                  pl.BlockSpec((1, M, D), lambda b: (b, 0, 0))] + w_specs,
        out_specs=pl.BlockSpec((1, S, D), lambda b: (b, 0, 0)),
        compiler_params=_PARAMS_1D,
    )(x, mem, *weights)


def pallas_projection(x, w_pad):
    B, S, D = x.shape
    Vp = w_pad.shape[1]
    return pl.pallas_call(
        _projection_kernel,
        out_shape=jax.ShapeDtypeStruct((B, S, Vp), jnp.float32),
        grid=(B,),
        in_specs=[pl.BlockSpec((1, S, D), lambda b: (b, 0, 0)),
                  pl.BlockSpec(w_pad.shape, lambda b: (0, 0))],
        out_specs=pl.BlockSpec((1, S, Vp), lambda b: (b, 0, 0)),
        compiler_params=_PARAMS_1D,
    )(x, w_pad)


# ----------------------------- model forward ------------------------------

def transformer_forward(params, img, trg_seq, *, n_heads, vocab_len, causal_mask=False):
    B, C, H, W = img.shape

    # EncoderImg stand-in: flatten NCHW -> (B, H*W, C) tokens, project to d_model.
    tokens = img.transpose(0, 2, 3, 1).reshape(B, H * W, C)
    mem = pallas_img_encoder(tokens, params["img_w"], params["img_b"])  # (B, H*W, D)

    # Embedding lookup (glue: gather has no clean Pallas fit at this size) + positional enc.
    # TODO(synk): PositionalEncoding source not provided; standard sinusoidal table used.
    S = trg_seq.shape[1]
    x = jnp.take(params["emb"], trg_seq, axis=0) + params["pe"][:S][None]

    for lp in params["layers"]:
        x = pallas_decoder_layer(x, mem, lp, n_heads, causal_mask)

    logits_padded = pallas_projection(x, params["proj_w"])  # (B, S, Vpad), lane-dense store
    return logits_padded[..., :vocab_len]


# ----------------------------- parameter init ------------------------------

def _sinusoid_table(n_position, d):
    pos = np.arange(n_position, dtype=np.float32)[:, None]
    i = np.arange(d, dtype=np.float32)[None, :]
    angle = pos / np.power(10000.0, 2.0 * np.floor(i / 2.0) / d)
    table = np.zeros((n_position, d), dtype=np.float32)
    table[:, 0::2] = np.sin(angle[:, 0::2])
    table[:, 1::2] = np.cos(angle[:, 1::2])
    return jnp.asarray(table)


def init_params(key, *, vocab_len, in_ch, d_model, d_hidden, n_layers, n_position):
    keys = iter(jax.random.split(key, 256))

    def nrm(shape, scale):
        return scale * jax.random.normal(next(keys), shape, jnp.float32)

    s = 1.0 / math.sqrt(d_model)
    layers = []
    for _ in range(n_layers):
        layers.append({
            "sa_wqkv": nrm((d_model, 3 * d_model), s),
            "sa_bqkv": jnp.zeros((1, 3 * d_model), jnp.float32),
            "sa_wo": nrm((d_model, d_model), s),
            "sa_bo": jnp.zeros((1, d_model), jnp.float32),
            "ln1_g": jnp.ones((1, d_model), jnp.float32),
            "ln1_b": jnp.zeros((1, d_model), jnp.float32),
            "ca_wq": nrm((d_model, d_model), s),
            "ca_bq": jnp.zeros((1, d_model), jnp.float32),
            "ca_wkv": nrm((d_model, 2 * d_model), s),
            "ca_bkv": jnp.zeros((1, 2 * d_model), jnp.float32),
            "ca_wo": nrm((d_model, d_model), s),
            "ca_bo": jnp.zeros((1, d_model), jnp.float32),
            "ln2_g": jnp.ones((1, d_model), jnp.float32),
            "ln2_b": jnp.zeros((1, d_model), jnp.float32),
            "w1": nrm((d_model, d_hidden), 1.0 / math.sqrt(d_model)),
            "b1": jnp.zeros((1, d_hidden), jnp.float32),
            "w2": nrm((d_hidden, d_model), 1.0 / math.sqrt(d_hidden)),
            "b2": jnp.zeros((1, d_model), jnp.float32),
            "ln3_g": jnp.ones((1, d_model), jnp.float32),
            "ln3_b": jnp.zeros((1, d_model), jnp.float32),
        })

    # trg_word_prj (bias=False): pad the vocab (output) dim to a multiple of 128 so the
    # logits store is lane-dense; padded columns are zero and sliced off after the kernel.
    vocab_pad = ((vocab_len + 127) // 128) * 128
    proj_w = nrm((d_model, vocab_len), s)
    proj_w = jnp.pad(proj_w, ((0, 0), (0, vocab_pad - vocab_len)))

    return {
        "emb": nrm((vocab_len, d_model), 1.0),   # nn.Embedding default N(0, 1)
        "pe": _sinusoid_table(n_position, d_model),
        "img_w": nrm((in_ch, d_model), 1.0 / math.sqrt(in_ch)),
        "img_b": jnp.zeros((1, d_model), jnp.float32),
        "layers": layers,
        "proj_w": proj_w,
    }


# ----------------------------- main ------------------------------

if __name__ == "__main__":
    B, C, H, W = 2, 4, 16, 16
    S, vocab_len = 8, 50
    d_model = emb_dim = 32        # d_model == emb_dim (asserted in the PyTorch module)
    d_hidden, n_layers, n_heads, n_position = 64, 2, 4, 200

    key = jax.random.PRNGKey(0)
    k_params, k_img, k_seq = jax.random.split(key, 3)

    params = init_params(
        k_params, vocab_len=vocab_len, in_ch=C, d_model=d_model,
        d_hidden=d_hidden, n_layers=n_layers, n_position=n_position,
    )
    img = jax.random.normal(k_img, (B, C, H, W), jnp.float32)
    trg_seq = jax.random.randint(k_seq, (B, S), 0, vocab_len, jnp.int32)

    # default module construction has mask=None -> unmasked decoder attention
    fwd = jax.jit(functools.partial(
        transformer_forward, n_heads=n_heads, vocab_len=vocab_len, causal_mask=False))
    logits = jax.block_until_ready(fwd(params, img, trg_seq))

    assert logits.shape == (B, S, vocab_len), logits.shape
    assert logits.dtype == jnp.float32
    assert bool(jnp.all(jnp.isfinite(logits)))
    print("KERNEL_OK")
</pallas_src>

<mosaic_0001>
module attributes {stable_mosaic.version = 11 : i64} {
  func.func @_img_encoder_kernel(%arg0: i32, %arg1: memref<1x256x4xf32, #tpu.memory_space<vmem>>, %arg2: memref<4x32xf32, #tpu.memory_space<vmem>>, %arg3: memref<1x32xf32, #tpu.memory_space<vmem>>, %arg4: memref<1x256x32xf32, #tpu.memory_space<vmem>>) attributes {dimension_semantics = [#tpu.dimension_semantics<parallel>], iteration_bounds = array<i64: 2>, scalar_prefetch = 0 : i64, scratch_operands = 0 : i64, tpu.core_type = #tpu.core_type<tc>, window_params = [{transform_indices = @transform_0, window_bounds = array<i64: 1, 256, 4>}, {pipeline_mode = #tpu.pipeline_mode<synchronous>, transform_indices = @transform_1, window_bounds = array<i64: 4, 32>}, {pipeline_mode = #tpu.pipeline_mode<synchronous>, transform_indices = @transform_2, window_bounds = array<i64: 1, 32>}, {transform_indices = @transform_3, window_bounds = array<i64: 1, 256, 32>}]} {
    %c0 = arith.constant 0 : index
    %c0_0 = arith.constant 0 : index
    %c0_1 = arith.constant 0 : index
    %0 = vector.load %arg1[%c0, %c0_0, %c0_1] : memref<1x256x4xf32, #tpu.memory_space<vmem>>, vector<1x256x4xf32>
    %1 = vector.shape_cast %0 : vector<1x256x4xf32> to vector<256x4xf32>
    %c0_2 = arith.constant 0 : index
    %c0_3 = arith.constant 0 : index
    %2 = vector.load %arg2[%c0_2, %c0_3] : memref<4x32xf32, #tpu.memory_space<vmem>>, vector<4x32xf32>
    %cst = arith.constant dense<0.000000e+00> : vector<256x32xf32>
    %3 = tpu.matmul %1, %2, %cst {dimension_numbers = #tpu.dot_dimension_numbers<[1], [0], [0], [1], [0, 0, 1, 1], [], []>} : vector<256x4xf32>, vector<4x32xf32>, vector<256x32xf32> -> vector<256x32xf32>
    %c0_4 = arith.constant 0 : index
    %c0_5 = arith.constant 0 : index
    %4 = vector.load %arg3[%c0_4, %c0_5] : memref<1x32xf32, #tpu.memory_space<vmem>>, vector<1x32xf32>
    %5 = vector.broadcast %4 : vector<1x32xf32> to vector<256x32xf32>
    %6 = arith.addf %3, %5 : vector<256x32xf32>
    %c0_6 = arith.constant 0 : index
    %c0_7 = arith.constant 0 : index
    %c0_8 = arith.constant 0 : index
    %7 = vector.load %arg4[%c0_6, %c0_7, %c0_8] : memref<1x256x32xf32, #tpu.memory_space<vmem>>, vector<1x256x32xf32>
    %8 = vector.shape_cast %7 : vector<1x256x32xf32> to vector<256x32xf32>
    %9 = vector.shape_cast %6 : vector<256x32xf32> to vector<1x256x32xf32>
    tpu.vector_store %arg4[%c0_6, %c0_7, %c0_8], %9 {strides = array<i32>} : memref<1x256x32xf32, #tpu.memory_space<vmem>>, vector<1x256x32xf32>,
    return
  }
  func.func @transform_0(%arg0: i32) -> (i32, i32, i32) {
    %c0_i32 = arith.constant 0 : i32
    %c0_i32_0 = arith.constant 0 : i32
    %c0_i32_1 = arith.constant 0 : i32
    return %arg0, %c0_i32, %c0_i32_0 : i32, i32, i32
  }
  func.func @transform_1(%arg0: i32) -> (i32, i32) {
    %c0_i32 = arith.constant 0 : i32
    %c0_i32_0 = arith.constant 0 : i32
    %c0_i32_1 = arith.constant 0 : i32
    return %c0_i32, %c0_i32_0 : i32, i32
  }
  func.func @transform_2(%arg0: i32) -> (i32, i32) {
    %c0_i32 = arith.constant 0 : i32
    %c0_i32_0 = arith.constant 0 : i32
    %c0_i32_1 = arith.constant 0 : i32
    return %c0_i32, %c0_i32_0 : i32, i32
  }
  func.func @transform_3(%arg0: i32) -> (i32, i32, i32) {
    %c0_i32 = arith.constant 0 : i32
    %c0_i32_0 = arith.constant 0 : i32
    %c0_i32_1 = arith.constant 0 : i32
    return %arg0, %c0_i32, %c0_i32_0 : i32, i32, i32
  }
}

module attributes {stable_mosaic.version = 11 : i64} {
  func.func @_projection_kernel(%arg0: i32, %arg1: memref<1x8x32xf32, #tpu.memory_space<vmem>>, %arg2: memref<32x128xf32, #tpu.memory_space<vmem>>, %arg3: memref<1x8x128xf32, #tpu.memory_space<vmem>>) attributes {dimension_semantics = [#tpu.dimension_semantics<parallel>], iteration_bounds = array<i64: 2>, scalar_prefetch = 0 : i64, scratch_operands = 0 : i64, tpu.core_type = #tpu.core_type<tc>, window_params = [{transform_indices = @transform_0, window_bounds = array<i64: 1, 8, 32>}, {pipeline_mode = #tpu.pipeline_mode<synchronous>, transform_indices = @transform_1, window_bounds = array<i64: 32, 128>}, {transform_indices = @transform_2, window_bounds = array<i64: 1, 8, 128>}]} {
    %c0 = arith.constant 0 : index
    %c0_0 = arith.constant 0 : index
    %c0_1 = arith.constant 0 : index
    %0 = vector.load %arg1[%c0, %c0_0, %c0_1] : memref<1x8x32xf32, #tpu.memory_space<vmem>>, vector<1x8x32xf32>
    %1 = vector.shape_cast %0 : vector<1x8x32xf32> to vector<8x32xf32>
    %c0_2 = arith.constant 0 : index
    %c0_3 = arith.constant 0 : index
    %2 = vector.load %arg2[%c0_2, %c0_3] : memref<32x128xf32, #tpu.memory_space<vmem>>, vector<32x128xf32>
    %cst = arith.constant dense<0.000000e+00> : vector<8x128xf32>
    %3 = tpu.matmul %1, %2, %cst {dimension_numbers = #tpu.dot_dimension_numbers<[1], [0], [0], [1], [0, 0, 1, 1], [], []>} : vector<8x32xf32>, vector<32x128xf32>, vector<8x128xf32> -> vector<8x128xf32>
    %c0_4 = arith.constant 0 : index
    %c0_5 = arith.constant 0 : index
    %c0_6 = arith.constant 0 : index
    %4 = vector.load %arg3[%c0_4, %c0_5, %c0_6] : memref<1x8x128xf32, #tpu.memory_space<vmem>>, vector<1x8x128xf32>
    %5 = vector.shape_cast %4 : vector<1x8x128xf32> to vector<8x128xf32>
    %6 = vector.shape_cast %3 : vector<8x128xf32> to vector<1x8x128xf32>
    tpu.vector_store %arg3[%c0_4, %c0_5, %c0_6], %6 {strides = array<i32>} : memref<1x8x128xf32, #tpu.memory_space<vmem>>, vector<1x8x128xf32>,
    return
  }
  func.func @transform_0(%arg0: i32) -> (i32, i32, i32) {
    %c0_i32 = arith.constant 0 : i32
    %c0_i32_0 = arith.constant 0 : i32
    %c0_i32_1 = arith.constant 0 : i32
    return %arg0, %c0_i32, %c0_i32_0 : i32, i32, i32
  }
  func.func @transform_1(%arg0: i32) -> (i32, i32) {
    %c0_i32 = arith.constant 0 : i32
    %c0_i32_0 = arith.constant 0 : i32
    %c0_i32_1 = arith.constant 0 : i32
    return %c0_i32, %c0_i32_0 : i32, i32
  }
  func.func @transform_2(%arg0: i32) -> (i32, i32, i32) {
    %c0_i32 = arith.constant 0 : i32
    %c0_i32_0 = arith.constant 0 : i32
    %c0_i32_1 = arith.constant 0 : i32
    return %arg0, %c0_i32, %c0_i32_0 : i32, i32, i32
  }
}

module attributes {stable_mosaic.version = 11 : i64} {
  func.func @_decoder_layer_kernel(%arg0: i32, %arg1: memref<1x8x32xf32, #tpu.memory_space<vmem>>, %arg2: memref<1x256x32xf32, #tpu.memory_space<vmem>>, %arg3: memref<32x96xf32, #tpu.memory_space<vmem>>, %arg4: memref<1x96xf32, #tpu.memory_space<vmem>>, %arg5: memref<32x32xf32, #tpu.memory_space<vmem>>, %arg6: memref<1x32xf32, #tpu.memory_space<vmem>>, %arg7: memref<1x32xf32, #tpu.memory_space<vmem>>, %arg8: memref<1x32xf32, #tpu.memory_space<vmem>>, %arg9: memref<32x32xf32, #tpu.memory_space<vmem>>, %arg10: memref<1x32xf32, #tpu.memory_space<vmem>>, %arg11: memref<32x64xf32, #tpu.memory_space<vmem>>, %arg12: memref<1x64xf32, #tpu.memory_space<vmem>>, %arg13: memref<32x32xf32, #tpu.memory_space<vmem>>, %arg14: memref<1x32xf32, #tpu.memory_space<vmem>>, %arg15: memref<1x32xf32, #tpu.memory_space<vmem>>, %arg16: memref<1x32xf32, #tpu.memory_space<vmem>>, %arg17: memref<32x64xf32, #tpu.memory_space<vmem>>, %arg18: memref<1x64xf32, #tpu.memory_space<vmem>>, %arg19: memref<64x32xf32, #tpu.memory_space<vmem>>, %arg20: memref<1x32xf32, #tpu.memory_space<vmem>>, %arg21: memref<1x32xf32, #tpu.memory_space<vmem>>, %arg22: memref<1x32xf32, #tpu.memory_space<vmem>>, %arg23: memref<1x8x32xf32, #tpu.memory_space<vmem>>) attributes {dimension_semantics = [#tpu.dimension_semantics<parallel>], iteration_bounds = array<i64: 2>, scalar_prefetch = 0 : i64, scratch_operands = 0 : i64, tpu.core_type = #tpu.core_type<tc>, window_params = [{transform_indices = @transform_0, window_bounds = array<i64: 1, 8, 32>}, {transform_indices = @transform_1, window_bounds = array<i64: 1, 256, 32>}, {pipeline_mode = #tpu.pipeline_mode<synchronous>, transform_indices = @transform_2, window_bounds = array<i64: 32, 96>}, {pipeline_mode = #tpu.pipeline_mode<synchronous>, transform_indices = @transform_3, window_bounds = array<i64: 1, 96>}, {pipeline_mode = #tpu.pipeline_mode<synchronous>, transform_indices = @transform_4, window_bounds = array<i64: 32, 32>}, {pipeline_mode = #tpu.pipeline_mode<synchronous>, transform_indices = @transform_5, window_bounds = array<i64: 1, 32>}, {pipeline_mode = #tpu.pipeline_mode<synchronous>, transform_indices = @transform_6, window_bounds = array<i64: 1, 32>}, {pipeline_mode = #tpu.pipeline_mode<synchronous>, transform_indices = @transform_7, window_bounds = array<i64: 1, 32>}, {pipeline_mode = #tpu.pipeline_mode<synchronous>, transform_indices = @transform_8, window_bounds = array<i64: 32, 32>}, {pipeline_mode = #tpu.pipeline_mode<synchronous>, transform_indices = @transform_9, window_bounds = array<i64: 1, 32>}, {pipeline_mode = #tpu.pipeline_mode<synchronous>, transform_indices = @transform_10, window_bounds = array<i64: 32, 64>}, {pipeline_mode = #tpu.pipeline_mode<synchronous>, transform_indices = @transform_11, window_bounds = array<i64: 1, 64>}, {pipeline_mode = #tpu.pipeline_mode<synchronous>, transform_indices = @transform_12, window_bounds = array<i64: 32, 32>}, {pipeline_mode = #tpu.pipeline_mode<synchronous>, transform_indices = @transform_13, window_bounds = array<i64: 1, 32>}, {pipeline_mode = #tpu.pipeline_mode<synchronous>, transform_indices = @transform_14, window_bounds = array<i64: 1, 32>}, {pipeline_mode = #tpu.pipeline_mode<synchronous>, transform_indices = @transform_15, window_bounds = array<i64: 1, 32>}, {pipeline_mode = #tpu.pipeline_mode<synchronous>, transform_indices = @transform_16, window_bounds = array<i64: 32, 64>}, {pipeline_mode = #tpu.pipeline_mode<synchronous>, transform_indices = @transform_17, window_bounds = array<i64: 1, 64>}, {pipeline_mode = #tpu.pipeline_mode<synchronous>, transform_indices = @transform_18, window_bounds = array<i64: 64, 32>}, {pipeline_mode = #tpu.pipeline_mode<synchronous>, transform_indices = @transform_19, window_bounds = array<i64: 1, 32>}, {pipeline_mode = #tpu.pipeline_mode<synchronous>, transform_indices = @transform_20, window_bounds = array<i64: 1, 32>}, {pipeline_mode = #tpu.pipeline_mode<synchronous>, transform_indices = @transform_21, window_bounds = array<i64: 1, 32>}, {transform_indices = @transform_22, window_bounds = array<i64: 1, 8, 32>}]} {
    %c0 = arith.constant 0 : index
    %c0_0 = arith.constant 0 : index
    %c0_1 = arith.constant 0 : index
    %0 = vector.load %arg1[%c0, %c0_0, %c0_1] : memref<1x8x32xf32, #tpu.memory_space<vmem>>, vector<1x8x32xf32>
    %1 = vector.shape_cast %0 : vector<1x8x32xf32> to vector<8x32xf32>
    %c0_2 = arith.constant 0 : index
    %c0_3 = arith.constant 0 : index
    %c0_4 = arith.constant 0 : index
    %2 = vector.load %arg2[%c0_2, %c0_3, %c0_4] : memref<1x256x32xf32, #tpu.memory_space<vmem>>, vector<1x256x32xf32>
    %3 = vector.shape_cast %2 : vector<1x256x32xf32> to vector<256x32xf32>
    %c0_5 = arith.constant 0 : index
    %c0_6 = arith.constant 0 : index
    %4 = vector.load %arg3[%c0_5, %c0_6] : memref<32x96xf32, #tpu.memory_space<vmem>>, vector<32x96xf32>
    %cst = arith.constant dense<0.000000e+00> : vector<8x96xf32>
    %5 = tpu.matmul %1, %4, %cst {dimension_numbers = #tpu.dot_dimension_numbers<[1], [0], [0], [1], [0, 0, 1, 1], [], []>} : vector<8x32xf32>, vector<32x96xf32>, vector<8x96xf32> -> vector<8x96xf32>
    %c0_7 = arith.constant 0 : index
    %c0_8 = arith.constant 0 : index
    %6 = vector.load %arg4[%c0_7, %c0_8] : memref<1x96xf32, #tpu.memory_space<vmem>>, vector<1x96xf32>
    %7 = vector.broadcast %6 : vector<1x96xf32> to vector<8x96xf32>
    %8 = arith.addf %5, %7 : vector<8x96xf32>
    %9 = vector.extract_strided_slice %8 {offsets = [0, 0], sizes = [8, 32], strides = [1, 1]} : vector<8x96xf32> to vector<8x32xf32>
    %10 = vector.extract_strided_slice %8 {offsets = [0, 32], sizes = [8, 32], strides = [1, 1]} : vector<8x96xf32> to vector<8x32xf32>
    %11 = vector.extract_strided_slice %8 {offsets = [0, 64], sizes = [8, 32], strides = [1, 1]} : vector<8x96xf32> to vector<8x32xf32>
    %c0_9 = arith.constant 0 : index
    %c0_10 = arith.constant 0 : index
    %12 = vector.load %arg5[%c0_9, %c0_10] : memref<32x32xf32, #tpu.memory_space<vmem>>, vector<32x32xf32>
    %c0_11 = arith.constant 0 : index
    %c0_12 = arith.constant 0 : index
    %13 = vector.load %arg6[%c0_11, %c0_12] : memref<1x32xf32, #tpu.memory_space<vmem>>, vector<1x32xf32>
    %14 = vector.extract_strided_slice %9 {offsets = [0, 0], sizes = [8, 8], strides = [1, 1]} : vector<8x32xf32> to vector<8x8xf32>
    %15 = vector.extract_strided_slice %10 {offsets = [0, 0], sizes = [8, 8], strides = [1, 1]} : vector<8x32xf32> to vector<8x8xf32>
    %16 = vector.extract_strided_slice %11 {offsets = [0, 0], sizes = [8, 8], strides = [1, 1]} : vector<8x32xf32> to vector<8x8xf32>
    %cst_13 = arith.constant dense<0.000000e+00> : vector<8x8xf32>
    %17 = tpu.matmul %14, %15, %cst_13 {dimension_numbers = #tpu.dot_dimension_numbers<[1], [1], [0], [0], [0, 0, 1, 0], [], []>} : vector<8x8xf32>, vector<8x8xf32>, vector<8x8xf32> -> vector<8x8xf32>
    %cst_14 = arith.constant 0.353553385 : f32
    %18 = vector.broadcast %cst_14 : f32 to vector<8x8xf32>
    %19 = arith.mulf %17, %18 : vector<8x8xf32>
    %cst_15 = arith.constant dense<0xFF800000> : vector<8xf32>
    %20 = vector.multi_reduction <maximumf>, %19, %cst_15 [1] : vector<8x8xf32> to vector<8xf32>
    %21 = vector.shape_cast %20 : vector<8xf32> to vector<8x1xf32>
    %22 = vector.broadcast %21 : vector<8x1xf32> to vector<8x8xf32>
    %23 = arith.subf %19, %22 : vector<8x8xf32>
    %24 = math.exp %23 : vector<8x8xf32>
    %cst_16 = arith.constant dense<0.000000e+00> : vector<8xf32>
    %25 = vector.multi_reduction <add>, %24, %cst_16 [1] : vector<8x8xf32> to vector<8xf32>
    %26 = vector.shape_cast %25 : vector<8xf32> to vector<8x1xf32>
    %27 = tpu.reciprocal %26 {approx = true} : vector<8x1xf32> -> vector<8x1xf32>
    %28 = vector.broadcast %27 : vector<8x1xf32> to vector<8x8xf32>
    %29 = arith.mulf %24, %28 : vector<8x8xf32>
    %cst_17 = arith.constant dense<0.000000e+00> : vector<8x8xf32>
    %30 = tpu.matmul %29, %16, %cst_17 {dimension_numbers = #tpu.dot_dimension_numbers<[1], [0], [0], [1], [0, 0, 1, 1], [], []>} : vector<8x8xf32>, vector<8x8xf32>, vector<8x8xf32> -> vector<8x8xf32>
    %31 = vector.extract_strided_slice %12 {offsets = [0, 0], sizes = [8, 32], strides = [1, 1]} : vector<32x32xf32> to vector<8x32xf32>
    %cst_18 = arith.constant dense<0.000000e+00> : vector<8x32xf32>
    %32 = tpu.matmul %30, %31, %cst_18 {dimension_numbers = #tpu.dot_dimension_numbers<[1], [0], [0], [1], [0, 0, 1, 1], [], []>} : vector<8x8xf32>, vector<8x32xf32>, vector<8x32xf32> -> vector<8x32xf32>
    %33 = vector.extract_strided_slice %9 {offsets = [0, 8], sizes = [8, 8], strides = [1, 1]} : vector<8x32xf32> to vector<8x8xf32>
    %34 = vector.extract_strided_slice %10 {offsets = [0, 8], sizes = [8, 8], strides = [1, 1]} : vector<8x32xf32> to vector<8x8xf32>
    %35 = vector.extract_strided_slice %11 {offsets = [0, 8], sizes = [8, 8], strides = [1, 1]} : vector<8x32xf32> to vector<8x8xf32>
    %cst_19 = arith.constant dense<0.000000e+00> : vector<8x8xf32>
    %36 = tpu.matmul %33, %34, %cst_19 {dimension_numbers = #tpu.dot_dimension_numbers<[1], [1], [0], [0], [0, 0, 1, 0], [], []>} : vector<8x8xf32>, vector<8x8xf32>, vector<8x8xf32> -> vector<8x8xf32>
    %cst_20 = arith.constant 0.353553385 : f32
    %37 = vector.broadcast %cst_20 : f32 to vector<8x8xf32>
    %38 = arith.mulf %36, %37 : vector<8x8xf32>
    %cst_21 = arith.constant dense<0xFF800000> : vector<8xf32>
    %39 = vector.multi_reduction <maximumf>, %38, %cst_21 [1] : vector<8x8xf32> to vector<8xf32>
    %40 = vector.shape_cast %39 : vector<8xf32> to vector<8x1xf32>
    %41 = vector.broadcast %40 : vector<8x1xf32> to vector<8x8xf32>
    %42 = arith.subf %38, %41 : vector<8x8xf32>
    %43 = math.exp %42 : vector<8x8xf32>
    %cst_22 = arith.constant dense<0.000000e+00> : vector<8xf32>
    %44 = vector.multi_reduction <add>, %43, %cst_22 [1] : vector<8x8xf32> to vector<8xf32>
    %45 = vector.shape_cast %44 : vector<8xf32> to vector<8x1xf32>
    %46 = tpu.reciprocal %45 {approx = true} : vector<8x1xf32> -> vector<8x1xf32>
    %47 = vector.broadcast %46 : vector<8x1xf32> to vector<8x8xf32>
    %48 = arith.mulf %43, %47 : vector<8x8xf32>
    %cst_23 = arith.constant dense<0.000000e+00> : vector<8x8xf32>
    %49 = tpu.matmul %48, %35, %cst_23 {dimension_numbers = #tpu.dot_dimension_numbers<[1], [0], [0], [1], [0, 0, 1, 1], [], []>} : vector<8x8xf32>, vector<8x8xf32>, vector<8x8xf32> -> vector<8x8xf32>
    %50 = vector.extract_strided_slice %12 {offsets = [8, 0], sizes = [8, 32], strides = [1, 1]} : vector<32x32xf32> to vector<8x32xf32>
    %cst_24 = arith.constant dense<0.000000e+00> : vector<8x32xf32>
    %51 = tpu.matmul %49, %50, %cst_24 {dimension_numbers = #tpu.dot_dimension_numbers<[1], [0], [0], [1], [0, 0, 1, 1], [], []>} : vector<8x8xf32>, vector<8x32xf32>, vector<8x32xf32> -> vector<8x32xf32>
    %52 = arith.addf %32, %51 : vector<8x32xf32>
    %53 = vector.extract_strided_slice %9 {offsets = [0, 16], sizes = [8, 8], strides = [1, 1]} : vector<8x32xf32> to vector<8x8xf32>
    %54 = vector.extract_strided_slice %10 {offsets = [0, 16], sizes = [8, 8], strides = [1, 1]} : vector<8x32xf32> to vector<8x8xf32>
    %55 = vector.extract_strided_slice %11 {offsets = [0, 16], sizes = [8, 8], strides = [1, 1]} : vector<8x32xf32> to vector<8x8xf32>
    %cst_25 = arith.constant dense<0.000000e+00> : vector<8x8xf32>
    %56 = tpu.matmul %53, %54, %cst_25 {dimension_numbers = #tpu.dot_dimension_numbers<[1], [1], [0], [0], [0, 0, 1, 0], [], []>} : vector<8x8xf32>, vector<8x8xf32>, vector<8x8xf32> -> vector<8x8xf32>
    %cst_26 = arith.constant 0.353553385 : f32
    %57 = vector.broadcast %cst_26 : f32 to vector<8x8xf32>
    %58 = arith.mulf %56, %57 : vector<8x8xf32>
    %cst_27 = arith.constant dense<0xFF800000> : vector<8xf32>
    %59 = vector.multi_reduction <maximumf>, %58, %cst_27 [1] : vector<8x8xf32> to vector<8xf32>
    %60 = vector.shape_cast %59 : vector<8xf32> to vector<8x1xf32>
    %61 = vector.broadcast %60 : vector<8x1xf32> to vector<8x8xf32>
    %62 = arith.subf %58, %61 : vector<8x8xf32>
    %63 = math.exp %62 : vector<8x8xf32>
    %cst_28 = arith.constant dense<0.000000e+00> : vector<8xf32>
    %64 = vector.multi_reduction <add>, %63, %cst_28 [1] : vector<8x8xf32> to vector<8xf32>
    %65 = vector.shape_cast %64 : vector<8xf32> to vector<8x1xf32>
    %66 = tpu.reciprocal %65 {approx = true} : vector<8x1xf32> -> vector<8x1xf32>
    %67 = vector.broadcast %66 : vector<8x1xf32> to vector<8x8xf32>
    %68 = arith.mulf %63, %67 : vector<8x8xf32>
    %cst_29 = arith.constant dense<0.000000e+00> : vector<8x8xf32>
    %69 = tpu.matmul %68, %55, %cst_29 {dimension_numbers = #tpu.dot_dimension_numbers<[1], [0], [0], [1], [0, 0, 1, 1], [], []>} : vector<8x8xf32>, vector<8x8xf32>, vector<8x8xf32> -> vector<8x8xf32>
    %70 = vector.extract_strided_slice %12 {offsets = [16, 0], sizes = [8, 32], strides = [1, 1]} : vector<32x32xf32> to vector<8x32xf32>
    %cst_30 = arith.constant dense<0.000000e+00> : vector<8x32xf32>
    %71 = tpu.matmul %69, %70, %cst_30 {dimension_numbers = #tpu.dot_dimension_numbers<[1], [0], [0], [1], [0, 0, 1, 1], [], []>} : vector<8x8xf32>, vector<8x32xf32>, vector<8x32xf32> -> vector<8x32xf32>
    %72 = arith.addf %52, %71 : vector<8x32xf32>
    %73 = vector.extract_strided_slice %9 {offsets = [0, 24], sizes = [8, 8], strides = [1, 1]} : vector<8x32xf32> to vector<8x8xf32>
    %74 = vector.extract_strided_slice %10 {offsets = [0, 24], sizes = [8, 8], strides = [1, 1]} : vector<8x32xf32> to vector<8x8xf32>
    %75 = vector.extract_strided_slice %11 {offsets = [0, 24], sizes = [8, 8], strides = [1, 1]} : vector<8x32xf32> to vector<8x8xf32>
    %cst_31 = arith.constant dense<0.000000e+00> : vector<8x8xf32>
    %76 = tpu.matmul %73, %74, %cst_31 {dimension_numbers = #tpu.dot_dimension_numbers<[1], [1], [0], [0], [0, 0, 1, 0], [], []>} : vector<8x8xf32>, vector<8x8xf32>, vector<8x8xf32> -> vector<8x8xf32>
    %cst_32 = arith.constant 0.353553385 : f32
    %77 = vector.broadcast %cst_32 : f32 to vector<8x8xf32>
    %78 = arith.mulf %76, %77 : vector<8x8xf32>
    %cst_33 = arith.constant dense<0xFF800000> : vector<8xf32>
    %79 = vector.multi_reduction <maximumf>, %78, %cst_33 [1] : vector<8x8xf32> to vector<8xf32>
    %80 = vector.shape_cast %79 : vector<8xf32> to vector<8x1xf32>
    %81 = vector.broadcast %80 : vector<8x1xf32> to vector<8x8xf32>
    %82 = arith.subf %78, %81 : vector<8x8xf32>
    %83 = math.exp %82 : vector<8x8xf32>
    %cst_34 = arith.constant dense<0.000000e+00> : vector<8xf32>
    %84 = vector.multi_reduction <add>, %83, %cst_34 [1] : vector<8x8xf32> to vector<8xf32>
    %85 = vector.shape_cast %84 : vector<8xf32> to vector<8x1xf32>
    %86 = tpu.reciprocal %85 {approx = true} : vector<8x1xf32> -> vector<8x1xf32>
    %87 = vector.broadcast %86 : vector<8x1xf32> to vector<8x8xf32>
    %88 = arith.mulf %83, %87 : vector<8x8xf32>
    %cst_35 = arith.constant dense<0.000000e+00> : vector<8x8xf32>
    %89 = tpu.matmul %88, %75, %cst_35 {dimension_numbers = #tpu.dot_dimension_numbers<[1], [0], [0], [1], [0, 0, 1, 1], [], []>} : vector<8x8xf32>, vector<8x8xf32>, vector<8x8xf32> -> vector<8x8xf32>
    %90 = vector.extract_strided_slice %12 {offsets = [24, 0], sizes = [8, 32], strides = [1, 1]} : vector<32x32xf32> to vector<8x32xf32>
    %cst_36 = arith.constant dense<0.000000e+00> : vector<8x32xf32>
    %91 = tpu.matmul %89, %90, %cst_36 {dimension_numbers = #tpu.dot_dimension_numbers<[1], [0], [0], [1], [0, 0, 1, 1], [], []>} : vector<8x8xf32>, vector<8x32xf32>, vector<8x32xf32> -> vector<8x32xf32>
    %92 = arith.addf %72, %91 : vector<8x32xf32>
    %93 = vector.broadcast %13 : vector<1x32xf32> to vector<8x32xf32>
    %94 = arith.addf %92, %93 : vector<8x32xf32>
    %c0_37 = arith.constant 0 : index
    %c0_38 = arith.constant 0 : index
    %95 = vector.load %arg7[%c0_37, %c0_38] : memref<1x32xf32, #tpu.memory_space<vmem>>, vector<1x32xf32>
    %c0_39 = arith.constant 0 : index
    %c0_40 = arith.constant 0 : index
    %96 = vector.load %arg8[%c0_39, %c0_40] : memref<1x32xf32, #tpu.memory_space<vmem>>, vector<1x32xf32>
    %97 = arith.addf %1, %94 : vector<8x32xf32>
    %cst_41 = arith.constant dense<0.000000e+00> : vector<8xf32>
    %98 = vector.multi_reduction <add>, %97, %cst_41 [1] : vector<8x32xf32> to vector<8xf32>
    %99 = vector.shape_cast %98 : vector<8xf32> to vector<8x1xf32>
    %cst_42 = arith.constant 3.200000e+01 : f32
    %100 = vector.broadcast %cst_42 : f32 to vector<8x1xf32>
    %101 = arith.divf %99, %100 : vector<8x1xf32>
    %102 = vector.broadcast %101 : vector<8x1xf32> to vector<8x32xf32>
    %103 = arith.subf %97, %102 : vector<8x32xf32>
    %104 = arith.mulf %103, %103 : vector<8x32xf32>
    %cst_43 = arith.constant dense<0.000000e+00> : vector<8xf32>
    %105 = vector.multi_reduction <add>, %104, %cst_43 [1] : vector<8x32xf32> to vector<8xf32>
    %106 = vector.shape_cast %105 : vector<8xf32> to vector<8x1xf32>
    %cst_44 = arith.constant 3.200000e+01 : f32
    %107 = vector.broadcast %cst_44 : f32 to vector<8x1xf32>
    %108 = arith.divf %106, %107 : vector<8x1xf32>
    %109 = vector.broadcast %101 : vector<8x1xf32> to vector<8x32xf32>
    %110 = arith.subf %97, %109 : vector<8x32xf32>
    %cst_45 = arith.constant 9.99999974E-6 : f32
    %111 = vector.broadcast %cst_45 : f32 to vector<8x1xf32>
    %112 = arith.addf %108, %111 : vector<8x1xf32>
    %113 = math.rsqrt %112 : vector<8x1xf32>
    %114 = vector.broadcast %113 : vector<8x1xf32> to vector<8x32xf32>
    %115 = arith.mulf %110, %114 : vector<8x32xf32>
    %116 = vector.broadcast %95 : vector<1x32xf32> to vector<8x32xf32>
    %117 = arith.mulf %115, %116 : vector<8x32xf32>
    %118 = vector.broadcast %96 : vector<1x32xf32> to vector<8x32xf32>
    %119 = arith.addf %117, %118 : vector<8x32xf32>
    %c0_46 = arith.constant 0 : index
    %c0_47 = arith.constant 0 : index
    %120 = vector.load %arg9[%c0_46, %c0_47] : memref<32x32xf32, #tpu.memory_space<vmem>>, vector<32x32xf32>
    %cst_48 = arith.constant dense<0.000000e+00> : vector<8x32xf32>
    %121 = tpu.matmul %119, %120, %cst_48 {dimension_numbers = #tpu.dot_dimension_numbers<[1], [0], [0], [1], [0, 0, 1, 1], [], []>} : vector<8x32xf32>, vector<32x32xf32>, vector<8x32xf32> -> vector<8x32xf32>
    %c0_49 = arith.constant 0 : index
    %c0_50 = arith.constant 0 : index
    %122 = vector.load %arg10[%c0_49, %c0_50] : memref<1x32xf32, #tpu.memory_space<vmem>>, vector<1x32xf32>
    %123 = vector.broadcast %122 : vector<1x32xf32> to vector<8x32xf32>
    %124 = arith.addf %121, %123 : vector<8x32xf32>
    %c0_51 = arith.constant 0 : index
    %c0_52 = arith.constant 0 : index
    %125 = vector.load %arg11[%c0_51, %c0_52] : memref<32x64xf32, #tpu.memory_space<vmem>>, vector<32x64xf32>
    %cst_53 = arith.constant dense<0.000000e+00> : vector<256x64xf32>
    %126 = tpu.matmul %3, %125, %cst_53 {dimension_numbers = #tpu.dot_dimension_numbers<[1], [0], [0], [1], [0, 0, 1, 1], [], []>} : vector<256x32xf32>, vector<32x64xf32>, vector<256x64xf32> -> vector<256x64xf32>
    %c0_54 = arith.constant 0 : index
    %c0_55 = arith.constant 0 : index
    %127 = vector.load %arg12[%c0_54, %c0_55] : memref<1x64xf32, #tpu.memory_space<vmem>>, vector<1x64xf32>
    %128 = vector.broadcast %127 : vector<1x64xf32> to vector<256x64xf32>
    %129 = arith.addf %126, %128 : vector<256x64xf32>
    %130 = vector.extract_strided_slice %129 {offsets = [0, 0], sizes = [256, 32], strides = [1, 1]} : vector<256x64xf32> to vector<256x32xf32>
    %131 = vector.extract_strided_slice %129 {offsets = [0, 32], sizes = [256, 32], strides = [1, 1]} : vector<256x64xf32> to vector<256x32xf32>
    %c0_56 = arith.constant 0 : index
    %c0_57 = arith.constant 0 : index
    %132 = vector.load %arg13[%c0_56, %c0_57] : memref<32x32xf32, #tpu.memory_space<vmem>>, vector<32x32xf32>
    %c0_58 = arith.constant 0 : index
    %c0_59 = arith.constant 0 : index
    %133 = vector.load %arg14[%c0_58, %c0_59] : memref<1x32xf32, #tpu.memory_space<vmem>>, vector<1x32xf32>
    %134 = vector.extract_strided_slice %124 {offsets = [0, 0], sizes = [8, 8], strides = [1, 1]} : vector<8x32xf32> to vector<8x8xf32>
    %135 = vector.extract_strided_slice %130 {offsets = [0, 0], sizes = [256, 8], strides = [1, 1]} : vector<256x32xf32> to vector<256x8xf32>
    %136 = vector.extract_strided_slice %131 {offsets = [0, 0], sizes = [256, 8], strides = [1, 1]} : vector<256x32xf32> to vector<256x8xf32>
    %cst_60 = arith.constant dense<0.000000e+00> : vector<8x256xf32>
    %137 = tpu.matmul %134, %135, %cst_60 {dimension_numbers = #tpu.dot_dimension_numbers<[1], [1], [0], [0], [0, 0, 1, 0], [], []>} : vector<8x8xf32>, vector<256x8xf32>, vector<8x256xf32> -> vector<8x256xf32>
    %cst_61 = arith.constant 0.353553385 : f32
    %138 = vector.broadcast %cst_61 : f32 to vector<8x256xf32>
    %139 = arith.mulf %137, %138 : vector<8x256xf32>
    %cst_62 = arith.constant dense<0xFF800000> : vector<8xf32>
    %140 = vector.multi_reduction <maximumf>, %139, %cst_62 [1] : vector<8x256xf32> to vector<8xf32>
    %141 = vector.shape_cast %140 : vector<8xf32> to vector<8x1xf32>
    %142 = vector.broadcast %141 : vector<8x1xf32> to vector<8x256xf32>
    %143 = arith.subf %139, %142 : vector<8x256xf32>
    %144 = math.exp %143 : vector<8x256xf32>
    %cst_63 = arith.constant dense<0.000000e+00> : vector<8xf32>
    %145 = vector.multi_reduction <add>, %144, %cst_63 [1] : vector<8x256xf32> to vector<8xf32>
    %146 = vector.shape_cast %145 : vector<8xf32> to vector<8x1xf32>
    %147 = tpu.reciprocal %146 {approx = true} : vector<8x1xf32> -> vector<8x1xf32>
    %148 = vector.broadcast %147 : vector<8x1xf32> to vector<8x256xf32>
    %149 = arith.mulf %144, %148 : vector<8x256xf32>
    %cst_64 = arith.constant dense<0.000000e+00> : vector<8x8xf32>
    %150 = tpu.matmul %149, %136, %cst_64 {dimension_numbers = #tpu.dot_dimension_numbers<[1], [0], [0], [1], [0, 0, 1, 1], [], []>} : vector<8x256xf32>, vector<256x8xf32>, vector<8x8xf32> -> vector<8x8xf32>
    %151 = vector.extract_strided_slice %132 {offsets = [0, 0], sizes = [8, 32], strides = [1, 1]} : vector<32x32xf32> to vector<8x32xf32>
    %cst_65 = arith.constant dense<0.000000e+00> : vector<8x32xf32>
    %152 = tpu.matmul %150, %151, %cst_65 {dimension_numbers = #tpu.dot_dimension_numbers<[1], [0], [0], [1], [0, 0, 1, 1], [], []>} : vector<8x8xf32>, vector<8x32xf32>, vector<8x32xf32> -> vector<8x32xf32>
    %153 = vector.extract_strided_slice %124 {offsets = [0, 8], sizes = [8, 8], strides = [1, 1]} : vector<8x32xf32> to vector<8x8xf32>
    %154 = vector.extract_strided_slice %130 {offsets = [0, 8], sizes = [256, 8], strides = [1, 1]} : vector<256x32xf32> to vector<256x8xf32>
    %155 = vector.extract_strided_slice %131 {offsets = [0, 8], sizes = [256, 8], strides = [1, 1]} : vector<256x32xf32> to vector<256x8xf32>
    %cst_66 = arith.constant dense<0.000000e+00> : vector<8x256xf32>
    %156 = tpu.matmul %153, %154, %cst_66 {dimension_numbers = #tpu.dot_dimension_numbers<[1], [1], [0], [0], [0, 0, 1, 0], [], []>} : vector<8x8xf32>, vector<256x8xf32>, vector<8x256xf32> -> vector<8x256xf32>
    %cst_67 = arith.constant 0.353553385 : f32
    %157 = vector.broadcast %cst_67 : f32 to vector<8x256xf32>
    %158 = arith.mulf %156, %157 : vector<8x256xf32>
    %cst_68 = arith.constant dense<0xFF800000> : vector<8xf32>
    %159 = vector.multi_reduction <maximumf>, %158, %cst_68 [1] : vector<8x256xf32> to vector<8xf32>
    %160 = vector.shape_cast %159 : vector<8xf32> to vector<8x1xf32>
    %161 = vector.broadcast %160 : vector<8x1xf32> to vector<8x256xf32>
    %162 = arith.subf %158, %161 : vector<8x256xf32>
    %163 = math.exp %162 : vector<8x256xf32>
    %cst_69 = arith.constant dense<0.000000e+00> : vector<8xf32>
    %164 = vector.multi_reduction <add>, %163, %cst_69 [1] : vector<8x256xf32> to vector<8xf32>
    %165 = vector.shape_cast %164 : vector<8xf32> to vector<8x1xf32>
    %166 = tpu.reciprocal %165 {approx = true} : vector<8x1xf32> -> vector<8x1xf32>
    %167 = vector.broadcast %166 : vector<8x1xf32> to vector<8x256xf32>
    %168 = arith.mulf %163, %167 : vector<8x256xf32>
    %cst_70 = arith.constant dense<0.000000e+00> : vector<8x8xf32>
    %169 = tpu.matmul %168, %155, %cst_70 {dimension_numbers = #tpu.dot_dimension_numbers<[1], [0], [0], [1], [0, 0, 1, 1], [], []>} : vector<8x256xf32>, vector<256x8xf32>, vector<8x8xf32> -> vector<8x8xf32>
    %170 = vector.extract_strided_slice %132 {offsets = [8, 0], sizes = [8, 32], strides = [1, 1]} : vector<32x32xf32> to vector<8x32xf32>
    %cst_71 = arith.constant dense<0.000000e+00> : vector<8x32xf32>
    %171 = tpu.matmul %169, %170, %cst_71 {dimension_numbers = #tpu.dot_dimension_numbers<[1], [0], [0], [1], [0, 0, 1, 1], [], []>} : vector<8x8xf32>, vector<8x32xf32>, vector<8x32xf32> -> vector<8x32xf32>
    %172 = arith.addf %152, %171 : vector<8x32xf32>
    %173 = vector.extract_strided_slice %124 {offsets = [0, 16], sizes = [8, 8], strides = [1, 1]} : vector<8x32xf32> to vector<8x8xf32>
    %174 = vector.extract_strided_slice %130 {offsets = [0, 16], sizes = [256, 8], strides = [1, 1]} : vector<256x32xf32> to vector<256x8xf32>
    %175 = vector.extract_strided_slice %131 {offsets = [0, 16], sizes = [256, 8], strides = [1, 1]} : vector<256x32xf32> to vector<256x8xf32>
    %cst_72 = arith.constant dense<0.000000e+00> : vector<8x256xf32>
    %176 = tpu.matmul %173, %174, %cst_72 {dimension_numbers = #tpu.dot_dimension_numbers<[1], [1], [0], [0], [0, 0, 1, 0], [], []>} : vector<8x8xf32>, vector<256x8xf32>, vector<8x256xf32> -> vector<8x256xf32>
    %cst_73 = arith.constant 0.353553385 : f32
    %177 = vector.broadcast %cst_73 : f32 to vector<8x256xf32>
    %178 = arith.mulf %176, %177 : vector<8x256xf32>
    %cst_74 = arith.constant dense<0xFF800000> : vector<8xf32>
    %179 = vector.multi_reduction <maximumf>, %178, %cst_74 [1] : vector<8x256xf32> to vector<8xf32>
    %180 = vector.shape_cast %179 : vector<8xf32> to vector<8x1xf32>
    %181 = vector.broadcast %180 : vector<8x1xf32> to vector<8x256xf32>
    %182 = arith.subf %178, %181 : vector<8x256xf32>
    %183 = math.exp %182 : vector<8x256xf32>
    %cst_75 = arith.constant dense<0.000000e+00> : vector<8xf32>
    %184 = vector.multi_reduction <add>, %183, %cst_75 [1] : vector<8x256xf32> to vector<8xf32>
    %185 = vector.shape_cast %184 : vector<8xf32> to vector<8x1xf32>
    %186 = tpu.reciprocal %185 {approx = true} : vector<8x1xf32> -> vector<8x1xf32>
    %187 = vector.broadcast %186 : vector<8x1xf32> to vector<8x256xf32>
    %188 = arith.mulf %183, %187 : vector<8x256xf32>
    %cst_76 = arith.constant dense<0.000000e+00> : vector<8x8xf32>
    %189 = tpu.matmul %188, %175, %cst_76 {dimension_numbers = #tpu.dot_dimension_numbers<[1], [0], [0], [1], [0, 0, 1, 1], [], []>} : vector<8x256xf32>, vector<256x8xf32>, vector<8x8xf32> -> vector<8x8xf32>
    %190 = vector.extract_strided_slice %132 {offsets = [16, 0], sizes = [8, 32], strides = [1, 1]} : vector<32x32xf32> to vector<8x32xf32>
    %cst_77 = arith.constant dense<0.000000e+00> : vector<8x32xf32>
    %191 = tpu.matmul %189, %190, %cst_77 {dimension_numbers = #tpu.dot_dimension_numbers<[1], [0], [0], [1], [0, 0, 1, 1], [], []>} : vector<8x8xf32>, vector<8x32xf32>, vector<8x32xf32> -> vector<8x32xf32>
    %192 = arith.addf %172, %191 : vector<8x32xf32>
    %193 = vector.extract_strided_slice %124 {offsets = [0, 24], sizes = [8, 8], strides = [1, 1]} : vector<8x32xf32> to vector<8x8xf32>
    %194 = vector.extract_strided_slice %130 {offsets = [0, 24], sizes = [256, 8], strides = [1, 1]} : vector<256x32xf32> to vector<256x8xf32>
    %195 = vector.extract_strided_slice %131 {offsets = [0, 24], sizes = [256, 8], strides = [1, 1]} : vector<256x32xf32> to vector<256x8xf32>
    %cst_78 = arith.constant dense<0.000000e+00> : vector<8x256xf32>
    %196 = tpu.matmul %193, %194, %cst_78 {dimension_numbers = #tpu.dot_dimension_numbers<[1], [1], [0], [0], [0, 0, 1, 0], [], []>} : vector<8x8xf32>, vector<256x8xf32>, vector<8x256xf32> -> vector<8x256xf32>
    %cst_79 = arith.constant 0.353553385 : f32
    %197 = vector.broadcast %cst_79 : f32 to vector<8x256xf32>
    %198 = arith.mulf %196, %197 : vector<8x256xf32>
    %cst_80 = arith.constant dense<0xFF800000> : vector<8xf32>
    %199 = vector.multi_reduction <maximumf>, %198, %cst_80 [1] : vector<8x256xf32> to vector<8xf32>
    %200 = vector.shape_cast %199 : vector<8xf32> to vector<8x1xf32>
    %201 = vector.broadcast %200 : vector<8x1xf32> to vector<8x256xf32>
    %202 = arith.subf %198, %201 : vector<8x256xf32>
    %203 = math.exp %202 : vector<8x256xf32>
    %cst_81 = arith.constant dense<0.000000e+00> : vector<8xf32>
    %204 = vector.multi_reduction <add>, %203, %cst_81 [1] : vector<8x256xf32> to vector<8xf32>
    %205 = vector.shape_cast %204 : vector<8xf32> to vector<8x1xf32>
    %206 = tpu.reciprocal %205 {approx = true} : vector<8x1xf32> -> vector<8x1xf32>
    %207 = vector.broadcast %206 : vector<8x1xf32> to vector<8x256xf32>
    %208 = arith.mulf %203, %207 : vector<8x256xf32>
    %cst_82 = arith.constant dense<0.000000e+00> : vector<8x8xf32>
    %209 = tpu.matmul %208, %195, %cst_82 {dimension_numbers = #tpu.dot_dimension_numbers<[1], [0], [0], [1], [0, 0, 1, 1], [], []>} : vector<8x256xf32>, vector<256x8xf32>, vector<8x8xf32> -> vector<8x8xf32>
    %210 = vector.extract_strided_slice %132 {offsets = [24, 0], sizes = [8, 32], strides = [1, 1]} : vector<32x32xf32> to vector<8x32xf32>
    %cst_83 = arith.constant dense<0.000000e+00> : vector<8x32xf32>
    %211 = tpu.matmul %209, %210, %cst_83 {dimension_numbers = #tpu.dot_dimension_numbers<[1], [0], [0], [1], [0, 0, 1, 1], [], []>} : vector<8x8xf32>, vector<8x32xf32>, vector<8x32xf32> -> vector<8x32xf32>
    %212 = arith.addf %192, %211 : vector<8x32xf32>
    %213 = vector.broadcast %133 : vector<1x32xf32> to vector<8x32xf32>
    %214 = arith.addf %212, %213 : vector<8x32xf32>
    %c0_84 = arith.constant 0 : index
    %c0_85 = arith.constant 0 : index
    %215 = vector.load %arg15[%c0_84, %c0_85] : memref<1x32xf32, #tpu.memory_space<vmem>>, vector<1x32xf32>
    %c0_86 = arith.constant 0 : index
    %c0_87 = arith.constant 0 : index
    %216 = vector.load %arg16[%c0_86, %c0_87] : memref<1x32xf32, #tpu.memory_space<vmem>>, vector<1x32xf32>
    %217 = arith.addf %119, %214 : vector<8x32xf32>
    %cst_88 = arith.constant dense<0.000000e+00> : vector<8xf32>
    %218 = vector.multi_reduction <add>, %217, %cst_88 [1] : vector<8x32xf32> to vector<8xf32>
    %219 = vector.shape_cast %218 : vector<8xf32> to vector<8x1xf32>
    %cst_89 = arith.constant 3.200000e+01 : f32
    %220 = vector.broadcast %cst_89 : f32 to vector<8x1xf32>
    %221 = arith.divf %219, %220 : vector<8x1xf32>
    %222 = vector.broadcast %221 : vector<8x1xf32> to vector<8x32xf32>
    %223 = arith.subf %217, %222 : vector<8x32xf32>
    %224 = arith.mulf %223, %223 : vector<8x32xf32>
    %cst_90 = arith.constant dense<0.000000e+00> : vector<8xf32>
    %225 = vector.multi_reduction <add>, %224, %cst_90 [1] : vector<8x32xf32> to vector<8xf32>
    %226 = vector.shape_cast %225 : vector<8xf32> to vector<8x1xf32>
    %cst_91 = arith.constant 3.200000e+01 : f32
    %227 = vector.broadcast %cst_91 : f32 to vector<8x1xf32>
    %228 = arith.divf %226, %227 : vector<8x1xf32>
    %229 = vector.broadcast %221 : vector<8x1xf32> to vector<8x32xf32>
    %230 = arith.subf %217, %229 : vector<8x32xf32>
    %cst_92 = arith.constant 9.99999974E-6 : f32
    %231 = vector.broadcast %cst_92 : f32 to vector<8x1xf32>
    %232 = arith.addf %228, %231 : vector<8x1xf32>
    %233 = math.rsqrt %232 : vector<8x1xf32>
    %234 = vector.broadcast %233 : vector<8x1xf32> to vector<8x32xf32>
    %235 = arith.mulf %230, %234 : vector<8x32xf32>
    %236 = vector.broadcast %215 : vector<1x32xf32> to vector<8x32xf32>
    %237 = arith.mulf %235, %236 : vector<8x32xf32>
    %238 = vector.broadcast %216 : vector<1x32xf32> to vector<8x32xf32>
    %239 = arith.addf %237, %238 : vector<8x32xf32>
    %c0_93 = arith.constant 0 : index
    %c0_94 = arith.constant 0 : index
    %240 = vector.load %arg17[%c0_93, %c0_94] : memref<32x64xf32, #tpu.memory_space<vmem>>, vector<32x64xf32>
    %cst_95 = arith.constant dense<0.000000e+00> : vector<8x64xf32>
    %241 = tpu.matmul %239, %240, %cst_95 {dimension_numbers = #tpu.dot_dimension_numbers<[1], [0], [0], [1], [0, 0, 1, 1], [], []>} : vector<8x32xf32>, vector<32x64xf32>, vector<8x64xf32> -> vector<8x64xf32>
    %c0_96 = arith.constant 0 : index
    %c0_97 = arith.constant 0 : index
    %242 = vector.load %arg18[%c0_96, %c0_97] : memref<1x64xf32, #tpu.memory_space<vmem>>, vector<1x64xf32>
    %243 = vector.broadcast %242 : vector<1x64xf32> to vector<8x64xf32>
    %244 = arith.addf %241, %243 : vector<8x64xf32>
    %cst_98 = arith.constant 0.000000e+00 : f32
    %245 = vector.broadcast %cst_98 : f32 to vector<8x64xf32>
    %246 = arith.maximumf %244, %245 : vector<8x64xf32>
    %c0_99 = arith.constant 0 : index
    %c0_100 = arith.constant 0 : index
    %247 = vector.load %arg19[%c0_99, %c0_100] : memref<64x32xf32, #tpu.memory_space<vmem>>, vector<64x32xf32>
    %cst_101 = arith.constant dense<0.000000e+00> : vector<8x32xf32>
    %248 = tpu.matmul %246, %247, %cst_101 {dimension_numbers = #tpu.dot_dimension_numbers<[1], [0], [0], [1], [0, 0, 1, 1], [], []>} : vector<8x64xf32>, vector<64x32xf32>, vector<8x32xf32> -> vector<8x32xf32>
    %c0_102 = arith.constant 0 : index
    %c0_103 = arith.constant 0 : index
    %249 = vector.load %arg20[%c0_102, %c0_103] : memref<1x32xf32, #tpu.memory_space<vmem>>, vector<1x32xf32>
    %250 = vector.broadcast %249 : vector<1x32xf32> to vector<8x32xf32>
    %251 = arith.addf %248, %250 : vector<8x32xf32>
    %c0_104 = arith.constant 0 : index
    %c0_105 = arith.constant 0 : index
    %252 = vector.load %arg21[%c0_104, %c0_105] : memref<1x32xf32, #tpu.memory_space<vmem>>, vector<1x32xf32>
    %c0_106 = arith.constant 0 : index
    %c0_107 = arith.constant 0 : index
    %253 = vector.load %arg22[%c0_106, %c0_107] : memref<1x32xf32, #tpu.memory_space<vmem>>, vector<1x32xf32>
    %254 = arith.addf %239, %251 : vector<8x32xf32>
    %cst_108 = arith.constant dense<0.000000e+00> : vector<8xf32>
    %255 = vector.multi_reduction <add>, %254, %cst_108 [1] : vector<8x32xf32> to vector<8xf32>
    %256 = vector.shape_cast %255 : vector<8xf32> to vector<8x1xf32>
    %cst_109 = arith.constant 3.200000e+01 : f32
    %257 = vector.broadcast %cst_109 : f32 to vector<8x1xf32>
    %258 = arith.divf %256, %257 : vector<8x1xf32>
    %259 = vector.broadcast %258 : vector<8x1xf32> to vector<8x32xf32>
    %260 = arith.subf %254, %259 : vector<8x32xf32>
    %261 = arith.mulf %260, %260 : vector<8x32xf32>
    %cst_110 = arith.constant dense<0.000000e+00> : vector<8xf32>
    %262 = vector.multi_reduction <add>, %261, %cst_110 [1] : vector<8x32xf32> to vector<8xf32>
    %263 = vector.shape_cast %262 : vector<8xf32> to vector<8x1xf32>
    %cst_111 = arith.constant 3.200000e+01 : f32
    %264 = vector.broadcast %cst_111 : f32 to vector<8x1xf32>
    %265 = arith.divf %263, %264 : vector<8x1xf32>
    %266 = vector.broadcast %258 : vector<8x1xf32> to vector<8x32xf32>
    %267 = arith.subf %254, %266 : vector<8x32xf32>
    %cst_112 = arith.constant 9.99999974E-6 : f32
    %268 = vector.broadcast %cst_112 : f32 to vector<8x1xf32>
    %269 = arith.addf %265, %268 : vector<8x1xf32>
    %270 = math.rsqrt %269 : vector<8x1xf32>
    %271 = vector.broadcast %270 : vector<8x1xf32> to vector<8x32xf32>
    %272 = arith.mulf %267, %271 : vector<8x32xf32>
    %273 = vector.broadcast %252 : vector<1x32xf32> to vector<8x32xf32>
    %274 = arith.mulf %272, %273 : vector<8x32xf32>
    %275 = vector.broadcast %253 : vector<1x32xf32> to vector<8x32xf32>
    %276 = arith.addf %274, %275 : vector<8x32xf32>
    %c0_113 = arith.constant 0 : index
    %c0_114 = arith.constant 0 : index
    %c0_115 = arith.constant 0 : index
    %277 = vector.load %arg23[%c0_113, %c0_114, %c0_115] : memref<1x8x32xf32, #tpu.memory_space<vmem>>, vector<1x8x32xf32>
    %278 = vector.shape_cast %277 : vector<1x8x32xf32> to vector<8x32xf32>
    %279 = vector.shape_cast %276 : vector<8x32xf32> to vector<1x8x32xf32>
    tpu.vector_store %arg23[%c0_113, %c0_114, %c0_115], %279 {strides = array<i32>} : memref<1x8x32xf32, #tpu.memory_space<vmem>>, vector<1x8x32xf32>,
    return
  }
  func.func @transform_0(%arg0: i32) -> (i32, i32, i32) {
    %c0_i32 = arith.constant 0 : i32
    %c0_i32_0 = arith.constant 0 : i32
    %c0_i32_1 = arith.constant 0 : i32
    return %arg0, %c0_i32, %c0_i32_0 : i32, i32, i32
  }
  func.func @transform_1(%arg0: i32) -> (i32, i32, i32) {
    %c0_i32 = arith.constant 0 : i32
    %c0_i32_0 = arith.constant 0 : i32
    %c0_i32_1 = arith.constant 0 : i32
    return %arg0, %c0_i32, %c0_i32_0 : i32, i32, i32
  }
  func.func @transform_2(%arg0: i32) -> (i32, i32) {
    %c0_i32 = arith.constant 0 : i32
    %c0_i32_0 = arith.constant 0 : i32
    %c0_i32_1 = arith.constant 0 : i32
    return %c0_i32, %c0_i32_0 : i32, i32
  }
  func.func @transform_3(%arg0: i32) -> (i32, i32) {
    %c0_i32 = arith.constant 0 : i32
    %c0_i32_0 = arith.constant 0 : i32
    %c0_i32_1 = arith.constant 0 : i32
    return %c0_i32, %c0_i32_0 : i32, i32
  }
  func.func @transform_4(%arg0: i32) -> (i32, i32) {
    %c0_i32 = arith.constant 0 : i32
    %c0_i32_0 = arith.constant 0 : i32
    %c0_i32_1 = arith.constant 0 : i32
    return %c0_i32, %c0_i32_0 : i32, i32
  }
  func.func @transform_5(%arg0: i32) -> (i32, i32) {
    %c0_i32 = arith.constant 0 : i32
    %c0_i32_0 = arith.constant 0 : i32
    %c0_i32_1 = arith.constant 0 : i32
    return %c0_i32, %c0_i32_0 : i32, i32
  }
  func.func @transform_6(%arg0: i32) -> (i32, i32) {
    %c0_i32 = arith.constant 0 : i32
    %c0_i32_0 = arith.constant 0 : i32
    %c0_i32_1 = arith.constant 0 : i32
    return %c0_i32, %c0_i32_0 : i32, i32
  }
  func.func @transform_7(%arg0: i32) -> (i32, i32) {
    %c0_i32 = arith.constant 0 : i32
    %c0_i32_0 = arith.constant 0 : i32
    %c0_i32_1 = arith.constant 0 : i32
    return %c0_i32, %c0_i32_0 : i32, i32
  }
  func.func @transform_8(%arg0: i32) -> (i32, i32) {
    %c0_i32 = arith.constant 0 : i32
    %c0_i32_0 = arith.constant 0 : i32
    %c0_i32_1 = arith.constant 0 : i32
    return %c0_i32, %c0_i32_0 : i32, i32
  }
  func.func @transform_9(%arg0: i32) -> (i32, i32) {
    %c0_i32 = arith.constant 0 : i32
    %c0_i32_0 = arith.constant 0 : i32
    %c0_i32_1 = arith.constant 0 : i32
    return %c0_i32, %c0_i32_0 : i32, i32
  }
  func.func @transform_10(%arg0: i32) -> (i32, i32) {
    %c0_i32 = arith.constant 0 : i32
    %c0_i32_0 = arith.constant 0 : i32
    %c0_i32_1 = arith.constant 0 : i32
    return %c0_i32, %c0_i32_0 : i32, i32
  }
  func.func @transform_11(%arg0: i32) -> (i32, i32) {
    %c0_i32 = arith.constant 0 : i32
    %c0_i32_0 = arith.constant 0 : i32
    %c0_i32_1 = arith.constant 0 : i32
    return %c0_i32, %c0_i32_0 : i32, i32
  }
  func.func @transform_12(%arg0: i32) -> (i32, i32) {
    %c0_i32 = arith.constant 0 : i32
    %c0_i32_0 = arith.constant 0 : i32
    %c0_i32_1 = arith.constant 0 : i32
    return %c0_i32, %c0_i32_0 : i32, i32
  }
  func.func @transform_13(%arg0: i32) -> (i32, i32) {
    %c0_i32 = arith.constant 0 : i32
    %c0_i32_0 = arith.constant 0 : i32
    %c0_i32_1 = arith.constant 0 : i32
    return %c0_i32, %c0_i32_0 : i32, i32
  }
  func.func @transform_14(%arg0: i32) -> (i32, i32) {
    %c0_i32 = arith.constant 0 : i32
    %c0_i32_0 = arith.constant 0 : i32
    %c0_i32_1 = arith.constant 0 : i32
    return %c0_i32, %c0_i32_0 : i32, i32
  }
  func.func @transform_15(%arg0: i32) -> (i32, i32) {
    %c0_i32 = arith.constant 0 : i32
    %c0_i32_0 = arith.constant 0 : i32
    %c0_i32_1 = arith.constant 0 : i32
    return %c0_i32, %c0_i32_0 : i32, i32
  }
  func.func @transform_16(%arg0: i32) -> (i32, i32) {
    %c0_i32 = arith.constant 0 : i32
    %c0_i32_0 = arith.constant 0 : i32
    %c0_i32_1 = arith.constant 0 : i32
    return %c0_i32, %c0_i32_0 : i32, i32
  }
  func.func @transform_17(%arg0: i32) -> (i32, i32) {
    %c0_i32 = arith.constant 0 : i32
    %c0_i32_0 = arith.constant 0 : i32
    %c0_i32_1 = arith.constant 0 : i32
    return %c0_i32, %c0_i32_0 : i32, i32
  }
  func.func @transform_18(%arg0: i32) -> (i32, i32) {
    %c0_i32 = arith.constant 0 : i32
    %c0_i32_0 = arith.constant 0 : i32
    %c0_i32_1 = arith.constant 0 : i32
    return %c0_i32, %c0_i32_0 : i32, i32
  }
  func.func @transform_19(%arg0: i32) -> (i32, i32) {
    %c0_i32 = arith.constant 0 : i32
    %c0_i32_0 = arith.constant 0 : i32
    %c0_i32_1 = arith.constant 0 : i32
    return %c0_i32, %c0_i32_0 : i32, i32
  }
  func.func @transform_20(%arg0: i32) -> (i32, i32) {
    %c0_i32 = arith.constant 0 : i32
    %c0_i32_0 = arith.constant 0 : i32
    %c0_i32_1 = arith.constant 0 : i32
    return %c0_i32, %c0_i32_0 : i32, i32
  }
  func.func @transform_21(%arg0: i32) -> (i32, i32) {
    %c0_i32 = arith.constant 0 : i32
    %c0_i32_0 = arith.constant 0 : i32
    %c0_i32_1 = arith.constant 0 : i32
    return %c0_i32, %c0_i32_0 : i32, i32
  }
  func.func @transform_22(%arg0: i32) -> (i32, i32, i32) {
    %c0_i32 = arith.constant 0 : i32
    %c0_i32_0 = arith.constant 0 : i32
    %c0_i32_1 = arith.constant 0 : i32
    return %arg0, %c0_i32, %c0_i32_0 : i32, i32, i32
  }
}

module attributes {stable_mosaic.version = 11 : i64} {
  func.func @_decoder_layer_kernel(%arg0: i32, %arg1: memref<1x8x32xf32, #tpu.memory_space<vmem>>, %arg2: memref<1x256x32xf32, #tpu.memory_space<vmem>>, %arg3: memref<32x96xf32, #tpu.memory_space<vmem>>, %arg4: memref<1x96xf32, #tpu.memory_space<vmem>>, %arg5: memref<32x32xf32, #tpu.memory_space<vmem>>, %arg6: memref<1x32xf32, #tpu.memory_space<vmem>>, %arg7: memref<1x32xf32, #tpu.memory_space<vmem>>, %arg8: memref<1x32xf32, #tpu.memory_space<vmem>>, %arg9: memref<32x32xf32, #tpu.memory_space<vmem>>, %arg10: memref<1x32xf32, #tpu.memory_space<vmem>>, %arg11: memref<32x64xf32, #tpu.memory_space<vmem>>, %arg12: memref<1x64xf32, #tpu.memory_space<vmem>>, %arg13: memref<32x32xf32, #tpu.memory_space<vmem>>, %arg14: memref<1x32xf32, #tpu.memory_space<vmem>>, %arg15: memref<1x32xf32, #tpu.memory_space<vmem>>, %arg16: memref<1x32xf32, #tpu.memory_space<vmem>>, %arg17: memref<32x64xf32, #tpu.memory_space<vmem>>, %arg18: memref<1x64xf32, #tpu.memory_space<vmem>>, %arg19: memref<64x32xf32, #tpu.memory_space<vmem>>, %arg20: memref<1x32xf32, #tpu.memory_space<vmem>>, %arg21: memref<1x32xf32, #tpu.memory_space<vmem>>, %arg22: memref<1x32xf32, #tpu.memory_space<vmem>>, %arg23: memref<1x8x32xf32, #tpu.memory_space<vmem>>) attributes {dimension_semantics = [#tpu.dimension_semantics<parallel>], iteration_bounds = array<i64: 2>, scalar_prefetch = 0 : i64, scratch_operands = 0 : i64, tpu.core_type = #tpu.core_type<tc>, window_params = [{transform_indices = @transform_0, window_bounds = array<i64: 1, 8, 32>}, {transform_indices = @transform_1, window_bounds = array<i64: 1, 256, 32>}, {pipeline_mode = #tpu.pipeline_mode<synchronous>, transform_indices = @transform_2, window_bounds = array<i64: 32, 96>}, {pipeline_mode = #tpu.pipeline_mode<synchronous>, transform_indices = @transform_3, window_bounds = array<i64: 1, 96>}, {pipeline_mode = #tpu.pipeline_mode<synchronous>, transform_indices = @transform_4, window_bounds = array<i64: 32, 32>}, {pipeline_mode = #tpu.pipeline_mode<synchronous>, transform_indices = @transform_5, window_bounds = array<i64: 1, 32>}, {pipeline_mode = #tpu.pipeline_mode<synchronous>, transform_indices = @transform_6, window_bounds = array<i64: 1, 32>}, {pipeline_mode = #tpu.pipeline_mode<synchronous>, transform_indices = @transform_7, window_bounds = array<i64: 1, 32>}, {pipeline_mode = #tpu.pipeline_mode<synchronous>, transform_indices = @transform_8, window_bounds = array<i64: 32, 32>}, {pipeline_mode = #tpu.pipeline_mode<synchronous>, transform_indices = @transform_9, window_bounds = array<i64: 1, 32>}, {pipeline_mode = #tpu.pipeline_mode<synchronous>, transform_indices = @transform_10, window_bounds = array<i64: 32, 64>}, {pipeline_mode = #tpu.pipeline_mode<synchronous>, transform_indices = @transform_11, window_bounds = array<i64: 1, 64>}, {pipeline_mode = #tpu.pipeline_mode<synchronous>, transform_indices = @transform_12, window_bounds = array<i64: 32, 32>}, {pipeline_mode = #tpu.pipeline_mode<synchronous>, transform_indices = @transform_13, window_bounds = array<i64: 1, 32>}, {pipeline_mode = #tpu.pipeline_mode<synchronous>, transform_indices = @transform_14, window_bounds = array<i64: 1, 32>}, {pipeline_mode = #tpu.pipeline_mode<synchronous>, transform_indices = @transform_15, window_bounds = array<i64: 1, 32>}, {pipeline_mode = #tpu.pipeline_mode<synchronous>, transform_indices = @transform_16, window_bounds = array<i64: 32, 64>}, {pipeline_mode = #tpu.pipeline_mode<synchronous>, transform_indices = @transform_17, window_bounds = array<i64: 1, 64>}, {pipeline_mode = #tpu.pipeline_mode<synchronous>, transform_indices = @transform_18, window_bounds = array<i64: 64, 32>}, {pipeline_mode = #tpu.pipeline_mode<synchronous>, transform_indices = @transform_19, window_bounds = array<i64: 1, 32>}, {pipeline_mode = #tpu.pipeline_mode<synchronous>, transform_indices = @transform_20, window_bounds = array<i64: 1, 32>}, {pipeline_mode = #tpu.pipeline_mode<synchronous>, transform_indices = @transform_21, window_bounds = array<i64: 1, 32>}, {transform_indices = @transform_22, window_bounds = array<i64: 1, 8, 32>}]} {
    %c0 = arith.constant 0 : index
    %c0_0 = arith.constant 0 : index
    %c0_1 = arith.constant 0 : index
    %0 = vector.load %arg1[%c0, %c0_0, %c0_1] : memref<1x8x32xf32, #tpu.memory_space<vmem>>, vector<1x8x32xf32>
    %1 = vector.shape_cast %0 : vector<1x8x32xf32> to vector<8x32xf32>
    %c0_2 = arith.constant 0 : index
    %c0_3 = arith.constant 0 : index
    %c0_4 = arith.constant 0 : index
    %2 = vector.load %arg2[%c0_2, %c0_3, %c0_4] : memref<1x256x32xf32, #tpu.memory_space<vmem>>, vector<1x256x32xf32>
    %3 = vector.shape_cast %2 : vector<1x256x32xf32> to vector<256x32xf32>
    %c0_5 = arith.constant 0 : index
    %c0_6 = arith.constant 0 : index
    %4 = vector.load %arg3[%c0_5, %c0_6] : memref<32x96xf32, #tpu.memory_space<vmem>>, vector<32x96xf32>
    %cst = arith.constant dense<0.000000e+00> : vector<8x96xf32>
    %5 = tpu.matmul %1, %4, %cst {dimension_numbers = #tpu.dot_dimension_numbers<[1], [0], [0], [1], [0, 0, 1, 1], [], []>} : vector<8x32xf32>, vector<32x96xf32>, vector<8x96xf32> -> vector<8x96xf32>
    %c0_7 = arith.constant 0 : index
    %c0_8 = arith.constant 0 : index
    %6 = vector.load %arg4[%c0_7, %c0_8] : memref<1x96xf32, #tpu.memory_space<vmem>>, vector<1x96xf32>
    %7 = vector.broadcast %6 : vector<1x96xf32> to vector<8x96xf32>
    %8 = arith.addf %5, %7 : vector<8x96xf32>
    %9 = vector.extract_strided_slice %8 {offsets = [0, 0], sizes = [8, 32], strides = [1, 1]} : vector<8x96xf32> to vector<8x32xf32>
    %10 = vector.extract_strided_slice %8 {offsets = [0, 32], sizes = [8, 32], strides = [1, 1]} : vector<8x96xf32> to vector<8x32xf32>
    %11 = vector.extract_strided_slice %8 {offsets = [0, 64], sizes = [8, 32], strides = [1, 1]} : vector<8x96xf32> to vector<8x32xf32>
    %c0_9 = arith.constant 0 : index
    %c0_10 = arith.constant 0 : index
    %12 = vector.load %arg5[%c0_9, %c0_10] : memref<32x32xf32, #tpu.memory_space<vmem>>, vector<32x32xf32>
    %c0_11 = arith.constant 0 : index
    %c0_12 = arith.constant 0 : index
    %13 = vector.load %arg6[%c0_11, %c0_12] : memref<1x32xf32, #tpu.memory_space<vmem>>, vector<1x32xf32>
    %14 = vector.extract_strided_slice %9 {offsets = [0, 0], sizes = [8, 8], strides = [1, 1]} : vector<8x32xf32> to vector<8x8xf32>
    %15 = vector.extract_strided_slice %10 {offsets = [0, 0], sizes = [8, 8], strides = [1, 1]} : vector<8x32xf32> to vector<8x8xf32>
    %16 = vector.extract_strided_slice %11 {offsets = [0, 0], sizes = [8, 8], strides = [1, 1]} : vector<8x32xf32> to vector<8x8xf32>
    %cst_13 = arith.constant dense<0.000000e+00> : vector<8x8xf32>
    %17 = tpu.matmul %14, %15, %cst_13 {dimension_numbers = #tpu.dot_dimension_numbers<[1], [1], [0], [0], [0, 0, 1, 0], [], []>} : vector<8x8xf32>, vector<8x8xf32>, vector<8x8xf32> -> vector<8x8xf32>
    %cst_14 = arith.constant 0.353553385 : f32
    %18 = vector.broadcast %cst_14 : f32 to vector<8x8xf32>
    %19 = arith.mulf %17, %18 : vector<8x8xf32>
    %cst_15 = arith.constant dense<0xFF800000> : vector<8xf32>
    %20 = vector.multi_reduction <maximumf>, %19, %cst_15 [1] : vector<8x8xf32> to vector<8xf32>
    %21 = vector.shape_cast %20 : vector<8xf32> to vector<8x1xf32>
    %22 = vector.broadcast %21 : vector<8x1xf32> to vector<8x8xf32>
    %23 = arith.subf %19, %22 : vector<8x8xf32>
    %24 = math.exp %23 : vector<8x8xf32>
    %cst_16 = arith.constant dense<0.000000e+00> : vector<8xf32>
    %25 = vector.multi_reduction <add>, %24, %cst_16 [1] : vector<8x8xf32> to vector<8xf32>
    %26 = vector.shape_cast %25 : vector<8xf32> to vector<8x1xf32>
    %27 = tpu.reciprocal %26 {approx = true} : vector<8x1xf32> -> vector<8x1xf32>
    %28 = vector.broadcast %27 : vector<8x1xf32> to vector<8x8xf32>
    %29 = arith.mulf %24, %28 : vector<8x8xf32>
    %cst_17 = arith.constant dense<0.000000e+00> : vector<8x8xf32>
    %30 = tpu.matmul %29, %16, %cst_17 {dimension_numbers = #tpu.dot_dimension_numbers<[1], [0], [0], [1], [0, 0, 1, 1], [], []>} : vector<8x8xf32>, vector<8x8xf32>, vector<8x8xf32> -> vector<8x8xf32>
    %31 = vector.extract_strided_slice %12 {offsets = [0, 0], sizes = [8, 32], strides = [1, 1]} : vector<32x32xf32> to vector<8x32xf32>
    %cst_18 = arith.constant dense<0.000000e+00> : vector<8x32xf32>
    %32 = tpu.matmul %30, %31, %cst_18 {dimension_numbers = #tpu.dot_dimension_numbers<[1], [0], [0], [1], [0, 0, 1, 1], [], []>} : vector<8x8xf32>, vector<8x32xf32>, vector<8x32xf32> -> vector<8x32xf32>
    %33 = vector.extract_strided_slice %9 {offsets = [0, 8], sizes = [8, 8], strides = [1, 1]} : vector<8x32xf32> to vector<8x8xf32>
    %34 = vector.extract_strided_slice %10 {offsets = [0, 8], sizes = [8, 8], strides = [1, 1]} : vector<8x32xf32> to vector<8x8xf32>
    %35 = vector.extract_strided_slice %11 {offsets = [0, 8], sizes = [8, 8], strides = [1, 1]} : vector<8x32xf32> to vector<8x8xf32>
    %cst_19 = arith.constant dense<0.000000e+00> : vector<8x8xf32>
    %36 = tpu.matmul %33, %34, %cst_19 {dimension_numbers = #tpu.dot_dimension_numbers<[1], [1], [0], [0], [0, 0, 1, 0], [], []>} : vector<8x8xf32>, vector<8x8xf32>, vector<8x8xf32> -> vector<8x8xf32>
    %cst_20 = arith.constant 0.353553385 : f32
    %37 = vector.broadcast %cst_20 : f32 to vector<8x8xf32>
    %38 = arith.mulf %36, %37 : vector<8x8xf32>
    %cst_21 = arith.constant dense<0xFF800000> : vector<8xf32>
    %39 = vector.multi_reduction <maximumf>, %38, %cst_21 [1] : vector<8x8xf32> to vector<8xf32>
    %40 = vector.shape_cast %39 : vector<8xf32> to vector<8x1xf32>
    %41 = vector.broadcast %40 : vector<8x1xf32> to vector<8x8xf32>
    %42 = arith.subf %38, %41 : vector<8x8xf32>
    %43 = math.exp %42 : vector<8x8xf32>
    %cst_22 = arith.constant dense<0.000000e+00> : vector<8xf32>
    %44 = vector.multi_reduction <add>, %43, %cst_22 [1] : vector<8x8xf32> to vector<8xf32>
    %45 = vector.shape_cast %44 : vector<8xf32> to vector<8x1xf32>
    %46 = tpu.reciprocal %45 {approx = true} : vector<8x1xf32> -> vector<8x1xf32>
    %47 = vector.broadcast %46 : vector<8x1xf32> to vector<8x8xf32>
    %48 = arith.mulf %43, %47 : vector<8x8xf32>
    %cst_23 = arith.constant dense<0.000000e+00> : vector<8x8xf32>
    %49 = tpu.matmul %48, %35, %cst_23 {dimension_numbers = #tpu.dot_dimension_numbers<[1], [0], [0], [1], [0, 0, 1, 1], [], []>} : vector<8x8xf32>, vector<8x8xf32>, vector<8x8xf32> -> vector<8x8xf32>
    %50 = vector.extract_strided_slice %12 {offsets = [8, 0], sizes = [8, 32], strides = [1, 1]} : vector<32x32xf32> to vector<8x32xf32>
    %cst_24 = arith.constant dense<0.000000e+00> : vector<8x32xf32>
    %51 = tpu.matmul %49, %50, %cst_24 {dimension_numbers = #tpu.dot_dimension_numbers<[1], [0], [0], [1], [0, 0, 1, 1], [], []>} : vector<8x8xf32>, vector<8x32xf32>, vector<8x32xf32> -> vector<8x32xf32>
    %52 = arith.addf %32, %51 : vector<8x32xf32>
    %53 = vector.extract_strided_slice %9 {offsets = [0, 16], sizes = [8, 8], strides = [1, 1]} : vector<8x32xf32> to vector<8x8xf32>
    %54 = vector.extract_strided_slice %10 {offsets = [0, 16], sizes = [8, 8], strides = [1, 1]} : vector<8x32xf32> to vector<8x8xf32>
    %55 = vector.extract_strided_slice %11 {offsets = [0, 16], sizes = [8, 8], strides = [1, 1]} : vector<8x32xf32> to vector<8x8xf32>
    %cst_25 = arith.constant dense<0.000000e+00> : vector<8x8xf32>
    %56 = tpu.matmul %53, %54, %cst_25 {dimension_numbers = #tpu.dot_dimension_numbers<[1], [1], [0], [0], [0, 0, 1, 0], [], []>} : vector<8x8xf32>, vector<8x8xf32>, vector<8x8xf32> -> vector<8x8xf32>
    %cst_26 = arith.constant 0.353553385 : f32
    %57 = vector.broadcast %cst_26 : f32 to vector<8x8xf32>
    %58 = arith.mulf %56, %57 : vector<8x8xf32>
    %cst_27 = arith.constant dense<0xFF800000> : vector<8xf32>
    %59 = vector.multi_reduction <maximumf>, %58, %cst_27 [1] : vector<8x8xf32> to vector<8xf32>
    %60 = vector.shape_cast %59 : vector<8xf32> to vector<8x1xf32>
    %61 = vector.broadcast %60 : vector<8x1xf32> to vector<8x8xf32>
    %62 = arith.subf %58, %61 : vector<8x8xf32>
    %63 = math.exp %62 : vector<8x8xf32>
    %cst_28 = arith.constant dense<0.000000e+00> : vector<8xf32>
    %64 = vector.multi_reduction <add>, %63, %cst_28 [1] : vector<8x8xf32> to vector<8xf32>
    %65 = vector.shape_cast %64 : vector<8xf32> to vector<8x1xf32>
    %66 = tpu.reciprocal %65 {approx = true} : vector<8x1xf32> -> vector<8x1xf32>
    %67 = vector.broadcast %66 : vector<8x1xf32> to vector<8x8xf32>
    %68 = arith.mulf %63, %67 : vector<8x8xf32>
    %cst_29 = arith.constant dense<0.000000e+00> : vector<8x8xf32>
    %69 = tpu.matmul %68, %55, %cst_29 {dimension_numbers = #tpu.dot_dimension_numbers<[1], [0], [0], [1], [0, 0, 1, 1], [], []>} : vector<8x8xf32>, vector<8x8xf32>, vector<8x8xf32> -> vector<8x8xf32>
    %70 = vector.extract_strided_slice %12 {offsets = [16, 0], sizes = [8, 32], strides = [1, 1]} : vector<32x32xf32> to vector<8x32xf32>
    %cst_30 = arith.constant dense<0.000000e+00> : vector<8x32xf32>
    %71 = tpu.matmul %69, %70, %cst_30 {dimension_numbers = #tpu.dot_dimension_numbers<[1], [0], [0], [1], [0, 0, 1, 1], [], []>} : vector<8x8xf32>, vector<8x32xf32>, vector<8x32xf32> -> vector<8x32xf32>
    %72 = arith.addf %52, %71 : vector<8x32xf32>
    %73 = vector.extract_strided_slice %9 {offsets = [0, 24], sizes = [8, 8], strides = [1, 1]} : vector<8x32xf32> to vector<8x8xf32>
    %74 = vector.extract_strided_slice %10 {offsets = [0, 24], sizes = [8, 8], strides = [1, 1]} : vector<8x32xf32> to vector<8x8xf32>
    %75 = vector.extract_strided_slice %11 {offsets = [0, 24], sizes = [8, 8], strides = [1, 1]} : vector<8x32xf32> to vector<8x8xf32>
    %cst_31 = arith.constant dense<0.000000e+00> : vector<8x8xf32>
    %76 = tpu.matmul %73, %74, %cst_31 {dimension_numbers = #tpu.dot_dimension_numbers<[1], [1], [0], [0], [0, 0, 1, 0], [], []>} : vector<8x8xf32>, vector<8x8xf32>, vector<8x8xf32> -> vector<8x8xf32>
    %cst_32 = arith.constant 0.353553385 : f32
    %77 = vector.broadcast %cst_32 : f32 to vector<8x8xf32>
    %78 = arith.mulf %76, %77 : vector<8x8xf32>
    %cst_33 = arith.constant dense<0xFF800000> : vector<8xf32>
    %79 = vector.multi_reduction <maximumf>, %78, %cst_33 [1] : vector<8x8xf32> to vector<8xf32>
    %80 = vector.shape_cast %79 : vector<8xf32> to vector<8x1xf32>
    %81 = vector.broadcast %80 : vector<8x1xf32> to vector<8x8xf32>
    %82 = arith.subf %78, %81 : vector<8x8xf32>
    %83 = math.exp %82 : vector<8x8xf32>
    %cst_34 = arith.constant dense<0.000000e+00> : vector<8xf32>
    %84 = vector.multi_reduction <add>, %83, %cst_34 [1] : vector<8x8xf32> to vector<8xf32>
    %85 = vector.shape_cast %84 : vector<8xf32> to vector<8x1xf32>
    %86 = tpu.reciprocal %85 {approx = true} : vector<8x1xf32> -> vector<8x1xf32>
    %87 = vector.broadcast %86 : vector<8x1xf32> to vector<8x8xf32>
    %88 = arith.mulf %83, %87 : vector<8x8xf32>
    %cst_35 = arith.constant dense<0.000000e+00> : vector<8x8xf32>
    %89 = tpu.matmul %88, %75, %cst_35 {dimension_numbers = #tpu.dot_dimension_numbers<[1], [0], [0], [1], [0, 0, 1, 1], [], []>} : vector<8x8xf32>, vector<8x8xf32>, vector<8x8xf32> -> vector<8x8xf32>
    %90 = vector.extract_strided_slice %12 {offsets = [24, 0], sizes = [8, 32], strides = [1, 1]} : vector<32x32xf32> to vector<8x32xf32>
    %cst_36 = arith.constant dense<0.000000e+00> : vector<8x32xf32>
    %91 = tpu.matmul %89, %90, %cst_36 {dimension_numbers = #tpu.dot_dimension_numbers<[1], [0], [0], [1], [0, 0, 1, 1], [], []>} : vector<8x8xf32>, vector<8x32xf32>, vector<8x32xf32> -> vector<8x32xf32>
    %92 = arith.addf %72, %91 : vector<8x32xf32>
    %93 = vector.broadcast %13 : vector<1x32xf32> to vector<8x32xf32>
    %94 = arith.addf %92, %93 : vector<8x32xf32>
    %c0_37 = arith.constant 0 : index
    %c0_38 = arith.constant 0 : index
    %95 = vector.load %arg7[%c0_37, %c0_38] : memref<1x32xf32, #tpu.memory_space<vmem>>, vector<1x32xf32>
    %c0_39 = arith.constant 0 : index
    %c0_40 = arith.constant 0 : index
    %96 = vector.load %arg8[%c0_39, %c0_40] : memref<1x32xf32, #tpu.memory_space<vmem>>, vector<1x32xf32>
    %97 = arith.addf %1, %94 : vector<8x32xf32>
    %cst_41 = arith.constant dense<0.000000e+00> : vector<8xf32>
    %98 = vector.multi_reduction <add>, %97, %cst_41 [1] : vector<8x32xf32> to vector<8xf32>
    %99 = vector.shape_cast %98 : vector<8xf32> to vector<8x1xf32>
    %cst_42 = arith.constant 3.200000e+01 : f32
    %100 = vector.broadcast %cst_42 : f32 to vector<8x1xf32>
    %101 = arith.divf %99, %100 : vector<8x1xf32>
    %102 = vector.broadcast %101 : vector<8x1xf32> to vector<8x32xf32>
    %103 = arith.subf %97, %102 : vector<8x32xf32>
    %104 = arith.mulf %103, %103 : vector<8x32xf32>
    %cst_43 = arith.constant dense<0.000000e+00> : vector<8xf32>
    %105 = vector.multi_reduction <add>, %104, %cst_43 [1] : vector<8x32xf32> to vector<8xf32>
    %106 = vector.shape_cast %105 : vector<8xf32> to vector<8x1xf32>
    %cst_44 = arith.constant 3.200000e+01 : f32
    %107 = vector.broadcast %cst_44 : f32 to vector<8x1xf32>
    %108 = arith.divf %106, %107 : vector<8x1xf32>
    %109 = vector.broadcast %101 : vector<8x1xf32> to vector<8x32xf32>
    %110 = arith.subf %97, %109 : vector<8x32xf32>
    %cst_45 = arith.constant 9.99999974E-6 : f32
    %111 = vector.broadcast %cst_45 : f32 to vector<8x1xf32>
    %112 = arith.addf %108, %111 : vector<8x1xf32>
    %113 = math.rsqrt %112 : vector<8x1xf32>
    %114 = vector.broadcast %113 : vector<8x1xf32> to vector<8x32xf32>
    %115 = arith.mulf %110, %114 : vector<8x32xf32>
    %116 = vector.broadcast %95 : vector<1x32xf32> to vector<8x32xf32>
    %117 = arith.mulf %115, %116 : vector<8x32xf32>
    %118 = vector.broadcast %96 : vector<1x32xf32> to vector<8x32xf32>
    %119 = arith.addf %117, %118 : vector<8x32xf32>
    %c0_46 = arith.constant 0 : index
    %c0_47 = arith.constant 0 : index
    %120 = vector.load %arg9[%c0_46, %c0_47] : memref<32x32xf32, #tpu.memory_space<vmem>>, vector<32x32xf32>
    %cst_48 = arith.constant dense<0.000000e+00> : vector<8x32xf32>
    %121 = tpu.matmul %119, %120, %cst_48 {dimension_numbers = #tpu.dot_dimension_numbers<[1], [0], [0], [1], [0, 0, 1, 1], [], []>} : vector<8x32xf32>, vector<32x32xf32>, vector<8x32xf32> -> vector<8x32xf32>
    %c0_49 = arith.constant 0 : index
    %c0_50 = arith.constant 0 : index
    %122 = vector.load %arg10[%c0_49, %c0_50] : memref<1x32xf32, #tpu.memory_space<vmem>>, vector<1x32xf32>
    %123 = vector.broadcast %122 : vector<1x32xf32> to vector<8x32xf32>
    %124 = arith.addf %121, %123 : vector<8x32xf32>
    %c0_51 = arith.constant 0 : index
    %c0_52 = arith.constant 0 : index
    %125 = vector.load %arg11[%c0_51, %c0_52] : memref<32x64xf32, #tpu.memory_space<vmem>>, vector<32x64xf32>
    %cst_53 = arith.constant dense<0.000000e+00> : vector<256x64xf32>
    %126 = tpu.matmul %3, %125, %cst_53 {dimension_numbers = #tpu.dot_dimension_numbers<[1], [0], [0], [1], [0, 0, 1, 1], [], []>} : vector<256x32xf32>, vector<32x64xf32>, vector<256x64xf32> -> vector<256x64xf32>
    %c0_54 = arith.constant 0 : index
    %c0_55 = arith.constant 0 : index
    %127 = vector.load %arg12[%c0_54, %c0_55] : memref<1x64xf32, #tpu.memory_space<vmem>>, vector<1x64xf32>
    %128 = vector.broadcast %127 : vector<1x64xf32> to vector<256x64xf32>
    %129 = arith.addf %126, %128 : vector<256x64xf32>
    %130 = vector.extract_strided_slice %129 {offsets = [0, 0], sizes = [256, 32], strides = [1, 1]} : vector<256x64xf32> to vector<256x32xf32>
    %131 = vector.extract_strided_slice %129 {offsets = [0, 32], sizes = [256, 32], strides = [1, 1]} : vector<256x64xf32> to vector<256x32xf32>
    %c0_56 = arith.constant 0 : index
    %c0_57 = arith.constant 0 : index
    %132 = vector.load %arg13[%c0_56, %c0_57] : memref<32x32xf32, #tpu.memory_space<vmem>>, vector<32x32xf32>
    %c0_58 = arith.constant 0 : index
    %c0_59 = arith.constant 0 : index
    %133 = vector.load %arg14[%c0_58, %c0_59] : memref<1x32xf32, #tpu.memory_space<vmem>>, vector<1x32xf32>
    %134 = vector.extract_strided_slice %124 {offsets = [0, 0], sizes = [8, 8], strides = [1, 1]} : vector<8x32xf32> to vector<8x8xf32>
    %135 = vector.extract_strided_slice %130 {offsets = [0, 0], sizes = [256, 8], strides = [1, 1]} : vector<256x32xf32> to vector<256x8xf32>
    %136 = vector.extract_strided_slice %131 {offsets = [0, 0], sizes = [256, 8], strides = [1, 1]} : vector<256x32xf32> to vector<256x8xf32>
    %cst_60 = arith.constant dense<0.000000e+00> : vector<8x256xf32>
    %137 = tpu.matmul %134, %135, %cst_60 {dimension_numbers = #tpu.dot_dimension_numbers<[1], [1], [0], [0], [0, 0, 1, 0], [], []>} : vector<8x8xf32>, vector<256x8xf32>, vector<8x256xf32> -> vector<8x256xf32>
    %cst_61 = arith.constant 0.353553385 : f32
    %138 = vector.broadcast %cst_61 : f32 to vector<8x256xf32>
    %139 = arith.mulf %137, %138 : vector<8x256xf32>
    %cst_62 = arith.constant dense<0xFF800000> : vector<8xf32>
    %140 = vector.multi_reduction <maximumf>, %139, %cst_62 [1] : vector<8x256xf32> to vector<8xf32>
    %141 = vector.shape_cast %140 : vector<8xf32> to vector<8x1xf32>
    %142 = vector.broadcast %141 : vector<8x1xf32> to vector<8x256xf32>
    %143 = arith.subf %139, %142 : vector<8x256xf32>
    %144 = math.exp %143 : vector<8x256xf32>
    %cst_63 = arith.constant dense<0.000000e+00> : vector<8xf32>
    %145 = vector.multi_reduction <add>, %144, %cst_63 [1] : vector<8x256xf32> to vector<8xf32>
    %146 = vector.shape_cast %145 : vector<8xf32> to vector<8x1xf32>
    %147 = tpu.reciprocal %146 {approx = true} : vector<8x1xf32> -> vector<8x1xf32>
    %148 = vector.broadcast %147 : vector<8x1xf32> to vector<8x256xf32>
    %149 = arith.mulf %144, %148 : vector<8x256xf32>
    %cst_64 = arith.constant dense<0.000000e+00> : vector<8x8xf32>
    %150 = tpu.matmul %149, %136, %cst_64 {dimension_numbers = #tpu.dot_dimension_numbers<[1], [0], [0], [1], [0, 0, 1, 1], [], []>} : vector<8x256xf32>, vector<256x8xf32>, vector<8x8xf32> -> vector<8x8xf32>
    %151 = vector.extract_strided_slice %132 {offsets = [0, 0], sizes = [8, 32], strides = [1, 1]} : vector<32x32xf32> to vector<8x32xf32>
    %cst_65 = arith.constant dense<0.000000e+00> : vector<8x32xf32>
    %152 = tpu.matmul %150, %151, %cst_65 {dimension_numbers = #tpu.dot_dimension_numbers<[1], [0], [0], [1], [0, 0, 1, 1], [], []>} : vector<8x8xf32>, vector<8x32xf32>, vector<8x32xf32> -> vector<8x32xf32>
    %153 = vector.extract_strided_slice %124 {offsets = [0, 8], sizes = [8, 8], strides = [1, 1]} : vector<8x32xf32> to vector<8x8xf32>
    %154 = vector.extract_strided_slice %130 {offsets = [0, 8], sizes = [256, 8], strides = [1, 1]} : vector<256x32xf32> to vector<256x8xf32>
    %155 = vector.extract_strided_slice %131 {offsets = [0, 8], sizes = [256, 8], strides = [1, 1]} : vector<256x32xf32> to vector<256x8xf32>
    %cst_66 = arith.constant dense<0.000000e+00> : vector<8x256xf32>
    %156 = tpu.matmul %153, %154, %cst_66 {dimension_numbers = #tpu.dot_dimension_numbers<[1], [1], [0], [0], [0, 0, 1, 0], [], []>} : vector<8x8xf32>, vector<256x8xf32>, vector<8x256xf32> -> vector<8x256xf32>
    %cst_67 = arith.constant 0.353553385 : f32
    %157 = vector.broadcast %cst_67 : f32 to vector<8x256xf32>
    %158 = arith.mulf %156, %157 : vector<8x256xf32>
    %cst_68 = arith.constant dense<0xFF800000> : vector<8xf32>
    %159 = vector.multi_reduction <maximumf>, %158, %cst_68 [1] : vector<8x256xf32> to vector<8xf32>
    %160 = vector.shape_cast %159 : vector<8xf32> to vector<8x1xf32>
    %161 = vector.broadcast %160 : vector<8x1xf32> to vector<8x256xf32>
    %162 = arith.subf %158, %161 : vector<8x256xf32>
    %163 = math.exp %162 : vector<8x256xf32>
    %cst_69 = arith.constant dense<0.000000e+00> : vector<8xf32>
    %164 = vector.multi_reduction <add>, %163, %cst_69 [1] : vector<8x256xf32> to vector<8xf32>
    %165 = vector.shape_cast %164 : vector<8xf32> to vector<8x1xf32>
    %166 = tpu.reciprocal %165 {approx = true} : vector<8x1xf32> -> vector<8x1xf32>
    %167 = vector.broadcast %166 : vector<8x1xf32> to vector<8x256xf32>
    %168 = arith.mulf %163, %167 : vector<8x256xf32>
    %cst_70 = arith.constant dense<0.000000e+00> : vector<8x8xf32>
    %169 = tpu.matmul %168, %155, %cst_70 {dimension_numbers = #tpu.dot_dimension_numbers<[1], [0], [0], [1], [0, 0, 1, 1], [], []>} : vector<8x256xf32>, vector<256x8xf32>, vector<8x8xf32> -> vector<8x8xf32>
    %170 = vector.extract_strided_slice %132 {offsets = [8, 0], sizes = [8, 32], strides = [1, 1]} : vector<32x32xf32> to vector<8x32xf32>
    %cst_71 = arith.constant dense<0.000000e+00> : vector<8x32xf32>
    %171 = tpu.matmul %169, %170, %cst_71 {dimension_numbers = #tpu.dot_dimension_numbers<[1], [0], [0], [1], [0, 0, 1, 1], [], []>} : vector<8x8xf32>, vector<8x32xf32>, vector<8x32xf32> -> vector<8x32xf32>
    %172 = arith.addf %152, %171 : vector<8x32xf32>
    %173 = vector.extract_strided_slice %124 {offsets = [0, 16], sizes = [8, 8], strides = [1, 1]} : vector<8x32xf32> to vector<8x8xf32>
    %174 = vector.extract_strided_slice %130 {offsets = [0, 16], sizes = [256, 8], strides = [1, 1]} : vector<256x32xf32> to vector<256x8xf32>
    %175 = vector.extract_strided_slice %131 {offsets = [0, 16], sizes = [256, 8], strides = [1, 1]} : vector<256x32xf32> to vector<256x8xf32>
    %cst_72 = arith.constant dense<0.000000e+00> : vector<8x256xf32>
    %176 = tpu.matmul %173, %174, %cst_72 {dimension_numbers = #tpu.dot_dimension_numbers<[1], [1], [0], [0], [0, 0, 1, 0], [], []>} : vector<8x8xf32>, vector<256x8xf32>, vector<8x256xf32> -> vector<8x256xf32>
    %cst_73 = arith.constant 0.353553385 : f32
    %177 = vector.broadcast %cst_73 : f32 to vector<8x256xf32>
    %178 = arith.mulf %176, %177 : vector<8x256xf32>
    %cst_74 = arith.constant dense<0xFF800000> : vector<8xf32>
    %179 = vector.multi_reduction <maximumf>, %178, %cst_74 [1] : vector<8x256xf32> to vector<8xf32>
    %180 = vector.shape_cast %179 : vector<8xf32> to vector<8x1xf32>
    %181 = vector.broadcast %180 : vector<8x1xf32> to vector<8x256xf32>
    %182 = arith.subf %178, %181 : vector<8x256xf32>
    %183 = math.exp %182 : vector<8x256xf32>
    %cst_75 = arith.constant dense<0.000000e+00> : vector<8xf32>
    %184 = vector.multi_reduction <add>, %183, %cst_75 [1] : vector<8x256xf32> to vector<8xf32>
    %185 = vector.shape_cast %184 : vector<8xf32> to vector<8x1xf32>
    %186 = tpu.reciprocal %185 {approx = true} : vector<8x1xf32> -> vector<8x1xf32>
    %187 = vector.broadcast %186 : vector<8x1xf32> to vector<8x256xf32>
    %188 = arith.mulf %183, %187 : vector<8x256xf32>
    %cst_76 = arith.constant dense<0.000000e+00> : vector<8x8xf32>
    %189 = tpu.matmul %188, %175, %cst_76 {dimension_numbers = #tpu.dot_dimension_numbers<[1], [0], [0], [1], [0, 0, 1, 1], [], []>} : vector<8x256xf32>, vector<256x8xf32>, vector<8x8xf32> -> vector<8x8xf32>
    %190 = vector.extract_strided_slice %132 {offsets = [16, 0], sizes = [8, 32], strides = [1, 1]} : vector<32x32xf32> to vector<8x32xf32>
    %cst_77 = arith.constant dense<0.000000e+00> : vector<8x32xf32>
    %191 = tpu.matmul %189, %190, %cst_77 {dimension_numbers = #tpu.dot_dimension_numbers<[1], [0], [0], [1], [0, 0, 1, 1], [], []>} : vector<8x8xf32>, vector<8x32xf32>, vector<8x32xf32> -> vector<8x32xf32>
    %192 = arith.addf %172, %191 : vector<8x32xf32>
    %193 = vector.extract_strided_slice %124 {offsets = [0, 24], sizes = [8, 8], strides = [1, 1]} : vector<8x32xf32> to vector<8x8xf32>
    %194 = vector.extract_strided_slice %130 {offsets = [0, 24], sizes = [256, 8], strides = [1, 1]} : vector<256x32xf32> to vector<256x8xf32>
    %195 = vector.extract_strided_slice %131 {offsets = [0, 24], sizes = [256, 8], strides = [1, 1]} : vector<256x32xf32> to vector<256x8xf32>
    %cst_78 = arith.constant dense<0.000000e+00> : vector<8x256xf32>
    %196 = tpu.matmul %193, %194, %cst_78 {dimension_numbers = #tpu.dot_dimension_numbers<[1], [1], [0], [0], [0, 0, 1, 0], [], []>} : vector<8x8xf32>, vector<256x8xf32>, vector<8x256xf32> -> vector<8x256xf32>
    %cst_79 = arith.constant 0.353553385 : f32
    %197 = vector.broadcast %cst_79 : f32 to vector<8x256xf32>
    %198 = arith.mulf %196, %197 : vector<8x256xf32>
    %cst_80 = arith.constant dense<0xFF800000> : vector<8xf32>
    %199 = vector.multi_reduction <maximumf>, %198, %cst_80 [1] : vector<8x256xf32> to vector<8xf32>
    %200 = vector.shape_cast %199 : vector<8xf32> to vector<8x1xf32>
    %201 = vector.broadcast %200 : vector<8x1xf32> to vector<8x256xf32>
    %202 = arith.subf %198, %201 : vector<8x256xf32>
    %203 = math.exp %202 : vector<8x256xf32>
    %cst_81 = arith.constant dense<0.000000e+00> : vector<8xf32>
    %204 = vector.multi_reduction <add>, %203, %cst_81 [1] : vector<8x256xf32> to vector<8xf32>
    %205 = vector.shape_cast %204 : vector<8xf32> to vector<8x1xf32>
    %206 = tpu.reciprocal %205 {approx = true} : vector<8x1xf32> -> vector<8x1xf32>
    %207 = vector.broadcast %206 : vector<8x1xf32> to vector<8x256xf32>
    %208 = arith.mulf %203, %207 : vector<8x256xf32>
    %cst_82 = arith.constant dense<0.000000e+00> : vector<8x8xf32>
    %209 = tpu.matmul %208, %195, %cst_82 {dimension_numbers = #tpu.dot_dimension_numbers<[1], [0], [0], [1], [0, 0, 1, 1], [], []>} : vector<8x256xf32>, vector<256x8xf32>, vector<8x8xf32> -> vector<8x8xf32>
    %210 = vector.extract_strided_slice %132 {offsets = [24, 0], sizes = [8, 32], strides = [1, 1]} : vector<32x32xf32> to vector<8x32xf32>
    %cst_83 = arith.constant dense<0.000000e+00> : vector<8x32xf32>
    %211 = tpu.matmul %209, %210, %cst_83 {dimension_numbers = #tpu.dot_dimension_numbers<[1], [0], [0], [1], [0, 0, 1, 1], [], []>} : vector<8x8xf32>, vector<8x32xf32>, vector<8x32xf32> -> vector<8x32xf32>
    %212 = arith.addf %192, %211 : vector<8x32xf32>
    %213 = vector.broadcast %133 : vector<1x32xf32> to vector<8x32xf32>
    %214 = arith.addf %212, %213 : vector<8x32xf32>
    %c0_84 = arith.constant 0 : index
    %c0_85 = arith.constant 0 : index
    %215 = vector.load %arg15[%c0_84, %c0_85] : memref<1x32xf32, #tpu.memory_space<vmem>>, vector<1x32xf32>
    %c0_86 = arith.constant 0 : index
    %c0_87 = arith.constant 0 : index
    %216 = vector.load %arg16[%c0_86, %c0_87] : memref<1x32xf32, #tpu.memory_space<vmem>>, vector<1x32xf32>
    %217 = arith.addf %119, %214 : vector<8x32xf32>
    %cst_88 = arith.constant dense<0.000000e+00> : vector<8xf32>
    %218 = vector.multi_reduction <add>, %217, %cst_88 [1] : vector<8x32xf32> to vector<8xf32>
    %219 = vector.shape_cast %218 : vector<8xf32> to vector<8x1xf32>
    %cst_89 = arith.constant 3.200000e+01 : f32
    %220 = vector.broadcast %cst_89 : f32 to vector<8x1xf32>
    %221 = arith.divf %219, %220 : vector<8x1xf32>
    %222 = vector.broadcast %221 : vector<8x1xf32> to vector<8x32xf32>
    %223 = arith.subf %217, %222 : vector<8x32xf32>
    %224 = arith.mulf %223, %223 : vector<8x32xf32>
    %cst_90 = arith.constant dense<0.000000e+00> : vector<8xf32>
    %225 = vector.multi_reduction <add>, %224, %cst_90 [1] : vector<8x32xf32> to vector<8xf32>
    %226 = vector.shape_cast %225 : vector<8xf32> to vector<8x1xf32>
    %cst_91 = arith.constant 3.200000e+01 : f32
    %227 = vector.broadcast %cst_91 : f32 to vector<8x1xf32>
    %228 = arith.divf %226, %227 : vector<8x1xf32>
    %229 = vector.broadcast %221 : vector<8x1xf32> to vector<8x32xf32>
    %230 = arith.subf %217, %229 : vector<8x32xf32>
    %cst_92 = arith.constant 9.99999974E-6 : f32
    %231 = vector.broadcast %cst_92 : f32 to vector<8x1xf32>
    %232 = arith.addf %228, %231 : vector<8x1xf32>
    %233 = math.rsqrt %232 : vector<8x1xf32>
    %234 = vector.broadcast %233 : vector<8x1xf32> to vector<8x32xf32>
    %235 = arith.mulf %230, %234 : vector<8x32xf32>
    %236 = vector.broadcast %215 : vector<1x32xf32> to vector<8x32xf32>
    %237 = arith.mulf %235, %236 : vector<8x32xf32>
    %238 = vector.broadcast %216 : vector<1x32xf32> to vector<8x32xf32>
    %239 = arith.addf %237, %238 : vector<8x32xf32>
    %c0_93 = arith.constant 0 : index
    %c0_94 = arith.constant 0 : index
    %240 = vector.load %arg17[%c0_93, %c0_94] : memref<32x64xf32, #tpu.memory_space<vmem>>, vector<32x64xf32>
    %cst_95 = arith.constant dense<0.000000e+00> : vector<8x64xf32>
    %241 = tpu.matmul %239, %240, %cst_95 {dimension_numbers = #tpu.dot_dimension_numbers<[1], [0], [0], [1], [0, 0, 1, 1], [], []>} : vector<8x32xf32>, vector<32x64xf32>, vector<8x64xf32> -> vector<8x64xf32>
    %c0_96 = arith.constant 0 : index
    %c0_97 = arith.constant 0 : index
    %242 = vector.load %arg18[%c0_96, %c0_97] : memref<1x64xf32, #tpu.memory_space<vmem>>, vector<1x64xf32>
    %243 = vector.broadcast %242 : vector<1x64xf32> to vector<8x64xf32>
    %244 = arith.addf %241, %243 : vector<8x64xf32>
    %cst_98 = arith.constant 0.000000e+00 : f32
    %245 = vector.broadcast %cst_98 : f32 to vector<8x64xf32>
    %246 = arith.maximumf %244, %245 : vector<8x64xf32>
    %c0_99 = arith.constant 0 : index
    %c0_100 = arith.constant 0 : index
    %247 = vector.load %arg19[%c0_99, %c0_100] : memref<64x32xf32, #tpu.memory_space<vmem>>, vector<64x32xf32>
    %cst_101 = arith.constant dense<0.000000e+00> : vector<8x32xf32>
    %248 = tpu.matmul %246, %247, %cst_101 {dimension_numbers = #tpu.dot_dimension_numbers<[1], [0], [0], [1], [0, 0, 1, 1], [], []>} : vector<8x64xf32>, vector<64x32xf32>, vector<8x32xf32> -> vector<8x32xf32>
    %c0_102 = arith.constant 0 : index
    %c0_103 = arith.constant 0 : index
    %249 = vector.load %arg20[%c0_102, %c0_103] : memref<1x32xf32, #tpu.memory_space<vmem>>, vector<1x32xf32>
    %250 = vector.broadcast %249 : vector<1x32xf32> to vector<8x32xf32>
    %251 = arith.addf %248, %250 : vector<8x32xf32>
    %c0_104 = arith.constant 0 : index
    %c0_105 = arith.constant 0 : index
    %252 = vector.load %arg21[%c0_104, %c0_105] : memref<1x32xf32, #tpu.memory_space<vmem>>, vector<1x32xf32>
    %c0_106 = arith.constant 0 : index
    %c0_107 = arith.constant 0 : index
    %253 = vector.load %arg22[%c0_106, %c0_107] : memref<1x32xf32, #tpu.memory_space<vmem>>, vector<1x32xf32>
    %254 = arith.addf %239, %251 : vector<8x32xf32>
    %cst_108 = arith.constant dense<0.000000e+00> : vector<8xf32>
    %255 = vector.multi_reduction <add>, %254, %cst_108 [1] : vector<8x32xf32> to vector<8xf32>
    %256 = vector.shape_cast %255 : vector<8xf32> to vector<8x1xf32>
    %cst_109 = arith.constant 3.200000e+01 : f32
    %257 = vector.broadcast %cst_109 : f32 to vector<8x1xf32>
    %258 = arith.divf %256, %257 : vector<8x1xf32>
    %259 = vector.broadcast %258 : vector<8x1xf32> to vector<8x32xf32>
    %260 = arith.subf %254, %259 : vector<8x32xf32>
    %261 = arith.mulf %260, %260 : vector<8x32xf32>
    %cst_110 = arith.constant dense<0.000000e+00> : vector<8xf32>
    %262 = vector.multi_reduction <add>, %261, %cst_110 [1] : vector<8x32xf32> to vector<8xf32>
    %263 = vector.shape_cast %262 : vector<8xf32> to vector<8x1xf32>
    %cst_111 = arith.constant 3.200000e+01 : f32
    %264 = vector.broadcast %cst_111 : f32 to vector<8x1xf32>
    %265 = arith.divf %263, %264 : vector<8x1xf32>
    %266 = vector.broadcast %258 : vector<8x1xf32> to vector<8x32xf32>
    %267 = arith.subf %254, %266 : vector<8x32xf32>
    %cst_112 = arith.constant 9.99999974E-6 : f32
    %268 = vector.broadcast %cst_112 : f32 to vector<8x1xf32>
    %269 = arith.addf %265, %268 : vector<8x1xf32>
    %270 = math.rsqrt %269 : vector<8x1xf32>
    %271 = vector.broadcast %270 : vector<8x1xf32> to vector<8x32xf32>
    %272 = arith.mulf %267, %271 : vector<8x32xf32>
    %273 = vector.broadcast %252 : vector<1x32xf32> to vector<8x32xf32>
    %274 = arith.mulf %272, %273 : vector<8x32xf32>
    %275 = vector.broadcast %253 : vector<1x32xf32> to vector<8x32xf32>
    %276 = arith.addf %274, %275 : vector<8x32xf32>
    %c0_113 = arith.constant 0 : index
    %c0_114 = arith.constant 0 : index
    %c0_115 = arith.constant 0 : index
    %277 = vector.load %arg23[%c0_113, %c0_114, %c0_115] : memref<1x8x32xf32, #tpu.memory_space<vmem>>, vector<1x8x32xf32>
    %278 = vector.shape_cast %277 : vector<1x8x32xf32> to vector<8x32xf32>
    %279 = vector.shape_cast %276 : vector<8x32xf32> to vector<1x8x32xf32>
    tpu.vector_store %arg23[%c0_113, %c0_114, %c0_115], %279 {strides = array<i32>} : memref<1x8x32xf32, #tpu.memory_space<vmem>>, vector<1x8x32xf32>,
    return
  }
  func.func @transform_0(%arg0: i32) -> (i32, i32, i32) {
    %c0_i32 = arith.constant 0 : i32
    %c0_i32_0 = arith.constant 0 : i32
    %c0_i32_1 = arith.constant 0 : i32
    return %arg0, %c0_i32, %c0_i32_0 : i32, i32, i32
  }
  func.func @transform_1(%arg0: i32) -> (i32, i32, i32) {
    %c0_i32 = arith.constant 0 : i32
    %c0_i32_0 = arith.constant 0 : i32
    %c0_i32_1 = arith.constant 0 : i32
    return %arg0, %c0_i32, %c0_i32_0 : i32, i32, i32
  }
  func.func @transform_2(%arg0: i32) -> (i32, i32) {
    %c0_i32 = arith.constant 0 : i32
    %c0_i32_0 = arith.constant 0 : i32
    %c0_i32_1 = arith.constant 0 : i32
    return %c0_i32, %c0_i32_0 : i32, i32
  }
  func.func @transform_3(%arg0: i32) -> (i32, i32) {
    %c0_i32 = arith.constant 0 : i32
    %c0_i32_0 = arith.constant 0 : i32
    %c0_i32_1 = arith.constant 0 : i32
    return %c0_i32, %c0_i32_0 : i32, i32
  }
  func.func @transform_4(%arg0: i32) -> (i32, i32) {
    %c0_i32 = arith.constant 0 : i32
    %c0_i32_0 = arith.constant 0 : i32
    %c0_i32_1 = arith.constant 0 : i32
    return %c0_i32, %c0_i32_0 : i32, i32
  }
  func.func @transform_5(%arg0: i32) -> (i32, i32) {
    %c0_i32 = arith.constant 0 : i32
    %c0_i32_0 = arith.constant 0 : i32
    %c0_i32_1 = arith.constant 0 : i32
    return %c0_i32, %c0_i32_0 : i32, i32
  }
  func.func @transform_6(%arg0: i32) -> (i32, i32) {
    %c0_i32 = arith.constant 0 : i32
    %c0_i32_0 = arith.constant 0 : i32
    %c0_i32_1 = arith.constant 0 : i32
    return %c0_i32, %c0_i32_0 : i32, i32
  }
  func.func @transform_7(%arg0: i32) -> (i32, i32) {
    %c0_i32 = arith.constant 0 : i32
    %c0_i32_0 = arith.constant 0 : i32
    %c0_i32_1 = arith.constant 0 : i32
    return %c0_i32, %c0_i32_0 : i32, i32
  }
  func.func @transform_8(%arg0: i32) -> (i32, i32) {
    %c0_i32 = arith.constant 0 : i32
    %c0_i32_0 = arith.constant 0 : i32
    %c0_i32_1 = arith.constant 0 : i32
    return %c0_i32, %c0_i32_0 : i32, i32
  }
  func.func @transform_9(%arg0: i32) -> (i32, i32) {
    %c0_i32 = arith.constant 0 : i32
    %c0_i32_0 = arith.constant 0 : i32
    %c0_i32_1 = arith.constant 0 : i32
    return %c0_i32, %c0_i32_0 : i32, i32
  }
  func.func @transform_10(%arg0: i32) -> (i32, i32) {
    %c0_i32 = arith.constant 0 : i32
    %c0_i32_0 = arith.constant 0 : i32
    %c0_i32_1 = arith.constant 0 : i32
    return %c0_i32, %c0_i32_0 : i32, i32
  }
  func.func @transform_11(%arg0: i32) -> (i32, i32) {
    %c0_i32 = arith.constant 0 : i32
    %c0_i32_0 = arith.constant 0 : i32
    %c0_i32_1 = arith.constant 0 : i32
    return %c0_i32, %c0_i32_0 : i32, i32
  }
  func.func @transform_12(%arg0: i32) -> (i32, i32) {
    %c0_i32 = arith.constant 0 : i32
    %c0_i32_0 = arith.constant 0 : i32
    %c0_i32_1 = arith.constant 0 : i32
    return %c0_i32, %c0_i32_0 : i32, i32
  }
  func.func @transform_13(%arg0: i32) -> (i32, i32) {
    %c0_i32 = arith.constant 0 : i32
    %c0_i32_0 = arith.constant 0 : i32
    %c0_i32_1 = arith.constant 0 : i32
    return %c0_i32, %c0_i32_0 : i32, i32
  }
  func.func @transform_14(%arg0: i32) -> (i32, i32) {
    %c0_i32 = arith.constant 0 : i32
    %c0_i32_0 = arith.constant 0 : i32
    %c0_i32_1 = arith.constant 0 : i32
    return %c0_i32, %c0_i32_0 : i32, i32
  }
  func.func @transform_15(%arg0: i32) -> (i32, i32) {
    %c0_i32 = arith.constant 0 : i32
    %c0_i32_0 = arith.constant 0 : i32
    %c0_i32_1 = arith.constant 0 : i32
    return %c0_i32, %c0_i32_0 : i32, i32
  }
  func.func @transform_16(%arg0: i32) -> (i32, i32) {
    %c0_i32 = arith.constant 0 : i32
    %c0_i32_0 = arith.constant 0 : i32
    %c0_i32_1 = arith.constant 0 : i32
    return %c0_i32, %c0_i32_0 : i32, i32
  }
  func.func @transform_17(%arg0: i32) -> (i32, i32) {
    %c0_i32 = arith.constant 0 : i32
    %c0_i32_0 = arith.constant 0 : i32
    %c0_i32_1 = arith.constant 0 : i32
    return %c0_i32, %c0_i32_0 : i32, i32
  }
  func.func @transform_18(%arg0: i32) -> (i32, i32) {
    %c0_i32 = arith.constant 0 : i32
    %c0_i32_0 = arith.constant 0 : i32
    %c0_i32_1 = arith.constant 0 : i32
    return %c0_i32, %c0_i32_0 : i32, i32
  }
  func.func @transform_19(%arg0: i32) -> (i32, i32) {
    %c0_i32 = arith.constant 0 : i32
    %c0_i32_0 = arith.constant 0 : i32
    %c0_i32_1 = arith.constant 0 : i32
    return %c0_i32, %c0_i32_0 : i32, i32
  }
  func.func @transform_20(%arg0: i32) -> (i32, i32) {
    %c0_i32 = arith.constant 0 : i32
    %c0_i32_0 = arith.constant 0 : i32
    %c0_i32_1 = arith.constant 0 : i32
    return %c0_i32, %c0_i32_0 : i32, i32
  }
  func.func @transform_21(%arg0: i32) -> (i32, i32) {
    %c0_i32 = arith.constant 0 : i32
    %c0_i32_0 = arith.constant 0 : i32
    %c0_i32_1 = arith.constant 0 : i32
    return %c0_i32, %c0_i32_0 : i32, i32
  }
  func.func @transform_22(%arg0: i32) -> (i32, i32, i32) {
    %c0_i32 = arith.constant 0 : i32
    %c0_i32_0 = arith.constant 0 : i32
    %c0_i32_1 = arith.constant 0 : i32
    return %arg0, %c0_i32, %c0_i32_0 : i32, i32, i32
  }
}

</mosaic_0001>

<llo_original>
// kernel: transformer_forward.4
$region0: #{transformer_forward.4}
  #allocation0 [shape = 'u32[]', space=smem, size = 0x4, offset = 0x4, fixed_abs, tag = 'smem constant byte address 0x4 - core index']
  #allocation1 [shape = 'u32[144,128]{1,0:T(1,128)}', space=vmem, size = 0x12000, scoped, tag = 'internal scratch']
  %s0 = inlined_call_operand.vmem [shape: f32[2,256,4], index: 0, kind: input, shape index: {}]
  %s1 = inlined_call_operand.vmem [shape: f32[4,32], index: 1, kind: input, shape index: {}]
  %s2 = inlined_call_operand.vmem [shape: f32[1,32], index: 2, kind: input, shape index: {}]
  %s3 = inlined_call_operand.vmem [shape: f32[2,256,32], index: 3, kind: output, shape index: {}]
  %s4 = sld [smem:[#allocation0]]
  $region45: #{transformer_forward.4} parent=0
    _
  %s6 = ssub.s32 1, %s4
  %s7 = scalar_select 0, %s6, %s4
  loop: start=0, step=1, limit=4
  $region2: #{transformer_forward.4} parent=0 // loop_pre_header
    _
  $region3: #{transformer_forward.4} parent=0 // loop_header
    %s9 = sphi 0, %s13
    %p10 = scmp.ge.s32.totalorder %s9, 4
    %s19 = sphi 0, %s21
    %s22 = sphi 0, %s19
    %s23 = sphi 0, %s22
    %s39 = sphi 0, %s23
    %s43 = sphi 0, %s43
    %s45 = sphi 0, %s43
    %s46 = sphi 0, %s45
    %s60 = sphi 0, %s46
    %s64 = sphi 0, %s64
    %s66 = sphi 0, %s64
    %s67 = sphi 0, %s66
    %s81 = sphi 0, %s67
    %s87 = sphi 0, %s89
    %s90 = sphi 0, %s87
    %s91 = sphi 0, %s90
    %s107 = sphi 0, %s91
  $region4: #{transformer_forward.4} parent=0 // loop_header_branch
    %12 = sbr.rel (%p10) target = $region8
  $region5: #{transformer_forward.4} parent=0 // loop_body
    %s14 = ssub.s32 %s9, 1
    %s15 = ssub.s32 %s9, 2
    %s16 = sadd.s32 %s9, 1
    %s17 = ssub.s32 %s9, %s16
    %p18 = scmp.eq.s32.totalorder %s17, 0
    %s20 = sadd.s32 %s19, 1
    %s21 = scalar_select %p18, %s19, %s20
    %p24 = pneg %p18
    %p25 = scmp.eq.s32.totalorder %s9, 1
    %p26 = por %p24, %p25
    %p27 = scmp.ne.s32.totalorder %s19, %s22
    %p28 = scmp.eq.s32.totalorder %s9, 0
    %p29 = por %p27, %p28
    %p30 = scmp.ne.s32.totalorder %s19, %s22
    %p31 = scmp.eq.s32.totalorder %s14, 1
    %p32 = por %p30, %p31
    %p33 = scmp.ne.s32.totalorder %s22, %s23
    %p34 = scmp.eq.s32.totalorder %s14, 0
    %p35 = por %p33, %p34
    %p36 = scmp.ne.s32.totalorder %s22, %s23
    %p37 = scmp.eq.s32.totalorder %s15, 1
    %p38 = por %p36, %p37
    %p40 = scmp.ne.s32.totalorder %s23, %s39
    %p41 = scmp.eq.s32.totalorder %s15, 0
    %p42 = por %p40, %p41
    %s44 = sadd.s32 %s43, 1
    %p47 = scmp.eq.s32.totalorder %s9, 1
    %p48 = scmp.ne.s32.totalorder %s43, %s45
    %p49 = scmp.eq.s32.totalorder %s9, 0
    %p50 = por %p48, %p49
    %p51 = scmp.ne.s32.totalorder %s43, %s45
    %p52 = scmp.eq.s32.totalorder %s14, 1
    %p53 = por %p51, %p52
    %p54 = scmp.ne.s32.totalorder %s45, %s46
    %p55 = scmp.eq.s32.totalorder %s14, 0
    %p56 = por %p54, %p55
    %p57 = scmp.ne.s32.totalorder %s45, %s46
    %p58 = scmp.eq.s32.totalorder %s15, 1
    %p59 = por %p57, %p58
    %p61 = scmp.ne.s32.totalorder %s46, %s60
    %p62 = scmp.eq.s32.totalorder %s15, 0
    %p63 = por %p61, %p62
    %s65 = sadd.s32 %s64, 1
    %p68 = scmp.eq.s32.totalorder %s9, 1
    %p69 = scmp.ne.s32.totalorder %s64, %s66
    %p70 = scmp.eq.s32.totalorder %s9, 0
    %p71 = por %p69, %p70
    %p72 = scmp.ne.s32.totalorder %s64, %s66
    %p73 = scmp.eq.s32.totalorder %s14, 1
    %p74 = por %p72, %p73
    %p75 = scmp.ne.s32.totalorder %s66, %s67
    %p76 = scmp.eq.s32.totalorder %s14, 0
    %p77 = por %p75, %p76
    %p78 = scmp.ne.s32.totalorder %s66, %s67
    %p79 = scmp.eq.s32.totalorder %s15, 1
    %p80 = por %p78, %p79
    %p82 = scmp.ne.s32.totalorder %s67, %s81
    %p83 = scmp.eq.s32.totalorder %s15, 0
    %p84 = por %p82, %p83
    %s85 = ssub.s32 %s9, %s16
    %p86 = scmp.eq.s32.totalorder %s85, 0
    %s88 = sadd.s32 %s87, 1
    %s89 = scalar_select %p86, %s87, %s88
    %p92 = pneg %p86
    %p93 = scmp.eq.s32.totalorder %s9, 1
    %p94 = por %p92, %p93
    %p95 = scmp.ne.s32.totalorder %s87, %s90
    %p96 = scmp.eq.s32.totalorder %s9, 0
    %p97 = por %p95, %p96
    %p98 = scmp.ne.s32.totalorder %s87, %s90
    %p99 = scmp.eq.s32.totalorder %s14, 1
    %p100 = por %p98, %p99
    %p101 = scmp.ne.s32.totalorder %s90, %s91
    %p102 = scmp.eq.s32.totalorder %s14, 0
    %p103 = por %p101, %p102
    %p104 = scmp.ne.s32.totalorder %s90, %s91
    %p105 = scmp.eq.s32.totalorder %s15, 1
    %p106 = por %p104, %p105
    %p108 = scmp.ne.s32.totalorder %s91, %s107
    %p109 = scmp.eq.s32.totalorder %s15, 0
    %p110 = por %p108, %p109
    %p111 = scmp.le.s32.totalorder 1, %s9
    %p112 = scmp.lt.s32.totalorder %s9, 3
    %p113 = pnand %p111, %p112
    %p114 = pneg %p113
    // Predicated region
    $region9: #{transformer_forward.4} parent=5 // pred_check
      _
    $region10: #{transformer_forward.4} parent=5 // pred_check_branch
      %116 = sbr.rel (%p113) target = $region12
    $region11: #{transformer_forward.4} parent=5 // pred_region
      %s117 = ssub.s32 %s9, 1
      // Predicated region
      $region13: #{transformer_forward.4} parent=11 // pred_check
        %p118 = pneg %p56
      $region14: #{transformer_forward.4} parent=11 // pred_check_branch
        %120 = sbr.rel (%p118) target = $region16
      $region15: #{transformer_forward.4} parent=11 // pred_region
        _
      $region16: #{transformer_forward.4} parent=11 // pred_fallthru
        _
      // Predicated region
      $region17: #{transformer_forward.4} parent=11 // pred_check
        %p121 = pneg %p77
      $region18: #{transformer_forward.4} parent=11 // pred_check_branch
        %123 = sbr.rel (%p121) target = $region20
      $region19: #{transformer_forward.4} parent=11 // pred_region
        _
      $region20: #{transformer_forward.4} parent=11 // pred_fallthru
        _
    $region12: #{transformer_forward.4} parent=5 // pred_fallthru
      _
    %p124 = scmp.lt.s32.totalorder %s9, 2
    // Predicated region
    $region21: #{transformer_forward.4} parent=5 // pred_check
      %p125 = pneg %p124
    $region22: #{transformer_forward.4} parent=5 // pred_check_branch
      %127 = sbr.rel (%p125) target = $region24
    $region23: #{transformer_forward.4} parent=5 // pred_region
      // Predicated region
      $region25: #{transformer_forward.4} parent=23 // pred_check
        %p128 = pneg %p29
      $region26: #{transformer_forward.4} parent=23 // pred_check_branch
        %130 = sbr.rel (%p128) target = $region28
      $region27: #{transformer_forward.4} parent=23 // pred_region
        %p131 = scmp.lt.s32.totalorder %s9, 1
        %s132 = scalar_select %p131, %s9, 1
        %s133 = smul.addr %s132, 32
        %s134 = smul.addr %s133, 8
        %s135 = scalar_lea.vmem %s0, %s134
      $region28: #{transformer_forward.4} parent=23 // pred_fallthru
        _
    $region24: #{transformer_forward.4} parent=5 // pred_fallthru
      _
    %p136 = scmp.le.s32.totalorder 1, %s9
    %p137 = scmp.lt.s32.totalorder %s9, 3
    %p138 = pnand %p136, %p137
    %p139 = pneg %p138
    // Predicated region
    $region29: #{transformer_forward.4} parent=5 // pred_check
      _
    $region30: #{transformer_forward.4} parent=5 // pred_check_branch
      %141 = sbr.rel (%p138) target = $region32
    $region31: #{transformer_forward.4} parent=5 // pred_region
      %s142 = ssub.s32 %s9, 1
      %p143 = scmp.lt.s32.totalorder %s14, 1
      %s144 = scalar_select %p143, %s14, 1
      %s145 = smul.addr %s144, 32
      %s146 = smul.addr %s145, 8
      %s147 = scalar_lea.vmem %s0, %s146
      %p148 = pneg %p35
      %p149 = pneg %p32
      %p150 = pneg %p56
      %p151 = pneg %p53
      %p152 = pneg %p77
      %p153 = pneg %p74
      %p154 = pneg %p103
      %p155 = pneg %p100
      %p156 = scmp.lt.s32.totalorder %s14, 1
      %s157 = scalar_select %p156, %s14, 1
      %s158 = smul.addr %s157, 32
      %s159 = smul.addr %s158, 8
      %s160 = scalar_lea.vmem %s3, %s159
      %p161 = scmp.lt.s32.totalorder %s14, 1
      %s162 = scalar_select %p161, %s14, 1
      %s163 = smul.addr %s162, 32
      %s164 = smul.addr %s163, 8
      %s165 = scalar_lea.vmem %s0, %s164
      %p166 = scmp.lt.s32.totalorder %s14, 1
      %s167 = scalar_select %p166, %s14, 1
      %s168 = smul.addr %s167, 32
      %s169 = smul.addr %s168, 8
      %s170 = scalar_lea.vmem %s3, %s169
      %v171 = vld [vmem:[%s165] sm:$0xff]
      %v172 = vld [vmem:[%s165 + $0x8] sm:$0xff]
      %v173 = vld [vmem:[%s165 + $0x10] sm:$0xff]
      %v174 = vld [vmem:[%s165 + $0x18] sm:$0xff]
      %v175 = vld [vmem:[%s165 + $0x20] sm:$0xff]
      %v176 = vld [vmem:[%s165 + $0x28] sm:$0xff]
      %v177 = vld [vmem:[%s165 + $0x30] sm:$0xff]
      %v178 = vld [vmem:[%s165 + $0x38] sm:$0xff]
      %v179 = vld [vmem:[%s165 + $0x40] sm:$0xff]
      %v180 = vld [vmem:[%s165 + $0x48] sm:$0xff]
      %v181 = vld [vmem:[%s165 + $0x50] sm:$0xff]
      %v182 = vld [vmem:[%s165 + $0x58] sm:$0xff]
      %v183 = vld [vmem:[%s165 + $0x60] sm:$0xff]
      %v184 = vld [vmem:[%s165 + $0x68] sm:$0xff]
      %v185 = vld [vmem:[%s165 + $0x70] sm:$0xff]
      %v186 = vld [vmem:[%s165 + $0x78] sm:$0xff]
      %v187 = vld [vmem:[%s165 + $0x80] sm:$0xff]
      %v188 = vld [vmem:[%s165 + $0x88] sm:$0xff]
      %v189 = vld [vmem:[%s165 + $0x90] sm:$0xff]
      %v190 = vld [vmem:[%s165 + $0x98] sm:$0xff]
      %v191 = vld [vmem:[%s165 + $0xa0] sm:$0xff]
      %v192 = vld [vmem:[%s165 + $0xa8] sm:$0xff]
      %v193 = vld [vmem:[%s165 + $0xb0] sm:$0xff]
      %v194 = vld [vmem:[%s165 + $0xb8] sm:$0xff]
      %v195 = vld [vmem:[%s165 + $0xc0] sm:$0xff]
      %v196 = vld [vmem:[%s165 + $0xc8] sm:$0xff]
      %v197 = vld [vmem:[%s165 + $0xd0] sm:$0xff]
      %v198 = vld [vmem:[%s165 + $0xd8] sm:$0xff]
      %v199 = vld [vmem:[%s165 + $0xe0] sm:$0xff]
      %v200 = vld [vmem:[%s165 + $0xe8] sm:$0xff]
      %v201 = vld [vmem:[%s165 + $0xf0] sm:$0xff]
      %v202 = vld [vmem:[%s165 + $0xf8] sm:$0xff]
      %v203 = vld [vmem:[%s1] sm:$0xf]
      %v204 = vld [vmem:[%s2] sm:$0x1]
      %v206 = vlaneseq
      %v207 = vshrl.u32 %v206, 7
      %v208 = vsub.s32 0, %v207
      %v209 = vrot.slane %v204, %v208
      %vm211 = vcmask 31744
      %v213 = vsel %vm211, %v171, 0
      %v216 = vsel %vm211, %v172, 0
      %v219 = vsel %vm211, %v173, 0
      %v222 = vsel %vm211, %v174, 0
      %v225 = vsel %vm211, %v175, 0
      %v228 = vsel %vm211, %v176, 0
      %v231 = vsel %vm211, %v177, 0
      %v234 = vsel %vm211, %v178, 0
      %v237 = vsel %vm211, %v179, 0
      %v240 = vsel %vm211, %v180, 0
      %v243 = vsel %vm211, %v181, 0
      %v246 = vsel %vm211, %v182, 0
      %v249 = vsel %vm211, %v183, 0
      %v252 = vsel %vm211, %v184, 0
      %v255 = vsel %vm211, %v185, 0
      %v258 = vsel %vm211, %v186, 0
      %v261 = vsel %vm211, %v187, 0
      %v264 = vsel %vm211, %v188, 0
      %v267 = vsel %vm211, %v189, 0
      %v270 = vsel %vm211, %v190, 0
      %v273 = vsel %vm211, %v191, 0
      %v276 = vsel %vm211, %v192, 0
      %v279 = vsel %vm211, %v193, 0
      %v282 = vsel %vm211, %v194, 0
      %v285 = vsel %vm211, %v195, 0
      %v288 = vsel %vm211, %v196, 0
      %v291 = vsel %vm211, %v197, 0
      %v294 = vsel %vm211, %v198, 0
      %v297 = vsel %vm211, %v199, 0
      %v300 = vsel %vm211, %v200, 0
      %v303 = vsel %vm211, %v201, 0
      %v306 = vsel %vm211, %v202, 0
      %vm308 = vcmask 1043456
      %v310 = vsel %vm308, %v203, 0
      %312 = vmatprep.subr.mxu0 0.0
      %313 = vmatpush1.msra.mxu0 %v310
      %314 = vmatprep.subr.mxu0 0.0
      %315 = vmatpush1.msra.mxu0 0.0
      %316 = vmatprep.subr.mxu0 0.0
      %317 = vmatpush1.msra.mxu0 0.0
      %318 = vmatprep.subr.mxu0 0.0
      %319 = vmatpush1.msra.mxu0 0.0
      %320 = vmatprep.subr.mxu0 0.0
      %321 = vmatpush1.msra.mxu0 0.0
      %322 = vmatprep.subr.mxu0 0.0
      %323 = vmatpush1.msra.mxu0 0.0
      %324 = vmatprep.subr.mxu0 0.0
      %325 = vmatpush1.msra.mxu0 0.0
      %326 = vmatprep.subr.mxu0 0.0
      %327 = vmatpush1.msra.mxu0 0.0
      %328 = vmatprep.subr.mxu0 0.0
      %329 = vmatpush1.msra.mxu0 0.0
      %330 = vmatprep.subr.mxu0 0.0
      %331 = vmatpush1.msra.mxu0 0.0
      %332 = vmatprep.subr.mxu0 0.0
      %333 = vmatpush1.msra.mxu0 0.0
      %334 = vmatprep.subr.mxu0 0.0
      %335 = vmatpush1.msra.mxu0 0.0
      %336 = vmatprep.subr.mxu0 0.0
      %337 = vmatpush1.msra.mxu0 0.0
      %338 = vmatprep.subr.mxu0 0.0
      %339 = vmatpush1.msra.mxu0 0.0
      %340 = vmatprep.subr.mxu0 0.0
      %341 = vmatpush1.msra.mxu0 0.0
      %342 = vmatprep.subr.mxu0 0.0
      %343 = vmatpush1.msra.mxu0 0.0
      %344 = vmatprep.subr.mxu0 0.0
      %345 = vmatpush1.msra.mxu0 0.0
      %346 = vmatprep.subr.mxu0 0.0
      %347 = vmatpush1.msra.mxu0 0.0
      %348 = vmatprep.subr.mxu0 0.0
      %349 = vmatpush1.msra.mxu0 0.0
      %350 = vmatprep.subr.mxu0 0.0
      %351 = vmatpush1.msra.mxu0 0.0
      %352 = vmatprep.subr.mxu0 0.0
      %353 = vmatpush1.msra.mxu0 0.0
      %354 = vmatprep.subr.mxu0 0.0
      %355 = vmatpush1.msra.mxu0 0.0
      %356 = vmatprep.subr.mxu0 0.0
      %357 = vmatpush1.msra.mxu0 0.0
      %358 = vmatprep.subr.mxu0 0.0
      %359 = vmatpush1.msra.mxu0 0.0
      %360 = vmatprep.subr.mxu0 0.0
      %361 = vmatpush1.msra.mxu0 0.0
      %362 = vmatprep.subr.mxu0 0.0
      %363 = vmatpush1.msra.mxu0 0.0
      %364 = vmatprep.subr.mxu0 0.0
      %365 = vmatpush1.msra.mxu0 0.0
      %366 = vmatprep.subr.mxu0 0.0
      %367 = vmatpush1.msra.mxu0 0.0
      %368 = vmatprep.subr.mxu0 0.0
      %369 = vmatpush1.msra.mxu0 0.0
      %370 = vmatprep.subr.mxu0 0.0
      %371 = vmatpush1.msra.mxu0 0.0
      %372 = vmatprep.subr.mxu0 0.0
      %373 = vmatpush1.msra.mxu0 0.0
      %374 = vmatprep.subr.mxu0 0.0
      %375 = vmatpush1.msra.mxu0 0.0
      %376 = vmatprep.mubr.f32.mxu0 0.0
      %377 = vmatmul.mubr.f32.gmra.mrb[0].mxu0 %v213
      %v378 = vpop.f32.mrb[0].mxu0
      %v379 = vadd.f32 %v209, %v378
      %v380 = vpop.f32.mrb[0].mxu0
      %381 = vmatprep.mubr.f32.mxu0 0.0
      %382 = vmatmul.mubr.f32.gmra.mrb[0].mxu0 %v216
      %v383 = vpop.f32.mrb[0].mxu0
      %v384 = vadd.f32 %v209, %v383
      %v385 = vpop.f32.mrb[0].mxu0
      %386 = vmatprep.mubr.f32.mxu0 0.0
      %387 = vmatmul.mubr.f32.gmra.mrb[0].mxu0 %v219
      %v388 = vpop.f32.mrb[0].mxu0
      %v389 = vadd.f32 %v209, %v388
      %v390 = vpop.f32.mrb[0].mxu0
      %391 = vmatprep.mubr.f32.mxu0 0.0
      %392 = vmatmul.mubr.f32.gmra.mrb[0].mxu0 %v222
      %v393 = vpop.f32.mrb[0].mxu0
      %v394 = vadd.f32 %v209, %v393
      %v395 = vpop.f32.mrb[0].mxu0
      %396 = vmatprep.mubr.f32.mxu0 0.0
      %397 = vmatmul.mubr.f32.gmra.mrb[0].mxu0 %v225
      %v398 = vpop.f32.mrb[0].mxu0
      %v399 = vadd.f32 %v209, %v398
      %v400 = vpop.f32.mrb[0].mxu0
      %401 = vmatprep.mubr.f32.mxu0 0.0
      %402 = vmatmul.mubr.f32.gmra.mrb[0].mxu0 %v228
      %v403 = vpop.f32.mrb[0].mxu0
      %v404 = vadd.f32 %v209, %v403
      %v405 = vpop.f32.mrb[0].mxu0
      %406 = vmatprep.mubr.f32.mxu0 0.0
      %407 = vmatmul.mubr.f32.gmra.mrb[0].mxu0 %v231
      %v408 = vpop.f32.mrb[0].mxu0
      %v409 = vadd.f32 %v209, %v408
      %v410 = vpop.f32.mrb[0].mxu0
      %411 = vmatprep.mubr.f32.mxu0 0.0
      %412 = vmatmul.mubr.f32.gmra.mrb[0].mxu0 %v234
      %v413 = vpop.f32.mrb[0].mxu0
      %v414 = vadd.f32 %v209, %v413
      %v415 = vpop.f32.mrb[0].mxu0
      %416 = vmatprep.mubr.f32.mxu0 0.0
      %417 = vmatmul.mubr.f32.gmra.mrb[0].mxu0 %v237
      %v418 = vpop.f32.mrb[0].mxu0
      %v419 = vadd.f32 %v209, %v418
      %v420 = vpop.f32.mrb[0].mxu0
      %421 = vmatprep.mubr.f32.mxu0 0.0
      %422 = vmatmul.mubr.f32.gmra.mrb[0].mxu0 %v240
      %v423 = vpop.f32.mrb[0].mxu0
      %v424 = vadd.f32 %v209, %v423
      %v425 = vpop.f32.mrb[0].mxu0
      %426 = vmatprep.mubr.f32.mxu0 0.0
      %427 = vmatmul.mubr.f32.gmra.mrb[0].mxu0 %v243
      %v428 = vpop.f32.mrb[0].mxu0
      %v429 = vadd.f32 %v209, %v428
      %v430 = vpop.f32.mrb[0].mxu0
      %431 = vmatprep.mubr.f32.mxu0 0.0
      %432 = vmatmul.mubr.f32.gmra.mrb[0].mxu0 %v246
      %v433 = vpop.f32.mrb[0].mxu0
      %v434 = vadd.f32 %v209, %v433
      %v435 = vpop.f32.mrb[0].mxu0
      %436 = vmatprep.mubr.f32.mxu0 0.0
      %437 = vmatmul.mubr.f32.gmra.mrb[0].mxu0 %v249
      %v438 = vpop.f32.mrb[0].mxu0
      %v439 = vadd.f32 %v209, %v438
      %v440 = vpop.f32.mrb[0].mxu0
      %441 = vmatprep.mubr.f32.mxu0 0.0
      %442 = vmatmul.mubr.f32.gmra.mrb[0].mxu0 %v252
      %v443 = vpop.f32.mrb[0].mxu0
      %v444 = vadd.f32 %v209, %v443
      %v445 = vpop.f32.mrb[0].mxu0
      %446 = vmatprep.mubr.f32.mxu0 0.0
      %447 = vmatmul.mubr.f32.gmra.mrb[0].mxu0 %v255
      %v448 = vpop.f32.mrb[0].mxu0
      %v449 = vadd.f32 %v209, %v448
      %v450 = vpop.f32.mrb[0].mxu0
      %451 = vmatprep.mubr.f32.mxu0 0.0
      %452 = vmatmul.mubr.f32.gmra.mrb[0].mxu0 %v258
      %v453 = vpop.f32.mrb[0].mxu0
      %v454 = vadd.f32 %v209, %v453
      %v455 = vpop.f32.mrb[0].mxu0
      %456 = vmatprep.mubr.f32.mxu0 0.0
      %457 = vmatmul.mubr.f32.gmra.mrb[0].mxu0 %v261
      %v458 = vpop.f32.mrb[0].mxu0
      %v459 = vadd.f32 %v209, %v458
      %v460 = vpop.f32.mrb[0].mxu0
      %461 = vmatprep.mubr.f32.mxu0 0.0
      %462 = vmatmul.mubr.f32.gmra.mrb[0].mxu0 %v264
      %v463 = vpop.f32.mrb[0].mxu0
      %v464 = vadd.f32 %v209, %v463
      %v465 = vpop.f32.mrb[0].mxu0
      %466 = vmatprep.mubr.f32.mxu0 0.0
      %467 = vmatmul.mubr.f32.gmra.mrb[0].mxu0 %v267
      %v468 = vpop.f32.mrb[0].mxu0
      %v469 = vadd.f32 %v209, %v468
      %v470 = vpop.f32.mrb[0].mxu0
      %471 = vmatprep.mubr.f32.mxu0 0.0
      %472 = vmatmul.mubr.f32.gmra.mrb[0].mxu0 %v270
      %v473 = vpop.f32.mrb[0].mxu0
      %v474 = vadd.f32 %v209, %v473
      %v475 = vpop.f32.mrb[0].mxu0
      %476 = vmatprep.mubr.f32.mxu0 0.0
      %477 = vmatmul.mubr.f32.gmra.mrb[0].mxu0 %v273
      %v478 = vpop.f32.mrb[0].mxu0
      %v479 = vadd.f32 %v209, %v478
      %v480 = vpop.f32.mrb[0].mxu0
      %481 = vmatprep.mubr.f32.mxu0 0.0
      %482 = vmatmul.mubr.f32.gmra.mrb[0].mxu0 %v276
      %v483 = vpop.f32.mrb[0].mxu0
      %v484 = vadd.f32 %v209, %v483
      %v485 = vpop.f32.mrb[0].mxu0
      %486 = vmatprep.mubr.f32.mxu0 0.0
      %487 = vmatmul.mubr.f32.gmra.mrb[0].mxu0 %v279
      %v488 = vpop.f32.mrb[0].mxu0
      %v489 = vadd.f32 %v209, %v488
      %v490 = vpop.f32.mrb[0].mxu0
      %491 = vmatprep.mubr.f32.mxu0 0.0
      %492 = vmatmul.mubr.f32.gmra.mrb[0].mxu0 %v282
      %v493 = vpop.f32.mrb[0].mxu0
      %v494 = vadd.f32 %v209, %v493
      %v495 = vpop.f32.mrb[0].mxu0
      %496 = vmatprep.mubr.f32.mxu0 0.0
      %497 = vmatmul.mubr.f32.gmra.mrb[0].mxu0 %v285
      %v498 = vpop.f32.mrb[0].mxu0
      %v499 = vadd.f32 %v209, %v498
      %v500 = vpop.f32.mrb[0].mxu0
      %501 = vmatprep.mubr.f32.mxu0 0.0
      %502 = vmatmul.mubr.f32.gmra.mrb[0].mxu0 %v288
      %v503 = vpop.f32.mrb[0].mxu0
      %v504 = vadd.f32 %v209, %v503
      %v505 = vpop.f32.mrb[0].mxu0
      %506 = vmatprep.mubr.f32.mxu0 0.0
      %507 = vmatmul.mubr.f32.gmra.mrb[0].mxu0 %v291
      %v508 = vpop.f32.mrb[0].mxu0
      %v509 = vadd.f32 %v209, %v508
      %v510 = vpop.f32.mrb[0].mxu0
      %511 = vmatprep.mubr.f32.mxu0 0.0
      %512 = vmatmul.mubr.f32.gmra.mrb[0].mxu0 %v294
      %v513 = vpop.f32.mrb[0].mxu0
      %v514 = vadd.f32 %v209, %v513
      %v515 = vpop.f32.mrb[0].mxu0
      %516 = vmatprep.mubr.f32.mxu0 0.0
      %517 = vmatmul.mubr.f32.gmra.mrb[0].mxu0 %v297
      %v518 = vpop.f32.mrb[0].mxu0
      %v519 = vadd.f32 %v209, %v518
      %v520 = vpop.f32.mrb[0].mxu0
      %521 = vmatprep.mubr.f32.mxu0 0.0
      %522 = vmatmul.mubr.f32.gmra.mrb[0].mxu0 %v300
      %v523 = vpop.f32.mrb[0].mxu0
      %v524 = vadd.f32 %v209, %v523
      %v525 = vpop.f32.mrb[0].mxu0
      %526 = vmatprep.mubr.f32.mxu0 0.0
      %527 = vmatmul.mubr.f32.gmra.mrb[0].mxu0 %v303
      %v528 = vpop.f32.mrb[0].mxu0
      %v529 = vadd.f32 %v209, %v528
      %v530 = vpop.f32.mrb[0].mxu0
      %531 = vmatprep.mubr.f32.mxu0 0.0
      %532 = vmatmul.mubr.f32.gmra.mrb[0].mxu0 %v306
      %v533 = vpop.f32.mrb[0].mxu0
      %v534 = vadd.f32 %v209, %v533
      %v535 = vpop.f32.mrb[0].mxu0
      %536 = vdwg.mxu0
      %vm537 = vcmask 261120
      %538 = vst.msk [vmem:[%s170] sm:$0xff] %vm537, %v379
      %539 = vst.msk [vmem:[%s170 + $0x8] sm:$0xff] %vm537, %v384
      %540 = vst.msk [vmem:[%s170 + $0x10] sm:$0xff] %vm537, %v389
      %541 = vst.msk [vmem:[%s170 + $0x18] sm:$0xff] %vm537, %v394
      %542 = vst.msk [vmem:[%s170 + $0x20] sm:$0xff] %vm537, %v399
      %543 = vst.msk [vmem:[%s170 + $0x28] sm:$0xff] %vm537, %v404
      %544 = vst.msk [vmem:[%s170 + $0x30] sm:$0xff] %vm537, %v409
      %545 = vst.msk [vmem:[%s170 + $0x38] sm:$0xff] %vm537, %v414
      %546 = vst.msk [vmem:[%s170 + $0x40] sm:$0xff] %vm537, %v419
      %547 = vst.msk [vmem:[%s170 + $0x48] sm:$0xff] %vm537, %v424
      %548 = vst.msk [vmem:[%s170 + $0x50] sm:$0xff] %vm537, %v429
      %549 = vst.msk [vmem:[%s170 + $0x58] sm:$0xff] %vm537, %v434
      %550 = vst.msk [vmem:[%s170 + $0x60] sm:$0xff] %vm537, %v439
      %551 = vst.msk [vmem:[%s170 + $0x68] sm:$0xff] %vm537, %v444
      %552 = vst.msk [vmem:[%s170 + $0x70] sm:$0xff] %vm537, %v449
      %553 = vst.msk [vmem:[%s170 + $0x78] sm:$0xff] %vm537, %v454
      %554 = vst.msk [vmem:[%s170 + $0x80] sm:$0xff] %vm537, %v459
      %555 = vst.msk [vmem:[%s170 + $0x88] sm:$0xff] %vm537, %v464
      %556 = vst.msk [vmem:[%s170 + $0x90] sm:$0xff] %vm537, %v469
      %557 = vst.msk [vmem:[%s170 + $0x98] sm:$0xff] %vm537, %v474
      %558 = vst.msk [vmem:[%s170 + $0xa0] sm:$0xff] %vm537, %v479
      %559 = vst.msk [vmem:[%s170 + $0xa8] sm:$0xff] %vm537, %v484
      %560 = vst.msk [vmem:[%s170 + $0xb0] sm:$0xff] %vm537, %v489
      %561 = vst.msk [vmem:[%s170 + $0xb8] sm:$0xff] %vm537, %v494
      %562 = vst.msk [vmem:[%s170 + $0xc0] sm:$0xff] %vm537, %v499
      %563 = vst.msk [vmem:[%s170 + $0xc8] sm:$0xff] %vm537, %v504
      %564 = vst.msk [vmem:[%s170 + $0xd0] sm:$0xff] %vm537, %v509
      %565 = vst.msk [vmem:[%s170 + $0xd8] sm:$0xff] %vm537, %v514
      %566 = vst.msk [vmem:[%s170 + $0xe0] sm:$0xff] %vm537, %v519
      %567 = vst.msk [vmem:[%s170 + $0xe8] sm:$0xff] %vm537, %v524
      %568 = vst.msk [vmem:[%s170 + $0xf0] sm:$0xff] %vm537, %v529
      %569 = vst.msk [vmem:[%s170 + $0xf8] sm:$0xff] %vm537, %v534
      %p570 = scmp.lt.s32.totalorder %s14, 1
      %s571 = scalar_select %p570, %s14, 1
      %s572 = smul.addr %s571, 32
      %s573 = smul.addr %s572, 8
      %s574 = scalar_lea.vmem %s3, %s573
      // Predicated region
      $region33: #{transformer_forward.4} parent=31 // pred_check
        %p575 = pneg %p100
      $region34: #{transformer_forward.4} parent=31 // pred_check_branch
        %577 = sbr.rel (%p575) target = $region36
      $region35: #{transformer_forward.4} parent=31 // pred_region
        _
      $region36: #{transformer_forward.4} parent=31 // pred_fallthru
        _
    $region32: #{transformer_forward.4} parent=5 // pred_fallthru
      _
    %p578 = scmp.le.s32.totalorder 2, %s9
    // Predicated region
    $region37: #{transformer_forward.4} parent=5 // pred_check
      %p579 = pneg %p578
    $region38: #{transformer_forward.4} parent=5 // pred_check_branch
      %581 = sbr.rel (%p579) target = $region40
    $region39: #{transformer_forward.4} parent=5 // pred_region
      %s582 = ssub.s32 %s9, 2
      // Predicated region
      $region41: #{transformer_forward.4} parent=39 // pred_check
        %p583 = pneg %p106
      $region42: #{transformer_forward.4} parent=39 // pred_check_branch
        %585 = sbr.rel (%p583) target = $region44
      $region43: #{transformer_forward.4} parent=39 // pred_region
        %p586 = scmp.lt.s32.totalorder %s15, 1
        %s587 = scalar_select %p586, %s15, 1
        %s588 = smul.addr %s587, 32
        %s589 = smul.addr %s588, 8
        %s590 = scalar_lea.vmem %s3, %s589
      $region44: #{transformer_forward.4} parent=39 // pred_fallthru
        _
    $region40: #{transformer_forward.4} parent=5 // pred_fallthru
      _
  $region6: #{transformer_forward.4} parent=0 // loop_footer
    %s13 = sadd.s32 1, %s9
  $region7: #{transformer_forward.4} parent=0 // loop_footer_branch
    %8 = sbr.rel target = $region3
  $region8: #{transformer_forward.4} parent=0 // loop_exit
    _

// kernel: transformer_forward.7
$region0: #{transformer_forward.7}
  #allocation0 [shape = 'u32[]', space=smem, size = 0x4, offset = 0x4, fixed_abs, tag = 'smem constant byte address 0x4 - core index']
  #allocation1 [shape = 'u32[144,128]{1,0:T(1,128)}', space=vmem, size = 0x12000, scoped, tag = 'internal scratch']
  %s0 = inlined_call_operand.vmem [shape: f32[2,8,32], index: 0, kind: input, shape index: {}]
  %s1 = inlined_call_operand.vmem [shape: f32[32,128], index: 1, kind: input, shape index: {}]
  %s2 = inlined_call_operand.hbm [shape: f32[2,8,128], index: 2, kind: output, shape index: {}]
  %s3 = sld [smem:[#allocation0]]
  $region41: #{transformer_forward.7} parent=0
    _
  %s5 = ssub.s32 1, %s3
  %s6 = scalar_select 0, %s5, %s3
  $region1: #{transformer_forward.7} parent=0
    #allocation2 [shape = 'u8[8192]{0}', space=vmem, size = 0x2000, scoped, tag = 'output window, operand 0']
    #allocation3 [shape = 's32[2]{0}', space=sflag, size = 0x8, scoped, tag = 'scoped memory for transformer_forward.7']
    %7 = vsyncpa [#allocation3], 0
    %s8 = scalar_lea.sflag [#allocation3], 1
    %9 = vsyncpa %s8, 0
    loop: start=0, step=1, limit=4
    $region2: #{transformer_forward.7} parent=1 // loop_pre_header
      _
    $region3: #{transformer_forward.7} parent=1 // loop_header
      %s11 = sphi 0, %s15
      %p12 = scmp.ge.s32.totalorder %s11, 4
      %s21 = sphi 0, %s23
      %s24 = sphi 0, %s21
      %s25 = sphi 0, %s24
      %s41 = sphi 0, %s25
      %s45 = sphi 0, %s45
      %s47 = sphi 0, %s45
      %s48 = sphi 0, %s47
      %s62 = sphi 0, %s48
      %s68 = sphi 0, %s70
      %s71 = sphi 0, %s68
      %s72 = sphi 0, %s71
      %s88 = sphi 0, %s72
    $region4: #{transformer_forward.7} parent=1 // loop_header_branch
      %14 = sbr.rel (%p12) target = $region8
    $region5: #{transformer_forward.7} parent=1 // loop_body
      %s16 = ssub.s32 %s11, 1
      %s17 = ssub.s32 %s11, 2
      %s18 = sadd.s32 %s11, 1
      %s19 = ssub.s32 %s11, %s18
      %p20 = scmp.eq.s32.totalorder %s19, 0
      %s22 = sadd.s32 %s21, 1
      %s23 = scalar_select %p20, %s21, %s22
      %p26 = pneg %p20
      %p27 = scmp.eq.s32.totalorder %s11, 1
      %p28 = por %p26, %p27
      %p29 = scmp.ne.s32.totalorder %s21, %s24
      %p30 = scmp.eq.s32.totalorder %s11, 0
      %p31 = por %p29, %p30
      %p32 = scmp.ne.s32.totalorder %s21, %s24
      %p33 = scmp.eq.s32.totalorder %s16, 1
      %p34 = por %p32, %p33
      %p35 = scmp.ne.s32.totalorder %s24, %s25
      %p36 = scmp.eq.s32.totalorder %s16, 0
      %p37 = por %p35, %p36
      %p38 = scmp.ne.s32.totalorder %s24, %s25
      %p39 = scmp.eq.s32.totalorder %s17, 1
      %p40 = por %p38, %p39
      %p42 = scmp.ne.s32.totalorder %s25, %s41
      %p43 = scmp.eq.s32.totalorder %s17, 0
      %p44 = por %p42, %p43
      %s46 = sadd.s32 %s45, 1
      %p49 = scmp.eq.s32.totalorder %s11, 1
      %p50 = scmp.ne.s32.totalorder %s45, %s47
      %p51 = scmp.eq.s32.totalorder %s11, 0
      %p52 = por %p50, %p51
      %p53 = scmp.ne.s32.totalorder %s45, %s47
      %p54 = scmp.eq.s32.totalorder %s16, 1
      %p55 = por %p53, %p54
      %p56 = scmp.ne.s32.totalorder %s47, %s48
      %p57 = scmp.eq.s32.totalorder %s16, 0
      %p58 = por %p56, %p57
      %p59 = scmp.ne.s32.totalorder %s47, %s48
      %p60 = scmp.eq.s32.totalorder %s17, 1
      %p61 = por %p59, %p60
      %p63 = scmp.ne.s32.totalorder %s48, %s62
      %p64 = scmp.eq.s32.totalorder %s17, 0
      %p65 = por %p63, %p64
      %s66 = ssub.s32 %s11, %s18
      %p67 = scmp.eq.s32.totalorder %s66, 0
      %s69 = sadd.s32 %s68, 1
      %s70 = scalar_select %p67, %s68, %s69
      %p73 = pneg %p67
      %p74 = scmp.eq.s32.totalorder %s11, 1
      %p75 = por %p73, %p74
      %p76 = scmp.ne.s32.totalorder %s68, %s71
      %p77 = scmp.eq.s32.totalorder %s11, 0
      %p78 = por %p76, %p77
      %p79 = scmp.ne.s32.totalorder %s68, %s71
      %p80 = scmp.eq.s32.totalorder %s16, 1
      %p81 = por %p79, %p80
      %p82 = scmp.ne.s32.totalorder %s71, %s72
      %p83 = scmp.eq.s32.totalorder %s16, 0
      %p84 = por %p82, %p83
      %p85 = scmp.ne.s32.totalorder %s71, %s72
      %p86 = scmp.eq.s32.totalorder %s17, 1
      %p87 = por %p85, %p86
      %p89 = scmp.ne.s32.totalorder %s72, %s88
      %p90 = scmp.eq.s32.totalorder %s17, 0
      %p91 = por %p89, %p90
      %p92 = scmp.le.s32.totalorder 1, %s11
      %p93 = scmp.lt.s32.totalorder %s11, 3
      %p94 = pnand %p92, %p93
      %p95 = pneg %p94
      // Predicated region
      $region9: #{transformer_forward.7} parent=5 // pred_check
        _
      $region10: #{transformer_forward.7} parent=5 // pred_check_branch
        %97 = sbr.rel (%p94) target = $region12
      $region11: #{transformer_forward.7} parent=5 // pred_region
        %s98 = ssub.s32 %s11, 1
        // Predicated region
        $region13: #{transformer_forward.7} parent=11 // pred_check
          %p99 = pneg %p58
        $region14: #{transformer_forward.7} parent=11 // pred_check_branch
          %101 = sbr.rel (%p99) target = $region16
        $region15: #{transformer_forward.7} parent=11 // pred_region
          _
        $region16: #{transformer_forward.7} parent=11 // pred_fallthru
          _
      $region12: #{transformer_forward.7} parent=5 // pred_fallthru
        _
      %p102 = scmp.lt.s32.totalorder %s11, 2
      // Predicated region
      $region17: #{transformer_forward.7} parent=5 // pred_check
        %p103 = pneg %p102
      $region18: #{transformer_forward.7} parent=5 // pred_check_branch
        %105 = sbr.rel (%p103) target = $region20
      $region19: #{transformer_forward.7} parent=5 // pred_region
        // Predicated region
        $region21: #{transformer_forward.7} parent=19 // pred_check
          %p106 = pneg %p31
        $region22: #{transformer_forward.7} parent=19 // pred_check_branch
          %108 = sbr.rel (%p106) target = $region24
        $region23: #{transformer_forward.7} parent=19 // pred_region
          %p109 = scmp.lt.s32.totalorder %s11, 1
          %s110 = scalar_select %p109, %s11, 1
          %s111 = smul.addr %s110, 8
          %s112 = scalar_lea.vmem %s0, %s111
        $region24: #{transformer_forward.7} parent=19 // pred_fallthru
          _
      $region20: #{transformer_forward.7} parent=5 // pred_fallthru
        _
      %p113 = scmp.le.s32.totalorder 1, %s11
      %p114 = scmp.lt.s32.totalorder %s11, 3
      %p115 = pnand %p113, %p114
      %p116 = pneg %p115
      // Predicated region
      $region25: #{transformer_forward.7} parent=5 // pred_check
        _
      $region26: #{transformer_forward.7} parent=5 // pred_check_branch
        %118 = sbr.rel (%p115) target = $region28
      $region27: #{transformer_forward.7} parent=5 // pred_region
        %s119 = ssub.s32 %s11, 1
        %p120 = scmp.lt.s32.totalorder %s16, 1
        %s121 = scalar_select %p120, %s16, 1
        %s122 = smul.addr %s121, 8
        %s123 = scalar_lea.vmem %s0, %s122
        %p124 = pneg %p37
        %p125 = pneg %p34
        %p126 = pneg %p58
        %p127 = pneg %p55
        %p128 = pneg %p84
        %p129 = pneg %p81
        %s130 = sand.u32 %s71, 1
        %s131 = scalar_lea.sflag [#allocation3], %s130
        %s132 = sand.u32 %s71, 1
        %s133 = smul.addr %s132, 8
        %s134 = scalar_lea.vmem [#allocation2], %s133
        %p135 = scmp.lt.s32.totalorder %s16, 1
        %s136 = scalar_select %p135, %s16, 1
        %s137 = smul.addr %s136, 8
        %s138 = scalar_lea.vmem %s0, %s137
        %v139 = vld [vmem:[%s138] sm:$0xff]
        %v140 = vld [vmem:[%s1] sm:$0xff]
        %v141 = vld [vmem:[%s1 + $0x8] sm:$0xff]
        %v142 = vld [vmem:[%s1 + $0x10] sm:$0xff]
        %v143 = vld [vmem:[%s1 + $0x18] sm:$0xff]
        %vm144 = vcmask 261120
        %v146 = vsel %vm144, %v139, 0
        %148 = vmatprep.subr.mxu0 0.0
        %149 = vmatpush1.msra.mxu0 %v140
        %150 = vmatprep.subr.mxu0 0.0
        %151 = vmatpush1.msra.mxu0 %v141
        %152 = vmatprep.subr.mxu0 0.0
        %153 = vmatpush1.msra.mxu0 %v142
        %154 = vmatprep.subr.mxu0 0.0
        %155 = vmatpush1.msra.mxu0 %v143
        %156 = vmatprep.subr.mxu0 0.0
        %157 = vmatpush1.msra.mxu0 0.0
        %158 = vmatprep.subr.mxu0 0.0
        %159 = vmatpush1.msra.mxu0 0.0
        %160 = vmatprep.subr.mxu0 0.0
        %161 = vmatpush1.msra.mxu0 0.0
        %162 = vmatprep.subr.mxu0 0.0
        %163 = vmatpush1.msra.mxu0 0.0
        %164 = vmatprep.subr.mxu0 0.0
        %165 = vmatpush1.msra.mxu0 0.0
        %166 = vmatprep.subr.mxu0 0.0
        %167 = vmatpush1.msra.mxu0 0.0
        %168 = vmatprep.subr.mxu0 0.0
        %169 = vmatpush1.msra.mxu0 0.0
        %170 = vmatprep.subr.mxu0 0.0
        %171 = vmatpush1.msra.mxu0 0.0
        %172 = vmatprep.subr.mxu0 0.0
        %173 = vmatpush1.msra.mxu0 0.0
        %174 = vmatprep.subr.mxu0 0.0
        %175 = vmatpush1.msra.mxu0 0.0
        %176 = vmatprep.subr.mxu0 0.0
        %177 = vmatpush1.msra.mxu0 0.0
        %178 = vmatprep.subr.mxu0 0.0
        %179 = vmatpush1.msra.mxu0 0.0
        %180 = vmatprep.subr.mxu0 0.0
        %181 = vmatpush1.msra.mxu0 0.0
        %182 = vmatprep.subr.mxu0 0.0
        %183 = vmatpush1.msra.mxu0 0.0
        %184 = vmatprep.subr.mxu0 0.0
        %185 = vmatpush1.msra.mxu0 0.0
        %186 = vmatprep.subr.mxu0 0.0
        %187 = vmatpush1.msra.mxu0 0.0
        %188 = vmatprep.subr.mxu0 0.0
        %189 = vmatpush1.msra.mxu0 0.0
        %190 = vmatprep.subr.mxu0 0.0
        %191 = vmatpush1.msra.mxu0 0.0
        %192 = vmatprep.subr.mxu0 0.0
        %193 = vmatpush1.msra.mxu0 0.0
        %194 = vmatprep.subr.mxu0 0.0
        %195 = vmatpush1.msra.mxu0 0.0
        %196 = vmatprep.subr.mxu0 0.0
        %197 = vmatpush1.msra.mxu0 0.0
        %198 = vmatprep.subr.mxu0 0.0
        %199 = vmatpush1.msra.mxu0 0.0
        %200 = vmatprep.subr.mxu0 0.0
        %201 = vmatpush1.msra.mxu0 0.0
        %202 = vmatprep.subr.mxu0 0.0
        %203 = vmatpush1.msra.mxu0 0.0
        %204 = vmatprep.subr.mxu0 0.0
        %205 = vmatpush1.msra.mxu0 0.0
        %206 = vmatprep.subr.mxu0 0.0
        %207 = vmatpush1.msra.mxu0 0.0
        %208 = vmatprep.subr.mxu0 0.0
        %209 = vmatpush1.msra.mxu0 0.0
        %210 = vmatprep.subr.mxu0 0.0
        %211 = vmatpush1.msra.mxu0 0.0
        %212 = vmatprep.mubr.f32.mxu0 0.0
        %213 = vmatmul.mubr.f32.gmra.mrb[0].mxu0 %v146
        %v214 = vpop.f32.mrb[0].mxu0
        %v215 = vadd.f32 0.0, %v214
        %v216 = vpop.f32.mrb[0].mxu0
        %217 = vdwg.mxu0
        %218 = vst [vmem:[%s134] sm:$0xff] %v215
        %s219 = sand.u32 %s71, 1
        %s220 = scalar_lea.sflag [#allocation3], %s219
        %s221 = sand.u32 %s71, 1
        %s222 = smul.addr %s221, 8
        %s223 = scalar_lea.vmem [#allocation2], %s222
        // Predicated region
        $region29: #{transformer_forward.7} parent=27 // pred_check
          %p224 = pneg %p81
        $region30: #{transformer_forward.7} parent=27 // pred_check_branch
          %226 = sbr.rel (%p224) target = $region32
        $region31: #{transformer_forward.7} parent=27 // pred_region
          %s228 = ssub.s32 128, 128
          %229 = vsyncadd %s220, %s228
          %s230 = smul.addr %s16, 128
          %s231 = scalar_lea.hbm %s2, %s230
          %s233 = sshll.u32 %s223, 4
          %s234 = int_to_ptr.vmem [resolvable:$true] %s233
          %236 = dma.vmem_to_hbm [thread:$0]  %s234, 128, %s231, %s220
        $region32: #{transformer_forward.7} parent=27 // pred_fallthru
          _
      $region28: #{transformer_forward.7} parent=5 // pred_fallthru
        _
      %p237 = scmp.le.s32.totalorder 2, %s11
      // Predicated region
      $region33: #{transformer_forward.7} parent=5 // pred_check
        %p238 = pneg %p237
      $region34: #{transformer_forward.7} parent=5 // pred_check_branch
        %240 = sbr.rel (%p238) target = $region36
      $region35: #{transformer_forward.7} parent=5 // pred_region
        %s241 = ssub.s32 %s11, 2
        // Predicated region
        $region37: #{transformer_forward.7} parent=35 // pred_check
          %p242 = pneg %p87
        $region38: #{transformer_forward.7} parent=35 // pred_check_branch
          %244 = sbr.rel (%p242) target = $region40
        $region39: #{transformer_forward.7} parent=35 // pred_region
          %s245 = sand.u32 %s72, 1
          %s246 = scalar_lea.sflag [#allocation3], %s245
          %s247 = sand.u32 %s72, 1
          %s248 = smul.addr %s247, 8
          %s249 = scalar_lea.vmem [#allocation2], %s248
          %250 = dma.done %s246, 128
        $region40: #{transformer_forward.7} parent=35 // pred_fallthru
          _
      $region36: #{transformer_forward.7} parent=5 // pred_fallthru
        _
    $region6: #{transformer_forward.7} parent=1 // loop_footer
      %s15 = sadd.s32 1, %s11
    $region7: #{transformer_forward.7} parent=1 // loop_footer_branch
      %10 = sbr.rel target = $region3
    $region8: #{transformer_forward.7} parent=1 // loop_exit
      _
    %251 = vsyncpa [#allocation3], 1
    %s252 = scalar_lea.sflag [#allocation3], 1
    %253 = vsyncpa %s252, 1

// kernel: transformer_forward.5
$region0: #{transformer_forward.5}
  #allocation0 [shape = 'u32[]', space=smem, size = 0x4, offset = 0x4, fixed_abs, tag = 'smem constant byte address 0x4 - core index']
  #allocation1 [shape = 'u32[144,128]{1,0:T(1,128)}', space=vmem, size = 0x12000, scoped, tag = 'internal scratch']
  %s0 = inlined_call_operand.vmem [shape: f32[2,8,32], index: 0, kind: input, shape index: {}]
  %s1 = inlined_call_operand.vmem [shape: f32[2,256,32], index: 1, kind: input, shape index: {}]
  %s2 = inlined_call_operand.vmem [shape: f32[32,96], index: 2, kind: input, shape index: {}]
  %s3 = inlined_call_operand.vmem [shape: f32[1,96], index: 3, kind: input, shape index: {}]
  %s4 = inlined_call_operand.vmem [shape: f32[32,32], index: 4, kind: input, shape index: {}]
  %s5 = inlined_call_operand.vmem [shape: f32[1,32], index: 5, kind: input, shape index: {}]
  %s6 = inlined_call_operand.vmem [shape: f32[1,32], index: 6, kind: input, shape index: {}]
  %s7 = inlined_call_operand.vmem [shape: f32[1,32], index: 7, kind: input, shape index: {}]
  %s8 = inlined_call_operand.vmem [shape: f32[32,32], index: 8, kind: input, shape index: {}]
  %s9 = inlined_call_operand.vmem [shape: f32[1,32], index: 9, kind: input, shape index: {}]
  %s10 = inlined_call_operand.vmem [shape: f32[32,64], index: 10, kind: input, shape index: {}]
  %s11 = inlined_call_operand.vmem [shape: f32[1,64], index: 11, kind: input, shape index: {}]
  %s12 = inlined_call_operand.vmem [shape: f32[32,32], index: 12, kind: input, shape index: {}]
  %s13 = inlined_call_operand.vmem [shape: f32[1,32], index: 13, kind: input, shape index: {}]
  %s14 = inlined_call_operand.vmem [shape: f32[1,32], index: 14, kind: input, shape index: {}]
  %s15 = inlined_call_operand.vmem [shape: f32[1,32], index: 15, kind: input, shape index: {}]
  %s16 = inlined_call_operand.vmem [shape: f32[32,64], index: 16, kind: input, shape index: {}]
  %s17 = inlined_call_operand.vmem [shape: f32[1,64], index: 17, kind: input, shape index: {}]
  %s18 = inlined_call_operand.vmem [shape: f32[64,32], index: 18, kind: input, shape index: {}]
  %s19 = inlined_call_operand.vmem [shape: f32[1,32], index: 19, kind: input, shape index: {}]
  %s20 = inlined_call_operand.vmem [shape: f32[1,32], index: 20, kind: input, shape index: {}]
  %s21 = inlined_call_operand.vmem [shape: f32[1,32], index: 21, kind: input, shape index: {}]
  %s22 = inlined_call_operand.vmem [shape: f32[2,8,32], index: 22, kind: output, shape index: {}]
  %s23 = sld [smem:[#allocation0]]
  $region121: #{transformer_forward.5} parent=0
    _
  %s25 = ssub.s32 1, %s23
  %s26 = scalar_select 0, %s25, %s23
  loop: start=0, step=1, limit=4
  $region2: #{transformer_forward.5} parent=0 // loop_pre_header
    _
  $region3: #{transformer_forward.5} parent=0 // loop_header
    %s28 = sphi 0, %s32
    %p29 = scmp.ge.s32.totalorder %s28, 4
    %s38 = sphi 0, %s40
    %s41 = sphi 0, %s38
    %s42 = sphi 0, %s41
    %s58 = sphi 0, %s42
    %s64 = sphi 0, %s66
    %s67 = sphi 0, %s64
    %s68 = sphi 0, %s67
    %s84 = sphi 0, %s68
    %s88 = sphi 0, %s88
    %s90 = sphi 0, %s88
    %s91 = sphi 0, %s90
    %s105 = sphi 0, %s91
    %s109 = sphi 0, %s109
    %s111 = sphi 0, %s109
    %s112 = sphi 0, %s111
    %s126 = sphi 0, %s112
    %s130 = sphi 0, %s130
    %s132 = sphi 0, %s130
    %s133 = sphi 0, %s132
    %s147 = sphi 0, %s133
    %s151 = sphi 0, %s151
    %s153 = sphi 0, %s151
    %s154 = sphi 0, %s153
    %s168 = sphi 0, %s154
    %s172 = sphi 0, %s172
    %s174 = sphi 0, %s172
    %s175 = sphi 0, %s174
    %s189 = sphi 0, %s175
    %s193 = sphi 0, %s193
    %s195 = sphi 0, %s193
    %s196 = sphi 0, %s195
    %s210 = sphi 0, %s196
    %s214 = sphi 0, %s214
    %s216 = sphi 0, %s214
    %s217 = sphi 0, %s216
    %s231 = sphi 0, %s217
    %s235 = sphi 0, %s235
    %s237 = sphi 0, %s235
    %s238 = sphi 0, %s237
    %s252 = sphi 0, %s238
    %s256 = sphi 0, %s256
    %s258 = sphi 0, %s256
    %s259 = sphi 0, %s258
    %s273 = sphi 0, %s259
    %s277 = sphi 0, %s277
    %s279 = sphi 0, %s277
    %s280 = sphi 0, %s279
    %s294 = sphi 0, %s280
    %s298 = sphi 0, %s298
    %s300 = sphi 0, %s298
    %s301 = sphi 0, %s300
    %s315 = sphi 0, %s301
    %s319 = sphi 0, %s319
    %s321 = sphi 0, %s319
    %s322 = sphi 0, %s321
    %s336 = sphi 0, %s322
    %s340 = sphi 0, %s340
    %s342 = sphi 0, %s340
    %s343 = sphi 0, %s342
    %s357 = sphi 0, %s343
    %s361 = sphi 0, %s361
    %s363 = sphi 0, %s361
    %s364 = sphi 0, %s363
    %s378 = sphi 0, %s364
    %s382 = sphi 0, %s382
    %s384 = sphi 0, %s382
    %s385 = sphi 0, %s384
    %s399 = sphi 0, %s385
    %s403 = sphi 0, %s403
    %s405 = sphi 0, %s403
    %s406 = sphi 0, %s405
    %s420 = sphi 0, %s406
    %s424 = sphi 0, %s424
    %s426 = sphi 0, %s424
    %s427 = sphi 0, %s426
    %s441 = sphi 0, %s427
    %s445 = sphi 0, %s445
    %s447 = sphi 0, %s445
    %s448 = sphi 0, %s447
    %s462 = sphi 0, %s448
    %s466 = sphi 0, %s466
    %s468 = sphi 0, %s466
    %s469 = sphi 0, %s468
    %s483 = sphi 0, %s469
    %s487 = sphi 0, %s487
    %s489 = sphi 0, %s487
    %s490 = sphi 0, %s489
    %s504 = sphi 0, %s490
    %s510 = sphi 0, %s512
    %s513 = sphi 0, %s510
    %s514 = sphi 0, %s513
    %s530 = sphi 0, %s514
  $region4: #{transformer_forward.5} parent=0 // loop_header_branch
    %31 = sbr.rel (%p29) target = $region8
  $region5: #{transformer_forward.5} parent=0 // loop_body
    %s33 = ssub.s32 %s28, 1
    %s34 = ssub.s32 %s28, 2
    %s35 = sadd.s32 %s28, 1
    %s36 = ssub.s32 %s28, %s35
    %p37 = scmp.eq.s32.totalorder %s36, 0
    %s39 = sadd.s32 %s38, 1
    %s40 = scalar_select %p37, %s38, %s39
    %p43 = pneg %p37
    %p44 = scmp.eq.s32.totalorder %s28, 1
    %p45 = por %p43, %p44
    %p46 = scmp.ne.s32.totalorder %s38, %s41
    %p47 = scmp.eq.s32.totalorder %s28, 0
    %p48 = por %p46, %p47
    %p49 = scmp.ne.s32.totalorder %s38, %s41
    %p50 = scmp.eq.s32.totalorder %s33, 1
    %p51 = por %p49, %p50
    %p52 = scmp.ne.s32.totalorder %s41, %s42
    %p53 = scmp.eq.s32.totalorder %s33, 0
    %p54 = por %p52, %p53
    %p55 = scmp.ne.s32.totalorder %s41, %s42
    %p56 = scmp.eq.s32.totalorder %s34, 1
    %p57 = por %p55, %p56
    %p59 = scmp.ne.s32.totalorder %s42, %s58
    %p60 = scmp.eq.s32.totalorder %s34, 0
    %p61 = por %p59, %p60
    %s62 = ssub.s32 %s28, %s35
    %p63 = scmp.eq.s32.totalorder %s62, 0
    %s65 = sadd.s32 %s64, 1
    %s66 = scalar_select %p63, %s64, %s65
    %p69 = pneg %p63
    %p70 = scmp.eq.s32.totalorder %s28, 1
    %p71 = por %p69, %p70
    %p72 = scmp.ne.s32.totalorder %s64, %s67
    %p73 = scmp.eq.s32.totalorder %s28, 0
    %p74 = por %p72, %p73
    %p75 = scmp.ne.s32.totalorder %s64, %s67
    %p76 = scmp.eq.s32.totalorder %s33, 1
    %p77 = por %p75, %p76
    %p78 = scmp.ne.s32.totalorder %s67, %s68
    %p79 = scmp.eq.s32.totalorder %s33, 0
    %p80 = por %p78, %p79
    %p81 = scmp.ne.s32.totalorder %s67, %s68
    %p82 = scmp.eq.s32.totalorder %s34, 1
    %p83 = por %p81, %p82
    %p85 = scmp.ne.s32.totalorder %s68, %s84
    %p86 = scmp.eq.s32.totalorder %s34, 0
    %p87 = por %p85, %p86
    %s89 = sadd.s32 %s88, 1
    %p92 = scmp.eq.s32.totalorder %s28, 1
    %p93 = scmp.ne.s32.totalorder %s88, %s90
    %p94 = scmp.eq.s32.totalorder %s28, 0
    %p95 = por %p93, %p94
    %p96 = scmp.ne.s32.totalorder %s88, %s90
    %p97 = scmp.eq.s32.totalorder %s33, 1
    %p98 = por %p96, %p97
    %p99 = scmp.ne.s32.totalorder %s90, %s91
    %p100 = scmp.eq.s32.totalorder %s33, 0
    %p101 = por %p99, %p100
    %p102 = scmp.ne.s32.totalorder %s90, %s91
    %p103 = scmp.eq.s32.totalorder %s34, 1
    %p104 = por %p102, %p103
    %p106 = scmp.ne.s32.totalorder %s91, %s105
    %p107 = scmp.eq.s32.totalorder %s34, 0
    %p108 = por %p106, %p107
    %s110 = sadd.s32 %s109, 1
    %p113 = scmp.eq.s32.totalorder %s28, 1
    %p114 = scmp.ne.s32.totalorder %s109, %s111
    %p115 = scmp.eq.s32.totalorder %s28, 0
    %p116 = por %p114, %p115
    %p117 = scmp.ne.s32.totalorder %s109, %s111
    %p118 = scmp.eq.s32.totalorder %s33, 1
    %p119 = por %p117, %p118
    %p120 = scmp.ne.s32.totalorder %s111, %s112
    %p121 = scmp.eq.s32.totalorder %s33, 0
    %p122 = por %p120, %p121
    %p123 = scmp.ne.s32.totalorder %s111, %s112
    %p124 = scmp.eq.s32.totalorder %s34, 1
    %p125 = por %p123, %p124
    %p127 = scmp.ne.s32.totalorder %s112, %s126
    %p128 = scmp.eq.s32.totalorder %s34, 0
    %p129 = por %p127, %p128
    %s131 = sadd.s32 %s130, 1
    %p134 = scmp.eq.s32.totalorder %s28, 1
    %p135 = scmp.ne.s32.totalorder %s130, %s132
    %p136 = scmp.eq.s32.totalorder %s28, 0
    %p137 = por %p135, %p136
    %p138 = scmp.ne.s32.totalorder %s130, %s132
    %p139 = scmp.eq.s32.totalorder %s33, 1
    %p140 = por %p138, %p139
    %p141 = scmp.ne.s32.totalorder %s132, %s133
    %p142 = scmp.eq.s32.totalorder %s33, 0
    %p143 = por %p141, %p142
    %p144 = scmp.ne.s32.totalorder %s132, %s133
    %p145 = scmp.eq.s32.totalorder %s34, 1
    %p146 = por %p144, %p145
    %p148 = scmp.ne.s32.totalorder %s133, %s147
    %p149 = scmp.eq.s32.totalorder %s34, 0
    %p150 = por %p148, %p149
    %s152 = sadd.s32 %s151, 1
    %p155 = scmp.eq.s32.totalorder %s28, 1
    %p156 = scmp.ne.s32.totalorder %s151, %s153
    %p157 = scmp.eq.s32.totalorder %s28, 0
    %p158 = por %p156, %p157
    %p159 = scmp.ne.s32.totalorder %s151, %s153
    %p160 = scmp.eq.s32.totalorder %s33, 1
    %p161 = por %p159, %p160
    %p162 = scmp.ne.s32.totalorder %s153, %s154
    %p163 = scmp.eq.s32.totalorder %s33, 0
    %p164 = por %p162, %p163
    %p165 = scmp.ne.s32.totalorder %s153, %s154
    %p166 = scmp.eq.s32.totalorder %s34, 1
    %p167 = por %p165, %p166
    %p169 = scmp.ne.s32.totalorder %s154, %s168
    %p170 = scmp.eq.s32.totalorder %s34, 0
    %p171 = por %p169, %p170
    %s173 = sadd.s32 %s172, 1
    %p176 = scmp.eq.s32.totalorder %s28, 1
    %p177 = scmp.ne.s32.totalorder %s172, %s174
    %p178 = scmp.eq.s32.totalorder %s28, 0
    %p179 = por %p177, %p178
    %p180 = scmp.ne.s32.totalorder %s172, %s174
    %p181 = scmp.eq.s32.totalorder %s33, 1
    %p182 = por %p180, %p181
    %p183 = scmp.ne.s32.totalorder %s174, %s175
    %p184 = scmp.eq.s32.totalorder %s33, 0
    %p185 = por %p183, %p184
    %p186 = scmp.ne.s32.totalorder %s174, %s175
    %p187 = scmp.eq.s32.totalorder %s34, 1
    %p188 = por %p186, %p187
    %p190 = scmp.ne.s32.totalorder %s175, %s189
    %p191 = scmp.eq.s32.totalorder %s34, 0
    %p192 = por %p190, %p191
    %s194 = sadd.s32 %s193, 1
    %p197 = scmp.eq.s32.totalorder %s28, 1
    %p198 = scmp.ne.s32.totalorder %s193, %s195
    %p199 = scmp.eq.s32.totalorder %s28, 0
    %p200 = por %p198, %p199
    %p201 = scmp.ne.s32.totalorder %s193, %s195
    %p202 = scmp.eq.s32.totalorder %s33, 1
    %p203 = por %p201, %p202
    %p204 = scmp.ne.s32.totalorder %s195, %s196
    %p205 = scmp.eq.s32.totalorder %s33, 0
    %p206 = por %p204, %p205
    %p207 = scmp.ne.s32.totalorder %s195, %s196
    %p208 = scmp.eq.s32.totalorder %s34, 1
    %p209 = por %p207, %p208
    %p211 = scmp.ne.s32.totalorder %s196, %s210
    %p212 = scmp.eq.s32.totalorder %s34, 0
    %p213 = por %p211, %p212
    %s215 = sadd.s32 %s214, 1
    %p218 = scmp.eq.s32.totalorder %s28, 1
    %p219 = scmp.ne.s32.totalorder %s214, %s216
    %p220 = scmp.eq.s32.totalorder %s28, 0
    %p221 = por %p219, %p220
    %p222 = scmp.ne.s32.totalorder %s214, %s216
    %p223 = scmp.eq.s32.totalorder %s33, 1
    %p224 = por %p222, %p223
    %p225 = scmp.ne.s32.totalorder %s216, %s217
    %p226 = scmp.eq.s32.totalorder %s33, 0
    %p227 = por %p225, %p226
    %p228 = scmp.ne.s32.totalorder %s216, %s217
    %p229 = scmp.eq.s32.totalorder %s34, 1
    %p230 = por %p228, %p229
    %p232 = scmp.ne.s32.totalorder %s217, %s231
    %p233 = scmp.eq.s32.totalorder %s34, 0
    %p234 = por %p232, %p233
    %s236 = sadd.s32 %s235, 1
    %p239 = scmp.eq.s32.totalorder %s28, 1
    %p240 = scmp.ne.s32.totalorder %s235, %s237
    %p241 = scmp.eq.s32.totalorder %s28, 0
    %p242 = por %p240, %p241
    %p243 = scmp.ne.s32.totalorder %s235, %s237
    %p244 = scmp.eq.s32.totalorder %s33, 1
    %p245 = por %p243, %p244
    %p246 = scmp.ne.s32.totalorder %s237, %s238
    %p247 = scmp.eq.s32.totalorder %s33, 0
    %p248 = por %p246, %p247
    %p249 = scmp.ne.s32.totalorder %s237, %s238
    %p250 = scmp.eq.s32.totalorder %s34, 1
    %p251 = por %p249, %p250
    %p253 = scmp.ne.s32.totalorder %s238, %s252
    %p254 = scmp.eq.s32.totalorder %s34, 0
    %p255 = por %p253, %p254
    %s257 = sadd.s32 %s256, 1
    %p260 = scmp.eq.s32.totalorder %s28, 1
    %p261 = scmp.ne.s32.totalorder %s256, %s258
    %p262 = scmp.eq.s32.totalorder %s28, 0
    %p263 = por %p261, %p262
    %p264 = scmp.ne.s32.totalorder %s256, %s258
    %p265 = scmp.eq.s32.totalorder %s33, 1
    %p266 = por %p264, %p265
    %p267 = scmp.ne.s32.totalorder %s258, %s259
    %p268 = scmp.eq.s32.totalorder %s33, 0
    %p269 = por %p267, %p268
    %p270 = scmp.ne.s32.totalorder %s258, %s259
    %p271 = scmp.eq.s32.totalorder %s34, 1
    %p272 = por %p270, %p271
    %p274 = scmp.ne.s32.totalorder %s259, %s273
    %p275 = scmp.eq.s32.totalorder %s34, 0
    %p276 = por %p274, %p275
    %s278 = sadd.s32 %s277, 1
    %p281 = scmp.eq.s32.totalorder %s28, 1
    %p282 = scmp.ne.s32.totalorder %s277, %s279
    %p283 = scmp.eq.s32.totalorder %s28, 0
    %p284 = por %p282, %p283
    %p285 = scmp.ne.s32.totalorder %s277, %s279
    %p286 = scmp.eq.s32.totalorder %s33, 1
    %p287 = por %p285, %p286
    %p288 = scmp.ne.s32.totalorder %s279, %s280
    %p289 = scmp.eq.s32.totalorder %s33, 0
    %p290 = por %p288, %p289
    %p291 = scmp.ne.s32.totalorder %s279, %s280
    %p292 = scmp.eq.s32.totalorder %s34, 1
    %p293 = por %p291, %p292
    %p295 = scmp.ne.s32.totalorder %s280, %s294
    %p296 = scmp.eq.s32.totalorder %s34, 0
    %p297 = por %p295, %p296
    %s299 = sadd.s32 %s298, 1
    %p302 = scmp.eq.s32.totalorder %s28, 1
    %p303 = scmp.ne.s32.totalorder %s298, %s300
    %p304 = scmp.eq.s32.totalorder %s28, 0
    %p305 = por %p303, %p304
    %p306 = scmp.ne.s32.totalorder %s298, %s300
    %p307 = scmp.eq.s32.totalorder %s33, 1
    %p308 = por %p306, %p307
    %p309 = scmp.ne.s32.totalorder %s300, %s301
    %p310 = scmp.eq.s32.totalorder %s33, 0
    %p311 = por %p309, %p310
    %p312 = scmp.ne.s32.totalorder %s300, %s301
    %p313 = scmp.eq.s32.totalorder %s34, 1
    %p314 = por %p312, %p313
    %p316 = scmp.ne.s32.totalorder %s301, %s315
    %p317 = scmp.eq.s32.totalorder %s34, 0
    %p318 = por %p316, %p317
    %s320 = sadd.s32 %s319, 1
    %p323 = scmp.eq.s32.totalorder %s28, 1
    %p324 = scmp.ne.s32.totalorder %s319, %s321
    %p325 = scmp.eq.s32.totalorder %s28, 0
    %p326 = por %p324, %p325
    %p327 = scmp.ne.s32.totalorder %s319, %s321
    %p328 = scmp.eq.s32.totalorder %s33, 1
    %p329 = por %p327, %p328
    %p330 = scmp.ne.s32.totalorder %s321, %s322
    %p331 = scmp.eq.s32.totalorder %s33, 0
    %p332 = por %p330, %p331
    %p333 = scmp.ne.s32.totalorder %s321, %s322
    %p334 = scmp.eq.s32.totalorder %s34, 1
    %p335 = por %p333, %p334
    %p337 = scmp.ne.s32.totalorder %s322, %s336
    %p338 = scmp.eq.s32.totalorder %s34, 0
    %p339 = por %p337, %p338
    %s341 = sadd.s32 %s340, 1
    %p344 = scmp.eq.s32.totalorder %s28, 1
    %p345 = scmp.ne.s32.totalorder %s340, %s342
    %p346 = scmp.eq.s32.totalorder %s28, 0
    %p347 = por %p345, %p346
    %p348 = scmp.ne.s32.totalorder %s340, %s342
    %p349 = scmp.eq.s32.totalorder %s33, 1
    %p350 = por %p348, %p349
    %p351 = scmp.ne.s32.totalorder %s342, %s343
    %p352 = scmp.eq.s32.totalorder %s33, 0
    %p353 = por %p351, %p352
    %p354 = scmp.ne.s32.totalorder %s342, %s343
    %p355 = scmp.eq.s32.totalorder %s34, 1
    %p356 = por %p354, %p355
    %p358 = scmp.ne.s32.totalorder %s343, %s357
    %p359 = scmp.eq.s32.totalorder %s34, 0
    %p360 = por %p358, %p359
    %s362 = sadd.s32 %s361, 1
    %p365 = scmp.eq.s32.totalorder %s28, 1
    %p366 = scmp.ne.s32.totalorder %s361, %s363
    %p367 = scmp.eq.s32.totalorder %s28, 0
    %p368 = por %p366, %p367
    %p369 = scmp.ne.s32.totalorder %s361, %s363
    %p370 = scmp.eq.s32.totalorder %s33, 1
    %p371 = por %p369, %p370
    %p372 = scmp.ne.s32.totalorder %s363, %s364
    %p373 = scmp.eq.s32.totalorder %s33, 0
    %p374 = por %p372, %p373
    %p375 = scmp.ne.s32.totalorder %s363, %s364
    %p376 = scmp.eq.s32.totalorder %s34, 1
    %p377 = por %p375, %p376
    %p379 = scmp.ne.s32.totalorder %s364, %s378
    %p380 = scmp.eq.s32.totalorder %s34, 0
    %p381 = por %p379, %p380
    %s383 = sadd.s32 %s382, 1
    %p386 = scmp.eq.s32.totalorder %s28, 1
    %p387 = scmp.ne.s32.totalorder %s382, %s384
    %p388 = scmp.eq.s32.totalorder %s28, 0
    %p389 = por %p387, %p388
    %p390 = scmp.ne.s32.totalorder %s382, %s384
    %p391 = scmp.eq.s32.totalorder %s33, 1
    %p392 = por %p390, %p391
    %p393 = scmp.ne.s32.totalorder %s384, %s385
    %p394 = scmp.eq.s32.totalorder %s33, 0
    %p395 = por %p393, %p394
    %p396 = scmp.ne.s32.totalorder %s384, %s385
    %p397 = scmp.eq.s32.totalorder %s34, 1
    %p398 = por %p396, %p397
    %p400 = scmp.ne.s32.totalorder %s385, %s399
    %p401 = scmp.eq.s32.totalorder %s34, 0
    %p402 = por %p400, %p401
    %s404 = sadd.s32 %s403, 1
    %p407 = scmp.eq.s32.totalorder %s28, 1
    %p408 = scmp.ne.s32.totalorder %s403, %s405
    %p409 = scmp.eq.s32.totalorder %s28, 0
    %p410 = por %p408, %p409
    %p411 = scmp.ne.s32.totalorder %s403, %s405
    %p412 = scmp.eq.s32.totalorder %s33, 1
    %p413 = por %p411, %p412
    %p414 = scmp.ne.s32.totalorder %s405, %s406
    %p415 = scmp.eq.s32.totalorder %s33, 0
    %p416 = por %p414, %p415
    %p417 = scmp.ne.s32.totalorder %s405, %s406
    %p418 = scmp.eq.s32.totalorder %s34, 1
    %p419 = por %p417, %p418
    %p421 = scmp.ne.s32.totalorder %s406, %s420
    %p422 = scmp.eq.s32.totalorder %s34, 0
    %p423 = por %p421, %p422
    %s425 = sadd.s32 %s424, 1
    %p428 = scmp.eq.s32.totalorder %s28, 1
    %p429 = scmp.ne.s32.totalorder %s424, %s426
    %p430 = scmp.eq.s32.totalorder %s28, 0
    %p431 = por %p429, %p430
    %p432 = scmp.ne.s32.totalorder %s424, %s426
    %p433 = scmp.eq.s32.totalorder %s33, 1
    %p434 = por %p432, %p433
    %p435 = scmp.ne.s32.totalorder %s426, %s427
    %p436 = scmp.eq.s32.totalorder %s33, 0
    %p437 = por %p435, %p436
    %p438 = scmp.ne.s32.totalorder %s426, %s427
    %p439 = scmp.eq.s32.totalorder %s34, 1
    %p440 = por %p438, %p439
    %p442 = scmp.ne.s32.totalorder %s427, %s441
    %p443 = scmp.eq.s32.totalorder %s34, 0
    %p444 = por %p442, %p443
    %s446 = sadd.s32 %s445, 1
    %p449 = scmp.eq.s32.totalorder %s28, 1
    %p450 = scmp.ne.s32.totalorder %s445, %s447
    %p451 = scmp.eq.s32.totalorder %s28, 0
    %p452 = por %p450, %p451
    %p453 = scmp.ne.s32.totalorder %s445, %s447
    %p454 = scmp.eq.s32.totalorder %s33, 1
    %p455 = por %p453, %p454
    %p456 = scmp.ne.s32.totalorder %s447, %s448
    %p457 = scmp.eq.s32.totalorder %s33, 0
    %p458 = por %p456, %p457
    %p459 = scmp.ne.s32.totalorder %s447, %s448
    %p460 = scmp.eq.s32.totalorder %s34, 1
    %p461 = por %p459, %p460
    %p463 = scmp.ne.s32.totalorder %s448, %s462
    %p464 = scmp.eq.s32.totalorder %s34, 0
    %p465 = por %p463, %p464
    %s467 = sadd.s32 %s466, 1
    %p470 = scmp.eq.s32.totalorder %s28, 1
    %p471 = scmp.ne.s32.totalorder %s466, %s468
    %p472 = scmp.eq.s32.totalorder %s28, 0
    %p473 = por %p471, %p472
    %p474 = scmp.ne.s32.totalorder %s466, %s468
    %p475 = scmp.eq.s32.totalorder %s33, 1
    %p476 = por %p474, %p475
    %p477 = scmp.ne.s32.totalorder %s468, %s469
    %p478 = scmp.eq.s32.totalorder %s33, 0
    %p479 = por %p477, %p478
    %p480 = scmp.ne.s32.totalorder %s468, %s469
    %p481 = scmp.eq.s32.totalorder %s34, 1
    %p482 = por %p480, %p481
    %p484 = scmp.ne.s32.totalorder %s469, %s483
    %p485 = scmp.eq.s32.totalorder %s34, 0
    %p486 = por %p484, %p485
    %s488 = sadd.s32 %s487, 1
    %p491 = scmp.eq.s32.totalorder %s28, 1
    %p492 = scmp.ne.s32.totalorder %s487, %s489
    %p493 = scmp.eq.s32.totalorder %s28, 0
    %p494 = por %p492, %p493
    %p495 = scmp.ne.s32.totalorder %s487, %s489
    %p496 = scmp.eq.s32.totalorder %s33, 1
    %p497 = por %p495, %p496
    %p498 = scmp.ne.s32.totalorder %s489, %s490
    %p499 = scmp.eq.s32.totalorder %s33, 0
    %p500 = por %p498, %p499
    %p501 = scmp.ne.s32.totalorder %s489, %s490
    %p502 = scmp.eq.s32.totalorder %s34, 1
    %p503 = por %p501, %p502
    %p505 = scmp.ne.s32.totalorder %s490, %s504
    %p506 = scmp.eq.s32.totalorder %s34, 0
    %p507 = por %p505, %p506
    %s508 = ssub.s32 %s28, %s35
    %p509 = scmp.eq.s32.totalorder %s508, 0
    %s511 = sadd.s32 %s510, 1
    %s512 = scalar_select %p509, %s510, %s511
    %p515 = pneg %p509
    %p516 = scmp.eq.s32.totalorder %s28, 1
    %p517 = por %p515, %p516
    %p518 = scmp.ne.s32.totalorder %s510, %s513
    %p519 = scmp.eq.s32.totalorder %s28, 0
    %p520 = por %p518, %p519
    %p521 = scmp.ne.s32.totalorder %s510, %s513
    %p522 = scmp.eq.s32.totalorder %s33, 1
    %p523 = por %p521, %p522
    %p524 = scmp.ne.s32.totalorder %s513, %s514
    %p525 = scmp.eq.s32.totalorder %s33, 0
    %p526 = por %p524, %p525
    %p527 = scmp.ne.s32.totalorder %s513, %s514
    %p528 = scmp.eq.s32.totalorder %s34, 1
    %p529 = por %p527, %p528
    %p531 = scmp.ne.s32.totalorder %s514, %s530
    %p532 = scmp.eq.s32.totalorder %s34, 0
    %p533 = por %p531, %p532
    %p534 = scmp.le.s32.totalorder 1, %s28
    %p535 = scmp.lt.s32.totalorder %s28, 3
    %p536 = pnand %p534, %p535
    %p537 = pneg %p536
    // Predicated region
    $region9: #{transformer_forward.5} parent=5 // pred_check
      _
    $region10: #{transformer_forward.5} parent=5 // pred_check_branch
      %539 = sbr.rel (%p536) target = $region12
    $region11: #{transformer_forward.5} parent=5 // pred_region
      %s540 = ssub.s32 %s28, 1
      // Predicated region
      $region13: #{transformer_forward.5} parent=11 // pred_check
        %p541 = pneg %p101
      $region14: #{transformer_forward.5} parent=11 // pred_check_branch
        %543 = sbr.rel (%p541) target = $region16
      $region15: #{transformer_forward.5} parent=11 // pred_region
        _
      $region16: #{transformer_forward.5} parent=11 // pred_fallthru
        _
      // Predicated region
      $region17: #{transformer_forward.5} parent=11 // pred_check
        %p544 = pneg %p122
      $region18: #{transformer_forward.5} parent=11 // pred_check_branch
        %546 = sbr.rel (%p544) target = $region20
      $region19: #{transformer_forward.5} parent=11 // pred_region
        _
      $region20: #{transformer_forward.5} parent=11 // pred_fallthru
        _
      // Predicated region
      $region21: #{transformer_forward.5} parent=11 // pred_check
        %p547 = pneg %p143
      $region22: #{transformer_forward.5} parent=11 // pred_check_branch
        %549 = sbr.rel (%p547) target = $region24
      $region23: #{transformer_forward.5} parent=11 // pred_region
        _
      $region24: #{transformer_forward.5} parent=11 // pred_fallthru
        _
      // Predicated region
      $region25: #{transformer_forward.5} parent=11 // pred_check
        %p550 = pneg %p164
      $region26: #{transformer_forward.5} parent=11 // pred_check_branch
        %552 = sbr.rel (%p550) target = $region28
      $region27: #{transformer_forward.5} parent=11 // pred_region
        _
      $region28: #{transformer_forward.5} parent=11 // pred_fallthru
        _
      // Predicated region
      $region29: #{transformer_forward.5} parent=11 // pred_check
        %p553 = pneg %p185
      $region30: #{transformer_forward.5} parent=11 // pred_check_branch
        %555 = sbr.rel (%p553) target = $region32
      $region31: #{transformer_forward.5} parent=11 // pred_region
        _
      $region32: #{transformer_forward.5} parent=11 // pred_fallthru
        _
      // Predicated region
      $region33: #{transformer_forward.5} parent=11 // pred_check
        %p556 = pneg %p206
      $region34: #{transformer_forward.5} parent=11 // pred_check_branch
        %558 = sbr.rel (%p556) target = $region36
      $region35: #{transformer_forward.5} parent=11 // pred_region
        _
      $region36: #{transformer_forward.5} parent=11 // pred_fallthru
        _
      // Predicated region
      $region37: #{transformer_forward.5} parent=11 // pred_check
        %p559 = pneg %p227
      $region38: #{transformer_forward.5} parent=11 // pred_check_branch
        %561 = sbr.rel (%p559) target = $region40
      $region39: #{transformer_forward.5} parent=11 // pred_region
        _
      $region40: #{transformer_forward.5} parent=11 // pred_fallthru
        _
      // Predicated region
      $region41: #{transformer_forward.5} parent=11 // pred_check
        %p562 = pneg %p248
      $region42: #{transformer_forward.5} parent=11 // pred_check_branch
        %564 = sbr.rel (%p562) target = $region44
      $region43: #{transformer_forward.5} parent=11 // pred_region
        _
      $region44: #{transformer_forward.5} parent=11 // pred_fallthru
        _
      // Predicated region
      $region45: #{transformer_forward.5} parent=11 // pred_check
        %p565 = pneg %p269
      $region46: #{transformer_forward.5} parent=11 // pred_check_branch
        %567 = sbr.rel (%p565) target = $region48
      $region47: #{transformer_forward.5} parent=11 // pred_region
        _
      $region48: #{transformer_forward.5} parent=11 // pred_fallthru
        _
      // Predicated region
      $region49: #{transformer_forward.5} parent=11 // pred_check
        %p568 = pneg %p290
      $region50: #{transformer_forward.5} parent=11 // pred_check_branch
        %570 = sbr.rel (%p568) target = $region52
      $region51: #{transformer_forward.5} parent=11 // pred_region
        _
      $region52: #{transformer_forward.5} parent=11 // pred_fallthru
        _
      // Predicated region
      $region53: #{transformer_forward.5} parent=11 // pred_check
        %p571 = pneg %p311
      $region54: #{transformer_forward.5} parent=11 // pred_check_branch
        %573 = sbr.rel (%p571) target = $region56
      $region55: #{transformer_forward.5} parent=11 // pred_region
        _
      $region56: #{transformer_forward.5} parent=11 // pred_fallthru
        _
      // Predicated region
      $region57: #{transformer_forward.5} parent=11 // pred_check
        %p574 = pneg %p332
      $region58: #{transformer_forward.5} parent=11 // pred_check_branch
        %576 = sbr.rel (%p574) target = $region60
      $region59: #{transformer_forward.5} parent=11 // pred_region
        _
      $region60: #{transformer_forward.5} parent=11 // pred_fallthru
        _
      // Predicated region
      $region61: #{transformer_forward.5} parent=11 // pred_check
        %p577 = pneg %p353
      $region62: #{transformer_forward.5} parent=11 // pred_check_branch
        %579 = sbr.rel (%p577) target = $region64
      $region63: #{transformer_forward.5} parent=11 // pred_region
        _
      $region64: #{transformer_forward.5} parent=11 // pred_fallthru
        _
      // Predicated region
      $region65: #{transformer_forward.5} parent=11 // pred_check
        %p580 = pneg %p374
      $region66: #{transformer_forward.5} parent=11 // pred_check_branch
        %582 = sbr.rel (%p580) target = $region68
      $region67: #{transformer_forward.5} parent=11 // pred_region
        _
      $region68: #{transformer_forward.5} parent=11 // pred_fallthru
        _
      // Predicated region
      $region69: #{transformer_forward.5} parent=11 // pred_check
        %p583 = pneg %p395
      $region70: #{transformer_forward.5} parent=11 // pred_check_branch
        %585 = sbr.rel (%p583) target = $region72
      $region71: #{transformer_forward.5} parent=11 // pred_region
        _
      $region72: #{transformer_forward.5} parent=11 // pred_fallthru
        _
      // Predicated region
      $region73: #{transformer_forward.5} parent=11 // pred_check
        %p586 = pneg %p416
      $region74: #{transformer_forward.5} parent=11 // pred_check_branch
        %588 = sbr.rel (%p586) target = $region76
      $region75: #{transformer_forward.5} parent=11 // pred_region
        _
      $region76: #{transformer_forward.5} parent=11 // pred_fallthru
        _
      // Predicated region
      $region77: #{transformer_forward.5} parent=11 // pred_check
        %p589 = pneg %p437
      $region78: #{transformer_forward.5} parent=11 // pred_check_branch
        %591 = sbr.rel (%p589) target = $region80
      $region79: #{transformer_forward.5} parent=11 // pred_region
        _
      $region80: #{transformer_forward.5} parent=11 // pred_fallthru
        _
      // Predicated region
      $region81: #{transformer_forward.5} parent=11 // pred_check
        %p592 = pneg %p458
      $region82: #{transformer_forward.5} parent=11 // pred_check_branch
        %594 = sbr.rel (%p592) target = $region84
      $region83: #{transformer_forward.5} parent=11 // pred_region
        _
      $region84: #{transformer_forward.5} parent=11 // pred_fallthru
        _
      // Predicated region
      $region85: #{transformer_forward.5} parent=11 // pred_check
        %p595 = pneg %p479
      $region86: #{transformer_forward.5} parent=11 // pred_check_branch
        %597 = sbr.rel (%p595) target = $region88
      $region87: #{transformer_forward.5} parent=11 // pred_region
        _
      $region88: #{transformer_forward.5} parent=11 // pred_fallthru
        _
      // Predicated region
      $region89: #{transformer_forward.5} parent=11 // pred_check
        %p598 = pneg %p500
      $region90: #{transformer_forward.5} parent=11 // pred_check_branch
        %600 = sbr.rel (%p598) target = $region92
      $region91: #{transformer_forward.5} parent=11 // pred_region
        _
      $region92: #{transformer_forward.5} parent=11 // pred_fallthru
        _
    $region12: #{transformer_forward.5} parent=5 // pred_fallthru
      _
    %p601 = scmp.lt.s32.totalorder %s28, 2
    // Predicated region
    $region93: #{transformer_forward.5} parent=5 // pred_check
      %p602 = pneg %p601
    $region94: #{transformer_forward.5} parent=5 // pred_check_branch
      %604 = sbr.rel (%p602) target = $region96
    $region95: #{transformer_forward.5} parent=5 // pred_region
      // Predicated region
      $region97: #{transformer_forward.5} parent=95 // pred_check
        %p605 = pneg %p48
      $region98: #{transformer_forward.5} parent=95 // pred_check_branch
        %607 = sbr.rel (%p605) target = $region100
      $region99: #{transformer_forward.5} parent=95 // pred_region
        %p608 = scmp.lt.s32.totalorder %s28, 1
        %s609 = scalar_select %p608, %s28, 1
        %s610 = smul.addr %s609, 8
        %s611 = scalar_lea.vmem %s0, %s610
      $region100: #{transformer_forward.5} parent=95 // pred_fallthru
        _
      // Predicated region
      $region101: #{transformer_forward.5} parent=95 // pred_check
        %p612 = pneg %p74
      $region102: #{transformer_forward.5} parent=95 // pred_check_branch
        %614 = sbr.rel (%p612) target = $region104
      $region103: #{transformer_forward.5} parent=95 // pred_region
        %p615 = scmp.lt.s32.totalorder %s28, 1
        %s616 = scalar_select %p615, %s28, 1
        %s617 = smul.addr %s616, 32
        %s618 = smul.addr %s617, 8
        %s619 = scalar_lea.vmem %s1, %s618
      $region104: #{transformer_forward.5} parent=95 // pred_fallthru
        _
    $region96: #{transformer_forward.5} parent=5 // pred_fallthru
      _
    %p620 = scmp.le.s32.totalorder 1, %s28
    %p621 = scmp.lt.s32.totalorder %s28, 3
    %p622 = pnand %p620, %p621
    %p623 = pneg %p622
    // Predicated region
    $region105: #{transformer_forward.5} parent=5 // pred_check
      _
    $region106: #{transformer_forward.5} parent=5 // pred_check_branch
      %625 = sbr.rel (%p622) target = $region108
    $region107: #{transformer_forward.5} parent=5 // pred_region
      %s626 = ssub.s32 %s28, 1
      %p627 = scmp.lt.s32.totalorder %s33, 1
      %s628 = scalar_select %p627, %s33, 1
      %s629 = smul.addr %s628, 8
      %s630 = scalar_lea.vmem %s0, %s629
      %p631 = pneg %p54
      %p632 = pneg %p51
      %p633 = scmp.lt.s32.totalorder %s33, 1
      %s634 = scalar_select %p633, %s33, 1
      %s635 = smul.addr %s634, 32
      %s636 = smul.addr %s635, 8
      %s637 = scalar_lea.vmem %s1, %s636
      %p638 = pneg %p80
      %p639 = pneg %p77
      %p640 = pneg %p101
      %p641 = pneg %p98
      %p642 = pneg %p122
      %p643 = pneg %p119
      %p644 = pneg %p143
      %p645 = pneg %p140
      %p646 = pneg %p164
      %p647 = pneg %p161
      %p648 = pneg %p185
      %p649 = pneg %p182
      %p650 = pneg %p206
      %p651 = pneg %p203
      %p652 = pneg %p227
      %p653 = pneg %p224
      %p654 = pneg %p248
      %p655 = pneg %p245
      %p656 = pneg %p269
      %p657 = pneg %p266
      %p658 = pneg %p290
      %p659 = pneg %p287
      %p660 = pneg %p311
      %p661 = pneg %p308
      %p662 = pneg %p332
      %p663 = pneg %p329
      %p664 = pneg %p353
      %p665 = pneg %p350
      %p666 = pneg %p374
      %p667 = pneg %p371
      %p668 = pneg %p395
      %p669 = pneg %p392
      %p670 = pneg %p416
      %p671 = pneg %p413
      %p672 = pneg %p437
      %p673 = pneg %p434
      %p674 = pneg %p458
      %p675 = pneg %p455
      %p676 = pneg %p479
      %p677 = pneg %p476
      %p678 = pneg %p500
      %p679 = pneg %p497
      %p680 = pneg %p526
      %p681 = pneg %p523
      %p682 = scmp.lt.s32.totalorder %s33, 1
      %s683 = scalar_select %p682, %s33, 1
      %s684 = smul.addr %s683, 8
      %s685 = scalar_lea.vmem %s22, %s684
      %p686 = scmp.lt.s32.totalorder %s33, 1
      %s687 = scalar_select %p686, %s33, 1
      %s688 = smul.addr %s687, 8
      %s689 = scalar_lea.vmem %s0, %s688
      %p690 = scmp.lt.s32.totalorder %s33, 1
      %s691 = scalar_select %p690, %s33, 1
      %s692 = smul.addr %s691, 32
      %s693 = smul.addr %s692, 8
      %s694 = scalar_lea.vmem %s1, %s693
      %p695 = scmp.lt.s32.totalorder %s33, 1
      %s696 = scalar_select %p695, %s33, 1
      %s697 = smul.addr %s696, 8
      %s698 = scalar_lea.vmem %s22, %s697
      %v699 = vld [vmem:[%s689] sm:$0xff]
      %v700 = vld [vmem:[%s694] sm:$0xff]
      %v701 = vld [vmem:[%s694 + $0x8] sm:$0xff]
      %v702 = vld [vmem:[%s694 + $0x10] sm:$0xff]
      %v703 = vld [vmem:[%s694 + $0x18] sm:$0xff]
      %v704 = vld [vmem:[%s694 + $0x20] sm:$0xff]
      %v705 = vld [vmem:[%s694 + $0x28] sm:$0xff]
      %v706 = vld [vmem:[%s694 + $0x30] sm:$0xff]
      %v707 = vld [vmem:[%s694 + $0x38] sm:$0xff]
      %v708 = vld [vmem:[%s694 + $0x40] sm:$0xff]
      %v709 = vld [vmem:[%s694 + $0x48] sm:$0xff]
      %v710 = vld [vmem:[%s694 + $0x50] sm:$0xff]
      %v711 = vld [vmem:[%s694 + $0x58] sm:$0xff]
      %v712 = vld [vmem:[%s694 + $0x60] sm:$0xff]
      %v713 = vld [vmem:[%s694 + $0x68] sm:$0xff]
      %v714 = vld [vmem:[%s694 + $0x70] sm:$0xff]
      %v715 = vld [vmem:[%s694 + $0x78] sm:$0xff]
      %v716 = vld [vmem:[%s694 + $0x80] sm:$0xff]
      %v717 = vld [vmem:[%s694 + $0x88] sm:$0xff]
      %v718 = vld [vmem:[%s694 + $0x90] sm:$0xff]
      %v719 = vld [vmem:[%s694 + $0x98] sm:$0xff]
      %v720 = vld [vmem:[%s694 + $0xa0] sm:$0xff]
      %v721 = vld [vmem:[%s694 + $0xa8] sm:$0xff]
      %v722 = vld [vmem:[%s694 + $0xb0] sm:$0xff]
      %v723 = vld [vmem:[%s694 + $0xb8] sm:$0xff]
      %v724 = vld [vmem:[%s694 + $0xc0] sm:$0xff]
      %v725 = vld [vmem:[%s694 + $0xc8] sm:$0xff]
      %v726 = vld [vmem:[%s694 + $0xd0] sm:$0xff]
      %v727 = vld [vmem:[%s694 + $0xd8] sm:$0xff]
      %v728 = vld [vmem:[%s694 + $0xe0] sm:$0xff]
      %v729 = vld [vmem:[%s694 + $0xe8] sm:$0xff]
      %v730 = vld [vmem:[%s694 + $0xf0] sm:$0xff]
      %v731 = vld [vmem:[%s694 + $0xf8] sm:$0xff]
      %v732 = vld [vmem:[%s2] sm:$0xff]
      %v733 = vld [vmem:[%s2 + $0x8] sm:$0xff]
      %v734 = vld [vmem:[%s2 + $0x10] sm:$0xff]
      %v735 = vld [vmem:[%s2 + $0x18] sm:$0xff]
      %v736 = vld [vmem:[%s3] sm:$0x1]
      %v738 = vlaneseq
      %v739 = vshrl.u32 %v738, 7
      %v740 = vsub.s32 0, %v739
      %v741 = vrot.slane %v736, %v740
      %vm743 = vcmask 261120
      %v745 = vsel %vm743, %v699, 0
      %747 = vmatprep.subr.mxu0 0.0
      %748 = vmatpush1.msra.mxu0 %v732
      %749 = vmatprep.subr.mxu0 0.0
      %750 = vmatpush1.msra.mxu0 %v733
      %751 = vmatprep.subr.mxu0 0.0
      %752 = vmatpush1.msra.mxu0 %v734
      %753 = vmatprep.subr.mxu0 0.0
      %754 = vmatpush1.msra.mxu0 %v735
      %755 = vmatprep.subr.mxu0 0.0
      %756 = vmatpush1.msra.mxu0 0.0
      %757 = vmatprep.subr.mxu0 0.0
      %758 = vmatpush1.msra.mxu0 0.0
      %759 = vmatprep.subr.mxu0 0.0
      %760 = vmatpush1.msra.mxu0 0.0
      %761 = vmatprep.subr.mxu0 0.0
      %762 = vmatpush1.msra.mxu0 0.0
      %763 = vmatprep.subr.mxu0 0.0
      %764 = vmatpush1.msra.mxu0 0.0
      %765 = vmatprep.subr.mxu0 0.0
      %766 = vmatpush1.msra.mxu0 0.0
      %767 = vmatprep.subr.mxu0 0.0
      %768 = vmatpush1.msra.mxu0 0.0
      %769 = vmatprep.subr.mxu0 0.0
      %770 = vmatpush1.msra.mxu0 0.0
      %771 = vmatprep.subr.mxu0 0.0
      %772 = vmatpush1.msra.mxu0 0.0
      %773 = vmatprep.subr.mxu0 0.0
      %774 = vmatpush1.msra.mxu0 0.0
      %775 = vmatprep.subr.mxu0 0.0
      %776 = vmatpush1.msra.mxu0 0.0
      %777 = vmatprep.subr.mxu0 0.0
      %778 = vmatpush1.msra.mxu0 0.0
      %779 = vmatprep.subr.mxu0 0.0
      %780 = vmatpush1.msra.mxu0 0.0
      %781 = vmatprep.subr.mxu0 0.0
      %782 = vmatpush1.msra.mxu0 0.0
      %783 = vmatprep.subr.mxu0 0.0
      %784 = vmatpush1.msra.mxu0 0.0
      %785 = vmatprep.subr.mxu0 0.0
      %786 = vmatpush1.msra.mxu0 0.0
      %787 = vmatprep.subr.mxu0 0.0
      %788 = vmatpush1.msra.mxu0 0.0
      %789 = vmatprep.subr.mxu0 0.0
      %790 = vmatpush1.msra.mxu0 0.0
      %791 = vmatprep.subr.mxu0 0.0
      %792 = vmatpush1.msra.mxu0 0.0
      %793 = vmatprep.subr.mxu0 0.0
      %794 = vmatpush1.msra.mxu0 0.0
      %795 = vmatprep.subr.mxu0 0.0
      %796 = vmatpush1.msra.mxu0 0.0
      %797 = vmatprep.subr.mxu0 0.0
      %798 = vmatpush1.msra.mxu0 0.0
      %799 = vmatprep.subr.mxu0 0.0
      %800 = vmatpush1.msra.mxu0 0.0
      %801 = vmatprep.subr.mxu0 0.0
      %802 = vmatpush1.msra.mxu0 0.0
      %803 = vmatprep.subr.mxu0 0.0
      %804 = vmatpush1.msra.mxu0 0.0
      %805 = vmatprep.subr.mxu0 0.0
      %806 = vmatpush1.msra.mxu0 0.0
      %807 = vmatprep.subr.mxu0 0.0
      %808 = vmatpush1.msra.mxu0 0.0
      %809 = vmatprep.subr.mxu0 0.0
      %810 = vmatpush1.msra.mxu0 0.0
      %811 = vmatprep.mubr.f32.mxu0 0.0
      %812 = vmatmul.mubr.f32.gmra.mrb[0].mxu0 %v745
      %v813 = vpop.f32.mrb[0].mxu0
      %v814 = vadd.f32 %v741, %v813
      %v815 = vpop.f32.mrb[0].mxu0
      %816 = vdwg.mxu0
      %v817 = vld [vmem:[%s4] sm:$0xff]
      %v818 = vld [vmem:[%s4 + $0x8] sm:$0xff]
      %v819 = vld [vmem:[%s4 + $0x10] sm:$0xff]
      %v820 = vld [vmem:[%s4 + $0x18] sm:$0xff]
      %v821 = vld [vmem:[%s5] sm:$0x1]
      %823 = vrot.lane.b32.xlu0 %v814, 96
      %v824 = vpop.permute.xlu0 %823
      %vm825 = vcmask 64512
      %v826 = vsel %vm825, %v814, 0
      %v828 = vsel %vm825, %v824, 0
      %830 = vmatprep.subr.mxu0 0.0
      %831 = vmatpush1.xpose.msra.mxu0 %v828
      %832 = vmatprep.subr.mxu0 0.0
      %833 = vmatpush1.xpose.msra.mxu0 0.0
      %834 = vmatprep.subr.mxu0 0.0
      %835 = vmatpush1.xpose.msra.mxu0 0.0
      %836 = vmatprep.subr.mxu0 0.0
      %837 = vmatpush1.xpose.msra.mxu0 0.0
      %838 = vmatprep.subr.mxu0 0.0
      %839 = vmatpush1.xpose.msra.mxu0 0.0
      %840 = vmatprep.subr.mxu0 0.0
      %841 = vmatpush1.xpose.msra.mxu0 0.0
      %842 = vmatprep.subr.mxu0 0.0
      %843 = vmatpush1.xpose.msra.mxu0 0.0
      %844 = vmatprep.subr.mxu0 0.0
      %845 = vmatpush1.xpose.msra.mxu0 0.0
      %846 = vmatprep.subr.mxu0 0.0
      %847 = vmatpush1.xpose.msra.mxu0 0.0
      %848 = vmatprep.subr.mxu0 0.0
      %849 = vmatpush1.xpose.msra.mxu0 0.0
      %850 = vmatprep.subr.mxu0 0.0
      %851 = vmatpush1.xpose.msra.mxu0 0.0
      %852 = vmatprep.subr.mxu0 0.0
      %853 = vmatpush1.xpose.msra.mxu0 0.0
      %854 = vmatprep.subr.mxu0 0.0
      %855 = vmatpush1.xpose.msra.mxu0 0.0
      %856 = vmatprep.subr.mxu0 0.0
      %857 = vmatpush1.xpose.msra.mxu0 0.0
      %858 = vmatprep.subr.mxu0 0.0
      %859 = vmatpush1.xpose.msra.mxu0 0.0
      %860 = vmatprep.subr.mxu0 0.0
      %861 = vmatpush1.xpose.msra.mxu0 0.0
      %862 = vmatprep.subr.mxu0 0.0
      %863 = vmatpush1.xpose.msra.mxu0 0.0
      %864 = vmatprep.subr.mxu0 0.0
      %865 = vmatpush1.xpose.msra.mxu0 0.0
      %866 = vmatprep.subr.mxu0 0.0
      %867 = vmatpush1.xpose.msra.mxu0 0.0
      %868 = vmatprep.subr.mxu0 0.0
      %869 = vmatpush1.xpose.msra.mxu0 0.0
      %870 = vmatprep.subr.mxu0 0.0
      %871 = vmatpush1.xpose.msra.mxu0 0.0
      %872 = vmatprep.subr.mxu0 0.0
      %873 = vmatpush1.xpose.msra.mxu0 0.0
      %874 = vmatprep.subr.mxu0 0.0
      %875 = vmatpush1.xpose.msra.mxu0 0.0
      %876 = vmatprep.subr.mxu0 0.0
      %877 = vmatpush1.xpose.msra.mxu0 0.0
      %878 = vmatprep.subr.mxu0 0.0
      %879 = vmatpush1.xpose.msra.mxu0 0.0
      %880 = vmatprep.subr.mxu0 0.0
      %881 = vmatpush1.xpose.msra.mxu0 0.0
      %882 = vmatprep.subr.mxu0 0.0
      %883 = vmatpush1.xpose.msra.mxu0 0.0
      %884 = vmatprep.subr.mxu0 0.0
      %885 = vmatpush1.xpose.msra.mxu0 0.0
      %886 = vmatprep.subr.mxu0 0.0
      %887 = vmatpush1.xpose.msra.mxu0 0.0
      %888 = vmatprep.subr.mxu0 0.0
      %889 = vmatpush1.xpose.msra.mxu0 0.0
      %890 = vmatprep.subr.mxu0 0.0
      %891 = vmatpush1.xpose.msra.mxu0 0.0
      %892 = vmatprep.subr.mxu0 0.0
      %893 = vmatpush1.xpose.msra.mxu0 0.0
      %894 = vmatprep.mubr.f32.mxu0 0.0
      %895 = vmatmul.mubr.f32.gmra.mrb[0].mxu0 %v826
      %v896 = vpop.f32.mrb[0].mxu0
      %v897 = vadd.f32 0.0, %v896
      %v898 = vpop.f32.mrb[0].mxu0
      %899 = vdwg.mxu0
      %v900 = vmul.f32 %v897, 0.35355338
      %v901 = vsel %vm825, %v900, -inf
      %902 = vmax.xlane.f32.xlu0 %v901
      %v903 = vpop.xlane.xlu0 %902
      %v904 = vsub.f32 %v900, %v903
      %v905 = vmul.f32 %v904, 1.442695
      %v906 = vpow.pop %v905
      %v907 = vsel %vm825, %v906, 0.0
      %908 = vadd.xlane.f32.xlu0 %v907
      %v909 = vpop.xlane.xlu0 %908
      %v910 = vrcp.pop %v909
      %v911 = vmul.f32 %v906, %v910
      %912 = vrot.lane.b32.xlu0 %v814, 64
      %v913 = vpop.permute.xlu0 %912
      %v916 = vsel %vm825, %v911, 0
      %918 = vmatprep.subr.mxu0 0.0
      %919 = vmatpush1.msra.mxu0 %v913
      %920 = vmatprep.subr.mxu0 0.0
      %921 = vmatpush1.msra.mxu0 0.0
      %922 = vmatprep.subr.mxu0 0.0
      %923 = vmatpush1.msra.mxu0 0.0
      %924 = vmatprep.subr.mxu0 0.0
      %925 = vmatpush1.msra.mxu0 0.0
      %926 = vmatprep.subr.mxu0 0.0
      %927 = vmatpush1.msra.mxu0 0.0
      %928 = vmatprep.subr.mxu0 0.0
      %929 = vmatpush1.msra.mxu0 0.0
      %930 = vmatprep.subr.mxu0 0.0
      %931 = vmatpush1.msra.mxu0 0.0
      %932 = vmatprep.subr.mxu0 0.0
      %933 = vmatpush1.msra.mxu0 0.0
      %934 = vmatprep.subr.mxu0 0.0
      %935 = vmatpush1.msra.mxu0 0.0
      %936 = vmatprep.subr.mxu0 0.0
      %937 = vmatpush1.msra.mxu0 0.0
      %938 = vmatprep.subr.mxu0 0.0
      %939 = vmatpush1.msra.mxu0 0.0
      %940 = vmatprep.subr.mxu0 0.0
      %941 = vmatpush1.msra.mxu0 0.0
      %942 = vmatprep.subr.mxu0 0.0
      %943 = vmatpush1.msra.mxu0 0.0
      %944 = vmatprep.subr.mxu0 0.0
      %945 = vmatpush1.msra.mxu0 0.0
      %946 = vmatprep.subr.mxu0 0.0
      %947 = vmatpush1.msra.mxu0 0.0
      %948 = vmatprep.subr.mxu0 0.0
      %949 = vmatpush1.msra.mxu0 0.0
      %950 = vmatprep.subr.mxu0 0.0
      %951 = vmatpush1.msra.mxu0 0.0
      %952 = vmatprep.subr.mxu0 0.0
      %953 = vmatpush1.msra.mxu0 0.0
      %954 = vmatprep.subr.mxu0 0.0
      %955 = vmatpush1.msra.mxu0 0.0
      %956 = vmatprep.subr.mxu0 0.0
      %957 = vmatpush1.msra.mxu0 0.0
      %958 = vmatprep.subr.mxu0 0.0
      %959 = vmatpush1.msra.mxu0 0.0
      %960 = vmatprep.subr.mxu0 0.0
      %961 = vmatpush1.msra.mxu0 0.0
      %962 = vmatprep.subr.mxu0 0.0
      %963 = vmatpush1.msra.mxu0 0.0
      %964 = vmatprep.subr.mxu0 0.0
      %965 = vmatpush1.msra.mxu0 0.0
      %966 = vmatprep.subr.mxu0 0.0
      %967 = vmatpush1.msra.mxu0 0.0
      %968 = vmatprep.subr.mxu0 0.0
      %969 = vmatpush1.msra.mxu0 0.0
      %970 = vmatprep.subr.mxu0 0.0
      %971 = vmatpush1.msra.mxu0 0.0
      %972 = vmatprep.subr.mxu0 0.0
      %973 = vmatpush1.msra.mxu0 0.0
      %974 = vmatprep.subr.mxu0 0.0
      %975 = vmatpush1.msra.mxu0 0.0
      %976 = vmatprep.subr.mxu0 0.0
      %977 = vmatpush1.msra.mxu0 0.0
      %978 = vmatprep.subr.mxu0 0.0
      %979 = vmatpush1.msra.mxu0 0.0
      %980 = vmatprep.subr.mxu0 0.0
      %981 = vmatpush1.msra.mxu0 0.0
      %982 = vmatprep.mubr.f32.mxu0 0.0
      %983 = vmatmul.mubr.f32.gmra.mrb[0].mxu0 %v916
      %v984 = vpop.f32.mrb[0].mxu0
      %v985 = vadd.f32 0.0, %v984
      %v986 = vpop.f32.mrb[0].mxu0
      %987 = vdwg.mxu0
      %988 = vrot.lane.b32.xlu0 %v814, 120
      %v989 = vpop.permute.xlu0 %988
      %990 = vrot.lane.b32.xlu0 %v814, 88
      %v991 = vpop.permute.xlu0 %990
      %v992 = vsel %vm825, %v989, 0
      %v994 = vsel %vm825, %v991, 0
      %996 = vmatprep.subr.mxu0 0.0
      %997 = vmatpush1.xpose.msra.mxu0 %v994
      %998 = vmatprep.subr.mxu0 0.0
      %999 = vmatpush1.xpose.msra.mxu0 0.0
      %1000 = vmatprep.subr.mxu0 0.0
      %1001 = vmatpush1.xpose.msra.mxu0 0.0
      %1002 = vmatprep.subr.mxu0 0.0
      %1003 = vmatpush1.xpose.msra.mxu0 0.0
      %1004 = vmatprep.subr.mxu0 0.0
      %1005 = vmatpush1.xpose.msra.mxu0 0.0
      %1006 = vmatprep.subr.mxu0 0.0
      %1007 = vmatpush1.xpose.msra.mxu0 0.0
      %1008 = vmatprep.subr.mxu0 0.0
      %1009 = vmatpush1.xpose.msra.mxu0 0.0
      %1010 = vmatprep.subr.mxu0 0.0
      %1011 = vmatpush1.xpose.msra.mxu0 0.0
      %1012 = vmatprep.subr.mxu0 0.0
      %1013 = vmatpush1.xpose.msra.mxu0 0.0
      %1014 = vmatprep.subr.mxu0 0.0
      %1015 = vmatpush1.xpose.msra.mxu0 0.0
      %1016 = vmatprep.subr.mxu0 0.0
      %1017 = vmatpush1.xpose.msra.mxu0 0.0
      %1018 = vmatprep.subr.mxu0 0.0
      %1019 = vmatpush1.xpose.msra.mxu0 0.0
      %1020 = vmatprep.subr.mxu0 0.0
      %1021 = vmatpush1.xpose.msra.mxu0 0.0
      %1022 = vmatprep.subr.mxu0 0.0
      %1023 = vmatpush1.xpose.msra.mxu0 0.0
      %1024 = vmatprep.subr.mxu0 0.0
      %1025 = vmatpush1.xpose.msra.mxu0 0.0
      %1026 = vmatprep.subr.mxu0 0.0
      %1027 = vmatpush1.xpose.msra.mxu0 0.0
      %1028 = vmatprep.subr.mxu0 0.0
      %1029 = vmatpush1.xpose.msra.mxu0 0.0
      %1030 = vmatprep.subr.mxu0 0.0
      %1031 = vmatpush1.xpose.msra.mxu0 0.0
      %1032 = vmatprep.subr.mxu0 0.0
      %1033 = vmatpush1.xpose.msra.mxu0 0.0
      %1034 = vmatprep.subr.mxu0 0.0
      %1035 = vmatpush1.xpose.msra.mxu0 0.0
      %1036 = vmatprep.subr.mxu0 0.0
      %1037 = vmatpush1.xpose.msra.mxu0 0.0
      %1038 = vmatprep.subr.mxu0 0.0
      %1039 = vmatpush1.xpose.msra.mxu0 0.0
      %1040 = vmatprep.subr.mxu0 0.0
      %1041 = vmatpush1.xpose.msra.mxu0 0.0
      %1042 = vmatprep.subr.mxu0 0.0
      %1043 = vmatpush1.xpose.msra.mxu0 0.0
      %1044 = vmatprep.subr.mxu0 0.0
      %1045 = vmatpush1.xpose.msra.mxu0 0.0
      %1046 = vmatprep.subr.mxu0 0.0
      %1047 = vmatpush1.xpose.msra.mxu0 0.0
      %1048 = vmatprep.subr.mxu0 0.0
      %1049 = vmatpush1.xpose.msra.mxu0 0.0
      %1050 = vmatprep.subr.mxu0 0.0
      %1051 = vmatpush1.xpose.msra.mxu0 0.0
      %1052 = vmatprep.subr.mxu0 0.0
      %1053 = vmatpush1.xpose.msra.mxu0 0.0
      %1054 = vmatprep.subr.mxu0 0.0
      %1055 = vmatpush1.xpose.msra.mxu0 0.0
      %1056 = vmatprep.subr.mxu0 0.0
      %1057 = vmatpush1.xpose.msra.mxu0 0.0
      %1058 = vmatprep.subr.mxu0 0.0
      %1059 = vmatpush1.xpose.msra.mxu0 0.0
      %1060 = vmatprep.mubr.f32.mxu0 0.0
      %1061 = vmatmul.mubr.f32.gmra.mrb[0].mxu0 %v992
      %v1062 = vpop.f32.mrb[0].mxu0
      %v1063 = vadd.f32 0.0, %v1062
      %v1064 = vpop.f32.mrb[0].mxu0
      %1065 = vdwg.mxu0
      %v1066 = vmul.f32 %v1063, 0.35355338
      %v1067 = vsel %vm825, %v1066, -inf
      %1068 = vmax.xlane.f32.xlu0 %v1067
      %v1069 = vpop.xlane.xlu0 %1068
      %v1070 = vsub.f32 %v1066, %v1069
      %v1071 = vmul.f32 %v1070, 1.442695
      %v1072 = vpow.pop %v1071
      %v1073 = vsel %vm825, %v1072, 0.0
      %1074 = vadd.xlane.f32.xlu0 %v1073
      %v1075 = vpop.xlane.xlu0 %1074
      %v1076 = vrcp.pop %v1075
      %v1077 = vmul.f32 %v1072, %v1076
      %1078 = vrot.lane.b32.xlu0 %v814, 56
      %v1079 = vpop.permute.xlu0 %1078
      %v1082 = vsel %vm825, %v1077, 0
      %1084 = vmatprep.subr.mxu0 0.0
      %1085 = vmatpush1.msra.mxu0 %v1079
      %1086 = vmatprep.subr.mxu0 0.0
      %1087 = vmatpush1.msra.mxu0 0.0
      %1088 = vmatprep.subr.mxu0 0.0
      %1089 = vmatpush1.msra.mxu0 0.0
      %1090 = vmatprep.subr.mxu0 0.0
      %1091 = vmatpush1.msra.mxu0 0.0
      %1092 = vmatprep.subr.mxu0 0.0
      %1093 = vmatpush1.msra.mxu0 0.0
      %1094 = vmatprep.subr.mxu0 0.0
      %1095 = vmatpush1.msra.mxu0 0.0
      %1096 = vmatprep.subr.mxu0 0.0
      %1097 = vmatpush1.msra.mxu0 0.0
      %1098 = vmatprep.subr.mxu0 0.0
      %1099 = vmatpush1.msra.mxu0 0.0
      %1100 = vmatprep.subr.mxu0 0.0
      %1101 = vmatpush1.msra.mxu0 0.0
      %1102 = vmatprep.subr.mxu0 0.0
      %1103 = vmatpush1.msra.mxu0 0.0
      %1104 = vmatprep.subr.mxu0 0.0
      %1105 = vmatpush1.msra.mxu0 0.0
      %1106 = vmatprep.subr.mxu0 0.0
      %1107 = vmatpush1.msra.mxu0 0.0
      %1108 = vmatprep.subr.mxu0 0.0
      %1109 = vmatpush1.msra.mxu0 0.0
      %1110 = vmatprep.subr.mxu0 0.0
      %1111 = vmatpush1.msra.mxu0 0.0
      %1112 = vmatprep.subr.mxu0 0.0
      %1113 = vmatpush1.msra.mxu0 0.0
      %1114 = vmatprep.subr.mxu0 0.0
      %1115 = vmatpush1.msra.mxu0 0.0
      %1116 = vmatprep.subr.mxu0 0.0
      %1117 = vmatpush1.msra.mxu0 0.0
      %1118 = vmatprep.subr.mxu0 0.0
      %1119 = vmatpush1.msra.mxu0 0.0
      %1120 = vmatprep.subr.mxu0 0.0
      %1121 = vmatpush1.msra.mxu0 0.0
      %1122 = vmatprep.subr.mxu0 0.0
      %1123 = vmatpush1.msra.mxu0 0.0
      %1124 = vmatprep.subr.mxu0 0.0
      %1125 = vmatpush1.msra.mxu0 0.0
      %1126 = vmatprep.subr.mxu0 0.0
      %1127 = vmatpush1.msra.mxu0 0.0
      %1128 = vmatprep.subr.mxu0 0.0
      %1129 = vmatpush1.msra.mxu0 0.0
      %1130 = vmatprep.subr.mxu0 0.0
      %1131 = vmatpush1.msra.mxu0 0.0
      %1132 = vmatprep.subr.mxu0 0.0
      %1133 = vmatpush1.msra.mxu0 0.0
      %1134 = vmatprep.subr.mxu0 0.0
      %1135 = vmatpush1.msra.mxu0 0.0
      %1136 = vmatprep.subr.mxu0 0.0
      %1137 = vmatpush1.msra.mxu0 0.0
      %1138 = vmatprep.subr.mxu0 0.0
      %1139 = vmatpush1.msra.mxu0 0.0
      %1140 = vmatprep.subr.mxu0 0.0
      %1141 = vmatpush1.msra.mxu0 0.0
      %1142 = vmatprep.subr.mxu0 0.0
      %1143 = vmatpush1.msra.mxu0 0.0
      %1144 = vmatprep.subr.mxu0 0.0
      %1145 = vmatpush1.msra.mxu0 0.0
      %1146 = vmatprep.subr.mxu0 0.0
      %1147 = vmatpush1.msra.mxu0 0.0
      %1148 = vmatprep.mubr.f32.mxu0 0.0
      %1149 = vmatmul.mubr.f32.gmra.mrb[0].mxu0 %v1082
      %v1150 = vpop.f32.mrb[0].mxu0
      %v1151 = vadd.f32 0.0, %v1150
      %v1152 = vpop.f32.mrb[0].mxu0
      %1153 = vdwg.mxu0
      %v1155 = vsel %vm825, %v1151, 0
      %1157 = vmatprep.subr.mxu0 0.0
      %1158 = vmatpush1.msra.mxu0 %v818
      %1159 = vmatprep.subr.mxu0 0.0
      %1160 = vmatpush1.msra.mxu0 0.0
      %1161 = vmatprep.subr.mxu0 0.0
      %1162 = vmatpush1.msra.mxu0 0.0
      %1163 = vmatprep.subr.mxu0 0.0
      %1164 = vmatpush1.msra.mxu0 0.0
      %1165 = vmatprep.subr.mxu0 0.0
      %1166 = vmatpush1.msra.mxu0 0.0
      %1167 = vmatprep.subr.mxu0 0.0
      %1168 = vmatpush1.msra.mxu0 0.0
      %1169 = vmatprep.subr.mxu0 0.0
      %1170 = vmatpush1.msra.mxu0 0.0
      %1171 = vmatprep.subr.mxu0 0.0
      %1172 = vmatpush1.msra.mxu0 0.0
      %1173 = vmatprep.subr.mxu0 0.0
      %1174 = vmatpush1.msra.mxu0 0.0
      %1175 = vmatprep.subr.mxu0 0.0
      %1176 = vmatpush1.msra.mxu0 0.0
      %1177 = vmatprep.subr.mxu0 0.0
      %1178 = vmatpush1.msra.mxu0 0.0
      %1179 = vmatprep.subr.mxu0 0.0
      %1180 = vmatpush1.msra.mxu0 0.0
      %1181 = vmatprep.subr.mxu0 0.0
      %1182 = vmatpush1.msra.mxu0 0.0
      %1183 = vmatprep.subr.mxu0 0.0
      %1184 = vmatpush1.msra.mxu0 0.0
      %1185 = vmatprep.subr.mxu0 0.0
      %1186 = vmatpush1.msra.mxu0 0.0
      %1187 = vmatprep.subr.mxu0 0.0
      %1188 = vmatpush1.msra.mxu0 0.0
      %1189 = vmatprep.subr.mxu0 0.0
      %1190 = vmatpush1.msra.mxu0 0.0
      %1191 = vmatprep.subr.mxu0 0.0
      %1192 = vmatpush1.msra.mxu0 0.0
      %1193 = vmatprep.subr.mxu0 0.0
      %1194 = vmatpush1.msra.mxu0 0.0
      %1195 = vmatprep.subr.mxu0 0.0
      %1196 = vmatpush1.msra.mxu0 0.0
      %1197 = vmatprep.subr.mxu0 0.0
      %1198 = vmatpush1.msra.mxu0 0.0
      %1199 = vmatprep.subr.mxu0 0.0
      %1200 = vmatpush1.msra.mxu0 0.0
      %1201 = vmatprep.subr.mxu0 0.0
      %1202 = vmatpush1.msra.mxu0 0.0
      %1203 = vmatprep.subr.mxu0 0.0
      %1204 = vmatpush1.msra.mxu0 0.0
      %1205 = vmatprep.subr.mxu0 0.0
      %1206 = vmatpush1.msra.mxu0 0.0
      %1207 = vmatprep.subr.mxu0 0.0
      %1208 = vmatpush1.msra.mxu0 0.0
      %1209 = vmatprep.subr.mxu0 0.0
      %1210 = vmatpush1.msra.mxu0 0.0
      %1211 = vmatprep.subr.mxu0 0.0
      %1212 = vmatpush1.msra.mxu0 0.0
      %1213 = vmatprep.subr.mxu0 0.0
      %1214 = vmatpush1.msra.mxu0 0.0
      %1215 = vmatprep.subr.mxu0 0.0
      %1216 = vmatpush1.msra.mxu0 0.0
      %1217 = vmatprep.subr.mxu0 0.0
      %1218 = vmatpush1.msra.mxu0 0.0
      %1219 = vmatprep.subr.mxu0 0.0
      %1220 = vmatpush1.msra.mxu0 0.0
      %1221 = vmatprep.mubr.f32.mxu0 0.0
      %1222 = vmatmul.mubr.f32.gmra.mrb[0].mxu0 %v1155
      %v1223 = vpop.f32.mrb[0].mxu0
      %v1224 = vadd.f32 0.0, %v1223
      %v1225 = vpop.f32.mrb[0].mxu0
      %1226 = vdwg.mxu0
      %v1228 = vsel %vm825, %v985, 0
      %1230 = vmatprep.subr.mxu0 0.0
      %1231 = vmatpush1.msra.mxu0 %v817
      %1232 = vmatprep.subr.mxu0 0.0
      %1233 = vmatpush1.msra.mxu0 0.0
      %1234 = vmatprep.subr.mxu0 0.0
      %1235 = vmatpush1.msra.mxu0 0.0
      %1236 = vmatprep.subr.mxu0 0.0
      %1237 = vmatpush1.msra.mxu0 0.0
      %1238 = vmatprep.subr.mxu0 0.0
      %1239 = vmatpush1.msra.mxu0 0.0
      %1240 = vmatprep.subr.mxu0 0.0
      %1241 = vmatpush1.msra.mxu0 0.0
      %1242 = vmatprep.subr.mxu0 0.0
      %1243 = vmatpush1.msra.mxu0 0.0
      %1244 = vmatprep.subr.mxu0 0.0
      %1245 = vmatpush1.msra.mxu0 0.0
      %1246 = vmatprep.subr.mxu0 0.0
      %1247 = vmatpush1.msra.mxu0 0.0
      %1248 = vmatprep.subr.mxu0 0.0
      %1249 = vmatpush1.msra.mxu0 0.0
      %1250 = vmatprep.subr.mxu0 0.0
      %1251 = vmatpush1.msra.mxu0 0.0
      %1252 = vmatprep.subr.mxu0 0.0
      %1253 = vmatpush1.msra.mxu0 0.0
      %1254 = vmatprep.subr.mxu0 0.0
      %1255 = vmatpush1.msra.mxu0 0.0
      %1256 = vmatprep.subr.mxu0 0.0
      %1257 = vmatpush1.msra.mxu0 0.0
      %1258 = vmatprep.subr.mxu0 0.0
      %1259 = vmatpush1.msra.mxu0 0.0
      %1260 = vmatprep.subr.mxu0 0.0
      %1261 = vmatpush1.msra.mxu0 0.0
      %1262 = vmatprep.subr.mxu0 0.0
      %1263 = vmatpush1.msra.mxu0 0.0
      %1264 = vmatprep.subr.mxu0 0.0
      %1265 = vmatpush1.msra.mxu0 0.0
      %1266 = vmatprep.subr.mxu0 0.0
      %1267 = vmatpush1.msra.mxu0 0.0
      %1268 = vmatprep.subr.mxu0 0.0
      %1269 = vmatpush1.msra.mxu0 0.0
      %1270 = vmatprep.subr.mxu0 0.0
      %1271 = vmatpush1.msra.mxu0 0.0
      %1272 = vmatprep.subr.mxu0 0.0
      %1273 = vmatpush1.msra.mxu0 0.0
      %1274 = vmatprep.subr.mxu0 0.0
      %1275 = vmatpush1.msra.mxu0 0.0
      %1276 = vmatprep.subr.mxu0 0.0
      %1277 = vmatpush1.msra.mxu0 0.0
      %1278 = vmatprep.subr.mxu0 0.0
      %1279 = vmatpush1.msra.mxu0 0.0
      %1280 = vmatprep.subr.mxu0 0.0
      %1281 = vmatpush1.msra.mxu0 0.0
      %1282 = vmatprep.subr.mxu0 0.0
      %1283 = vmatpush1.msra.mxu0 0.0
      %1284 = vmatprep.subr.mxu0 0.0
      %1285 = vmatpush1.msra.mxu0 0.0
      %1286 = vmatprep.subr.mxu0 0.0
      %1287 = vmatpush1.msra.mxu0 0.0
      %1288 = vmatprep.subr.mxu0 0.0
      %1289 = vmatpush1.msra.mxu0 0.0
      %1290 = vmatprep.subr.mxu0 0.0
      %1291 = vmatpush1.msra.mxu0 0.0
      %1292 = vmatprep.subr.mxu0 0.0
      %1293 = vmatpush1.msra.mxu0 0.0
      %1294 = vmatprep.mubr.f32.mxu0 0.0
      %1295 = vmatmul.mubr.f32.gmra.mrb[0].mxu0 %v1228
      %v1296 = vpop.f32.mrb[0].mxu0
      %v1297 = vadd.f32 %v1224, %v1296
      %v1298 = vpop.f32.mrb[0].mxu0
      %1299 = vdwg.mxu0
      %1300 = vrot.lane.b32.xlu0 %v814, 112
      %v1301 = vpop.permute.xlu0 %1300
      %1302 = vrot.lane.b32.xlu0 %v814, 80
      %v1303 = vpop.permute.xlu0 %1302
      %v1304 = vsel %vm825, %v1301, 0
      %v1306 = vsel %vm825, %v1303, 0
      %1308 = vmatprep.subr.mxu0 0.0
      %1309 = vmatpush1.xpose.msra.mxu0 %v1306
      %1310 = vmatprep.subr.mxu0 0.0
      %1311 = vmatpush1.xpose.msra.mxu0 0.0
      %1312 = vmatprep.subr.mxu0 0.0
      %1313 = vmatpush1.xpose.msra.mxu0 0.0
      %1314 = vmatprep.subr.mxu0 0.0
      %1315 = vmatpush1.xpose.msra.mxu0 0.0
      %1316 = vmatprep.subr.mxu0 0.0
      %1317 = vmatpush1.xpose.msra.mxu0 0.0
      %1318 = vmatprep.subr.mxu0 0.0
      %1319 = vmatpush1.xpose.msra.mxu0 0.0
      %1320 = vmatprep.subr.mxu0 0.0
      %1321 = vmatpush1.xpose.msra.mxu0 0.0
      %1322 = vmatprep.subr.mxu0 0.0
      %1323 = vmatpush1.xpose.msra.mxu0 0.0
      %1324 = vmatprep.subr.mxu0 0.0
      %1325 = vmatpush1.xpose.msra.mxu0 0.0
      %1326 = vmatprep.subr.mxu0 0.0
      %1327 = vmatpush1.xpose.msra.mxu0 0.0
      %1328 = vmatprep.subr.mxu0 0.0
      %1329 = vmatpush1.xpose.msra.mxu0 0.0
      %1330 = vmatprep.subr.mxu0 0.0
      %1331 = vmatpush1.xpose.msra.mxu0 0.0
      %1332 = vmatprep.subr.mxu0 0.0
      %1333 = vmatpush1.xpose.msra.mxu0 0.0
      %1334 = vmatprep.subr.mxu0 0.0
      %1335 = vmatpush1.xpose.msra.mxu0 0.0
      %1336 = vmatprep.subr.mxu0 0.0
      %1337 = vmatpush1.xpose.msra.mxu0 0.0
      %1338 = vmatprep.subr.mxu0 0.0
      %1339 = vmatpush1.xpose.msra.mxu0 0.0
      %1340 = vmatprep.subr.mxu0 0.0
      %1341 = vmatpush1.xpose.msra.mxu0 0.0
      %1342 = vmatprep.subr.mxu0 0.0
      %1343 = vmatpush1.xpose.msra.mxu0 0.0
      %1344 = vmatprep.subr.mxu0 0.0
      %1345 = vmatpush1.xpose.msra.mxu0 0.0
      %1346 = vmatprep.subr.mxu0 0.0
      %1347 = vmatpush1.xpose.msra.mxu0 0.0
      %1348 = vmatprep.subr.mxu0 0.0
      %1349 = vmatpush1.xpose.msra.mxu0 0.0
      %1350 = vmatprep.subr.mxu0 0.0
      %1351 = vmatpush1.xpose.msra.mxu0 0.0
      %1352 = vmatprep.subr.mxu0 0.0
      %1353 = vmatpush1.xpose.msra.mxu0 0.0
      %1354 = vmatprep.subr.mxu0 0.0
      %1355 = vmatpush1.xpose.msra.mxu0 0.0
      %1356 = vmatprep.subr.mxu0 0.0
      %1357 = vmatpush1.xpose.msra.mxu0 0.0
      %1358 = vmatprep.subr.mxu0 0.0
      %1359 = vmatpush1.xpose.msra.mxu0 0.0
      %1360 = vmatprep.subr.mxu0 0.0
      %1361 = vmatpush1.xpose.msra.mxu0 0.0
      %1362 = vmatprep.subr.mxu0 0.0
      %1363 = vmatpush1.xpose.msra.mxu0 0.0
      %1364 = vmatprep.subr.mxu0 0.0
      %1365 = vmatpush1.xpose.msra.mxu0 0.0
      %1366 = vmatprep.subr.mxu0 0.0
      %1367 = vmatpush1.xpose.msra.mxu0 0.0
      %1368 = vmatprep.subr.mxu0 0.0
      %1369 = vmatpush1.xpose.msra.mxu0 0.0
      %1370 = vmatprep.subr.mxu0 0.0
      %1371 = vmatpush1.xpose.msra.mxu0 0.0
      %1372 = vmatprep.mubr.f32.mxu0 0.0
      %1373 = vmatmul.mubr.f32.gmra.mrb[0].mxu0 %v1304
      %v1374 = vpop.f32.mrb[0].mxu0
      %v1375 = vadd.f32 0.0, %v1374
      %v1376 = vpop.f32.mrb[0].mxu0
      %1377 = vdwg.mxu0
      %v1378 = vmul.f32 %v1375, 0.35355338
      %v1379 = vsel %vm825, %v1378, -inf
      %1380 = vmax.xlane.f32.xlu0 %v1379
      %v1381 = vpop.xlane.xlu0 %1380
      %v1382 = vsub.f32 %v1378, %v1381
      %v1383 = vmul.f32 %v1382, 1.442695
      %v1384 = vpow.pop %v1383
      %v1385 = vsel %vm825, %v1384, 0.0
      %1386 = vadd.xlane.f32.xlu0 %v1385
      %v1387 = vpop.xlane.xlu0 %1386
      %v1388 = vrcp.pop %v1387
      %v1389 = vmul.f32 %v1384, %v1388
      %1390 = vrot.lane.b32.xlu0 %v814, 48
      %v1391 = vpop.permute.xlu0 %1390
      %v1394 = vsel %vm825, %v1389, 0
      %1396 = vmatprep.subr.mxu0 0.0
      %1397 = vmatpush1.msra.mxu0 %v1391
      %1398 = vmatprep.subr.mxu0 0.0
      %1399 = vmatpush1.msra.mxu0 0.0
      %1400 = vmatprep.subr.mxu0 0.0
      %1401 = vmatpush1.msra.mxu0 0.0
      %1402 = vmatprep.subr.mxu0 0.0
      %1403 = vmatpush1.msra.mxu0 0.0
      %1404 = vmatprep.subr.mxu0 0.0
      %1405 = vmatpush1.msra.mxu0 0.0
      %1406 = vmatprep.subr.mxu0 0.0
      %1407 = vmatpush1.msra.mxu0 0.0
      %1408 = vmatprep.subr.mxu0 0.0
      %1409 = vmatpush1.msra.mxu0 0.0
      %1410 = vmatprep.subr.mxu0 0.0
      %1411 = vmatpush1.msra.mxu0 0.0
      %1412 = vmatprep.subr.mxu0 0.0
      %1413 = vmatpush1.msra.mxu0 0.0
      %1414 = vmatprep.subr.mxu0 0.0
      %1415 = vmatpush1.msra.mxu0 0.0
      %1416 = vmatprep.subr.mxu0 0.0
      %1417 = vmatpush1.msra.mxu0 0.0
      %1418 = vmatprep.subr.mxu0 0.0
      %1419 = vmatpush1.msra.mxu0 0.0
      %1420 = vmatprep.subr.mxu0 0.0
      %1421 = vmatpush1.msra.mxu0 0.0
      %1422 = vmatprep.subr.mxu0 0.0
      %1423 = vmatpush1.msra.mxu0 0.0
      %1424 = vmatprep.subr.mxu0 0.0
      %1425 = vmatpush1.msra.mxu0 0.0
      %1426 = vmatprep.subr.mxu0 0.0
      %1427 = vmatpush1.msra.mxu0 0.0
      %1428 = vmatprep.subr.mxu0 0.0
      %1429 = vmatpush1.msra.mxu0 0.0
      %1430 = vmatprep.subr.mxu0 0.0
      %1431 = vmatpush1.msra.mxu0 0.0
      %1432 = vmatprep.subr.mxu0 0.0
      %1433 = vmatpush1.msra.mxu0 0.0
      %1434 = vmatprep.subr.mxu0 0.0
      %1435 = vmatpush1.msra.mxu0 0.0
      %1436 = vmatprep.subr.mxu0 0.0
      %1437 = vmatpush1.msra.mxu0 0.0
      %1438 = vmatprep.subr.mxu0 0.0
      %1439 = vmatpush1.msra.mxu0 0.0
      %1440 = vmatprep.subr.mxu0 0.0
      %1441 = vmatpush1.msra.mxu0 0.0
      %1442 = vmatprep.subr.mxu0 0.0
      %1443 = vmatpush1.msra.mxu0 0.0
      %1444 = vmatprep.subr.mxu0 0.0
      %1445 = vmatpush1.msra.mxu0 0.0
      %1446 = vmatprep.subr.mxu0 0.0
      %1447 = vmatpush1.msra.mxu0 0.0
      %1448 = vmatprep.subr.mxu0 0.0
      %1449 = vmatpush1.msra.mxu0 0.0
      %1450 = vmatprep.subr.mxu0 0.0
      %1451 = vmatpush1.msra.mxu0 0.0
      %1452 = vmatprep.subr.mxu0 0.0
      %1453 = vmatpush1.msra.mxu0 0.0
      %1454 = vmatprep.subr.mxu0 0.0
      %1455 = vmatpush1.msra.mxu0 0.0
      %1456 = vmatprep.subr.mxu0 0.0
      %1457 = vmatpush1.msra.mxu0 0.0
      %1458 = vmatprep.subr.mxu0 0.0
      %1459 = vmatpush1.msra.mxu0 0.0
      %1460 = vmatprep.mubr.f32.mxu0 0.0
      %1461 = vmatmul.mubr.f32.gmra.mrb[0].mxu0 %v1394
      %v1462 = vpop.f32.mrb[0].mxu0
      %v1463 = vadd.f32 0.0, %v1462
      %v1464 = vpop.f32.mrb[0].mxu0
      %1465 = vdwg.mxu0
      %v1467 = vsel %vm825, %v1463, 0
      %1469 = vmatprep.subr.mxu0 0.0
      %1470 = vmatpush1.msra.mxu0 %v819
      %1471 = vmatprep.subr.mxu0 0.0
      %1472 = vmatpush1.msra.mxu0 0.0
      %1473 = vmatprep.subr.mxu0 0.0
      %1474 = vmatpush1.msra.mxu0 0.0
      %1475 = vmatprep.subr.mxu0 0.0
      %1476 = vmatpush1.msra.mxu0 0.0
      %1477 = vmatprep.subr.mxu0 0.0
      %1478 = vmatpush1.msra.mxu0 0.0
      %1479 = vmatprep.subr.mxu0 0.0
      %1480 = vmatpush1.msra.mxu0 0.0
      %1481 = vmatprep.subr.mxu0 0.0
      %1482 = vmatpush1.msra.mxu0 0.0
      %1483 = vmatprep.subr.mxu0 0.0
      %1484 = vmatpush1.msra.mxu0 0.0
      %1485 = vmatprep.subr.mxu0 0.0
      %1486 = vmatpush1.msra.mxu0 0.0
      %1487 = vmatprep.subr.mxu0 0.0
      %1488 = vmatpush1.msra.mxu0 0.0
      %1489 = vmatprep.subr.mxu0 0.0
      %1490 = vmatpush1.msra.mxu0 0.0
      %1491 = vmatprep.subr.mxu0 0.0
      %1492 = vmatpush1.msra.mxu0 0.0
      %1493 = vmatprep.subr.mxu0 0.0
      %1494 = vmatpush1.msra.mxu0 0.0
      %1495 = vmatprep.subr.mxu0 0.0
      %1496 = vmatpush1.msra.mxu0 0.0
      %1497 = vmatprep.subr.mxu0 0.0
      %1498 = vmatpush1.msra.mxu0 0.0
      %1499 = vmatprep.subr.mxu0 0.0
      %1500 = vmatpush1.msra.mxu0 0.0
      %1501 = vmatprep.subr.mxu0 0.0
      %1502 = vmatpush1.msra.mxu0 0.0
      %1503 = vmatprep.subr.mxu0 0.0
      %1504 = vmatpush1.msra.mxu0 0.0
      %1505 = vmatprep.subr.mxu0 0.0
      %1506 = vmatpush1.msra.mxu0 0.0
      %1507 = vmatprep.subr.mxu0 0.0
      %1508 = vmatpush1.msra.mxu0 0.0
      %1509 = vmatprep.subr.mxu0 0.0
      %1510 = vmatpush1.msra.mxu0 0.0
      %1511 = vmatprep.subr.mxu0 0.0
      %1512 = vmatpush1.msra.mxu0 0.0
      %1513 = vmatprep.subr.mxu0 0.0
      %1514 = vmatpush1.msra.mxu0 0.0
      %1515 = vmatprep.subr.mxu0 0.0
      %1516 = vmatpush1.msra.mxu0 0.0
      %1517 = vmatprep.subr.mxu0 0.0
      %1518 = vmatpush1.msra.mxu0 0.0
      %1519 = vmatprep.subr.mxu0 0.0
      %1520 = vmatpush1.msra.mxu0 0.0
      %1521 = vmatprep.subr.mxu0 0.0
      %1522 = vmatpush1.msra.mxu0 0.0
      %1523 = vmatprep.subr.mxu0 0.0
      %1524 = vmatpush1.msra.mxu0 0.0
      %1525 = vmatprep.subr.mxu0 0.0
      %1526 = vmatpush1.msra.mxu0 0.0
      %1527 = vmatprep.subr.mxu0 0.0
      %1528 = vmatpush1.msra.mxu0 0.0
      %1529 = vmatprep.subr.mxu0 0.0
      %1530 = vmatpush1.msra.mxu0 0.0
      %1531 = vmatprep.subr.mxu0 0.0
      %1532 = vmatpush1.msra.mxu0 0.0
      %1533 = vmatprep.mubr.f32.mxu0 0.0
      %1534 = vmatmul.mubr.f32.gmra.mrb[0].mxu0 %v1467
      %v1535 = vpop.f32.mrb[0].mxu0
      %v1536 = vadd.f32 0.0, %v1535
      %v1537 = vpop.f32.mrb[0].mxu0
      %1538 = vdwg.mxu0
      %v1539 = vadd.f32 %v1297, %v1536
      %1540 = vrot.lane.b32.xlu0 %v814, 104
      %v1541 = vpop.permute.xlu0 %1540
      %1542 = vrot.lane.b32.xlu0 %v814, 72
      %v1543 = vpop.permute.xlu0 %1542
      %v1544 = vsel %vm825, %v1541, 0
      %v1546 = vsel %vm825, %v1543, 0
      %1548 = vmatprep.subr.mxu0 0.0
      %1549 = vmatpush1.xpose.msra.mxu0 %v1546
      %1550 = vmatprep.subr.mxu0 0.0
      %1551 = vmatpush1.xpose.msra.mxu0 0.0
      %1552 = vmatprep.subr.mxu0 0.0
      %1553 = vmatpush1.xpose.msra.mxu0 0.0
      %1554 = vmatprep.subr.mxu0 0.0
      %1555 = vmatpush1.xpose.msra.mxu0 0.0
      %1556 = vmatprep.subr.mxu0 0.0
      %1557 = vmatpush1.xpose.msra.mxu0 0.0
      %1558 = vmatprep.subr.mxu0 0.0
      %1559 = vmatpush1.xpose.msra.mxu0 0.0
      %1560 = vmatprep.subr.mxu0 0.0
      %1561 = vmatpush1.xpose.msra.mxu0 0.0
      %1562 = vmatprep.subr.mxu0 0.0
      %1563 = vmatpush1.xpose.msra.mxu0 0.0
      %1564 = vmatprep.subr.mxu0 0.0
      %1565 = vmatpush1.xpose.msra.mxu0 0.0
      %1566 = vmatprep.subr.mxu0 0.0
      %1567 = vmatpush1.xpose.msra.mxu0 0.0
      %1568 = vmatprep.subr.mxu0 0.0
      %1569 = vmatpush1.xpose.msra.mxu0 0.0
      %1570 = vmatprep.subr.mxu0 0.0
      %1571 = vmatpush1.xpose.msra.mxu0 0.0
      %1572 = vmatprep.subr.mxu0 0.0
      %1573 = vmatpush1.xpose.msra.mxu0 0.0
      %1574 = vmatprep.subr.mxu0 0.0
      %1575 = vmatpush1.xpose.msra.mxu0 0.0
      %1576 = vmatprep.subr.mxu0 0.0
      %1577 = vmatpush1.xpose.msra.mxu0 0.0
      %1578 = vmatprep.subr.mxu0 0.0
      %1579 = vmatpush1.xpose.msra.mxu0 0.0
      %1580 = vmatprep.subr.mxu0 0.0
      %1581 = vmatpush1.xpose.msra.mxu0 0.0
      %1582 = vmatprep.subr.mxu0 0.0
      %1583 = vmatpush1.xpose.msra.mxu0 0.0
      %1584 = vmatprep.subr.mxu0 0.0
      %1585 = vmatpush1.xpose.msra.mxu0 0.0
      %1586 = vmatprep.subr.mxu0 0.0
      %1587 = vmatpush1.xpose.msra.mxu0 0.0
      %1588 = vmatprep.subr.mxu0 0.0
      %1589 = vmatpush1.xpose.msra.mxu0 0.0
      %1590 = vmatprep.subr.mxu0 0.0
      %1591 = vmatpush1.xpose.msra.mxu0 0.0
      %1592 = vmatprep.subr.mxu0 0.0
      %1593 = vmatpush1.xpose.msra.mxu0 0.0
      %1594 = vmatprep.subr.mxu0 0.0
      %1595 = vmatpush1.xpose.msra.mxu0 0.0
      %1596 = vmatprep.subr.mxu0 0.0
      %1597 = vmatpush1.xpose.msra.mxu0 0.0
      %1598 = vmatprep.subr.mxu0 0.0
      %1599 = vmatpush1.xpose.msra.mxu0 0.0
      %1600 = vmatprep.subr.mxu0 0.0
      %1601 = vmatpush1.xpose.msra.mxu0 0.0
      %1602 = vmatprep.subr.mxu0 0.0
      %1603 = vmatpush1.xpose.msra.mxu0 0.0
      %1604 = vmatprep.subr.mxu0 0.0
      %1605 = vmatpush1.xpose.msra.mxu0 0.0
      %1606 = vmatprep.subr.mxu0 0.0
      %1607 = vmatpush1.xpose.msra.mxu0 0.0
      %1608 = vmatprep.subr.mxu0 0.0
      %1609 = vmatpush1.xpose.msra.mxu0 0.0
      %1610 = vmatprep.subr.mxu0 0.0
      %1611 = vmatpush1.xpose.msra.mxu0 0.0
      %1612 = vmatprep.mubr.f32.mxu0 0.0
      %1613 = vmatmul.mubr.f32.gmra.mrb[0].mxu0 %v1544
      %v1614 = vpop.f32.mrb[0].mxu0
      %v1615 = vadd.f32 0.0, %v1614
      %v1616 = vpop.f32.mrb[0].mxu0
      %1617 = vdwg.mxu0
      %v1618 = vmul.f32 %v1615, 0.35355338
      %v1619 = vsel %vm825, %v1618, -inf
      %1620 = vmax.xlane.f32.xlu0 %v1619
      %v1621 = vpop.xlane.xlu0 %1620
      %v1622 = vsub.f32 %v1618, %v1621
      %v1623 = vmul.f32 %v1622, 1.442695
      %v1624 = vpow.pop %v1623
      %v1625 = vsel %vm825, %v1624, 0.0
      %1626 = vadd.xlane.f32.xlu0 %v1625
      %v1627 = vpop.xlane.xlu0 %1626
      %v1628 = vrcp.pop %v1627
      %v1629 = vmul.f32 %v1624, %v1628
      %1630 = vrot.lane.b32.xlu0 %v814, 40
      %v1631 = vpop.permute.xlu0 %1630
      %v1634 = vsel %vm825, %v1629, 0
      %1636 = vmatprep.subr.mxu0 0.0
      %1637 = vmatpush1.msra.mxu0 %v1631
      %1638 = vmatprep.subr.mxu0 0.0
      %1639 = vmatpush1.msra.mxu0 0.0
      %1640 = vmatprep.subr.mxu0 0.0
      %1641 = vmatpush1.msra.mxu0 0.0
      %1642 = vmatprep.subr.mxu0 0.0
      %1643 = vmatpush1.msra.mxu0 0.0
      %1644 = vmatprep.subr.mxu0 0.0
      %1645 = vmatpush1.msra.mxu0 0.0
      %1646 = vmatprep.subr.mxu0 0.0
      %1647 = vmatpush1.msra.mxu0 0.0
      %1648 = vmatprep.subr.mxu0 0.0
      %1649 = vmatpush1.msra.mxu0 0.0
      %1650 = vmatprep.subr.mxu0 0.0
      %1651 = vmatpush1.msra.mxu0 0.0
      %1652 = vmatprep.subr.mxu0 0.0
      %1653 = vmatpush1.msra.mxu0 0.0
      %1654 = vmatprep.subr.mxu0 0.0
      %1655 = vmatpush1.msra.mxu0 0.0
      %1656 = vmatprep.subr.mxu0 0.0
      %1657 = vmatpush1.msra.mxu0 0.0
      %1658 = vmatprep.subr.mxu0 0.0
      %1659 = vmatpush1.msra.mxu0 0.0
      %1660 = vmatprep.subr.mxu0 0.0
      %1661 = vmatpush1.msra.mxu0 0.0
      %1662 = vmatprep.subr.mxu0 0.0
      %1663 = vmatpush1.msra.mxu0 0.0
      %1664 = vmatprep.subr.mxu0 0.0
      %1665 = vmatpush1.msra.mxu0 0.0
      %1666 = vmatprep.subr.mxu0 0.0
      %1667 = vmatpush1.msra.mxu0 0.0
      %1668 = vmatprep.subr.mxu0 0.0
      %1669 = vmatpush1.msra.mxu0 0.0
      %1670 = vmatprep.subr.mxu0 0.0
      %1671 = vmatpush1.msra.mxu0 0.0
      %1672 = vmatprep.subr.mxu0 0.0
      %1673 = vmatpush1.msra.mxu0 0.0
      %1674 = vmatprep.subr.mxu0 0.0
      %1675 = vmatpush1.msra.mxu0 0.0
      %1676 = vmatprep.subr.mxu0 0.0
      %1677 = vmatpush1.msra.mxu0 0.0
      %1678 = vmatprep.subr.mxu0 0.0
      %1679 = vmatpush1.msra.mxu0 0.0
      %1680 = vmatprep.subr.mxu0 0.0
      %1681 = vmatpush1.msra.mxu0 0.0
      %1682 = vmatprep.subr.mxu0 0.0
      %1683 = vmatpush1.msra.mxu0 0.0
      %1684 = vmatprep.subr.mxu0 0.0
      %1685 = vmatpush1.msra.mxu0 0.0
      %1686 = vmatprep.subr.mxu0 0.0
      %1687 = vmatpush1.msra.mxu0 0.0
      %1688 = vmatprep.subr.mxu0 0.0
      %1689 = vmatpush1.msra.mxu0 0.0
      %1690 = vmatprep.subr.mxu0 0.0
      %1691 = vmatpush1.msra.mxu0 0.0
      %1692 = vmatprep.subr.mxu0 0.0
      %1693 = vmatpush1.msra.mxu0 0.0
      %1694 = vmatprep.subr.mxu0 0.0
      %1695 = vmatpush1.msra.mxu0 0.0
      %1696 = vmatprep.subr.mxu0 0.0
      %1697 = vmatpush1.msra.mxu0 0.0
      %1698 = vmatprep.subr.mxu0 0.0
      %1699 = vmatpush1.msra.mxu0 0.0
      %1700 = vmatprep.mubr.f32.mxu0 0.0
      %1701 = vmatmul.mubr.f32.gmra.mrb[0].mxu0 %v1634
      %v1702 = vpop.f32.mrb[0].mxu0
      %v1703 = vadd.f32 0.0, %v1702
      %v1704 = vpop.f32.mrb[0].mxu0
      %1705 = vdwg.mxu0
      %v1707 = vsel %vm825, %v1703, 0
      %1709 = vmatprep.subr.mxu0 0.0
      %1710 = vmatpush1.msra.mxu0 %v820
      %1711 = vmatprep.subr.mxu0 0.0
      %1712 = vmatpush1.msra.mxu0 0.0
      %1713 = vmatprep.subr.mxu0 0.0
      %1714 = vmatpush1.msra.mxu0 0.0
      %1715 = vmatprep.subr.mxu0 0.0
      %1716 = vmatpush1.msra.mxu0 0.0
      %1717 = vmatprep.subr.mxu0 0.0
      %1718 = vmatpush1.msra.mxu0 0.0
      %1719 = vmatprep.subr.mxu0 0.0
      %1720 = vmatpush1.msra.mxu0 0.0
      %1721 = vmatprep.subr.mxu0 0.0
      %1722 = vmatpush1.msra.mxu0 0.0
      %1723 = vmatprep.subr.mxu0 0.0
      %1724 = vmatpush1.msra.mxu0 0.0
      %1725 = vmatprep.subr.mxu0 0.0
      %1726 = vmatpush1.msra.mxu0 0.0
      %1727 = vmatprep.subr.mxu0 0.0
      %1728 = vmatpush1.msra.mxu0 0.0
      %1729 = vmatprep.subr.mxu0 0.0
      %1730 = vmatpush1.msra.mxu0 0.0
      %1731 = vmatprep.subr.mxu0 0.0
      %1732 = vmatpush1.msra.mxu0 0.0
      %1733 = vmatprep.subr.mxu0 0.0
      %1734 = vmatpush1.msra.mxu0 0.0
      %1735 = vmatprep.subr.mxu0 0.0
      %1736 = vmatpush1.msra.mxu0 0.0
      %1737 = vmatprep.subr.mxu0 0.0
      %1738 = vmatpush1.msra.mxu0 0.0
      %1739 = vmatprep.subr.mxu0 0.0
      %1740 = vmatpush1.msra.mxu0 0.0
      %1741 = vmatprep.subr.mxu0 0.0
      %1742 = vmatpush1.msra.mxu0 0.0
      %1743 = vmatprep.subr.mxu0 0.0
      %1744 = vmatpush1.msra.mxu0 0.0
      %1745 = vmatprep.subr.mxu0 0.0
      %1746 = vmatpush1.msra.mxu0 0.0
      %1747 = vmatprep.subr.mxu0 0.0
      %1748 = vmatpush1.msra.mxu0 0.0
      %1749 = vmatprep.subr.mxu0 0.0
      %1750 = vmatpush1.msra.mxu0 0.0
      %1751 = vmatprep.subr.mxu0 0.0
      %1752 = vmatpush1.msra.mxu0 0.0
      %1753 = vmatprep.subr.mxu0 0.0
      %1754 = vmatpush1.msra.mxu0 0.0
      %1755 = vmatprep.subr.mxu0 0.0
      %1756 = vmatpush1.msra.mxu0 0.0
      %1757 = vmatprep.subr.mxu0 0.0
      %1758 = vmatpush1.msra.mxu0 0.0
      %1759 = vmatprep.subr.mxu0 0.0
      %1760 = vmatpush1.msra.mxu0 0.0
      %1761 = vmatprep.subr.mxu0 0.0
      %1762 = vmatpush1.msra.mxu0 0.0
      %1763 = vmatprep.subr.mxu0 0.0
      %1764 = vmatpush1.msra.mxu0 0.0
      %1765 = vmatprep.subr.mxu0 0.0
      %1766 = vmatpush1.msra.mxu0 0.0
      %1767 = vmatprep.subr.mxu0 0.0
      %1768 = vmatpush1.msra.mxu0 0.0
      %1769 = vmatprep.subr.mxu0 0.0
      %1770 = vmatpush1.msra.mxu0 0.0
      %1771 = vmatprep.subr.mxu0 0.0
      %1772 = vmatpush1.msra.mxu0 0.0
      %1773 = vmatprep.mubr.f32.mxu0 0.0
      %1774 = vmatmul.mubr.f32.gmra.mrb[0].mxu0 %v1707
      %v1775 = vpop.f32.mrb[0].mxu0
      %v1776 = vadd.f32 0.0, %v1775
      %v1777 = vpop.f32.mrb[0].mxu0
      %1778 = vdwg.mxu0
      %v1779 = vadd.f32 %v1539, %v1776
      %v1781 = vlaneseq
      %v1782 = vshrl.u32 %v1781, 7
      %v1783 = vsub.s32 0, %v1782
      %v1784 = vrot.slane %v821, %v1783
      %v1786 = vadd.f32 %v1779, %v1784
      %v1787 = vld [vmem:[%s6] sm:$0x1]
      %v1788 = vld [vmem:[%s7] sm:$0x1]
      %v1789 = vadd.f32 %v699, %v1786
      %v1790 = vsel %vm743, %v1789, 0.0
      %1791 = vadd.xlane.f32.xlu0 %v1790
      %v1792 = vpop.xlane.xlu0 %1791
      %v1793 = vrcp.pop 32.0
      %v1794 = vmul.f32 %v1792, %v1793
      %v1795 = vsub.f32 %v1789, %v1794
      %v1796 = vmul.f32 %v1795, %v1795
      %v1797 = vsel %vm743, %v1796, 0.0
      %1798 = vadd.xlane.f32.xlu0 %v1797
      %v1799 = vpop.xlane.xlu0 %1798
      %v1800 = vmul.f32 %v1799, %v1793
      %v1801 = vadd.f32 %v1800, 1e-05
      %v1802 = vrsqrt.pop %v1801
      %v1803 = vmul.f32 %v1795, %v1802
      %v1805 = vlaneseq
      %v1806 = vshrl.u32 %v1805, 7
      %v1807 = vsub.s32 0, %v1806
      %v1808 = vrot.slane %v1787, %v1807
      %v1810 = vmul.f32 %v1803, %v1808
      %v1812 = vlaneseq
      %v1813 = vshrl.u32 %v1812, 7
      %v1814 = vsub.s32 0, %v1813
      %v1815 = vrot.slane %v1788, %v1814
      %v1817 = vadd.f32 %v1810, %v1815
      %v1818 = vld [vmem:[%s8] sm:$0xff]
      %v1819 = vld [vmem:[%s8 + $0x8] sm:$0xff]
      %v1820 = vld [vmem:[%s8 + $0x10] sm:$0xff]
      %v1821 = vld [vmem:[%s8 + $0x18] sm:$0xff]
      %v1822 = vld [vmem:[%s9] sm:$0x1]
      %v1824 = vlaneseq
      %v1825 = vshrl.u32 %v1824, 7
      %v1826 = vsub.s32 0, %v1825
      %v1827 = vrot.slane %v1822, %v1826
      %v1830 = vsel %vm743, %v1817, 0
      %1832 = vmatprep.subr.mxu0 0.0
      %1833 = vmatpush1.msra.mxu0 %v1818
      %1834 = vmatprep.subr.mxu0 0.0
      %1835 = vmatpush1.msra.mxu0 %v1819
      %1836 = vmatprep.subr.mxu0 0.0
      %1837 = vmatpush1.msra.mxu0 %v1820
      %1838 = vmatprep.subr.mxu0 0.0
      %1839 = vmatpush1.msra.mxu0 %v1821
      %1840 = vmatprep.subr.mxu0 0.0
      %1841 = vmatpush1.msra.mxu0 0.0
      %1842 = vmatprep.subr.mxu0 0.0
      %1843 = vmatpush1.msra.mxu0 0.0
      %1844 = vmatprep.subr.mxu0 0.0
      %1845 = vmatpush1.msra.mxu0 0.0
      %1846 = vmatprep.subr.mxu0 0.0
      %1847 = vmatpush1.msra.mxu0 0.0
      %1848 = vmatprep.subr.mxu0 0.0
      %1849 = vmatpush1.msra.mxu0 0.0
      %1850 = vmatprep.subr.mxu0 0.0
      %1851 = vmatpush1.msra.mxu0 0.0
      %1852 = vmatprep.subr.mxu0 0.0
      %1853 = vmatpush1.msra.mxu0 0.0
      %1854 = vmatprep.subr.mxu0 0.0
      %1855 = vmatpush1.msra.mxu0 0.0
      %1856 = vmatprep.subr.mxu0 0.0
      %1857 = vmatpush1.msra.mxu0 0.0
      %1858 = vmatprep.subr.mxu0 0.0
      %1859 = vmatpush1.msra.mxu0 0.0
      %1860 = vmatprep.subr.mxu0 0.0
      %1861 = vmatpush1.msra.mxu0 0.0
      %1862 = vmatprep.subr.mxu0 0.0
      %1863 = vmatpush1.msra.mxu0 0.0
      %1864 = vmatprep.subr.mxu0 0.0
      %1865 = vmatpush1.msra.mxu0 0.0
      %1866 = vmatprep.subr.mxu0 0.0
      %1867 = vmatpush1.msra.mxu0 0.0
      %1868 = vmatprep.subr.mxu0 0.0
      %1869 = vmatpush1.msra.mxu0 0.0
      %1870 = vmatprep.subr.mxu0 0.0
      %1871 = vmatpush1.msra.mxu0 0.0
      %1872 = vmatprep.subr.mxu0 0.0
      %1873 = vmatpush1.msra.mxu0 0.0
      %1874 = vmatprep.subr.mxu0 0.0
      %1875 = vmatpush1.msra.mxu0 0.0
      %1876 = vmatprep.subr.mxu0 0.0
      %1877 = vmatpush1.msra.mxu0 0.0
      %1878 = vmatprep.subr.mxu0 0.0
      %1879 = vmatpush1.msra.mxu0 0.0
      %1880 = vmatprep.subr.mxu0 0.0
      %1881 = vmatpush1.msra.mxu0 0.0
      %1882 = vmatprep.subr.mxu0 0.0
      %1883 = vmatpush1.msra.mxu0 0.0
      %1884 = vmatprep.subr.mxu0 0.0
      %1885 = vmatpush1.msra.mxu0 0.0
      %1886 = vmatprep.subr.mxu0 0.0
      %1887 = vmatpush1.msra.mxu0 0.0
      %1888 = vmatprep.subr.mxu0 0.0
      %1889 = vmatpush1.msra.mxu0 0.0
      %1890 = vmatprep.subr.mxu0 0.0
      %1891 = vmatpush1.msra.mxu0 0.0
      %1892 = vmatprep.subr.mxu0 0.0
      %1893 = vmatpush1.msra.mxu0 0.0
      %1894 = vmatprep.subr.mxu0 0.0
      %1895 = vmatpush1.msra.mxu0 0.0
      %1896 = vmatprep.mubr.f32.mxu0 0.0
      %1897 = vmatmul.mubr.f32.gmra.mrb[0].mxu0 %v1830
      %v1898 = vpop.f32.mrb[0].mxu0
      %v1899 = vadd.f32 %v1827, %v1898
      %v1900 = vpop.f32.mrb[0].mxu0
      %1901 = vdwg.mxu0
      %v1902 = vld [vmem:[%s10] sm:$0xff]
      %v1903 = vld [vmem:[%s10 + $0x8] sm:$0xff]
      %v1904 = vld [vmem:[%s10 + $0x10] sm:$0xff]
      %v1905 = vld [vmem:[%s10 + $0x18] sm:$0xff]
      %v1906 = vld [vmem:[%s11] sm:$0x1]
      %v1908 = vlaneseq
      %v1909 = vshrl.u32 %v1908, 7
      %v1910 = vsub.s32 0, %v1909
      %v1911 = vrot.slane %v1906, %v1910
      %v1914 = vsel %vm743, %v700, 0
      %v1917 = vsel %vm743, %v701, 0
      %v1920 = vsel %vm743, %v702, 0
      %v1923 = vsel %vm743, %v703, 0
      %v1926 = vsel %vm743, %v704, 0
      %v1929 = vsel %vm743, %v705, 0
      %v1932 = vsel %vm743, %v706, 0
      %v1935 = vsel %vm743, %v707, 0
      %v1938 = vsel %vm743, %v708, 0
      %v1941 = vsel %vm743, %v709, 0
      %v1944 = vsel %vm743, %v710, 0
      %v1947 = vsel %vm743, %v711, 0
      %v1950 = vsel %vm743, %v712, 0
      %v1953 = vsel %vm743, %v713, 0
      %v1956 = vsel %vm743, %v714, 0
      %v1959 = vsel %vm743, %v715, 0
      %v1962 = vsel %vm743, %v716, 0
      %v1965 = vsel %vm743, %v717, 0
      %v1968 = vsel %vm743, %v718, 0
      %v1971 = vsel %vm743, %v719, 0
      %v1974 = vsel %vm743, %v720, 0
      %v1977 = vsel %vm743, %v721, 0
      %v1980 = vsel %vm743, %v722, 0
      %v1983 = vsel %vm743, %v723, 0
      %v1986 = vsel %vm743, %v724, 0
      %v1989 = vsel %vm743, %v725, 0
      %v1992 = vsel %vm743, %v726, 0
      %v1995 = vsel %vm743, %v727, 0
      %v1998 = vsel %vm743, %v728, 0
      %v2001 = vsel %vm743, %v729, 0
      %v2004 = vsel %vm743, %v730, 0
      %v2007 = vsel %vm743, %v731, 0
      %2009 = vmatprep.subr.mxu0 0.0
      %2010 = vmatpush1.msra.mxu0 %v1902
      %2011 = vmatprep.subr.mxu0 0.0
      %2012 = vmatpush1.msra.mxu0 %v1903
      %2013 = vmatprep.subr.mxu0 0.0
      %2014 = vmatpush1.msra.mxu0 %v1904
      %2015 = vmatprep.subr.mxu0 0.0
      %2016 = vmatpush1.msra.mxu0 %v1905
      %2017 = vmatprep.subr.mxu0 0.0
      %2018 = vmatpush1.msra.mxu0 0.0
      %2019 = vmatprep.subr.mxu0 0.0
      %2020 = vmatpush1.msra.mxu0 0.0
      %2021 = vmatprep.subr.mxu0 0.0
      %2022 = vmatpush1.msra.mxu0 0.0
      %2023 = vmatprep.subr.mxu0 0.0
      %2024 = vmatpush1.msra.mxu0 0.0
      %2025 = vmatprep.subr.mxu0 0.0
      %2026 = vmatpush1.msra.mxu0 0.0
      %2027 = vmatprep.subr.mxu0 0.0
      %2028 = vmatpush1.msra.mxu0 0.0
      %2029 = vmatprep.subr.mxu0 0.0
      %2030 = vmatpush1.msra.mxu0 0.0
      %2031 = vmatprep.subr.mxu0 0.0
      %2032 = vmatpush1.msra.mxu0 0.0
      %2033 = vmatprep.subr.mxu0 0.0
      %2034 = vmatpush1.msra.mxu0 0.0
      %2035 = vmatprep.subr.mxu0 0.0
      %2036 = vmatpush1.msra.mxu0 0.0
      %2037 = vmatprep.subr.mxu0 0.0
      %2038 = vmatpush1.msra.mxu0 0.0
      %2039 = vmatprep.subr.mxu0 0.0
      %2040 = vmatpush1.msra.mxu0 0.0
      %2041 = vmatprep.subr.mxu0 0.0
      %2042 = vmatpush1.msra.mxu0 0.0
      %2043 = vmatprep.subr.mxu0 0.0
      %2044 = vmatpush1.msra.mxu0 0.0
      %2045 = vmatprep.subr.mxu0 0.0
      %2046 = vmatpush1.msra.mxu0 0.0
      %2047 = vmatprep.subr.mxu0 0.0
      %2048 = vmatpush1.msra.mxu0 0.0
      %2049 = vmatprep.subr.mxu0 0.0
      %2050 = vmatpush1.msra.mxu0 0.0
      %2051 = vmatprep.subr.mxu0 0.0
      %2052 = vmatpush1.msra.mxu0 0.0
      %2053 = vmatprep.subr.mxu0 0.0
      %2054 = vmatpush1.msra.mxu0 0.0
      %2055 = vmatprep.subr.mxu0 0.0
      %2056 = vmatpush1.msra.mxu0 0.0
      %2057 = vmatprep.subr.mxu0 0.0
      %2058 = vmatpush1.msra.mxu0 0.0
      %2059 = vmatprep.subr.mxu0 0.0
      %2060 = vmatpush1.msra.mxu0 0.0
      %2061 = vmatprep.subr.mxu0 0.0
      %2062 = vmatpush1.msra.mxu0 0.0
      %2063 = vmatprep.subr.mxu0 0.0
      %2064 = vmatpush1.msra.mxu0 0.0
      %2065 = vmatprep.subr.mxu0 0.0
      %2066 = vmatpush1.msra.mxu0 0.0
      %2067 = vmatprep.subr.mxu0 0.0
      %2068 = vmatpush1.msra.mxu0 0.0
      %2069 = vmatprep.subr.mxu0 0.0
      %2070 = vmatpush1.msra.mxu0 0.0
      %2071 = vmatprep.subr.mxu0 0.0
      %2072 = vmatpush1.msra.mxu0 0.0
      %2073 = vmatprep.mubr.f32.mxu0 0.0
      %2074 = vmatmul.mubr.f32.gmra.mrb[0].mxu0 %v1914
      %v2075 = vpop.f32.mrb[0].mxu0
      %v2076 = vadd.f32 %v1911, %v2075
      %v2077 = vpop.f32.mrb[0].mxu0
      %2078 = vmatprep.mubr.f32.mxu0 0.0
      %2079 = vmatmul.mubr.f32.gmra.mrb[0].mxu0 %v1917
      %v2080 = vpop.f32.mrb[0].mxu0
      %v2081 = vadd.f32 %v1911, %v2080
      %v2082 = vpop.f32.mrb[0].mxu0
      %2083 = vmatprep.mubr.f32.mxu0 0.0
      %2084 = vmatmul.mubr.f32.gmra.mrb[0].mxu0 %v1920
      %v2085 = vpop.f32.mrb[0].mxu0
      %v2086 = vadd.f32 %v1911, %v2085
      %v2087 = vpop.f32.mrb[0].mxu0
      %2088 = vmatprep.mubr.f32.mxu0 0.0
      %2089 = vmatmul.mubr.f32.gmra.mrb[0].mxu0 %v1923
      %v2090 = vpop.f32.mrb[0].mxu0
      %v2091 = vadd.f32 %v1911, %v2090
      %v2092 = vpop.f32.mrb[0].mxu0
      %2093 = vmatprep.mubr.f32.mxu0 0.0
      %2094 = vmatmul.mubr.f32.gmra.mrb[0].mxu0 %v1926
      %v2095 = vpop.f32.mrb[0].mxu0
      %v2096 = vadd.f32 %v1911, %v2095
      %v2097 = vpop.f32.mrb[0].mxu0
      %2098 = vmatprep.mubr.f32.mxu0 0.0
      %2099 = vmatmul.mubr.f32.gmra.mrb[0].mxu0 %v1929
      %v2100 = vpop.f32.mrb[0].mxu0
      %v2101 = vadd.f32 %v1911, %v2100
      %v2102 = vpop.f32.mrb[0].mxu0
      %2103 = vmatprep.mubr.f32.mxu0 0.0
      %2104 = vmatmul.mubr.f32.gmra.mrb[0].mxu0 %v1932
      %v2105 = vpop.f32.mrb[0].mxu0
      %v2106 = vadd.f32 %v1911, %v2105
      %v2107 = vpop.f32.mrb[0].mxu0
      %2108 = vmatprep.mubr.f32.mxu0 0.0
      %2109 = vmatmul.mubr.f32.gmra.mrb[0].mxu0 %v1935
      %v2110 = vpop.f32.mrb[0].mxu0
      %v2111 = vadd.f32 %v1911, %v2110
      %v2112 = vpop.f32.mrb[0].mxu0
      %2113 = vmatprep.mubr.f32.mxu0 0.0
      %2114 = vmatmul.mubr.f32.gmra.mrb[0].mxu0 %v1938
      %v2115 = vpop.f32.mrb[0].mxu0
      %v2116 = vadd.f32 %v1911, %v2115
      %v2117 = vpop.f32.mrb[0].mxu0
      %2118 = vmatprep.mubr.f32.mxu0 0.0
      %2119 = vmatmul.mubr.f32.gmra.mrb[0].mxu0 %v1941
      %v2120 = vpop.f32.mrb[0].mxu0
      %v2121 = vadd.f32 %v1911, %v2120
      %v2122 = vpop.f32.mrb[0].mxu0
      %2123 = vmatprep.mubr.f32.mxu0 0.0
      %2124 = vmatmul.mubr.f32.gmra.mrb[0].mxu0 %v1944
      %v2125 = vpop.f32.mrb[0].mxu0
      %v2126 = vadd.f32 %v1911, %v2125
      %v2127 = vpop.f32.mrb[0].mxu0
      %2128 = vmatprep.mubr.f32.mxu0 0.0
      %2129 = vmatmul.mubr.f32.gmra.mrb[0].mxu0 %v1947
      %v2130 = vpop.f32.mrb[0].mxu0
      %v2131 = vadd.f32 %v1911, %v2130
      %v2132 = vpop.f32.mrb[0].mxu0
      %2133 = vmatprep.mubr.f32.mxu0 0.0
      %2134 = vmatmul.mubr.f32.gmra.mrb[0].mxu0 %v1950
      %v2135 = vpop.f32.mrb[0].mxu0
      %v2136 = vadd.f32 %v1911, %v2135
      %v2137 = vpop.f32.mrb[0].mxu0
      %2138 = vmatprep.mubr.f32.mxu0 0.0
      %2139 = vmatmul.mubr.f32.gmra.mrb[0].mxu0 %v1953
      %v2140 = vpop.f32.mrb[0].mxu0
      %v2141 = vadd.f32 %v1911, %v2140
      %v2142 = vpop.f32.mrb[0].mxu0
      %2143 = vmatprep.mubr.f32.mxu0 0.0
      %2144 = vmatmul.mubr.f32.gmra.mrb[0].mxu0 %v1956
      %v2145 = vpop.f32.mrb[0].mxu0
      %v2146 = vadd.f32 %v1911, %v2145
      %v2147 = vpop.f32.mrb[0].mxu0
      %2148 = vmatprep.mubr.f32.mxu0 0.0
      %2149 = vmatmul.mubr.f32.gmra.mrb[0].mxu0 %v1959
      %v2150 = vpop.f32.mrb[0].mxu0
      %v2151 = vadd.f32 %v1911, %v2150
      %v2152 = vpop.f32.mrb[0].mxu0
      %2153 = vmatprep.mubr.f32.mxu0 0.0
      %2154 = vmatmul.mubr.f32.gmra.mrb[0].mxu0 %v1962
      %v2155 = vpop.f32.mrb[0].mxu0
      %v2156 = vadd.f32 %v1911, %v2155
      %v2157 = vpop.f32.mrb[0].mxu0
      %2158 = vmatprep.mubr.f32.mxu0 0.0
      %2159 = vmatmul.mubr.f32.gmra.mrb[0].mxu0 %v1965
      %v2160 = vpop.f32.mrb[0].mxu0
      %v2161 = vadd.f32 %v1911, %v2160
      %v2162 = vpop.f32.mrb[0].mxu0
      %2163 = vmatprep.mubr.f32.mxu0 0.0
      %2164 = vmatmul.mubr.f32.gmra.mrb[0].mxu0 %v1968
      %v2165 = vpop.f32.mrb[0].mxu0
      %v2166 = vadd.f32 %v1911, %v2165
      %v2167 = vpop.f32.mrb[0].mxu0
      %2168 = vmatprep.mubr.f32.mxu0 0.0
      %2169 = vmatmul.mubr.f32.gmra.mrb[0].mxu0 %v1971
      %v2170 = vpop.f32.mrb[0].mxu0
      %v2171 = vadd.f32 %v1911, %v2170
      %v2172 = vpop.f32.mrb[0].mxu0
      %2173 = vmatprep.mubr.f32.mxu0 0.0
      %2174 = vmatmul.mubr.f32.gmra.mrb[0].mxu0 %v1974
      %v2175 = vpop.f32.mrb[0].mxu0
      %v2176 = vadd.f32 %v1911, %v2175
      %v2177 = vpop.f32.mrb[0].mxu0
      %2178 = vmatprep.mubr.f32.mxu0 0.0
      %2179 = vmatmul.mubr.f32.gmra.mrb[0].mxu0 %v1977
      %v2180 = vpop.f32.mrb[0].mxu0
      %v2181 = vadd.f32 %v1911, %v2180
      %v2182 = vpop.f32.mrb[0].mxu0
      %2183 = vmatprep.mubr.f32.mxu0 0.0
      %2184 = vmatmul.mubr.f32.gmra.mrb[0].mxu0 %v1980
      %v2185 = vpop.f32.mrb[0].mxu0
      %v2186 = vadd.f32 %v1911, %v2185
      %v2187 = vpop.f32.mrb[0].mxu0
      %2188 = vmatprep.mubr.f32.mxu0 0.0
      %2189 = vmatmul.mubr.f32.gmra.mrb[0].mxu0 %v1983
      %v2190 = vpop.f32.mrb[0].mxu0
      %v2191 = vadd.f32 %v1911, %v2190
      %v2192 = vpop.f32.mrb[0].mxu0
      %2193 = vmatprep.mubr.f32.mxu0 0.0
      %2194 = vmatmul.mubr.f32.gmra.mrb[0].mxu0 %v1986
      %v2195 = vpop.f32.mrb[0].mxu0
      %v2196 = vadd.f32 %v1911, %v2195
      %v2197 = vpop.f32.mrb[0].mxu0
      %2198 = vmatprep.mubr.f32.mxu0 0.0
      %2199 = vmatmul.mubr.f32.gmra.mrb[0].mxu0 %v1989
      %v2200 = vpop.f32.mrb[0].mxu0
      %v2201 = vadd.f32 %v1911, %v2200
      %v2202 = vpop.f32.mrb[0].mxu0
      %2203 = vmatprep.mubr.f32.mxu0 0.0
      %2204 = vmatmul.mubr.f32.gmra.mrb[0].mxu0 %v1992
      %v2205 = vpop.f32.mrb[0].mxu0
      %v2206 = vadd.f32 %v1911, %v2205
      %v2207 = vpop.f32.mrb[0].mxu0
      %2208 = vmatprep.mubr.f32.mxu0 0.0
      %2209 = vmatmul.mubr.f32.gmra.mrb[0].mxu0 %v1995
      %v2210 = vpop.f32.mrb[0].mxu0
      %v2211 = vadd.f32 %v1911, %v2210
      %v2212 = vpop.f32.mrb[0].mxu0
      %2213 = vmatprep.mubr.f32.mxu0 0.0
      %2214 = vmatmul.mubr.f32.gmra.mrb[0].mxu0 %v1998
      %v2215 = vpop.f32.mrb[0].mxu0
      %v2216 = vadd.f32 %v1911, %v2215
      %v2217 = vpop.f32.mrb[0].mxu0
      %2218 = vmatprep.mubr.f32.mxu0 0.0
      %2219 = vmatmul.mubr.f32.gmra.mrb[0].mxu0 %v2001
      %v2220 = vpop.f32.mrb[0].mxu0
      %v2221 = vadd.f32 %v1911, %v2220
      %v2222 = vpop.f32.mrb[0].mxu0
      %2223 = vmatprep.mubr.f32.mxu0 0.0
      %2224 = vmatmul.mubr.f32.gmra.mrb[0].mxu0 %v2004
      %v2225 = vpop.f32.mrb[0].mxu0
      %v2226 = vadd.f32 %v1911, %v2225
      %v2227 = vpop.f32.mrb[0].mxu0
      %2228 = vmatprep.mubr.f32.mxu0 0.0
      %2229 = vmatmul.mubr.f32.gmra.mrb[0].mxu0 %v2007
      %v2230 = vpop.f32.mrb[0].mxu0
      %v2231 = vadd.f32 %v1911, %v2230
      %v2232 = vpop.f32.mrb[0].mxu0
      %2233 = vdwg.mxu0
      %v2234 = vld [vmem:[%s12] sm:$0xff]
      %v2235 = vld [vmem:[%s12 + $0x8] sm:$0xff]
      %v2236 = vld [vmem:[%s12 + $0x10] sm:$0xff]
      %v2237 = vld [vmem:[%s12 + $0x18] sm:$0xff]
      %v2238 = vld [vmem:[%s13] sm:$0x1]
      %v2240 = vsel %vm825, %v1899, 0
      %v2243 = vsel %vm825, %v2076, 0
      %v2246 = vsel %vm825, %v2081, 0
      %v2249 = vsel %vm825, %v2086, 0
      %v2252 = vsel %vm825, %v2091, 0
      %v2255 = vsel %vm825, %v2096, 0
      %v2258 = vsel %vm825, %v2101, 0
      %v2261 = vsel %vm825, %v2106, 0
      %v2264 = vsel %vm825, %v2111, 0
      %v2267 = vsel %vm825, %v2116, 0
      %v2270 = vsel %vm825, %v2121, 0
      %v2273 = vsel %vm825, %v2126, 0
      %v2276 = vsel %vm825, %v2131, 0
      %v2279 = vsel %vm825, %v2136, 0
      %v2282 = vsel %vm825, %v2141, 0
      %v2285 = vsel %vm825, %v2146, 0
      %v2288 = vsel %vm825, %v2151, 0
      %v2291 = vsel %vm825, %v2156, 0
      %v2294 = vsel %vm825, %v2161, 0
      %v2297 = vsel %vm825, %v2166, 0
      %v2300 = vsel %vm825, %v2171, 0
      %v2303 = vsel %vm825, %v2176, 0
      %v2306 = vsel %vm825, %v2181, 0
      %v2309 = vsel %vm825, %v2186, 0
      %v2312 = vsel %vm825, %v2191, 0
      %v2315 = vsel %vm825, %v2196, 0
      %v2318 = vsel %vm825, %v2201, 0
      %v2321 = vsel %vm825, %v2206, 0
      %v2324 = vsel %vm825, %v2211, 0
      %v2327 = vsel %vm825, %v2216, 0
      %v2330 = vsel %vm825, %v2221, 0
      %v2333 = vsel %vm825, %v2226, 0
      %v2336 = vsel %vm825, %v2231, 0
      %2338 = vmatprep.subr.mxu0 0.0
      %2339 = vmatpush1.xpose.msra.mxu0 %v2243
      %2340 = vmatprep.subr.mxu0 0.0
      %2341 = vmatpush1.xpose.msra.mxu0 %v2246
      %2342 = vmatprep.subr.mxu0 0.0
      %2343 = vmatpush1.xpose.msra.mxu0 %v2249
      %2344 = vmatprep.subr.mxu0 0.0
      %2345 = vmatpush1.xpose.msra.mxu0 %v2252
      %2346 = vmatprep.subr.mxu0 0.0
      %2347 = vmatpush1.xpose.msra.mxu0 %v2255
      %2348 = vmatprep.subr.mxu0 0.0
      %2349 = vmatpush1.xpose.msra.mxu0 %v2258
      %2350 = vmatprep.subr.mxu0 0.0
      %2351 = vmatpush1.xpose.msra.mxu0 %v2261
      %2352 = vmatprep.subr.mxu0 0.0
      %2353 = vmatpush1.xpose.msra.mxu0 %v2264
      %2354 = vmatprep.subr.mxu0 0.0
      %2355 = vmatpush1.xpose.msra.mxu0 %v2267
      %2356 = vmatprep.subr.mxu0 0.0
      %2357 = vmatpush1.xpose.msra.mxu0 %v2270
      %2358 = vmatprep.subr.mxu0 0.0
      %2359 = vmatpush1.xpose.msra.mxu0 %v2273
      %2360 = vmatprep.subr.mxu0 0.0
      %2361 = vmatpush1.xpose.msra.mxu0 %v2276
      %2362 = vmatprep.subr.mxu0 0.0
      %2363 = vmatpush1.xpose.msra.mxu0 %v2279
      %2364 = vmatprep.subr.mxu0 0.0
      %2365 = vmatpush1.xpose.msra.mxu0 %v2282
      %2366 = vmatprep.subr.mxu0 0.0
      %2367 = vmatpush1.xpose.msra.mxu0 %v2285
      %2368 = vmatprep.subr.mxu0 0.0
      %2369 = vmatpush1.xpose.msra.mxu0 %v2288
      %2370 = vmatprep.subr.mxu0 0.0
      %2371 = vmatpush1.xpose.msra.mxu0 %v2291
      %2372 = vmatprep.subr.mxu0 0.0
      %2373 = vmatpush1.xpose.msra.mxu0 %v2294
      %2374 = vmatprep.subr.mxu0 0.0
      %2375 = vmatpush1.xpose.msra.mxu0 %v2297
      %2376 = vmatprep.subr.mxu0 0.0
      %2377 = vmatpush1.xpose.msra.mxu0 %v2300
      %2378 = vmatprep.subr.mxu0 0.0
      %2379 = vmatpush1.xpose.msra.mxu0 %v2303
      %2380 = vmatprep.subr.mxu0 0.0
      %2381 = vmatpush1.xpose.msra.mxu0 %v2306
      %2382 = vmatprep.subr.mxu0 0.0
      %2383 = vmatpush1.xpose.msra.mxu0 %v2309
      %2384 = vmatprep.subr.mxu0 0.0
      %2385 = vmatpush1.xpose.msra.mxu0 %v2312
      %2386 = vmatprep.subr.mxu0 0.0
      %2387 = vmatpush1.xpose.msra.mxu0 %v2315
      %2388 = vmatprep.subr.mxu0 0.0
      %2389 = vmatpush1.xpose.msra.mxu0 %v2318
      %2390 = vmatprep.subr.mxu0 0.0
      %2391 = vmatpush1.xpose.msra.mxu0 %v2321
      %2392 = vmatprep.subr.mxu0 0.0
      %2393 = vmatpush1.xpose.msra.mxu0 %v2324
      %2394 = vmatprep.subr.mxu0 0.0
      %2395 = vmatpush1.xpose.msra.mxu0 %v2327
      %2396 = vmatprep.subr.mxu0 0.0
      %2397 = vmatpush1.xpose.msra.mxu0 %v2330
      %2398 = vmatprep.subr.mxu0 0.0
      %2399 = vmatpush1.xpose.msra.mxu0 %v2333
      %2400 = vmatprep.subr.mxu0 0.0
      %2401 = vmatpush1.xpose.msra.mxu0 %v2336
      %2402 = vmatprep.mubr.f32.mxu0 0.0
      %2403 = vmatmul.mubr.f32.gmra.mrb[0].mxu0 %v2240
      %v2404 = vpop.f32.mrb[0].mxu0
      %v2405 = vadd.f32 0.0, %v2404
      %v2406 = vpop.f32.mrb[0].mxu0
      %v2407 = vadd.f32 0.0, %v2406
      %2408 = vdwg.mxu0
      %v2409 = vmul.f32 %v2405, 0.35355338
      %v2410 = vmul.f32 %v2407, 0.35355338
      %v2411 = vmax.f32 %v2409, %v2410
      %2412 = vmax.xlane.f32.xlu0 %v2411
      %v2413 = vpop.xlane.xlu0 %2412
      %v2414 = vsub.f32 %v2409, %v2413
      %v2415 = vsub.f32 %v2410, %v2413
      %v2416 = vmul.f32 %v2414, 1.442695
      %v2417 = vpow.pop %v2416
      %v2418 = vmul.f32 %v2415, 1.442695
      %v2419 = vpow.pop %v2418
      %v2420 = vadd.f32 %v2417, %v2419
      %2421 = vadd.xlane.f32.xlu0 %v2420
      %v2422 = vpop.xlane.xlu0 %2421
      %v2423 = vrcp.pop %v2422
      %v2424 = vmul.f32 %v2417, %v2423
      %v2425 = vmul.f32 %v2419, %v2423
      %2426 = vrot.lane.b32.xlu0 %v2076, 96
      %v2427 = vpop.permute.xlu0 %2426
      %2428 = vrot.lane.b32.xlu0 %v2081, 96
      %v2429 = vpop.permute.xlu0 %2428
      %2430 = vrot.lane.b32.xlu0 %v2086, 96
      %v2431 = vpop.permute.xlu0 %2430
      %2432 = vrot.lane.b32.xlu0 %v2091, 96
      %v2433 = vpop.permute.xlu0 %2432
      %2434 = vrot.lane.b32.xlu0 %v2096, 96
      %v2435 = vpop.permute.xlu0 %2434
      %2436 = vrot.lane.b32.xlu0 %v2101, 96
      %v2437 = vpop.permute.xlu0 %2436
      %2438 = vrot.lane.b32.xlu0 %v2106, 96
      %v2439 = vpop.permute.xlu0 %2438
      %2440 = vrot.lane.b32.xlu0 %v2111, 96
      %v2441 = vpop.permute.xlu0 %2440
      %2442 = vrot.lane.b32.xlu0 %v2116, 96
      %v2443 = vpop.permute.xlu0 %2442
      %2444 = vrot.lane.b32.xlu0 %v2121, 96
      %v2445 = vpop.permute.xlu0 %2444
      %2446 = vrot.lane.b32.xlu0 %v2126, 96
      %v2447 = vpop.permute.xlu0 %2446
      %2448 = vrot.lane.b32.xlu0 %v2131, 96
      %v2449 = vpop.permute.xlu0 %2448
      %2450 = vrot.lane.b32.xlu0 %v2136, 96
      %v2451 = vpop.permute.xlu0 %2450
      %2452 = vrot.lane.b32.xlu0 %v2141, 96
      %v2453 = vpop.permute.xlu0 %2452
      %2454 = vrot.lane.b32.xlu0 %v2146, 96
      %v2455 = vpop.permute.xlu0 %2454
      %2456 = vrot.lane.b32.xlu0 %v2151, 96
      %v2457 = vpop.permute.xlu0 %2456
      %2458 = vrot.lane.b32.xlu0 %v2156, 96
      %v2459 = vpop.permute.xlu0 %2458
      %2460 = vrot.lane.b32.xlu0 %v2161, 96
      %v2461 = vpop.permute.xlu0 %2460
      %2462 = vrot.lane.b32.xlu0 %v2166, 96
      %v2463 = vpop.permute.xlu0 %2462
      %2464 = vrot.lane.b32.xlu0 %v2171, 96
      %v2465 = vpop.permute.xlu0 %2464
      %2466 = vrot.lane.b32.xlu0 %v2176, 96
      %v2467 = vpop.permute.xlu0 %2466
      %2468 = vrot.lane.b32.xlu0 %v2181, 96
      %v2469 = vpop.permute.xlu0 %2468
      %2470 = vrot.lane.b32.xlu0 %v2186, 96
      %v2471 = vpop.permute.xlu0 %2470
      %2472 = vrot.lane.b32.xlu0 %v2191, 96
      %v2473 = vpop.permute.xlu0 %2472
      %2474 = vrot.lane.b32.xlu0 %v2196, 96
      %v2475 = vpop.permute.xlu0 %2474
      %2476 = vrot.lane.b32.xlu0 %v2201, 96
      %v2477 = vpop.permute.xlu0 %2476
      %2478 = vrot.lane.b32.xlu0 %v2206, 96
      %v2479 = vpop.permute.xlu0 %2478
      %2480 = vrot.lane.b32.xlu0 %v2211, 96
      %v2481 = vpop.permute.xlu0 %2480
      %2482 = vrot.lane.b32.xlu0 %v2216, 96
      %v2483 = vpop.permute.xlu0 %2482
      %2484 = vrot.lane.b32.xlu0 %v2221, 96
      %v2485 = vpop.permute.xlu0 %2484
      %2486 = vrot.lane.b32.xlu0 %v2226, 96
      %v2487 = vpop.permute.xlu0 %2486
      %2488 = vrot.lane.b32.xlu0 %v2231, 96
      %v2489 = vpop.permute.xlu0 %2488
      %2522 = vmatprep.subr.mxu0 0.0
      %2523 = vmatpush1.msra.mxu0 %v2427
      %2524 = vmatprep.subr.mxu0 0.0
      %2525 = vmatpush1.msra.mxu0 %v2429
      %2526 = vmatprep.subr.mxu0 0.0
      %2527 = vmatpush1.msra.mxu0 %v2431
      %2528 = vmatprep.subr.mxu0 0.0
      %2529 = vmatpush1.msra.mxu0 %v2433
      %2530 = vmatprep.subr.mxu0 0.0
      %2531 = vmatpush1.msra.mxu0 %v2435
      %2532 = vmatprep.subr.mxu0 0.0
      %2533 = vmatpush1.msra.mxu0 %v2437
      %2534 = vmatprep.subr.mxu0 0.0
      %2535 = vmatpush1.msra.mxu0 %v2439
      %2536 = vmatprep.subr.mxu0 0.0
      %2537 = vmatpush1.msra.mxu0 %v2441
      %2538 = vmatprep.subr.mxu0 0.0
      %2539 = vmatpush1.msra.mxu0 %v2443
      %2540 = vmatprep.subr.mxu0 0.0
      %2541 = vmatpush1.msra.mxu0 %v2445
      %2542 = vmatprep.subr.mxu0 0.0
      %2543 = vmatpush1.msra.mxu0 %v2447
      %2544 = vmatprep.subr.mxu0 0.0
      %2545 = vmatpush1.msra.mxu0 %v2449
      %2546 = vmatprep.subr.mxu0 0.0
      %2547 = vmatpush1.msra.mxu0 %v2451
      %2548 = vmatprep.subr.mxu0 0.0
      %2549 = vmatpush1.msra.mxu0 %v2453
      %2550 = vmatprep.subr.mxu0 0.0
      %2551 = vmatpush1.msra.mxu0 %v2455
      %2552 = vmatprep.subr.mxu0 0.0
      %2553 = vmatpush1.msra.mxu0 %v2457
      %2554 = vmatprep.subr.mxu0 0.0
      %2555 = vmatpush1.msra.mxu0 %v2459
      %2556 = vmatprep.subr.mxu0 0.0
      %2557 = vmatpush1.msra.mxu0 %v2461
      %2558 = vmatprep.subr.mxu0 0.0
      %2559 = vmatpush1.msra.mxu0 %v2463
      %2560 = vmatprep.subr.mxu0 0.0
      %2561 = vmatpush1.msra.mxu0 %v2465
      %2562 = vmatprep.subr.mxu0 0.0
      %2563 = vmatpush1.msra.mxu0 %v2467
      %2564 = vmatprep.subr.mxu0 0.0
      %2565 = vmatpush1.msra.mxu0 %v2469
      %2566 = vmatprep.subr.mxu0 0.0
      %2567 = vmatpush1.msra.mxu0 %v2471
      %2568 = vmatprep.subr.mxu0 0.0
      %2569 = vmatpush1.msra.mxu0 %v2473
      %2570 = vmatprep.subr.mxu0 0.0
      %2571 = vmatpush1.msra.mxu0 %v2475
      %2572 = vmatprep.subr.mxu0 0.0
      %2573 = vmatpush1.msra.mxu0 %v2477
      %2574 = vmatprep.subr.mxu0 0.0
      %2575 = vmatpush1.msra.mxu0 %v2479
      %2576 = vmatprep.subr.mxu0 0.0
      %2577 = vmatpush1.msra.mxu0 %v2481
      %2578 = vmatprep.subr.mxu0 0.0
      %2579 = vmatpush1.msra.mxu0 %v2483
      %2580 = vmatprep.subr.mxu0 0.0
      %2581 = vmatpush1.msra.mxu0 %v2485
      %2582 = vmatprep.subr.mxu0 0.0
      %2583 = vmatpush1.msra.mxu0 %v2487
      %2584 = vmatprep.subr.mxu0 0.0
      %2585 = vmatpush1.msra.mxu0 %v2489
      %2586 = vmatprep.mubr.f32.mxu0 %v2425
      %2587 = vmatmul.mubr.f32.gmra.mrb[0].mxu0 %v2424
      %v2588 = vpop.f32.mrb[0].mxu0
      %v2589 = vadd.f32 0.0, %v2588
      %v2590 = vpop.f32.mrb[0].mxu0
      %2591 = vdwg.mxu0
      %2592 = vrot.lane.b32.xlu0 %v1899, 120
      %v2593 = vpop.permute.xlu0 %2592
      %2594 = vrot.lane.b32.xlu0 %v2076, 120
      %v2595 = vpop.permute.xlu0 %2594
      %2596 = vrot.lane.b32.xlu0 %v2081, 120
      %v2597 = vpop.permute.xlu0 %2596
      %2598 = vrot.lane.b32.xlu0 %v2086, 120
      %v2599 = vpop.permute.xlu0 %2598
      %2600 = vrot.lane.b32.xlu0 %v2091, 120
      %v2601 = vpop.permute.xlu0 %2600
      %2602 = vrot.lane.b32.xlu0 %v2096, 120
      %v2603 = vpop.permute.xlu0 %2602
      %2604 = vrot.lane.b32.xlu0 %v2101, 120
      %v2605 = vpop.permute.xlu0 %2604
      %2606 = vrot.lane.b32.xlu0 %v2106, 120
      %v2607 = vpop.permute.xlu0 %2606
      %2608 = vrot.lane.b32.xlu0 %v2111, 120
      %v2609 = vpop.permute.xlu0 %2608
      %2610 = vrot.lane.b32.xlu0 %v2116, 120
      %v2611 = vpop.permute.xlu0 %2610
      %2612 = vrot.lane.b32.xlu0 %v2121, 120
      %v2613 = vpop.permute.xlu0 %2612
      %2614 = vrot.lane.b32.xlu0 %v2126, 120
      %v2615 = vpop.permute.xlu0 %2614
      %2616 = vrot.lane.b32.xlu0 %v2131, 120
      %v2617 = vpop.permute.xlu0 %2616
      %2618 = vrot.lane.b32.xlu0 %v2136, 120
      %v2619 = vpop.permute.xlu0 %2618
      %2620 = vrot.lane.b32.xlu0 %v2141, 120
      %v2621 = vpop.permute.xlu0 %2620
      %2622 = vrot.lane.b32.xlu0 %v2146, 120
      %v2623 = vpop.permute.xlu0 %2622
      %2624 = vrot.lane.b32.xlu0 %v2151, 120
      %v2625 = vpop.permute.xlu0 %2624
      %2626 = vrot.lane.b32.xlu0 %v2156, 120
      %v2627 = vpop.permute.xlu0 %2626
      %2628 = vrot.lane.b32.xlu0 %v2161, 120
      %v2629 = vpop.permute.xlu0 %2628
      %2630 = vrot.lane.b32.xlu0 %v2166, 120
      %v2631 = vpop.permute.xlu0 %2630
      %2632 = vrot.lane.b32.xlu0 %v2171, 120
      %v2633 = vpop.permute.xlu0 %2632
      %2634 = vrot.lane.b32.xlu0 %v2176, 120
      %v2635 = vpop.permute.xlu0 %2634
      %2636 = vrot.lane.b32.xlu0 %v2181, 120
      %v2637 = vpop.permute.xlu0 %2636
      %2638 = vrot.lane.b32.xlu0 %v2186, 120
      %v2639 = vpop.permute.xlu0 %2638
      %2640 = vrot.lane.b32.xlu0 %v2191, 120
      %v2641 = vpop.permute.xlu0 %2640
      %2642 = vrot.lane.b32.xlu0 %v2196, 120
      %v2643 = vpop.permute.xlu0 %2642
      %2644 = vrot.lane.b32.xlu0 %v2201, 120
      %v2645 = vpop.permute.xlu0 %2644
      %2646 = vrot.lane.b32.xlu0 %v2206, 120
      %v2647 = vpop.permute.xlu0 %2646
      %2648 = vrot.lane.b32.xlu0 %v2211, 120
      %v2649 = vpop.permute.xlu0 %2648
      %2650 = vrot.lane.b32.xlu0 %v2216, 120
      %v2651 = vpop.permute.xlu0 %2650
      %2652 = vrot.lane.b32.xlu0 %v2221, 120
      %v2653 = vpop.permute.xlu0 %2652
      %2654 = vrot.lane.b32.xlu0 %v2226, 120
      %v2655 = vpop.permute.xlu0 %2654
      %2656 = vrot.lane.b32.xlu0 %v2231, 120
      %v2657 = vpop.permute.xlu0 %2656
      %v2658 = vsel %vm825, %v2593, 0
      %v2660 = vsel %vm825, %v2595, 0
      %v2662 = vsel %vm825, %v2597, 0
      %v2664 = vsel %vm825, %v2599, 0
      %v2666 = vsel %vm825, %v2601, 0
      %v2668 = vsel %vm825, %v2603, 0
      %v2670 = vsel %vm825, %v2605, 0
      %v2672 = vsel %vm825, %v2607, 0
      %v2674 = vsel %vm825, %v2609, 0
      %v2676 = vsel %vm825, %v2611, 0
      %v2678 = vsel %vm825, %v2613, 0
      %v2680 = vsel %vm825, %v2615, 0
      %v2682 = vsel %vm825, %v2617, 0
      %v2684 = vsel %vm825, %v2619, 0
      %v2686 = vsel %vm825, %v2621, 0
      %v2688 = vsel %vm825, %v2623, 0
      %v2690 = vsel %vm825, %v2625, 0
      %v2692 = vsel %vm825, %v2627, 0
      %v2694 = vsel %vm825, %v2629, 0
      %v2696 = vsel %vm825, %v2631, 0
      %v2698 = vsel %vm825, %v2633, 0
      %v2700 = vsel %vm825, %v2635, 0
      %v2702 = vsel %vm825, %v2637, 0
      %v2704 = vsel %vm825, %v2639, 0
      %v2706 = vsel %vm825, %v2641, 0
      %v2708 = vsel %vm825, %v2643, 0
      %v2710 = vsel %vm825, %v2645, 0
      %v2712 = vsel %vm825, %v2647, 0
      %v2714 = vsel %vm825, %v2649, 0
      %v2716 = vsel %vm825, %v2651, 0
      %v2718 = vsel %vm825, %v2653, 0
      %v2720 = vsel %vm825, %v2655, 0
      %v2722 = vsel %vm825, %v2657, 0
      %2724 = vmatprep.subr.mxu0 0.0
      %2725 = vmatpush1.xpose.msra.mxu0 %v2660
      %2726 = vmatprep.subr.mxu0 0.0
      %2727 = vmatpush1.xpose.msra.mxu0 %v2662
      %2728 = vmatprep.subr.mxu0 0.0
      %2729 = vmatpush1.xpose.msra.mxu0 %v2664
      %2730 = vmatprep.subr.mxu0 0.0
      %2731 = vmatpush1.xpose.msra.mxu0 %v2666
      %2732 = vmatprep.subr.mxu0 0.0
      %2733 = vmatpush1.xpose.msra.mxu0 %v2668
      %2734 = vmatprep.subr.mxu0 0.0
      %2735 = vmatpush1.xpose.msra.mxu0 %v2670
      %2736 = vmatprep.subr.mxu0 0.0
      %2737 = vmatpush1.xpose.msra.mxu0 %v2672
      %2738 = vmatprep.subr.mxu0 0.0
      %2739 = vmatpush1.xpose.msra.mxu0 %v2674
      %2740 = vmatprep.subr.mxu0 0.0
      %2741 = vmatpush1.xpose.msra.mxu0 %v2676
      %2742 = vmatprep.subr.mxu0 0.0
      %2743 = vmatpush1.xpose.msra.mxu0 %v2678
      %2744 = vmatprep.subr.mxu0 0.0
      %2745 = vmatpush1.xpose.msra.mxu0 %v2680
      %2746 = vmatprep.subr.mxu0 0.0
      %2747 = vmatpush1.xpose.msra.mxu0 %v2682
      %2748 = vmatprep.subr.mxu0 0.0
      %2749 = vmatpush1.xpose.msra.mxu0 %v2684
      %2750 = vmatprep.subr.mxu0 0.0
      %2751 = vmatpush1.xpose.msra.mxu0 %v2686
      %2752 = vmatprep.subr.mxu0 0.0
      %2753 = vmatpush1.xpose.msra.mxu0 %v2688
      %2754 = vmatprep.subr.mxu0 0.0
      %2755 = vmatpush1.xpose.msra.mxu0 %v2690
      %2756 = vmatprep.subr.mxu0 0.0
      %2757 = vmatpush1.xpose.msra.mxu0 %v2692
      %2758 = vmatprep.subr.mxu0 0.0
      %2759 = vmatpush1.xpose.msra.mxu0 %v2694
      %2760 = vmatprep.subr.mxu0 0.0
      %2761 = vmatpush1.xpose.msra.mxu0 %v2696
      %2762 = vmatprep.subr.mxu0 0.0
      %2763 = vmatpush1.xpose.msra.mxu0 %v2698
      %2764 = vmatprep.subr.mxu0 0.0
      %2765 = vmatpush1.xpose.msra.mxu0 %v2700
      %2766 = vmatprep.subr.mxu0 0.0
      %2767 = vmatpush1.xpose.msra.mxu0 %v2702
      %2768 = vmatprep.subr.mxu0 0.0
      %2769 = vmatpush1.xpose.msra.mxu0 %v2704
      %2770 = vmatprep.subr.mxu0 0.0
      %2771 = vmatpush1.xpose.msra.mxu0 %v2706
      %2772 = vmatprep.subr.mxu0 0.0
      %2773 = vmatpush1.xpose.msra.mxu0 %v2708
      %2774 = vmatprep.subr.mxu0 0.0
      %2775 = vmatpush1.xpose.msra.mxu0 %v2710
      %2776 = vmatprep.subr.mxu0 0.0
      %2777 = vmatpush1.xpose.msra.mxu0 %v2712
      %2778 = vmatprep.subr.mxu0 0.0
      %2779 = vmatpush1.xpose.msra.mxu0 %v2714
      %2780 = vmatprep.subr.mxu0 0.0
      %2781 = vmatpush1.xpose.msra.mxu0 %v2716
      %2782 = vmatprep.subr.mxu0 0.0
      %2783 = vmatpush1.xpose.msra.mxu0 %v2718
      %2784 = vmatprep.subr.mxu0 0.0
      %2785 = vmatpush1.xpose.msra.mxu0 %v2720
      %2786 = vmatprep.subr.mxu0 0.0
      %2787 = vmatpush1.xpose.msra.mxu0 %v2722
      %2788 = vmatprep.mubr.f32.mxu0 0.0
      %2789 = vmatmul.mubr.f32.gmra.mrb[0].mxu0 %v2658
      %v2790 = vpop.f32.mrb[0].mxu0
      %v2791 = vadd.f32 0.0, %v2790
      %v2792 = vpop.f32.mrb[0].mxu0
      %v2793 = vadd.f32 0.0, %v2792
      %2794 = vdwg.mxu0
      %v2795 = vmul.f32 %v2791, 0.35355338
      %v2796 = vmul.f32 %v2793, 0.35355338
      %v2797 = vmax.f32 %v2795, %v2796
      %2798 = vmax.xlane.f32.xlu0 %v2797
      %v2799 = vpop.xlane.xlu0 %2798
      %v2800 = vsub.f32 %v2795, %v2799
      %v2801 = vsub.f32 %v2796, %v2799
      %v2802 = vmul.f32 %v2800, 1.442695
      %v2803 = vpow.pop %v2802
      %v2804 = vmul.f32 %v2801, 1.442695
      %v2805 = vpow.pop %v2804
      %v2806 = vadd.f32 %v2803, %v2805
      %2807 = vadd.xlane.f32.xlu0 %v2806
      %v2808 = vpop.xlane.xlu0 %2807
      %v2809 = vrcp.pop %v2808
      %v2810 = vmul.f32 %v2803, %v2809
      %v2811 = vmul.f32 %v2805, %v2809
      %2812 = vrot.lane.b32.xlu0 %v2076, 88
      %v2813 = vpop.permute.xlu0 %2812
      %2814 = vrot.lane.b32.xlu0 %v2081, 88
      %v2815 = vpop.permute.xlu0 %2814
      %2816 = vrot.lane.b32.xlu0 %v2086, 88
      %v2817 = vpop.permute.xlu0 %2816
      %2818 = vrot.lane.b32.xlu0 %v2091, 88
      %v2819 = vpop.permute.xlu0 %2818
      %2820 = vrot.lane.b32.xlu0 %v2096, 88
      %v2821 = vpop.permute.xlu0 %2820
      %2822 = vrot.lane.b32.xlu0 %v2101, 88
      %v2823 = vpop.permute.xlu0 %2822
      %2824 = vrot.lane.b32.xlu0 %v2106, 88
      %v2825 = vpop.permute.xlu0 %2824
      %2826 = vrot.lane.b32.xlu0 %v2111, 88
      %v2827 = vpop.permute.xlu0 %2826
      %2828 = vrot.lane.b32.xlu0 %v2116, 88
      %v2829 = vpop.permute.xlu0 %2828
      %2830 = vrot.lane.b32.xlu0 %v2121, 88
      %v2831 = vpop.permute.xlu0 %2830
      %2832 = vrot.lane.b32.xlu0 %v2126, 88
      %v2833 = vpop.permute.xlu0 %2832
      %2834 = vrot.lane.b32.xlu0 %v2131, 88
      %v2835 = vpop.permute.xlu0 %2834
      %2836 = vrot.lane.b32.xlu0 %v2136, 88
      %v2837 = vpop.permute.xlu0 %2836
      %2838 = vrot.lane.b32.xlu0 %v2141, 88
      %v2839 = vpop.permute.xlu0 %2838
      %2840 = vrot.lane.b32.xlu0 %v2146, 88
      %v2841 = vpop.permute.xlu0 %2840
      %2842 = vrot.lane.b32.xlu0 %v2151, 88
      %v2843 = vpop.permute.xlu0 %2842
      %2844 = vrot.lane.b32.xlu0 %v2156, 88
      %v2845 = vpop.permute.xlu0 %2844
      %2846 = vrot.lane.b32.xlu0 %v2161, 88
      %v2847 = vpop.permute.xlu0 %2846
      %2848 = vrot.lane.b32.xlu0 %v2166, 88
      %v2849 = vpop.permute.xlu0 %2848
      %2850 = vrot.lane.b32.xlu0 %v2171, 88
      %v2851 = vpop.permute.xlu0 %2850
      %2852 = vrot.lane.b32.xlu0 %v2176, 88
      %v2853 = vpop.permute.xlu0 %2852
      %2854 = vrot.lane.b32.xlu0 %v2181, 88
      %v2855 = vpop.permute.xlu0 %2854
      %2856 = vrot.lane.b32.xlu0 %v2186, 88
      %v2857 = vpop.permute.xlu0 %2856
      %2858 = vrot.lane.b32.xlu0 %v2191, 88
      %v2859 = vpop.permute.xlu0 %2858
      %2860 = vrot.lane.b32.xlu0 %v2196, 88
      %v2861 = vpop.permute.xlu0 %2860
      %2862 = vrot.lane.b32.xlu0 %v2201, 88
      %v2863 = vpop.permute.xlu0 %2862
      %2864 = vrot.lane.b32.xlu0 %v2206, 88
      %v2865 = vpop.permute.xlu0 %2864
      %2866 = vrot.lane.b32.xlu0 %v2211, 88
      %v2867 = vpop.permute.xlu0 %2866
      %2868 = vrot.lane.b32.xlu0 %v2216, 88
      %v2869 = vpop.permute.xlu0 %2868
      %2870 = vrot.lane.b32.xlu0 %v2221, 88
      %v2871 = vpop.permute.xlu0 %2870
      %2872 = vrot.lane.b32.xlu0 %v2226, 88
      %v2873 = vpop.permute.xlu0 %2872
      %2874 = vrot.lane.b32.xlu0 %v2231, 88
      %v2875 = vpop.permute.xlu0 %2874
      %2908 = vmatprep.subr.mxu0 0.0
      %2909 = vmatpush1.msra.mxu0 %v2813
      %2910 = vmatprep.subr.mxu0 0.0
      %2911 = vmatpush1.msra.mxu0 %v2815
      %2912 = vmatprep.subr.mxu0 0.0
      %2913 = vmatpush1.msra.mxu0 %v2817
      %2914 = vmatprep.subr.mxu0 0.0
      %2915 = vmatpush1.msra.mxu0 %v2819
      %2916 = vmatprep.subr.mxu0 0.0
      %2917 = vmatpush1.msra.mxu0 %v2821
      %2918 = vmatprep.subr.mxu0 0.0
      %2919 = vmatpush1.msra.mxu0 %v2823
      %2920 = vmatprep.subr.mxu0 0.0
      %2921 = vmatpush1.msra.mxu0 %v2825
      %2922 = vmatprep.subr.mxu0 0.0
      %2923 = vmatpush1.msra.mxu0 %v2827
      %2924 = vmatprep.subr.mxu0 0.0
      %2925 = vmatpush1.msra.mxu0 %v2829
      %2926 = vmatprep.subr.mxu0 0.0
      %2927 = vmatpush1.msra.mxu0 %v2831
      %2928 = vmatprep.subr.mxu0 0.0
      %2929 = vmatpush1.msra.mxu0 %v2833
      %2930 = vmatprep.subr.mxu0 0.0
      %2931 = vmatpush1.msra.mxu0 %v2835
      %2932 = vmatprep.subr.mxu0 0.0
      %2933 = vmatpush1.msra.mxu0 %v2837
      %2934 = vmatprep.subr.mxu0 0.0
      %2935 = vmatpush1.msra.mxu0 %v2839
      %2936 = vmatprep.subr.mxu0 0.0
      %2937 = vmatpush1.msra.mxu0 %v2841
      %2938 = vmatprep.subr.mxu0 0.0
      %2939 = vmatpush1.msra.mxu0 %v2843
      %2940 = vmatprep.subr.mxu0 0.0
      %2941 = vmatpush1.msra.mxu0 %v2845
      %2942 = vmatprep.subr.mxu0 0.0
      %2943 = vmatpush1.msra.mxu0 %v2847
      %2944 = vmatprep.subr.mxu0 0.0
      %2945 = vmatpush1.msra.mxu0 %v2849
      %2946 = vmatprep.subr.mxu0 0.0
      %2947 = vmatpush1.msra.mxu0 %v2851
      %2948 = vmatprep.subr.mxu0 0.0
      %2949 = vmatpush1.msra.mxu0 %v2853
      %2950 = vmatprep.subr.mxu0 0.0
      %2951 = vmatpush1.msra.mxu0 %v2855
      %2952 = vmatprep.subr.mxu0 0.0
      %2953 = vmatpush1.msra.mxu0 %v2857
      %2954 = vmatprep.subr.mxu0 0.0
      %2955 = vmatpush1.msra.mxu0 %v2859
      %2956 = vmatprep.subr.mxu0 0.0
      %2957 = vmatpush1.msra.mxu0 %v2861
      %2958 = vmatprep.subr.mxu0 0.0
      %2959 = vmatpush1.msra.mxu0 %v2863
      %2960 = vmatprep.subr.mxu0 0.0
      %2961 = vmatpush1.msra.mxu0 %v2865
      %2962 = vmatprep.subr.mxu0 0.0
      %2963 = vmatpush1.msra.mxu0 %v2867
      %2964 = vmatprep.subr.mxu0 0.0
      %2965 = vmatpush1.msra.mxu0 %v2869
      %2966 = vmatprep.subr.mxu0 0.0
      %2967 = vmatpush1.msra.mxu0 %v2871
      %2968 = vmatprep.subr.mxu0 0.0
      %2969 = vmatpush1.msra.mxu0 %v2873
      %2970 = vmatprep.subr.mxu0 0.0
      %2971 = vmatpush1.msra.mxu0 %v2875
      %2972 = vmatprep.mubr.f32.mxu0 %v2811
      %2973 = vmatmul.mubr.f32.gmra.mrb[0].mxu0 %v2810
      %v2974 = vpop.f32.mrb[0].mxu0
      %v2975 = vadd.f32 0.0, %v2974
      %v2976 = vpop.f32.mrb[0].mxu0
      %2977 = vdwg.mxu0
      %v2979 = vsel %vm825, %v2975, 0
      %2981 = vmatprep.subr.mxu0 0.0
      %2982 = vmatpush1.msra.mxu0 %v2235
      %2983 = vmatprep.subr.mxu0 0.0
      %2984 = vmatpush1.msra.mxu0 0.0
      %2985 = vmatprep.subr.mxu0 0.0
      %2986 = vmatpush1.msra.mxu0 0.0
      %2987 = vmatprep.subr.mxu0 0.0
      %2988 = vmatpush1.msra.mxu0 0.0
      %2989 = vmatprep.subr.mxu0 0.0
      %2990 = vmatpush1.msra.mxu0 0.0
      %2991 = vmatprep.subr.mxu0 0.0
      %2992 = vmatpush1.msra.mxu0 0.0
      %2993 = vmatprep.subr.mxu0 0.0
      %2994 = vmatpush1.msra.mxu0 0.0
      %2995 = vmatprep.subr.mxu0 0.0
      %2996 = vmatpush1.msra.mxu0 0.0
      %2997 = vmatprep.subr.mxu0 0.0
      %2998 = vmatpush1.msra.mxu0 0.0
      %2999 = vmatprep.subr.mxu0 0.0
      %3000 = vmatpush1.msra.mxu0 0.0
      %3001 = vmatprep.subr.mxu0 0.0
      %3002 = vmatpush1.msra.mxu0 0.0
      %3003 = vmatprep.subr.mxu0 0.0
      %3004 = vmatpush1.msra.mxu0 0.0
      %3005 = vmatprep.subr.mxu0 0.0
      %3006 = vmatpush1.msra.mxu0 0.0
      %3007 = vmatprep.subr.mxu0 0.0
      %3008 = vmatpush1.msra.mxu0 0.0
      %3009 = vmatprep.subr.mxu0 0.0
      %3010 = vmatpush1.msra.mxu0 0.0
      %3011 = vmatprep.subr.mxu0 0.0
      %3012 = vmatpush1.msra.mxu0 0.0
      %3013 = vmatprep.subr.mxu0 0.0
      %3014 = vmatpush1.msra.mxu0 0.0
      %3015 = vmatprep.subr.mxu0 0.0
      %3016 = vmatpush1.msra.mxu0 0.0
      %3017 = vmatprep.subr.mxu0 0.0
      %3018 = vmatpush1.msra.mxu0 0.0
      %3019 = vmatprep.subr.mxu0 0.0
      %3020 = vmatpush1.msra.mxu0 0.0
      %3021 = vmatprep.subr.mxu0 0.0
      %3022 = vmatpush1.msra.mxu0 0.0
      %3023 = vmatprep.subr.mxu0 0.0
      %3024 = vmatpush1.msra.mxu0 0.0
      %3025 = vmatprep.subr.mxu0 0.0
      %3026 = vmatpush1.msra.mxu0 0.0
      %3027 = vmatprep.subr.mxu0 0.0
      %3028 = vmatpush1.msra.mxu0 0.0
      %3029 = vmatprep.subr.mxu0 0.0
      %3030 = vmatpush1.msra.mxu0 0.0
      %3031 = vmatprep.subr.mxu0 0.0
      %3032 = vmatpush1.msra.mxu0 0.0
      %3033 = vmatprep.subr.mxu0 0.0
      %3034 = vmatpush1.msra.mxu0 0.0
      %3035 = vmatprep.subr.mxu0 0.0
      %3036 = vmatpush1.msra.mxu0 0.0
      %3037 = vmatprep.subr.mxu0 0.0
      %3038 = vmatpush1.msra.mxu0 0.0
      %3039 = vmatprep.subr.mxu0 0.0
      %3040 = vmatpush1.msra.mxu0 0.0
      %3041 = vmatprep.subr.mxu0 0.0
      %3042 = vmatpush1.msra.mxu0 0.0
      %3043 = vmatprep.subr.mxu0 0.0
      %3044 = vmatpush1.msra.mxu0 0.0
      %3045 = vmatprep.mubr.f32.mxu0 0.0
      %3046 = vmatmul.mubr.f32.gmra.mrb[0].mxu0 %v2979
      %v3047 = vpop.f32.mrb[0].mxu0
      %v3048 = vadd.f32 0.0, %v3047
      %v3049 = vpop.f32.mrb[0].mxu0
      %3050 = vdwg.mxu0
      %v3052 = vsel %vm825, %v2589, 0
      %3054 = vmatprep.subr.mxu0 0.0
      %3055 = vmatpush1.msra.mxu0 %v2234
      %3056 = vmatprep.subr.mxu0 0.0
      %3057 = vmatpush1.msra.mxu0 0.0
      %3058 = vmatprep.subr.mxu0 0.0
      %3059 = vmatpush1.msra.mxu0 0.0
      %3060 = vmatprep.subr.mxu0 0.0
      %3061 = vmatpush1.msra.mxu0 0.0
      %3062 = vmatprep.subr.mxu0 0.0
      %3063 = vmatpush1.msra.mxu0 0.0
      %3064 = vmatprep.subr.mxu0 0.0
      %3065 = vmatpush1.msra.mxu0 0.0
      %3066 = vmatprep.subr.mxu0 0.0
      %3067 = vmatpush1.msra.mxu0 0.0
      %3068 = vmatprep.subr.mxu0 0.0
      %3069 = vmatpush1.msra.mxu0 0.0
      %3070 = vmatprep.subr.mxu0 0.0
      %3071 = vmatpush1.msra.mxu0 0.0
      %3072 = vmatprep.subr.mxu0 0.0
      %3073 = vmatpush1.msra.mxu0 0.0
      %3074 = vmatprep.subr.mxu0 0.0
      %3075 = vmatpush1.msra.mxu0 0.0
      %3076 = vmatprep.subr.mxu0 0.0
      %3077 = vmatpush1.msra.mxu0 0.0
      %3078 = vmatprep.subr.mxu0 0.0
      %3079 = vmatpush1.msra.mxu0 0.0
      %3080 = vmatprep.subr.mxu0 0.0
      %3081 = vmatpush1.msra.mxu0 0.0
      %3082 = vmatprep.subr.mxu0 0.0
      %3083 = vmatpush1.msra.mxu0 0.0
      %3084 = vmatprep.subr.mxu0 0.0
      %3085 = vmatpush1.msra.mxu0 0.0
      %3086 = vmatprep.subr.mxu0 0.0
      %3087 = vmatpush1.msra.mxu0 0.0
      %3088 = vmatprep.subr.mxu0 0.0
      %3089 = vmatpush1.msra.mxu0 0.0
      %3090 = vmatprep.subr.mxu0 0.0
      %3091 = vmatpush1.msra.mxu0 0.0
      %3092 = vmatprep.subr.mxu0 0.0
      %3093 = vmatpush1.msra.mxu0 0.0
      %3094 = vmatprep.subr.mxu0 0.0
      %3095 = vmatpush1.msra.mxu0 0.0
      %3096 = vmatprep.subr.mxu0 0.0
      %3097 = vmatpush1.msra.mxu0 0.0
      %3098 = vmatprep.subr.mxu0 0.0
      %3099 = vmatpush1.msra.mxu0 0.0
      %3100 = vmatprep.subr.mxu0 0.0
      %3101 = vmatpush1.msra.mxu0 0.0
      %3102 = vmatprep.subr.mxu0 0.0
      %3103 = vmatpush1.msra.mxu0 0.0
      %3104 = vmatprep.subr.mxu0 0.0
      %3105 = vmatpush1.msra.mxu0 0.0
      %3106 = vmatprep.subr.mxu0 0.0
      %3107 = vmatpush1.msra.mxu0 0.0
      %3108 = vmatprep.subr.mxu0 0.0
      %3109 = vmatpush1.msra.mxu0 0.0
      %3110 = vmatprep.subr.mxu0 0.0
      %3111 = vmatpush1.msra.mxu0 0.0
      %3112 = vmatprep.subr.mxu0 0.0
      %3113 = vmatpush1.msra.mxu0 0.0
      %3114 = vmatprep.subr.mxu0 0.0
      %3115 = vmatpush1.msra.mxu0 0.0
      %3116 = vmatprep.subr.mxu0 0.0
      %3117 = vmatpush1.msra.mxu0 0.0
      %3118 = vmatprep.mubr.f32.mxu0 0.0
      %3119 = vmatmul.mubr.f32.gmra.mrb[0].mxu0 %v3052
      %v3120 = vpop.f32.mrb[0].mxu0
      %v3121 = vadd.f32 %v3048, %v3120
      %v3122 = vpop.f32.mrb[0].mxu0
      %3123 = vdwg.mxu0
      %3124 = vrot.lane.b32.xlu0 %v1899, 112
      %v3125 = vpop.permute.xlu0 %3124
      %3126 = vrot.lane.b32.xlu0 %v2076, 112
      %v3127 = vpop.permute.xlu0 %3126
      %3128 = vrot.lane.b32.xlu0 %v2081, 112
      %v3129 = vpop.permute.xlu0 %3128
      %3130 = vrot.lane.b32.xlu0 %v2086, 112
      %v3131 = vpop.permute.xlu0 %3130
      %3132 = vrot.lane.b32.xlu0 %v2091, 112
      %v3133 = vpop.permute.xlu0 %3132
      %3134 = vrot.lane.b32.xlu0 %v2096, 112
      %v3135 = vpop.permute.xlu0 %3134
      %3136 = vrot.lane.b32.xlu0 %v2101, 112
      %v3137 = vpop.permute.xlu0 %3136
      %3138 = vrot.lane.b32.xlu0 %v2106, 112
      %v3139 = vpop.permute.xlu0 %3138
      %3140 = vrot.lane.b32.xlu0 %v2111, 112
      %v3141 = vpop.permute.xlu0 %3140
      %3142 = vrot.lane.b32.xlu0 %v2116, 112
      %v3143 = vpop.permute.xlu0 %3142
      %3144 = vrot.lane.b32.xlu0 %v2121, 112
      %v3145 = vpop.permute.xlu0 %3144
      %3146 = vrot.lane.b32.xlu0 %v2126, 112
      %v3147 = vpop.permute.xlu0 %3146
      %3148 = vrot.lane.b32.xlu0 %v2131, 112
      %v3149 = vpop.permute.xlu0 %3148
      %3150 = vrot.lane.b32.xlu0 %v2136, 112
      %v3151 = vpop.permute.xlu0 %3150
      %3152 = vrot.lane.b32.xlu0 %v2141, 112
      %v3153 = vpop.permute.xlu0 %3152
      %3154 = vrot.lane.b32.xlu0 %v2146, 112
      %v3155 = vpop.permute.xlu0 %3154
      %3156 = vrot.lane.b32.xlu0 %v2151, 112
      %v3157 = vpop.permute.xlu0 %3156
      %3158 = vrot.lane.b32.xlu0 %v2156, 112
      %v3159 = vpop.permute.xlu0 %3158
      %3160 = vrot.lane.b32.xlu0 %v2161, 112
      %v3161 = vpop.permute.xlu0 %3160
      %3162 = vrot.lane.b32.xlu0 %v2166, 112
      %v3163 = vpop.permute.xlu0 %3162
      %3164 = vrot.lane.b32.xlu0 %v2171, 112
      %v3165 = vpop.permute.xlu0 %3164
      %3166 = vrot.lane.b32.xlu0 %v2176, 112
      %v3167 = vpop.permute.xlu0 %3166
      %3168 = vrot.lane.b32.xlu0 %v2181, 112
      %v3169 = vpop.permute.xlu0 %3168
      %3170 = vrot.lane.b32.xlu0 %v2186, 112
      %v3171 = vpop.permute.xlu0 %3170
      %3172 = vrot.lane.b32.xlu0 %v2191, 112
      %v3173 = vpop.permute.xlu0 %3172
      %3174 = vrot.lane.b32.xlu0 %v2196, 112
      %v3175 = vpop.permute.xlu0 %3174
      %3176 = vrot.lane.b32.xlu0 %v2201, 112
      %v3177 = vpop.permute.xlu0 %3176
      %3178 = vrot.lane.b32.xlu0 %v2206, 112
      %v3179 = vpop.permute.xlu0 %3178
      %3180 = vrot.lane.b32.xlu0 %v2211, 112
      %v3181 = vpop.permute.xlu0 %3180
      %3182 = vrot.lane.b32.xlu0 %v2216, 112
      %v3183 = vpop.permute.xlu0 %3182
      %3184 = vrot.lane.b32.xlu0 %v2221, 112
      %v3185 = vpop.permute.xlu0 %3184
      %3186 = vrot.lane.b32.xlu0 %v2226, 112
      %v3187 = vpop.permute.xlu0 %3186
      %3188 = vrot.lane.b32.xlu0 %v2231, 112
      %v3189 = vpop.permute.xlu0 %3188
      %v3190 = vsel %vm825, %v3125, 0
      %v3192 = vsel %vm825, %v3127, 0
      %v3194 = vsel %vm825, %v3129, 0
      %v3196 = vsel %vm825, %v3131, 0
      %v3198 = vsel %vm825, %v3133, 0
      %v3200 = vsel %vm825, %v3135, 0
      %v3202 = vsel %vm825, %v3137, 0
      %v3204 = vsel %vm825, %v3139, 0
      %v3206 = vsel %vm825, %v3141, 0
      %v3208 = vsel %vm825, %v3143, 0
      %v3210 = vsel %vm825, %v3145, 0
      %v3212 = vsel %vm825, %v3147, 0
      %v3214 = vsel %vm825, %v3149, 0
      %v3216 = vsel %vm825, %v3151, 0
      %v3218 = vsel %vm825, %v3153, 0
      %v3220 = vsel %vm825, %v3155, 0
      %v3222 = vsel %vm825, %v3157, 0
      %v3224 = vsel %vm825, %v3159, 0
      %v3226 = vsel %vm825, %v3161, 0
      %v3228 = vsel %vm825, %v3163, 0
      %v3230 = vsel %vm825, %v3165, 0
      %v3232 = vsel %vm825, %v3167, 0
      %v3234 = vsel %vm825, %v3169, 0
      %v3236 = vsel %vm825, %v3171, 0
      %v3238 = vsel %vm825, %v3173, 0
      %v3240 = vsel %vm825, %v3175, 0
      %v3242 = vsel %vm825, %v3177, 0
      %v3244 = vsel %vm825, %v3179, 0
      %v3246 = vsel %vm825, %v3181, 0
      %v3248 = vsel %vm825, %v3183, 0
      %v3250 = vsel %vm825, %v3185, 0
      %v3252 = vsel %vm825, %v3187, 0
      %v3254 = vsel %vm825, %v3189, 0
      %3256 = vmatprep.subr.mxu0 0.0
      %3257 = vmatpush1.xpose.msra.mxu0 %v3192
      %3258 = vmatprep.subr.mxu0 0.0
      %3259 = vmatpush1.xpose.msra.mxu0 %v3194
      %3260 = vmatprep.subr.mxu0 0.0
      %3261 = vmatpush1.xpose.msra.mxu0 %v3196
      %3262 = vmatprep.subr.mxu0 0.0
      %3263 = vmatpush1.xpose.msra.mxu0 %v3198
      %3264 = vmatprep.subr.mxu0 0.0
      %3265 = vmatpush1.xpose.msra.mxu0 %v3200
      %3266 = vmatprep.subr.mxu0 0.0
      %3267 = vmatpush1.xpose.msra.mxu0 %v3202
      %3268 = vmatprep.subr.mxu0 0.0
      %3269 = vmatpush1.xpose.msra.mxu0 %v3204
      %3270 = vmatprep.subr.mxu0 0.0
      %3271 = vmatpush1.xpose.msra.mxu0 %v3206
      %3272 = vmatprep.subr.mxu0 0.0
      %3273 = vmatpush1.xpose.msra.mxu0 %v3208
      %3274 = vmatprep.subr.mxu0 0.0
      %3275 = vmatpush1.xpose.msra.mxu0 %v3210
      %3276 = vmatprep.subr.mxu0 0.0
      %3277 = vmatpush1.xpose.msra.mxu0 %v3212
      %3278 = vmatprep.subr.mxu0 0.0
      %3279 = vmatpush1.xpose.msra.mxu0 %v3214
      %3280 = vmatprep.subr.mxu0 0.0
      %3281 = vmatpush1.xpose.msra.mxu0 %v3216
      %3282 = vmatprep.subr.mxu0 0.0
      %3283 = vmatpush1.xpose.msra.mxu0 %v3218
      %3284 = vmatprep.subr.mxu0 0.0
      %3285 = vmatpush1.xpose.msra.mxu0 %v3220
      %3286 = vmatprep.subr.mxu0 0.0
      %3287 = vmatpush1.xpose.msra.mxu0 %v3222
      %3288 = vmatprep.subr.mxu0 0.0
      %3289 = vmatpush1.xpose.msra.mxu0 %v3224
      %3290 = vmatprep.subr.mxu0 0.0
      %3291 = vmatpush1.xpose.msra.mxu0 %v3226
      %3292 = vmatprep.subr.mxu0 0.0
      %3293 = vmatpush1.xpose.msra.mxu0 %v3228
      %3294 = vmatprep.subr.mxu0 0.0
      %3295 = vmatpush1.xpose.msra.mxu0 %v3230
      %3296 = vmatprep.subr.mxu0 0.0
      %3297 = vmatpush1.xpose.msra.mxu0 %v3232
      %3298 = vmatprep.subr.mxu0 0.0
      %3299 = vmatpush1.xpose.msra.mxu0 %v3234
      %3300 = vmatprep.subr.mxu0 0.0
      %3301 = vmatpush1.xpose.msra.mxu0 %v3236
      %3302 = vmatprep.subr.mxu0 0.0
      %3303 = vmatpush1.xpose.msra.mxu0 %v3238
      %3304 = vmatprep.subr.mxu0 0.0
      %3305 = vmatpush1.xpose.msra.mxu0 %v3240
      %3306 = vmatprep.subr.mxu0 0.0
      %3307 = vmatpush1.xpose.msra.mxu0 %v3242
      %3308 = vmatprep.subr.mxu0 0.0
      %3309 = vmatpush1.xpose.msra.mxu0 %v3244
      %3310 = vmatprep.subr.mxu0 0.0
      %3311 = vmatpush1.xpose.msra.mxu0 %v3246
      %3312 = vmatprep.subr.mxu0 0.0
      %3313 = vmatpush1.xpose.msra.mxu0 %v3248
      %3314 = vmatprep.subr.mxu0 0.0
      %3315 = vmatpush1.xpose.msra.mxu0 %v3250
      %3316 = vmatprep.subr.mxu0 0.0
      %3317 = vmatpush1.xpose.msra.mxu0 %v3252
      %3318 = vmatprep.subr.mxu0 0.0
      %3319 = vmatpush1.xpose.msra.mxu0 %v3254
      %3320 = vmatprep.mubr.f32.mxu0 0.0
      %3321 = vmatmul.mubr.f32.gmra.mrb[0].mxu0 %v3190
      %v3322 = vpop.f32.mrb[0].mxu0
      %v3323 = vadd.f32 0.0, %v3322
      %v3324 = vpop.f32.mrb[0].mxu0
      %v3325 = vadd.f32 0.0, %v3324
      %3326 = vdwg.mxu0
      %v3327 = vmul.f32 %v3323, 0.35355338
      %v3328 = vmul.f32 %v3325, 0.35355338
      %v3329 = vmax.f32 %v3327, %v3328
      %3330 = vmax.xlane.f32.xlu0 %v3329
      %v3331 = vpop.xlane.xlu0 %3330
      %v3332 = vsub.f32 %v3327, %v3331
      %v3333 = vsub.f32 %v3328, %v3331
      %v3334 = vmul.f32 %v3332, 1.442695
      %v3335 = vpow.pop %v3334
      %v3336 = vmul.f32 %v3333, 1.442695
      %v3337 = vpow.pop %v3336
      %v3338 = vadd.f32 %v3335, %v3337
      %3339 = vadd.xlane.f32.xlu0 %v3338
      %v3340 = vpop.xlane.xlu0 %3339
      %v3341 = vrcp.pop %v3340
      %v3342 = vmul.f32 %v3335, %v3341
      %v3343 = vmul.f32 %v3337, %v3341
      %3344 = vrot.lane.b32.xlu0 %v2076, 80
      %v3345 = vpop.permute.xlu0 %3344
      %3346 = vrot.lane.b32.xlu0 %v2081, 80
      %v3347 = vpop.permute.xlu0 %3346
      %3348 = vrot.lane.b32.xlu0 %v2086, 80
      %v3349 = vpop.permute.xlu0 %3348
      %3350 = vrot.lane.b32.xlu0 %v2091, 80
      %v3351 = vpop.permute.xlu0 %3350
      %3352 = vrot.lane.b32.xlu0 %v2096, 80
      %v3353 = vpop.permute.xlu0 %3352
      %3354 = vrot.lane.b32.xlu0 %v2101, 80
      %v3355 = vpop.permute.xlu0 %3354
      %3356 = vrot.lane.b32.xlu0 %v2106, 80
      %v3357 = vpop.permute.xlu0 %3356
      %3358 = vrot.lane.b32.xlu0 %v2111, 80
      %v3359 = vpop.permute.xlu0 %3358
      %3360 = vrot.lane.b32.xlu0 %v2116, 80
      %v3361 = vpop.permute.xlu0 %3360
      %3362 = vrot.lane.b32.xlu0 %v2121, 80
      %v3363 = vpop.permute.xlu0 %3362
      %3364 = vrot.lane.b32.xlu0 %v2126, 80
      %v3365 = vpop.permute.xlu0 %3364
      %3366 = vrot.lane.b32.xlu0 %v2131, 80
      %v3367 = vpop.permute.xlu0 %3366
      %3368 = vrot.lane.b32.xlu0 %v2136, 80
      %v3369 = vpop.permute.xlu0 %3368
      %3370 = vrot.lane.b32.xlu0 %v2141, 80
      %v3371 = vpop.permute.xlu0 %3370
      %3372 = vrot.lane.b32.xlu0 %v2146, 80
      %v3373 = vpop.permute.xlu0 %3372
      %3374 = vrot.lane.b32.xlu0 %v2151, 80
      %v3375 = vpop.permute.xlu0 %3374
      %3376 = vrot.lane.b32.xlu0 %v2156, 80
      %v3377 = vpop.permute.xlu0 %3376
      %3378 = vrot.lane.b32.xlu0 %v2161, 80
      %v3379 = vpop.permute.xlu0 %3378
      %3380 = vrot.lane.b32.xlu0 %v2166, 80
      %v3381 = vpop.permute.xlu0 %3380
      %3382 = vrot.lane.b32.xlu0 %v2171, 80
      %v3383 = vpop.permute.xlu0 %3382
      %3384 = vrot.lane.b32.xlu0 %v2176, 80
      %v3385 = vpop.permute.xlu0 %3384
      %3386 = vrot.lane.b32.xlu0 %v2181, 80
      %v3387 = vpop.permute.xlu0 %3386
      %3388 = vrot.lane.b32.xlu0 %v2186, 80
      %v3389 = vpop.permute.xlu0 %3388
      %3390 = vrot.lane.b32.xlu0 %v2191, 80
      %v3391 = vpop.permute.xlu0 %3390
      %3392 = vrot.lane.b32.xlu0 %v2196, 80
      %v3393 = vpop.permute.xlu0 %3392
      %3394 = vrot.lane.b32.xlu0 %v2201, 80
      %v3395 = vpop.permute.xlu0 %3394
      %3396 = vrot.lane.b32.xlu0 %v2206, 80
      %v3397 = vpop.permute.xlu0 %3396
      %3398 = vrot.lane.b32.xlu0 %v2211, 80
      %v3399 = vpop.permute.xlu0 %3398
      %3400 = vrot.lane.b32.xlu0 %v2216, 80
      %v3401 = vpop.permute.xlu0 %3400
      %3402 = vrot.lane.b32.xlu0 %v2221, 80
      %v3403 = vpop.permute.xlu0 %3402
      %3404 = vrot.lane.b32.xlu0 %v2226, 80
      %v3405 = vpop.permute.xlu0 %3404
      %3406 = vrot.lane.b32.xlu0 %v2231, 80
      %v3407 = vpop.permute.xlu0 %3406
      %3440 = vmatprep.subr.mxu0 0.0
      %3441 = vmatpush1.msra.mxu0 %v3345
      %3442 = vmatprep.subr.mxu0 0.0
      %3443 = vmatpush1.msra.mxu0 %v3347
      %3444 = vmatprep.subr.mxu0 0.0
      %3445 = vmatpush1.msra.mxu0 %v3349
      %3446 = vmatprep.subr.mxu0 0.0
      %3447 = vmatpush1.msra.mxu0 %v3351
      %3448 = vmatprep.subr.mxu0 0.0
      %3449 = vmatpush1.msra.mxu0 %v3353
      %3450 = vmatprep.subr.mxu0 0.0
      %3451 = vmatpush1.msra.mxu0 %v3355
      %3452 = vmatprep.subr.mxu0 0.0
      %3453 = vmatpush1.msra.mxu0 %v3357
      %3454 = vmatprep.subr.mxu0 0.0
      %3455 = vmatpush1.msra.mxu0 %v3359
      %3456 = vmatprep.subr.mxu0 0.0
      %3457 = vmatpush1.msra.mxu0 %v3361
      %3458 = vmatprep.subr.mxu0 0.0
      %3459 = vmatpush1.msra.mxu0 %v3363
      %3460 = vmatprep.subr.mxu0 0.0
      %3461 = vmatpush1.msra.mxu0 %v3365
      %3462 = vmatprep.subr.mxu0 0.0
      %3463 = vmatpush1.msra.mxu0 %v3367
      %3464 = vmatprep.subr.mxu0 0.0
      %3465 = vmatpush1.msra.mxu0 %v3369
      %3466 = vmatprep.subr.mxu0 0.0
      %3467 = vmatpush1.msra.mxu0 %v3371
      %3468 = vmatprep.subr.mxu0 0.0
      %3469 = vmatpush1.msra.mxu0 %v3373
      %3470 = vmatprep.subr.mxu0 0.0
      %3471 = vmatpush1.msra.mxu0 %v3375
      %3472 = vmatprep.subr.mxu0 0.0
      %3473 = vmatpush1.msra.mxu0 %v3377
      %3474 = vmatprep.subr.mxu0 0.0
      %3475 = vmatpush1.msra.mxu0 %v3379
      %3476 = vmatprep.subr.mxu0 0.0
      %3477 = vmatpush1.msra.mxu0 %v3381
      %3478 = vmatprep.subr.mxu0 0.0
      %3479 = vmatpush1.msra.mxu0 %v3383
      %3480 = vmatprep.subr.mxu0 0.0
      %3481 = vmatpush1.msra.mxu0 %v3385
      %3482 = vmatprep.subr.mxu0 0.0
      %3483 = vmatpush1.msra.mxu0 %v3387
      %3484 = vmatprep.subr.mxu0 0.0
      %3485 = vmatpush1.msra.mxu0 %v3389
      %3486 = vmatprep.subr.mxu0 0.0
      %3487 = vmatpush1.msra.mxu0 %v3391
      %3488 = vmatprep.subr.mxu0 0.0
      %3489 = vmatpush1.msra.mxu0 %v3393
      %3490 = vmatprep.subr.mxu0 0.0
      %3491 = vmatpush1.msra.mxu0 %v3395
      %3492 = vmatprep.subr.mxu0 0.0
      %3493 = vmatpush1.msra.mxu0 %v3397
      %3494 = vmatprep.subr.mxu0 0.0
      %3495 = vmatpush1.msra.mxu0 %v3399
      %3496 = vmatprep.subr.mxu0 0.0
      %3497 = vmatpush1.msra.mxu0 %v3401
      %3498 = vmatprep.subr.mxu0 0.0
      %3499 = vmatpush1.msra.mxu0 %v3403
      %3500 = vmatprep.subr.mxu0 0.0
      %3501 = vmatpush1.msra.mxu0 %v3405
      %3502 = vmatprep.subr.mxu0 0.0
      %3503 = vmatpush1.msra.mxu0 %v3407
      %3504 = vmatprep.mubr.f32.mxu0 %v3343
      %3505 = vmatmul.mubr.f32.gmra.mrb[0].mxu0 %v3342
      %v3506 = vpop.f32.mrb[0].mxu0
      %v3507 = vadd.f32 0.0, %v3506
      %v3508 = vpop.f32.mrb[0].mxu0
      %3509 = vdwg.mxu0
      %v3511 = vsel %vm825, %v3507, 0
      %3513 = vmatprep.subr.mxu0 0.0
      %3514 = vmatpush1.msra.mxu0 %v2236
      %3515 = vmatprep.subr.mxu0 0.0
      %3516 = vmatpush1.msra.mxu0 0.0
      %3517 = vmatprep.subr.mxu0 0.0
      %3518 = vmatpush1.msra.mxu0 0.0
      %3519 = vmatprep.subr.mxu0 0.0
      %3520 = vmatpush1.msra.mxu0 0.0
      %3521 = vmatprep.subr.mxu0 0.0
      %3522 = vmatpush1.msra.mxu0 0.0
      %3523 = vmatprep.subr.mxu0 0.0
      %3524 = vmatpush1.msra.mxu0 0.0
      %3525 = vmatprep.subr.mxu0 0.0
      %3526 = vmatpush1.msra.mxu0 0.0
      %3527 = vmatprep.subr.mxu0 0.0
      %3528 = vmatpush1.msra.mxu0 0.0
      %3529 = vmatprep.subr.mxu0 0.0
      %3530 = vmatpush1.msra.mxu0 0.0
      %3531 = vmatprep.subr.mxu0 0.0
      %3532 = vmatpush1.msra.mxu0 0.0
      %3533 = vmatprep.subr.mxu0 0.0
      %3534 = vmatpush1.msra.mxu0 0.0
      %3535 = vmatprep.subr.mxu0 0.0
      %3536 = vmatpush1.msra.mxu0 0.0
      %3537 = vmatprep.subr.mxu0 0.0
      %3538 = vmatpush1.msra.mxu0 0.0
      %3539 = vmatprep.subr.mxu0 0.0
      %3540 = vmatpush1.msra.mxu0 0.0
      %3541 = vmatprep.subr.mxu0 0.0
      %3542 = vmatpush1.msra.mxu0 0.0
      %3543 = vmatprep.subr.mxu0 0.0
      %3544 = vmatpush1.msra.mxu0 0.0
      %3545 = vmatprep.subr.mxu0 0.0
      %3546 = vmatpush1.msra.mxu0 0.0
      %3547 = vmatprep.subr.mxu0 0.0
      %3548 = vmatpush1.msra.mxu0 0.0
      %3549 = vmatprep.subr.mxu0 0.0
      %3550 = vmatpush1.msra.mxu0 0.0
      %3551 = vmatprep.subr.mxu0 0.0
      %3552 = vmatpush1.msra.mxu0 0.0
      %3553 = vmatprep.subr.mxu0 0.0
      %3554 = vmatpush1.msra.mxu0 0.0
      %3555 = vmatprep.subr.mxu0 0.0
      %3556 = vmatpush1.msra.mxu0 0.0
      %3557 = vmatprep.subr.mxu0 0.0
      %3558 = vmatpush1.msra.mxu0 0.0
      %3559 = vmatprep.subr.mxu0 0.0
      %3560 = vmatpush1.msra.mxu0 0.0
      %3561 = vmatprep.subr.mxu0 0.0
      %3562 = vmatpush1.msra.mxu0 0.0
      %3563 = vmatprep.subr.mxu0 0.0
      %3564 = vmatpush1.msra.mxu0 0.0
      %3565 = vmatprep.subr.mxu0 0.0
      %3566 = vmatpush1.msra.mxu0 0.0
      %3567 = vmatprep.subr.mxu0 0.0
      %3568 = vmatpush1.msra.mxu0 0.0
      %3569 = vmatprep.subr.mxu0 0.0
      %3570 = vmatpush1.msra.mxu0 0.0
      %3571 = vmatprep.subr.mxu0 0.0
      %3572 = vmatpush1.msra.mxu0 0.0
      %3573 = vmatprep.subr.mxu0 0.0
      %3574 = vmatpush1.msra.mxu0 0.0
      %3575 = vmatprep.subr.mxu0 0.0
      %3576 = vmatpush1.msra.mxu0 0.0
      %3577 = vmatprep.mubr.f32.mxu0 0.0
      %3578 = vmatmul.mubr.f32.gmra.mrb[0].mxu0 %v3511
      %v3579 = vpop.f32.mrb[0].mxu0
      %v3580 = vadd.f32 0.0, %v3579
      %v3581 = vpop.f32.mrb[0].mxu0
      %3582 = vdwg.mxu0
      %v3583 = vadd.f32 %v3121, %v3580
      %3584 = vrot.lane.b32.xlu0 %v1899, 104
      %v3585 = vpop.permute.xlu0 %3584
      %3586 = vrot.lane.b32.xlu0 %v2076, 104
      %v3587 = vpop.permute.xlu0 %3586
      %3588 = vrot.lane.b32.xlu0 %v2081, 104
      %v3589 = vpop.permute.xlu0 %3588
      %3590 = vrot.lane.b32.xlu0 %v2086, 104
      %v3591 = vpop.permute.xlu0 %3590
      %3592 = vrot.lane.b32.xlu0 %v2091, 104
      %v3593 = vpop.permute.xlu0 %3592
      %3594 = vrot.lane.b32.xlu0 %v2096, 104
      %v3595 = vpop.permute.xlu0 %3594
      %3596 = vrot.lane.b32.xlu0 %v2101, 104
      %v3597 = vpop.permute.xlu0 %3596
      %3598 = vrot.lane.b32.xlu0 %v2106, 104
      %v3599 = vpop.permute.xlu0 %3598
      %3600 = vrot.lane.b32.xlu0 %v2111, 104
      %v3601 = vpop.permute.xlu0 %3600
      %3602 = vrot.lane.b32.xlu0 %v2116, 104
      %v3603 = vpop.permute.xlu0 %3602
      %3604 = vrot.lane.b32.xlu0 %v2121, 104
      %v3605 = vpop.permute.xlu0 %3604
      %3606 = vrot.lane.b32.xlu0 %v2126, 104
      %v3607 = vpop.permute.xlu0 %3606
      %3608 = vrot.lane.b32.xlu0 %v2131, 104
      %v3609 = vpop.permute.xlu0 %3608
      %3610 = vrot.lane.b32.xlu0 %v2136, 104
      %v3611 = vpop.permute.xlu0 %3610
      %3612 = vrot.lane.b32.xlu0 %v2141, 104
      %v3613 = vpop.permute.xlu0 %3612
      %3614 = vrot.lane.b32.xlu0 %v2146, 104
      %v3615 = vpop.permute.xlu0 %3614
      %3616 = vrot.lane.b32.xlu0 %v2151, 104
      %v3617 = vpop.permute.xlu0 %3616
      %3618 = vrot.lane.b32.xlu0 %v2156, 104
      %v3619 = vpop.permute.xlu0 %3618
      %3620 = vrot.lane.b32.xlu0 %v2161, 104
      %v3621 = vpop.permute.xlu0 %3620
      %3622 = vrot.lane.b32.xlu0 %v2166, 104
      %v3623 = vpop.permute.xlu0 %3622
      %3624 = vrot.lane.b32.xlu0 %v2171, 104
      %v3625 = vpop.permute.xlu0 %3624
      %3626 = vrot.lane.b32.xlu0 %v2176, 104
      %v3627 = vpop.permute.xlu0 %3626
      %3628 = vrot.lane.b32.xlu0 %v2181, 104
      %v3629 = vpop.permute.xlu0 %3628
      %3630 = vrot.lane.b32.xlu0 %v2186, 104
      %v3631 = vpop.permute.xlu0 %3630
      %3632 = vrot.lane.b32.xlu0 %v2191, 104
      %v3633 = vpop.permute.xlu0 %3632
      %3634 = vrot.lane.b32.xlu0 %v2196, 104
      %v3635 = vpop.permute.xlu0 %3634
      %3636 = vrot.lane.b32.xlu0 %v2201, 104
      %v3637 = vpop.permute.xlu0 %3636
      %3638 = vrot.lane.b32.xlu0 %v2206, 104
      %v3639 = vpop.permute.xlu0 %3638
      %3640 = vrot.lane.b32.xlu0 %v2211, 104
      %v3641 = vpop.permute.xlu0 %3640
      %3642 = vrot.lane.b32.xlu0 %v2216, 104
      %v3643 = vpop.permute.xlu0 %3642
      %3644 = vrot.lane.b32.xlu0 %v2221, 104
      %v3645 = vpop.permute.xlu0 %3644
      %3646 = vrot.lane.b32.xlu0 %v2226, 104
      %v3647 = vpop.permute.xlu0 %3646
      %3648 = vrot.lane.b32.xlu0 %v2231, 104
      %v3649 = vpop.permute.xlu0 %3648
      %v3650 = vsel %vm825, %v3585, 0
      %v3652 = vsel %vm825, %v3587, 0
      %v3654 = vsel %vm825, %v3589, 0
      %v3656 = vsel %vm825, %v3591, 0
      %v3658 = vsel %vm825, %v3593, 0
      %v3660 = vsel %vm825, %v3595, 0
      %v3662 = vsel %vm825, %v3597, 0
      %v3664 = vsel %vm825, %v3599, 0
      %v3666 = vsel %vm825, %v3601, 0
      %v3668 = vsel %vm825, %v3603, 0
      %v3670 = vsel %vm825, %v3605, 0
      %v3672 = vsel %vm825, %v3607, 0
      %v3674 = vsel %vm825, %v3609, 0
      %v3676 = vsel %vm825, %v3611, 0
      %v3678 = vsel %vm825, %v3613, 0
      %v3680 = vsel %vm825, %v3615, 0
      %v3682 = vsel %vm825, %v3617, 0
      %v3684 = vsel %vm825, %v3619, 0
      %v3686 = vsel %vm825, %v3621, 0
      %v3688 = vsel %vm825, %v3623, 0
      %v3690 = vsel %vm825, %v3625, 0
      %v3692 = vsel %vm825, %v3627, 0
      %v3694 = vsel %vm825, %v3629, 0
      %v3696 = vsel %vm825, %v3631, 0
      %v3698 = vsel %vm825, %v3633, 0
      %v3700 = vsel %vm825, %v3635, 0
      %v3702 = vsel %vm825, %v3637, 0
      %v3704 = vsel %vm825, %v3639, 0
      %v3706 = vsel %vm825, %v3641, 0
      %v3708 = vsel %vm825, %v3643, 0
      %v3710 = vsel %vm825, %v3645, 0
      %v3712 = vsel %vm825, %v3647, 0
      %v3714 = vsel %vm825, %v3649, 0
      %3716 = vmatprep.subr.mxu0 0.0
      %3717 = vmatpush1.xpose.msra.mxu0 %v3652
      %3718 = vmatprep.subr.mxu0 0.0
      %3719 = vmatpush1.xpose.msra.mxu0 %v3654
      %3720 = vmatprep.subr.mxu0 0.0
      %3721 = vmatpush1.xpose.msra.mxu0 %v3656
      %3722 = vmatprep.subr.mxu0 0.0
      %3723 = vmatpush1.xpose.msra.mxu0 %v3658
      %3724 = vmatprep.subr.mxu0 0.0
      %3725 = vmatpush1.xpose.msra.mxu0 %v3660
      %3726 = vmatprep.subr.mxu0 0.0
      %3727 = vmatpush1.xpose.msra.mxu0 %v3662
      %3728 = vmatprep.subr.mxu0 0.0
      %3729 = vmatpush1.xpose.msra.mxu0 %v3664
      %3730 = vmatprep.subr.mxu0 0.0
      %3731 = vmatpush1.xpose.msra.mxu0 %v3666
      %3732 = vmatprep.subr.mxu0 0.0
      %3733 = vmatpush1.xpose.msra.mxu0 %v3668
      %3734 = vmatprep.subr.mxu0 0.0
      %3735 = vmatpush1.xpose.msra.mxu0 %v3670
      %3736 = vmatprep.subr.mxu0 0.0
      %3737 = vmatpush1.xpose.msra.mxu0 %v3672
      %3738 = vmatprep.subr.mxu0 0.0
      %3739 = vmatpush1.xpose.msra.mxu0 %v3674
      %3740 = vmatprep.subr.mxu0 0.0
      %3741 = vmatpush1.xpose.msra.mxu0 %v3676
      %3742 = vmatprep.subr.mxu0 0.0
      %3743 = vmatpush1.xpose.msra.mxu0 %v3678
      %3744 = vmatprep.subr.mxu0 0.0
      %3745 = vmatpush1.xpose.msra.mxu0 %v3680
      %3746 = vmatprep.subr.mxu0 0.0
      %3747 = vmatpush1.xpose.msra.mxu0 %v3682
      %3748 = vmatprep.subr.mxu0 0.0
      %3749 = vmatpush1.xpose.msra.mxu0 %v3684
      %3750 = vmatprep.subr.mxu0 0.0
      %3751 = vmatpush1.xpose.msra.mxu0 %v3686
      %3752 = vmatprep.subr.mxu0 0.0
      %3753 = vmatpush1.xpose.msra.mxu0 %v3688
      %3754 = vmatprep.subr.mxu0 0.0
      %3755 = vmatpush1.xpose.msra.mxu0 %v3690
      %3756 = vmatprep.subr.mxu0 0.0
      %3757 = vmatpush1.xpose.msra.mxu0 %v3692
      %3758 = vmatprep.subr.mxu0 0.0
      %3759 = vmatpush1.xpose.msra.mxu0 %v3694
      %3760 = vmatprep.subr.mxu0 0.0
      %3761 = vmatpush1.xpose.msra.mxu0 %v3696
      %3762 = vmatprep.subr.mxu0 0.0
      %3763 = vmatpush1.xpose.msra.mxu0 %v3698
      %3764 = vmatprep.subr.mxu0 0.0
      %3765 = vmatpush1.xpose.msra.mxu0 %v3700
      %3766 = vmatprep.subr.mxu0 0.0
      %3767 = vmatpush1.xpose.msra.mxu0 %v3702
      %3768 = vmatprep.subr.mxu0 0.0
      %3769 = vmatpush1.xpose.msra.mxu0 %v3704
      %3770 = vmatprep.subr.mxu0 0.0
      %3771 = vmatpush1.xpose.msra.mxu0 %v3706
      %3772 = vmatprep.subr.mxu0 0.0
      %3773 = vmatpush1.xpose.msra.mxu0 %v3708
      %3774 = vmatprep.subr.mxu0 0.0
      %3775 = vmatpush1.xpose.msra.mxu0 %v3710
      %3776 = vmatprep.subr.mxu0 0.0
      %3777 = vmatpush1.xpose.msra.mxu0 %v3712
      %3778 = vmatprep.subr.mxu0 0.0
      %3779 = vmatpush1.xpose.msra.mxu0 %v3714
      %3780 = vmatprep.mubr.f32.mxu0 0.0
      %3781 = vmatmul.mubr.f32.gmra.mrb[0].mxu0 %v3650
      %v3782 = vpop.f32.mrb[0].mxu0
      %v3783 = vadd.f32 0.0, %v3782
      %v3784 = vpop.f32.mrb[0].mxu0
      %v3785 = vadd.f32 0.0, %v3784
      %3786 = vdwg.mxu0
      %v3787 = vmul.f32 %v3783, 0.35355338
      %v3788 = vmul.f32 %v3785, 0.35355338
      %v3789 = vmax.f32 %v3787, %v3788
      %3790 = vmax.xlane.f32.xlu0 %v3789
      %v3791 = vpop.xlane.xlu0 %3790
      %v3792 = vsub.f32 %v3787, %v3791
      %v3793 = vsub.f32 %v3788, %v3791
      %v3794 = vmul.f32 %v3792, 1.442695
      %v3795 = vpow.pop %v3794
      %v3796 = vmul.f32 %v3793, 1.442695
      %v3797 = vpow.pop %v3796
      %v3798 = vadd.f32 %v3795, %v3797
      %3799 = vadd.xlane.f32.xlu0 %v3798
      %v3800 = vpop.xlane.xlu0 %3799
      %v3801 = vrcp.pop %v3800
      %v3802 = vmul.f32 %v3795, %v3801
      %v3803 = vmul.f32 %v3797, %v3801
      %3804 = vrot.lane.b32.xlu0 %v2076, 72
      %v3805 = vpop.permute.xlu0 %3804
      %3806 = vrot.lane.b32.xlu0 %v2081, 72
      %v3807 = vpop.permute.xlu0 %3806
      %3808 = vrot.lane.b32.xlu0 %v2086, 72
      %v3809 = vpop.permute.xlu0 %3808
      %3810 = vrot.lane.b32.xlu0 %v2091, 72
      %v3811 = vpop.permute.xlu0 %3810
      %3812 = vrot.lane.b32.xlu0 %v2096, 72
      %v3813 = vpop.permute.xlu0 %3812
      %3814 = vrot.lane.b32.xlu0 %v2101, 72
      %v3815 = vpop.permute.xlu0 %3814
      %3816 = vrot.lane.b32.xlu0 %v2106, 72
      %v3817 = vpop.permute.xlu0 %3816
      %3818 = vrot.lane.b32.xlu0 %v2111, 72
      %v3819 = vpop.permute.xlu0 %3818
      %3820 = vrot.lane.b32.xlu0 %v2116, 72
      %v3821 = vpop.permute.xlu0 %3820
      %3822 = vrot.lane.b32.xlu0 %v2121, 72
      %v3823 = vpop.permute.xlu0 %3822
      %3824 = vrot.lane.b32.xlu0 %v2126, 72
      %v3825 = vpop.permute.xlu0 %3824
      %3826 = vrot.lane.b32.xlu0 %v2131, 72
      %v3827 = vpop.permute.xlu0 %3826
      %3828 = vrot.lane.b32.xlu0 %v2136, 72
      %v3829 = vpop.permute.xlu0 %3828
      %3830 = vrot.lane.b32.xlu0 %v2141, 72
      %v3831 = vpop.permute.xlu0 %3830
      %3832 = vrot.lane.b32.xlu0 %v2146, 72
      %v3833 = vpop.permute.xlu0 %3832
      %3834 = vrot.lane.b32.xlu0 %v2151, 72
      %v3835 = vpop.permute.xlu0 %3834
      %3836 = vrot.lane.b32.xlu0 %v2156, 72
      %v3837 = vpop.permute.xlu0 %3836
      %3838 = vrot.lane.b32.xlu0 %v2161, 72
      %v3839 = vpop.permute.xlu0 %3838
      %3840 = vrot.lane.b32.xlu0 %v2166, 72
      %v3841 = vpop.permute.xlu0 %3840
      %3842 = vrot.lane.b32.xlu0 %v2171, 72
      %v3843 = vpop.permute.xlu0 %3842
      %3844 = vrot.lane.b32.xlu0 %v2176, 72
      %v3845 = vpop.permute.xlu0 %3844
      %3846 = vrot.lane.b32.xlu0 %v2181, 72
      %v3847 = vpop.permute.xlu0 %3846
      %3848 = vrot.lane.b32.xlu0 %v2186, 72
      %v3849 = vpop.permute.xlu0 %3848
      %3850 = vrot.lane.b32.xlu0 %v2191, 72
      %v3851 = vpop.permute.xlu0 %3850
      %3852 = vrot.lane.b32.xlu0 %v2196, 72
      %v3853 = vpop.permute.xlu0 %3852
      %3854 = vrot.lane.b32.xlu0 %v2201, 72
      %v3855 = vpop.permute.xlu0 %3854
      %3856 = vrot.lane.b32.xlu0 %v2206, 72
      %v3857 = vpop.permute.xlu0 %3856
      %3858 = vrot.lane.b32.xlu0 %v2211, 72
      %v3859 = vpop.permute.xlu0 %3858
      %3860 = vrot.lane.b32.xlu0 %v2216, 72
      %v3861 = vpop.permute.xlu0 %3860
      %3862 = vrot.lane.b32.xlu0 %v2221, 72
      %v3863 = vpop.permute.xlu0 %3862
      %3864 = vrot.lane.b32.xlu0 %v2226, 72
      %v3865 = vpop.permute.xlu0 %3864
      %3866 = vrot.lane.b32.xlu0 %v2231, 72
      %v3867 = vpop.permute.xlu0 %3866
      %3900 = vmatprep.subr.mxu0 0.0
      %3901 = vmatpush1.msra.mxu0 %v3805
      %3902 = vmatprep.subr.mxu0 0.0
      %3903 = vmatpush1.msra.mxu0 %v3807
      %3904 = vmatprep.subr.mxu0 0.0
      %3905 = vmatpush1.msra.mxu0 %v3809
      %3906 = vmatprep.subr.mxu0 0.0
      %3907 = vmatpush1.msra.mxu0 %v3811
      %3908 = vmatprep.subr.mxu0 0.0
      %3909 = vmatpush1.msra.mxu0 %v3813
      %3910 = vmatprep.subr.mxu0 0.0
      %3911 = vmatpush1.msra.mxu0 %v3815
      %3912 = vmatprep.subr.mxu0 0.0
      %3913 = vmatpush1.msra.mxu0 %v3817
      %3914 = vmatprep.subr.mxu0 0.0
      %3915 = vmatpush1.msra.mxu0 %v3819
      %3916 = vmatprep.subr.mxu0 0.0
      %3917 = vmatpush1.msra.mxu0 %v3821
      %3918 = vmatprep.subr.mxu0 0.0
      %3919 = vmatpush1.msra.mxu0 %v3823
      %3920 = vmatprep.subr.mxu0 0.0
      %3921 = vmatpush1.msra.mxu0 %v3825
      %3922 = vmatprep.subr.mxu0 0.0
      %3923 = vmatpush1.msra.mxu0 %v3827
      %3924 = vmatprep.subr.mxu0 0.0
      %3925 = vmatpush1.msra.mxu0 %v3829
      %3926 = vmatprep.subr.mxu0 0.0
      %3927 = vmatpush1.msra.mxu0 %v3831
      %3928 = vmatprep.subr.mxu0 0.0
      %3929 = vmatpush1.msra.mxu0 %v3833
      %3930 = vmatprep.subr.mxu0 0.0
      %3931 = vmatpush1.msra.mxu0 %v3835
      %3932 = vmatprep.subr.mxu0 0.0
      %3933 = vmatpush1.msra.mxu0 %v3837
      %3934 = vmatprep.subr.mxu0 0.0
      %3935 = vmatpush1.msra.mxu0 %v3839
      %3936 = vmatprep.subr.mxu0 0.0
      %3937 = vmatpush1.msra.mxu0 %v3841
      %3938 = vmatprep.subr.mxu0 0.0
      %3939 = vmatpush1.msra.mxu0 %v3843
      %3940 = vmatprep.subr.mxu0 0.0
      %3941 = vmatpush1.msra.mxu0 %v3845
      %3942 = vmatprep.subr.mxu0 0.0
      %3943 = vmatpush1.msra.mxu0 %v3847
      %3944 = vmatprep.subr.mxu0 0.0
      %3945 = vmatpush1.msra.mxu0 %v3849
      %3946 = vmatprep.subr.mxu0 0.0
      %3947 = vmatpush1.msra.mxu0 %v3851
      %3948 = vmatprep.subr.mxu0 0.0
      %3949 = vmatpush1.msra.mxu0 %v3853
      %3950 = vmatprep.subr.mxu0 0.0
      %3951 = vmatpush1.msra.mxu0 %v3855
      %3952 = vmatprep.subr.mxu0 0.0
      %3953 = vmatpush1.msra.mxu0 %v3857
      %3954 = vmatprep.subr.mxu0 0.0
      %3955 = vmatpush1.msra.mxu0 %v3859
      %3956 = vmatprep.subr.mxu0 0.0
      %3957 = vmatpush1.msra.mxu0 %v3861
      %3958 = vmatprep.subr.mxu0 0.0
      %3959 = vmatpush1.msra.mxu0 %v3863
      %3960 = vmatprep.subr.mxu0 0.0
      %3961 = vmatpush1.msra.mxu0 %v3865
      %3962 = vmatprep.subr.mxu0 0.0
      %3963 = vmatpush1.msra.mxu0 %v3867
      %3964 = vmatprep.mubr.f32.mxu0 %v3803
      %3965 = vmatmul.mubr.f32.gmra.mrb[0].mxu0 %v3802
      %v3966 = vpop.f32.mrb[0].mxu0
      %v3967 = vadd.f32 0.0, %v3966
      %v3968 = vpop.f32.mrb[0].mxu0
      %3969 = vdwg.mxu0
      %v3971 = vsel %vm825, %v3967, 0
      %3973 = vmatprep.subr.mxu0 0.0
      %3974 = vmatpush1.msra.mxu0 %v2237
      %3975 = vmatprep.subr.mxu0 0.0
      %3976 = vmatpush1.msra.mxu0 0.0
      %3977 = vmatprep.subr.mxu0 0.0
      %3978 = vmatpush1.msra.mxu0 0.0
      %3979 = vmatprep.subr.mxu0 0.0
      %3980 = vmatpush1.msra.mxu0 0.0
      %3981 = vmatprep.subr.mxu0 0.0
      %3982 = vmatpush1.msra.mxu0 0.0
      %3983 = vmatprep.subr.mxu0 0.0
      %3984 = vmatpush1.msra.mxu0 0.0
      %3985 = vmatprep.subr.mxu0 0.0
      %3986 = vmatpush1.msra.mxu0 0.0
      %3987 = vmatprep.subr.mxu0 0.0
      %3988 = vmatpush1.msra.mxu0 0.0
      %3989 = vmatprep.subr.mxu0 0.0
      %3990 = vmatpush1.msra.mxu0 0.0
      %3991 = vmatprep.subr.mxu0 0.0
      %3992 = vmatpush1.msra.mxu0 0.0
      %3993 = vmatprep.subr.mxu0 0.0
      %3994 = vmatpush1.msra.mxu0 0.0
      %3995 = vmatprep.subr.mxu0 0.0
      %3996 = vmatpush1.msra.mxu0 0.0
      %3997 = vmatprep.subr.mxu0 0.0
      %3998 = vmatpush1.msra.mxu0 0.0
      %3999 = vmatprep.subr.mxu0 0.0
      %4000 = vmatpush1.msra.mxu0 0.0
      %4001 = vmatprep.subr.mxu0 0.0
      %4002 = vmatpush1.msra.mxu0 0.0
      %4003 = vmatprep.subr.mxu0 0.0
      %4004 = vmatpush1.msra.mxu0 0.0
      %4005 = vmatprep.subr.mxu0 0.0
      %4006 = vmatpush1.msra.mxu0 0.0
      %4007 = vmatprep.subr.mxu0 0.0
      %4008 = vmatpush1.msra.mxu0 0.0
      %4009 = vmatprep.subr.mxu0 0.0
      %4010 = vmatpush1.msra.mxu0 0.0
      %4011 = vmatprep.subr.mxu0 0.0
      %4012 = vmatpush1.msra.mxu0 0.0
      %4013 = vmatprep.subr.mxu0 0.0
      %4014 = vmatpush1.msra.mxu0 0.0
      %4015 = vmatprep.subr.mxu0 0.0
      %4016 = vmatpush1.msra.mxu0 0.0
      %4017 = vmatprep.subr.mxu0 0.0
      %4018 = vmatpush1.msra.mxu0 0.0
      %4019 = vmatprep.subr.mxu0 0.0
      %4020 = vmatpush1.msra.mxu0 0.0
      %4021 = vmatprep.subr.mxu0 0.0
      %4022 = vmatpush1.msra.mxu0 0.0
      %4023 = vmatprep.subr.mxu0 0.0
      %4024 = vmatpush1.msra.mxu0 0.0
      %4025 = vmatprep.subr.mxu0 0.0
      %4026 = vmatpush1.msra.mxu0 0.0
      %4027 = vmatprep.subr.mxu0 0.0
      %4028 = vmatpush1.msra.mxu0 0.0
      %4029 = vmatprep.subr.mxu0 0.0
      %4030 = vmatpush1.msra.mxu0 0.0
      %4031 = vmatprep.subr.mxu0 0.0
      %4032 = vmatpush1.msra.mxu0 0.0
      %4033 = vmatprep.subr.mxu0 0.0
      %4034 = vmatpush1.msra.mxu0 0.0
      %4035 = vmatprep.subr.mxu0 0.0
      %4036 = vmatpush1.msra.mxu0 0.0
      %4037 = vmatprep.mubr.f32.mxu0 0.0
      %4038 = vmatmul.mubr.f32.gmra.mrb[0].mxu0 %v3971
      %v4039 = vpop.f32.mrb[0].mxu0
      %v4040 = vadd.f32 0.0, %v4039
      %v4041 = vpop.f32.mrb[0].mxu0
      %4042 = vdwg.mxu0
      %v4043 = vadd.f32 %v3583, %v4040
      %v4045 = vlaneseq
      %v4046 = vshrl.u32 %v4045, 7
      %v4047 = vsub.s32 0, %v4046
      %v4048 = vrot.slane %v2238, %v4047
      %v4050 = vadd.f32 %v4043, %v4048
      %v4051 = vld [vmem:[%s14] sm:$0x1]
      %v4052 = vld [vmem:[%s15] sm:$0x1]
      %v4053 = vadd.f32 %v1817, %v4050
      %v4054 = vsel %vm743, %v4053, 0.0
      %4055 = vadd.xlane.f32.xlu0 %v4054
      %v4056 = vpop.xlane.xlu0 %4055
      %v4057 = vmul.f32 %v4056, %v1793
      %v4058 = vsub.f32 %v4053, %v4057
      %v4059 = vmul.f32 %v4058, %v4058
      %v4060 = vsel %vm743, %v4059, 0.0
      %4061 = vadd.xlane.f32.xlu0 %v4060
      %v4062 = vpop.xlane.xlu0 %4061
      %v4063 = vmul.f32 %v4062, %v1793
      %v4064 = vadd.f32 %v4063, 1e-05
      %v4065 = vrsqrt.pop %v4064
      %v4066 = vmul.f32 %v4058, %v4065
      %v4068 = vlaneseq
      %v4069 = vshrl.u32 %v4068, 7
      %v4070 = vsub.s32 0, %v4069
      %v4071 = vrot.slane %v4051, %v4070
      %v4073 = vmul.f32 %v4066, %v4071
      %v4075 = vlaneseq
      %v4076 = vshrl.u32 %v4075, 7
      %v4077 = vsub.s32 0, %v4076
      %v4078 = vrot.slane %v4052, %v4077
      %v4080 = vadd.f32 %v4073, %v4078
      %v4081 = vld [vmem:[%s16] sm:$0xff]
      %v4082 = vld [vmem:[%s16 + $0x8] sm:$0xff]
      %v4083 = vld [vmem:[%s16 + $0x10] sm:$0xff]
      %v4084 = vld [vmem:[%s16 + $0x18] sm:$0xff]
      %v4085 = vld [vmem:[%s17] sm:$0x1]
      %v4087 = vlaneseq
      %v4088 = vshrl.u32 %v4087, 7
      %v4089 = vsub.s32 0, %v4088
      %v4090 = vrot.slane %v4085, %v4089
      %v4093 = vsel %vm743, %v4080, 0
      %4095 = vmatprep.subr.mxu0 0.0
      %4096 = vmatpush1.msra.mxu0 %v4081
      %4097 = vmatprep.subr.mxu0 0.0
      %4098 = vmatpush1.msra.mxu0 %v4082
      %4099 = vmatprep.subr.mxu0 0.0
      %4100 = vmatpush1.msra.mxu0 %v4083
      %4101 = vmatprep.subr.mxu0 0.0
      %4102 = vmatpush1.msra.mxu0 %v4084
      %4103 = vmatprep.subr.mxu0 0.0
      %4104 = vmatpush1.msra.mxu0 0.0
      %4105 = vmatprep.subr.mxu0 0.0
      %4106 = vmatpush1.msra.mxu0 0.0
      %4107 = vmatprep.subr.mxu0 0.0
      %4108 = vmatpush1.msra.mxu0 0.0
      %4109 = vmatprep.subr.mxu0 0.0
      %4110 = vmatpush1.msra.mxu0 0.0
      %4111 = vmatprep.subr.mxu0 0.0
      %4112 = vmatpush1.msra.mxu0 0.0
      %4113 = vmatprep.subr.mxu0 0.0
      %4114 = vmatpush1.msra.mxu0 0.0
      %4115 = vmatprep.subr.mxu0 0.0
      %4116 = vmatpush1.msra.mxu0 0.0
      %4117 = vmatprep.subr.mxu0 0.0
      %4118 = vmatpush1.msra.mxu0 0.0
      %4119 = vmatprep.subr.mxu0 0.0
      %4120 = vmatpush1.msra.mxu0 0.0
      %4121 = vmatprep.subr.mxu0 0.0
      %4122 = vmatpush1.msra.mxu0 0.0
      %4123 = vmatprep.subr.mxu0 0.0
      %4124 = vmatpush1.msra.mxu0 0.0
      %4125 = vmatprep.subr.mxu0 0.0
      %4126 = vmatpush1.msra.mxu0 0.0
      %4127 = vmatprep.subr.mxu0 0.0
      %4128 = vmatpush1.msra.mxu0 0.0
      %4129 = vmatprep.subr.mxu0 0.0
      %4130 = vmatpush1.msra.mxu0 0.0
      %4131 = vmatprep.subr.mxu0 0.0
      %4132 = vmatpush1.msra.mxu0 0.0
      %4133 = vmatprep.subr.mxu0 0.0
      %4134 = vmatpush1.msra.mxu0 0.0
      %4135 = vmatprep.subr.mxu0 0.0
      %4136 = vmatpush1.msra.mxu0 0.0
      %4137 = vmatprep.subr.mxu0 0.0
      %4138 = vmatpush1.msra.mxu0 0.0
      %4139 = vmatprep.subr.mxu0 0.0
      %4140 = vmatpush1.msra.mxu0 0.0
      %4141 = vmatprep.subr.mxu0 0.0
      %4142 = vmatpush1.msra.mxu0 0.0
      %4143 = vmatprep.subr.mxu0 0.0
      %4144 = vmatpush1.msra.mxu0 0.0
      %4145 = vmatprep.subr.mxu0 0.0
      %4146 = vmatpush1.msra.mxu0 0.0
      %4147 = vmatprep.subr.mxu0 0.0
      %4148 = vmatpush1.msra.mxu0 0.0
      %4149 = vmatprep.subr.mxu0 0.0
      %4150 = vmatpush1.msra.mxu0 0.0
      %4151 = vmatprep.subr.mxu0 0.0
      %4152 = vmatpush1.msra.mxu0 0.0
      %4153 = vmatprep.subr.mxu0 0.0
      %4154 = vmatpush1.msra.mxu0 0.0
      %4155 = vmatprep.subr.mxu0 0.0
      %4156 = vmatpush1.msra.mxu0 0.0
      %4157 = vmatprep.subr.mxu0 0.0
      %4158 = vmatpush1.msra.mxu0 0.0
      %4159 = vmatprep.mubr.f32.mxu0 0.0
      %4160 = vmatmul.mubr.f32.gmra.mrb[0].mxu0 %v4093
      %v4161 = vpop.f32.mrb[0].mxu0
      %v4162 = vadd.f32 %v4090, %v4161
      %v4163 = vpop.f32.mrb[0].mxu0
      %4164 = vdwg.mxu0
      %v4165 = vmax.f32 %v4162, 0.0
      %v4166 = vld [vmem:[%s18] sm:$0xff]
      %v4167 = vld [vmem:[%s18 + $0x8] sm:$0xff]
      %v4168 = vld [vmem:[%s18 + $0x10] sm:$0xff]
      %v4169 = vld [vmem:[%s18 + $0x18] sm:$0xff]
      %v4170 = vld [vmem:[%s18 + $0x20] sm:$0xff]
      %v4171 = vld [vmem:[%s18 + $0x28] sm:$0xff]
      %v4172 = vld [vmem:[%s18 + $0x30] sm:$0xff]
      %v4173 = vld [vmem:[%s18 + $0x38] sm:$0xff]
      %v4174 = vld [vmem:[%s19] sm:$0x1]
      %v4176 = vlaneseq
      %v4177 = vshrl.u32 %v4176, 7
      %v4178 = vsub.s32 0, %v4177
      %v4179 = vrot.slane %v4174, %v4178
      %vm4181 = vcmask 523264
      %v4183 = vsel %vm4181, %v4165, 0
      %4185 = vmatprep.subr.mxu0 0.0
      %4186 = vmatpush1.msra.mxu0 %v4166
      %4187 = vmatprep.subr.mxu0 0.0
      %4188 = vmatpush1.msra.mxu0 %v4167
      %4189 = vmatprep.subr.mxu0 0.0
      %4190 = vmatpush1.msra.mxu0 %v4168
      %4191 = vmatprep.subr.mxu0 0.0
      %4192 = vmatpush1.msra.mxu0 %v4169
      %4193 = vmatprep.subr.mxu0 0.0
      %4194 = vmatpush1.msra.mxu0 %v4170
      %4195 = vmatprep.subr.mxu0 0.0
      %4196 = vmatpush1.msra.mxu0 %v4171
      %4197 = vmatprep.subr.mxu0 0.0
      %4198 = vmatpush1.msra.mxu0 %v4172
      %4199 = vmatprep.subr.mxu0 0.0
      %4200 = vmatpush1.msra.mxu0 %v4173
      %4201 = vmatprep.subr.mxu0 0.0
      %4202 = vmatpush1.msra.mxu0 0.0
      %4203 = vmatprep.subr.mxu0 0.0
      %4204 = vmatpush1.msra.mxu0 0.0
      %4205 = vmatprep.subr.mxu0 0.0
      %4206 = vmatpush1.msra.mxu0 0.0
      %4207 = vmatprep.subr.mxu0 0.0
      %4208 = vmatpush1.msra.mxu0 0.0
      %4209 = vmatprep.subr.mxu0 0.0
      %4210 = vmatpush1.msra.mxu0 0.0
      %4211 = vmatprep.subr.mxu0 0.0
      %4212 = vmatpush1.msra.mxu0 0.0
      %4213 = vmatprep.subr.mxu0 0.0
      %4214 = vmatpush1.msra.mxu0 0.0
      %4215 = vmatprep.subr.mxu0 0.0
      %4216 = vmatpush1.msra.mxu0 0.0
      %4217 = vmatprep.subr.mxu0 0.0
      %4218 = vmatpush1.msra.mxu0 0.0
      %4219 = vmatprep.subr.mxu0 0.0
      %4220 = vmatpush1.msra.mxu0 0.0
      %4221 = vmatprep.subr.mxu0 0.0
      %4222 = vmatpush1.msra.mxu0 0.0
      %4223 = vmatprep.subr.mxu0 0.0
      %4224 = vmatpush1.msra.mxu0 0.0
      %4225 = vmatprep.subr.mxu0 0.0
      %4226 = vmatpush1.msra.mxu0 0.0
      %4227 = vmatprep.subr.mxu0 0.0
      %4228 = vmatpush1.msra.mxu0 0.0
      %4229 = vmatprep.subr.mxu0 0.0
      %4230 = vmatpush1.msra.mxu0 0.0
      %4231 = vmatprep.subr.mxu0 0.0
      %4232 = vmatpush1.msra.mxu0 0.0
      %4233 = vmatprep.subr.mxu0 0.0
      %4234 = vmatpush1.msra.mxu0 0.0
      %4235 = vmatprep.subr.mxu0 0.0
      %4236 = vmatpush1.msra.mxu0 0.0
      %4237 = vmatprep.subr.mxu0 0.0
      %4238 = vmatpush1.msra.mxu0 0.0
      %4239 = vmatprep.subr.mxu0 0.0
      %4240 = vmatpush1.msra.mxu0 0.0
      %4241 = vmatprep.subr.mxu0 0.0
      %4242 = vmatpush1.msra.mxu0 0.0
      %4243 = vmatprep.subr.mxu0 0.0
      %4244 = vmatpush1.msra.mxu0 0.0
      %4245 = vmatprep.subr.mxu0 0.0
      %4246 = vmatpush1.msra.mxu0 0.0
      %4247 = vmatprep.subr.mxu0 0.0
      %4248 = vmatpush1.msra.mxu0 0.0
      %4249 = vmatprep.mubr.f32.mxu0 0.0
      %4250 = vmatmul.mubr.f32.gmra.mrb[0].mxu0 %v4183
      %v4251 = vpop.f32.mrb[0].mxu0
      %v4252 = vadd.f32 %v4179, %v4251
      %v4253 = vpop.f32.mrb[0].mxu0
      %4254 = vdwg.mxu0
      %v4255 = vld [vmem:[%s20] sm:$0x1]
      %v4256 = vld [vmem:[%s21] sm:$0x1]
      %v4257 = vadd.f32 %v4080, %v4252
      %v4258 = vsel %vm743, %v4257, 0.0
      %4259 = vadd.xlane.f32.xlu0 %v4258
      %v4260 = vpop.xlane.xlu0 %4259
      %v4261 = vmul.f32 %v4260, %v1793
      %v4262 = vsub.f32 %v4257, %v4261
      %v4263 = vmul.f32 %v4262, %v4262
      %v4264 = vsel %vm743, %v4263, 0.0
      %4265 = vadd.xlane.f32.xlu0 %v4264
      %v4266 = vpop.xlane.xlu0 %4265
      %v4267 = vmul.f32 %v4266, %v1793
      %v4268 = vadd.f32 %v4267, 1e-05
      %v4269 = vrsqrt.pop %v4268
      %v4270 = vmul.f32 %v4262, %v4269
      %v4272 = vlaneseq
      %v4273 = vshrl.u32 %v4272, 7
      %v4274 = vsub.s32 0, %v4273
      %v4275 = vrot.slane %v4255, %v4274
      %v4277 = vmul.f32 %v4270, %v4275
      %v4279 = vlaneseq
      %v4280 = vshrl.u32 %v4279, 7
      %v4281 = vsub.s32 0, %v4280
      %v4282 = vrot.slane %v4256, %v4281
      %v4284 = vadd.f32 %v4277, %v4282
      %4285 = vst.msk [vmem:[%s698] sm:$0xff] %vm743, %v4284
      %p4286 = scmp.lt.s32.totalorder %s33, 1
      %s4287 = scalar_select %p4286, %s33, 1
      %s4288 = smul.addr %s4287, 8
      %s4289 = scalar_lea.vmem %s22, %s4288
      // Predicated region
      $region109: #{transformer_forward.5} parent=107 // pred_check
        %p4290 = pneg %p523
      $region110: #{transformer_forward.5} parent=107 // pred_check_branch
        %4292 = sbr.rel (%p4290) target = $region112
      $region111: #{transformer_forward.5} parent=107 // pred_region
        _
      $region112: #{transformer_forward.5} parent=107 // pred_fallthru
        _
    $region108: #{transformer_forward.5} parent=5 // pred_fallthru
      _
    %p4293 = scmp.le.s32.totalorder 2, %s28
    // Predicated region
    $region113: #{transformer_forward.5} parent=5 // pred_check
      %p4294 = pneg %p4293
    $region114: #{transformer_forward.5} parent=5 // pred_check_branch
      %4296 = sbr.rel (%p4294) target = $region116
    $region115: #{transformer_forward.5} parent=5 // pred_region
      %s4297 = ssub.s32 %s28, 2
      // Predicated region
      $region117: #{transformer_forward.5} parent=115 // pred_check
        %p4298 = pneg %p529
      $region118: #{transformer_forward.5} parent=115 // pred_check_branch
        %4300 = sbr.rel (%p4298) target = $region120
      $region119: #{transformer_forward.5} parent=115 // pred_region
        %p4301 = scmp.lt.s32.totalorder %s34, 1
        %s4302 = scalar_select %p4301, %s34, 1
        %s4303 = smul.addr %s4302, 8
        %s4304 = scalar_lea.vmem %s22, %s4303
      $region120: #{transformer_forward.5} parent=115 // pred_fallthru
        _
    $region116: #{transformer_forward.5} parent=5 // pred_fallthru
      _
  $region6: #{transformer_forward.5} parent=0 // loop_footer
    %s32 = sadd.s32 1, %s28
  $region7: #{transformer_forward.5} parent=0 // loop_footer_branch
    %27 = sbr.rel target = $region3
  $region8: #{transformer_forward.5} parent=0 // loop_exit
    _

// kernel: transformer_forward.6
$region0: #{transformer_forward.6}
  #allocation0 [shape = 'u32[]', space=smem, size = 0x4, offset = 0x4, fixed_abs, tag = 'smem constant byte address 0x4 - core index']
  #allocation1 [shape = 'u32[144,128]{1,0:T(1,128)}', space=vmem, size = 0x12000, scoped, tag = 'internal scratch']
  %s0 = inlined_call_operand.vmem [shape: f32[2,8,32], index: 0, kind: input, shape index: {}]
  %s1 = inlined_call_operand.vmem [shape: f32[2,256,32], index: 1, kind: input, shape index: {}]
  %s2 = inlined_call_operand.vmem [shape: f32[32,96], index: 2, kind: input, shape index: {}]
  %s3 = inlined_call_operand.vmem [shape: f32[1,96], index: 3, kind: input, shape index: {}]
  %s4 = inlined_call_operand.vmem [shape: f32[32,32], index: 4, kind: input, shape index: {}]
  %s5 = inlined_call_operand.vmem [shape: f32[1,32], index: 5, kind: input, shape index: {}]
  %s6 = inlined_call_operand.vmem [shape: f32[1,32], index: 6, kind: input, shape index: {}]
  %s7 = inlined_call_operand.vmem [shape: f32[1,32], index: 7, kind: input, shape index: {}]
  %s8 = inlined_call_operand.vmem [shape: f32[32,32], index: 8, kind: input, shape index: {}]
  %s9 = inlined_call_operand.vmem [shape: f32[1,32], index: 9, kind: input, shape index: {}]
  %s10 = inlined_call_operand.vmem [shape: f32[32,64], index: 10, kind: input, shape index: {}]
  %s11 = inlined_call_operand.vmem [shape: f32[1,64], index: 11, kind: input, shape index: {}]
  %s12 = inlined_call_operand.vmem [shape: f32[32,32], index: 12, kind: input, shape index: {}]
  %s13 = inlined_call_operand.vmem [shape: f32[1,32], index: 13, kind: input, shape index: {}]
  %s14 = inlined_call_operand.vmem [shape: f32[1,32], index: 14, kind: input, shape index: {}]
  %s15 = inlined_call_operand.vmem [shape: f32[1,32], index: 15, kind: input, shape index: {}]
  %s16 = inlined_call_operand.vmem [shape: f32[32,64], index: 16, kind: input, shape index: {}]
  %s17 = inlined_call_operand.vmem [shape: f32[1,64], index: 17, kind: input, shape index: {}]
  %s18 = inlined_call_operand.vmem [shape: f32[64,32], index: 18, kind: input, shape index: {}]
  %s19 = inlined_call_operand.vmem [shape: f32[1,32], index: 19, kind: input, shape index: {}]
  %s20 = inlined_call_operand.vmem [shape: f32[1,32], index: 20, kind: input, shape index: {}]
  %s21 = inlined_call_operand.hbm [shape: f32[1,32], index: 21, kind: input, shape index: {}]
  %s22 = inlined_call_operand.vmem [shape: f32[2,8,32], index: 22, kind: output, shape index: {}]
  %s23 = sld [smem:[#allocation0]]
  $region125: #{transformer_forward.6} parent=0
    _
  %s25 = ssub.s32 1, %s23
  %s26 = scalar_select 0, %s25, %s23
  $region1: #{transformer_forward.6} parent=0
    #allocation2 [shape = 'u8[512]{0}', space=vmem, size = 0x400, scoped, tag = 'input window, operand 21, single buffered']
    #allocation3 [shape = 's32[2]{0}', space=sflag, size = 0x8, scoped, tag = 'scoped memory for transformer_forward.6']
    %27 = vsyncpa [#allocation3], 0
    loop: start=0, step=1, limit=4
    $region2: #{transformer_forward.6} parent=1 // loop_pre_header
      _
    $region3: #{transformer_forward.6} parent=1 // loop_header
      %s29 = sphi 0, %s33
      %p30 = scmp.ge.s32.totalorder %s29, 4
      %s39 = sphi 0, %s41
      %s42 = sphi 0, %s39
      %s43 = sphi 0, %s42
      %s59 = sphi 0, %s43
      %s65 = sphi 0, %s67
      %s68 = sphi 0, %s65
      %s69 = sphi 0, %s68
      %s85 = sphi 0, %s69
      %s89 = sphi 0, %s89
      %s91 = sphi 0, %s89
      %s92 = sphi 0, %s91
      %s106 = sphi 0, %s92
      %s110 = sphi 0, %s110
      %s112 = sphi 0, %s110
      %s113 = sphi 0, %s112
      %s127 = sphi 0, %s113
      %s131 = sphi 0, %s131
      %s133 = sphi 0, %s131
      %s134 = sphi 0, %s133
      %s148 = sphi 0, %s134
      %s152 = sphi 0, %s152
      %s154 = sphi 0, %s152
      %s155 = sphi 0, %s154
      %s169 = sphi 0, %s155
      %s173 = sphi 0, %s173
      %s175 = sphi 0, %s173
      %s176 = sphi 0, %s175
      %s190 = sphi 0, %s176
      %s194 = sphi 0, %s194
      %s196 = sphi 0, %s194
      %s197 = sphi 0, %s196
      %s211 = sphi 0, %s197
      %s215 = sphi 0, %s215
      %s217 = sphi 0, %s215
      %s218 = sphi 0, %s217
      %s232 = sphi 0, %s218
      %s236 = sphi 0, %s236
      %s238 = sphi 0, %s236
      %s239 = sphi 0, %s238
      %s253 = sphi 0, %s239
      %s257 = sphi 0, %s257
      %s259 = sphi 0, %s257
      %s260 = sphi 0, %s259
      %s274 = sphi 0, %s260
      %s278 = sphi 0, %s278
      %s280 = sphi 0, %s278
      %s281 = sphi 0, %s280
      %s295 = sphi 0, %s281
      %s299 = sphi 0, %s299
      %s301 = sphi 0, %s299
      %s302 = sphi 0, %s301
      %s316 = sphi 0, %s302
      %s320 = sphi 0, %s320
      %s322 = sphi 0, %s320
      %s323 = sphi 0, %s322
      %s337 = sphi 0, %s323
      %s341 = sphi 0, %s341
      %s343 = sphi 0, %s341
      %s344 = sphi 0, %s343
      %s358 = sphi 0, %s344
      %s362 = sphi 0, %s362
      %s364 = sphi 0, %s362
      %s365 = sphi 0, %s364
      %s379 = sphi 0, %s365
      %s383 = sphi 0, %s383
      %s385 = sphi 0, %s383
      %s386 = sphi 0, %s385
      %s400 = sphi 0, %s386
      %s404 = sphi 0, %s404
      %s406 = sphi 0, %s404
      %s407 = sphi 0, %s406
      %s421 = sphi 0, %s407
      %s425 = sphi 0, %s425
      %s427 = sphi 0, %s425
      %s428 = sphi 0, %s427
      %s442 = sphi 0, %s428
      %s446 = sphi 0, %s446
      %s448 = sphi 0, %s446
      %s449 = sphi 0, %s448
      %s463 = sphi 0, %s449
      %s467 = sphi 0, %s467
      %s469 = sphi 0, %s467
      %s470 = sphi 0, %s469
      %s484 = sphi 0, %s470
      %s488 = sphi 0, %s488
      %s490 = sphi 0, %s488
      %s491 = sphi 0, %s490
      %s505 = sphi 0, %s491
      %s511 = sphi 0, %s513
      %s514 = sphi 0, %s511
      %s515 = sphi 0, %s514
      %s531 = sphi 0, %s515
    $region4: #{transformer_forward.6} parent=1 // loop_header_branch
      %32 = sbr.rel (%p30) target = $region8
    $region5: #{transformer_forward.6} parent=1 // loop_body
      %s34 = ssub.s32 %s29, 1
      %s35 = ssub.s32 %s29, 2
      %s36 = sadd.s32 %s29, 1
      %s37 = ssub.s32 %s29, %s36
      %p38 = scmp.eq.s32.totalorder %s37, 0
      %s40 = sadd.s32 %s39, 1
      %s41 = scalar_select %p38, %s39, %s40
      %p44 = pneg %p38
      %p45 = scmp.eq.s32.totalorder %s29, 1
      %p46 = por %p44, %p45
      %p47 = scmp.ne.s32.totalorder %s39, %s42
      %p48 = scmp.eq.s32.totalorder %s29, 0
      %p49 = por %p47, %p48
      %p50 = scmp.ne.s32.totalorder %s39, %s42
      %p51 = scmp.eq.s32.totalorder %s34, 1
      %p52 = por %p50, %p51
      %p53 = scmp.ne.s32.totalorder %s42, %s43
      %p54 = scmp.eq.s32.totalorder %s34, 0
      %p55 = por %p53, %p54
      %p56 = scmp.ne.s32.totalorder %s42, %s43
      %p57 = scmp.eq.s32.totalorder %s35, 1
      %p58 = por %p56, %p57
      %p60 = scmp.ne.s32.totalorder %s43, %s59
      %p61 = scmp.eq.s32.totalorder %s35, 0
      %p62 = por %p60, %p61
      %s63 = ssub.s32 %s29, %s36
      %p64 = scmp.eq.s32.totalorder %s63, 0
      %s66 = sadd.s32 %s65, 1
      %s67 = scalar_select %p64, %s65, %s66
      %p70 = pneg %p64
      %p71 = scmp.eq.s32.totalorder %s29, 1
      %p72 = por %p70, %p71
      %p73 = scmp.ne.s32.totalorder %s65, %s68
      %p74 = scmp.eq.s32.totalorder %s29, 0
      %p75 = por %p73, %p74
      %p76 = scmp.ne.s32.totalorder %s65, %s68
      %p77 = scmp.eq.s32.totalorder %s34, 1
      %p78 = por %p76, %p77
      %p79 = scmp.ne.s32.totalorder %s68, %s69
      %p80 = scmp.eq.s32.totalorder %s34, 0
      %p81 = por %p79, %p80
      %p82 = scmp.ne.s32.totalorder %s68, %s69
      %p83 = scmp.eq.s32.totalorder %s35, 1
      %p84 = por %p82, %p83
      %p86 = scmp.ne.s32.totalorder %s69, %s85
      %p87 = scmp.eq.s32.totalorder %s35, 0
      %p88 = por %p86, %p87
      %s90 = sadd.s32 %s89, 1
      %p93 = scmp.eq.s32.totalorder %s29, 1
      %p94 = scmp.ne.s32.totalorder %s89, %s91
      %p95 = scmp.eq.s32.totalorder %s29, 0
      %p96 = por %p94, %p95
      %p97 = scmp.ne.s32.totalorder %s89, %s91
      %p98 = scmp.eq.s32.totalorder %s34, 1
      %p99 = por %p97, %p98
      %p100 = scmp.ne.s32.totalorder %s91, %s92
      %p101 = scmp.eq.s32.totalorder %s34, 0
      %p102 = por %p100, %p101
      %p103 = scmp.ne.s32.totalorder %s91, %s92
      %p104 = scmp.eq.s32.totalorder %s35, 1
      %p105 = por %p103, %p104
      %p107 = scmp.ne.s32.totalorder %s92, %s106
      %p108 = scmp.eq.s32.totalorder %s35, 0
      %p109 = por %p107, %p108
      %s111 = sadd.s32 %s110, 1
      %p114 = scmp.eq.s32.totalorder %s29, 1
      %p115 = scmp.ne.s32.totalorder %s110, %s112
      %p116 = scmp.eq.s32.totalorder %s29, 0
      %p117 = por %p115, %p116
      %p118 = scmp.ne.s32.totalorder %s110, %s112
      %p119 = scmp.eq.s32.totalorder %s34, 1
      %p120 = por %p118, %p119
      %p121 = scmp.ne.s32.totalorder %s112, %s113
      %p122 = scmp.eq.s32.totalorder %s34, 0
      %p123 = por %p121, %p122
      %p124 = scmp.ne.s32.totalorder %s112, %s113
      %p125 = scmp.eq.s32.totalorder %s35, 1
      %p126 = por %p124, %p125
      %p128 = scmp.ne.s32.totalorder %s113, %s127
      %p129 = scmp.eq.s32.totalorder %s35, 0
      %p130 = por %p128, %p129
      %s132 = sadd.s32 %s131, 1
      %p135 = scmp.eq.s32.totalorder %s29, 1
      %p136 = scmp.ne.s32.totalorder %s131, %s133
      %p137 = scmp.eq.s32.totalorder %s29, 0
      %p138 = por %p136, %p137
      %p139 = scmp.ne.s32.totalorder %s131, %s133
      %p140 = scmp.eq.s32.totalorder %s34, 1
      %p141 = por %p139, %p140
      %p142 = scmp.ne.s32.totalorder %s133, %s134
      %p143 = scmp.eq.s32.totalorder %s34, 0
      %p144 = por %p142, %p143
      %p145 = scmp.ne.s32.totalorder %s133, %s134
      %p146 = scmp.eq.s32.totalorder %s35, 1
      %p147 = por %p145, %p146
      %p149 = scmp.ne.s32.totalorder %s134, %s148
      %p150 = scmp.eq.s32.totalorder %s35, 0
      %p151 = por %p149, %p150
      %s153 = sadd.s32 %s152, 1
      %p156 = scmp.eq.s32.totalorder %s29, 1
      %p157 = scmp.ne.s32.totalorder %s152, %s154
      %p158 = scmp.eq.s32.totalorder %s29, 0
      %p159 = por %p157, %p158
      %p160 = scmp.ne.s32.totalorder %s152, %s154
      %p161 = scmp.eq.s32.totalorder %s34, 1
      %p162 = por %p160, %p161
      %p163 = scmp.ne.s32.totalorder %s154, %s155
      %p164 = scmp.eq.s32.totalorder %s34, 0
      %p165 = por %p163, %p164
      %p166 = scmp.ne.s32.totalorder %s154, %s155
      %p167 = scmp.eq.s32.totalorder %s35, 1
      %p168 = por %p166, %p167
      %p170 = scmp.ne.s32.totalorder %s155, %s169
      %p171 = scmp.eq.s32.totalorder %s35, 0
      %p172 = por %p170, %p171
      %s174 = sadd.s32 %s173, 1
      %p177 = scmp.eq.s32.totalorder %s29, 1
      %p178 = scmp.ne.s32.totalorder %s173, %s175
      %p179 = scmp.eq.s32.totalorder %s29, 0
      %p180 = por %p178, %p179
      %p181 = scmp.ne.s32.totalorder %s173, %s175
      %p182 = scmp.eq.s32.totalorder %s34, 1
      %p183 = por %p181, %p182
      %p184 = scmp.ne.s32.totalorder %s175, %s176
      %p185 = scmp.eq.s32.totalorder %s34, 0
      %p186 = por %p184, %p185
      %p187 = scmp.ne.s32.totalorder %s175, %s176
      %p188 = scmp.eq.s32.totalorder %s35, 1
      %p189 = por %p187, %p188
      %p191 = scmp.ne.s32.totalorder %s176, %s190
      %p192 = scmp.eq.s32.totalorder %s35, 0
      %p193 = por %p191, %p192
      %s195 = sadd.s32 %s194, 1
      %p198 = scmp.eq.s32.totalorder %s29, 1
      %p199 = scmp.ne.s32.totalorder %s194, %s196
      %p200 = scmp.eq.s32.totalorder %s29, 0
      %p201 = por %p199, %p200
      %p202 = scmp.ne.s32.totalorder %s194, %s196
      %p203 = scmp.eq.s32.totalorder %s34, 1
      %p204 = por %p202, %p203
      %p205 = scmp.ne.s32.totalorder %s196, %s197
      %p206 = scmp.eq.s32.totalorder %s34, 0
      %p207 = por %p205, %p206
      %p208 = scmp.ne.s32.totalorder %s196, %s197
      %p209 = scmp.eq.s32.totalorder %s35, 1
      %p210 = por %p208, %p209
      %p212 = scmp.ne.s32.totalorder %s197, %s211
      %p213 = scmp.eq.s32.totalorder %s35, 0
      %p214 = por %p212, %p213
      %s216 = sadd.s32 %s215, 1
      %p219 = scmp.eq.s32.totalorder %s29, 1
      %p220 = scmp.ne.s32.totalorder %s215, %s217
      %p221 = scmp.eq.s32.totalorder %s29, 0
      %p222 = por %p220, %p221
      %p223 = scmp.ne.s32.totalorder %s215, %s217
      %p224 = scmp.eq.s32.totalorder %s34, 1
      %p225 = por %p223, %p224
      %p226 = scmp.ne.s32.totalorder %s217, %s218
      %p227 = scmp.eq.s32.totalorder %s34, 0
      %p228 = por %p226, %p227
      %p229 = scmp.ne.s32.totalorder %s217, %s218
      %p230 = scmp.eq.s32.totalorder %s35, 1
      %p231 = por %p229, %p230
      %p233 = scmp.ne.s32.totalorder %s218, %s232
      %p234 = scmp.eq.s32.totalorder %s35, 0
      %p235 = por %p233, %p234
      %s237 = sadd.s32 %s236, 1
      %p240 = scmp.eq.s32.totalorder %s29, 1
      %p241 = scmp.ne.s32.totalorder %s236, %s238
      %p242 = scmp.eq.s32.totalorder %s29, 0
      %p243 = por %p241, %p242
      %p244 = scmp.ne.s32.totalorder %s236, %s238
      %p245 = scmp.eq.s32.totalorder %s34, 1
      %p246 = por %p244, %p245
      %p247 = scmp.ne.s32.totalorder %s238, %s239
      %p248 = scmp.eq.s32.totalorder %s34, 0
      %p249 = por %p247, %p248
      %p250 = scmp.ne.s32.totalorder %s238, %s239
      %p251 = scmp.eq.s32.totalorder %s35, 1
      %p252 = por %p250, %p251
      %p254 = scmp.ne.s32.totalorder %s239, %s253
      %p255 = scmp.eq.s32.totalorder %s35, 0
      %p256 = por %p254, %p255
      %s258 = sadd.s32 %s257, 1
      %p261 = scmp.eq.s32.totalorder %s29, 1
      %p262 = scmp.ne.s32.totalorder %s257, %s259
      %p263 = scmp.eq.s32.totalorder %s29, 0
      %p264 = por %p262, %p263
      %p265 = scmp.ne.s32.totalorder %s257, %s259
      %p266 = scmp.eq.s32.totalorder %s34, 1
      %p267 = por %p265, %p266
      %p268 = scmp.ne.s32.totalorder %s259, %s260
      %p269 = scmp.eq.s32.totalorder %s34, 0
      %p270 = por %p268, %p269
      %p271 = scmp.ne.s32.totalorder %s259, %s260
      %p272 = scmp.eq.s32.totalorder %s35, 1
      %p273 = por %p271, %p272
      %p275 = scmp.ne.s32.totalorder %s260, %s274
      %p276 = scmp.eq.s32.totalorder %s35, 0
      %p277 = por %p275, %p276
      %s279 = sadd.s32 %s278, 1
      %p282 = scmp.eq.s32.totalorder %s29, 1
      %p283 = scmp.ne.s32.totalorder %s278, %s280
      %p284 = scmp.eq.s32.totalorder %s29, 0
      %p285 = por %p283, %p284
      %p286 = scmp.ne.s32.totalorder %s278, %s280
      %p287 = scmp.eq.s32.totalorder %s34, 1
      %p288 = por %p286, %p287
      %p289 = scmp.ne.s32.totalorder %s280, %s281
      %p290 = scmp.eq.s32.totalorder %s34, 0
      %p291 = por %p289, %p290
      %p292 = scmp.ne.s32.totalorder %s280, %s281
      %p293 = scmp.eq.s32.totalorder %s35, 1
      %p294 = por %p292, %p293
      %p296 = scmp.ne.s32.totalorder %s281, %s295
      %p297 = scmp.eq.s32.totalorder %s35, 0
      %p298 = por %p296, %p297
      %s300 = sadd.s32 %s299, 1
      %p303 = scmp.eq.s32.totalorder %s29, 1
      %p304 = scmp.ne.s32.totalorder %s299, %s301
      %p305 = scmp.eq.s32.totalorder %s29, 0
      %p306 = por %p304, %p305
      %p307 = scmp.ne.s32.totalorder %s299, %s301
      %p308 = scmp.eq.s32.totalorder %s34, 1
      %p309 = por %p307, %p308
      %p310 = scmp.ne.s32.totalorder %s301, %s302
      %p311 = scmp.eq.s32.totalorder %s34, 0
      %p312 = por %p310, %p311
      %p313 = scmp.ne.s32.totalorder %s301, %s302
      %p314 = scmp.eq.s32.totalorder %s35, 1
      %p315 = por %p313, %p314
      %p317 = scmp.ne.s32.totalorder %s302, %s316
      %p318 = scmp.eq.s32.totalorder %s35, 0
      %p319 = por %p317, %p318
      %s321 = sadd.s32 %s320, 1
      %p324 = scmp.eq.s32.totalorder %s29, 1
      %p325 = scmp.ne.s32.totalorder %s320, %s322
      %p326 = scmp.eq.s32.totalorder %s29, 0
      %p327 = por %p325, %p326
      %p328 = scmp.ne.s32.totalorder %s320, %s322
      %p329 = scmp.eq.s32.totalorder %s34, 1
      %p330 = por %p328, %p329
      %p331 = scmp.ne.s32.totalorder %s322, %s323
      %p332 = scmp.eq.s32.totalorder %s34, 0
      %p333 = por %p331, %p332
      %p334 = scmp.ne.s32.totalorder %s322, %s323
      %p335 = scmp.eq.s32.totalorder %s35, 1
      %p336 = por %p334, %p335
      %p338 = scmp.ne.s32.totalorder %s323, %s337
      %p339 = scmp.eq.s32.totalorder %s35, 0
      %p340 = por %p338, %p339
      %s342 = sadd.s32 %s341, 1
      %p345 = scmp.eq.s32.totalorder %s29, 1
      %p346 = scmp.ne.s32.totalorder %s341, %s343
      %p347 = scmp.eq.s32.totalorder %s29, 0
      %p348 = por %p346, %p347
      %p349 = scmp.ne.s32.totalorder %s341, %s343
      %p350 = scmp.eq.s32.totalorder %s34, 1
      %p351 = por %p349, %p350
      %p352 = scmp.ne.s32.totalorder %s343, %s344
      %p353 = scmp.eq.s32.totalorder %s34, 0
      %p354 = por %p352, %p353
      %p355 = scmp.ne.s32.totalorder %s343, %s344
      %p356 = scmp.eq.s32.totalorder %s35, 1
      %p357 = por %p355, %p356
      %p359 = scmp.ne.s32.totalorder %s344, %s358
      %p360 = scmp.eq.s32.totalorder %s35, 0
      %p361 = por %p359, %p360
      %s363 = sadd.s32 %s362, 1
      %p366 = scmp.eq.s32.totalorder %s29, 1
      %p367 = scmp.ne.s32.totalorder %s362, %s364
      %p368 = scmp.eq.s32.totalorder %s29, 0
      %p369 = por %p367, %p368
      %p370 = scmp.ne.s32.totalorder %s362, %s364
      %p371 = scmp.eq.s32.totalorder %s34, 1
      %p372 = por %p370, %p371
      %p373 = scmp.ne.s32.totalorder %s364, %s365
      %p374 = scmp.eq.s32.totalorder %s34, 0
      %p375 = por %p373, %p374
      %p376 = scmp.ne.s32.totalorder %s364, %s365
      %p377 = scmp.eq.s32.totalorder %s35, 1
      %p378 = por %p376, %p377
      %p380 = scmp.ne.s32.totalorder %s365, %s379
      %p381 = scmp.eq.s32.totalorder %s35, 0
      %p382 = por %p380, %p381
      %s384 = sadd.s32 %s383, 1
      %p387 = scmp.eq.s32.totalorder %s29, 1
      %p388 = scmp.ne.s32.totalorder %s383, %s385
      %p389 = scmp.eq.s32.totalorder %s29, 0
      %p390 = por %p388, %p389
      %p391 = scmp.ne.s32.totalorder %s383, %s385
      %p392 = scmp.eq.s32.totalorder %s34, 1
      %p393 = por %p391, %p392
      %p394 = scmp.ne.s32.totalorder %s385, %s386
      %p395 = scmp.eq.s32.totalorder %s34, 0
      %p396 = por %p394, %p395
      %p397 = scmp.ne.s32.totalorder %s385, %s386
      %p398 = scmp.eq.s32.totalorder %s35, 1
      %p399 = por %p397, %p398
      %p401 = scmp.ne.s32.totalorder %s386, %s400
      %p402 = scmp.eq.s32.totalorder %s35, 0
      %p403 = por %p401, %p402
      %s405 = sadd.s32 %s404, 1
      %p408 = scmp.eq.s32.totalorder %s29, 1
      %p409 = scmp.ne.s32.totalorder %s404, %s406
      %p410 = scmp.eq.s32.totalorder %s29, 0
      %p411 = por %p409, %p410
      %p412 = scmp.ne.s32.totalorder %s404, %s406
      %p413 = scmp.eq.s32.totalorder %s34, 1
      %p414 = por %p412, %p413
      %p415 = scmp.ne.s32.totalorder %s406, %s407
      %p416 = scmp.eq.s32.totalorder %s34, 0
      %p417 = por %p415, %p416
      %p418 = scmp.ne.s32.totalorder %s406, %s407
      %p419 = scmp.eq.s32.totalorder %s35, 1
      %p420 = por %p418, %p419
      %p422 = scmp.ne.s32.totalorder %s407, %s421
      %p423 = scmp.eq.s32.totalorder %s35, 0
      %p424 = por %p422, %p423
      %s426 = sadd.s32 %s425, 1
      %p429 = scmp.eq.s32.totalorder %s29, 1
      %p430 = scmp.ne.s32.totalorder %s425, %s427
      %p431 = scmp.eq.s32.totalorder %s29, 0
      %p432 = por %p430, %p431
      %p433 = scmp.ne.s32.totalorder %s425, %s427
      %p434 = scmp.eq.s32.totalorder %s34, 1
      %p435 = por %p433, %p434
      %p436 = scmp.ne.s32.totalorder %s427, %s428
      %p437 = scmp.eq.s32.totalorder %s34, 0
      %p438 = por %p436, %p437
      %p439 = scmp.ne.s32.totalorder %s427, %s428
      %p440 = scmp.eq.s32.totalorder %s35, 1
      %p441 = por %p439, %p440
      %p443 = scmp.ne.s32.totalorder %s428, %s442
      %p444 = scmp.eq.s32.totalorder %s35, 0
      %p445 = por %p443, %p444
      %s447 = sadd.s32 %s446, 1
      %p450 = scmp.eq.s32.totalorder %s29, 1
      %p451 = scmp.ne.s32.totalorder %s446, %s448
      %p452 = scmp.eq.s32.totalorder %s29, 0
      %p453 = por %p451, %p452
      %p454 = scmp.ne.s32.totalorder %s446, %s448
      %p455 = scmp.eq.s32.totalorder %s34, 1
      %p456 = por %p454, %p455
      %p457 = scmp.ne.s32.totalorder %s448, %s449
      %p458 = scmp.eq.s32.totalorder %s34, 0
      %p459 = por %p457, %p458
      %p460 = scmp.ne.s32.totalorder %s448, %s449
      %p461 = scmp.eq.s32.totalorder %s35, 1
      %p462 = por %p460, %p461
      %p464 = scmp.ne.s32.totalorder %s449, %s463
      %p465 = scmp.eq.s32.totalorder %s35, 0
      %p466 = por %p464, %p465
      %s468 = sadd.s32 %s467, 1
      %p471 = scmp.eq.s32.totalorder %s29, 1
      %p472 = scmp.ne.s32.totalorder %s467, %s469
      %p473 = scmp.eq.s32.totalorder %s29, 0
      %p474 = por %p472, %p473
      %p475 = scmp.ne.s32.totalorder %s467, %s469
      %p476 = scmp.eq.s32.totalorder %s34, 1
      %p477 = por %p475, %p476
      %p478 = scmp.ne.s32.totalorder %s469, %s470
      %p479 = scmp.eq.s32.totalorder %s34, 0
      %p480 = por %p478, %p479
      %p481 = scmp.ne.s32.totalorder %s469, %s470
      %p482 = scmp.eq.s32.totalorder %s35, 1
      %p483 = por %p481, %p482
      %p485 = scmp.ne.s32.totalorder %s470, %s484
      %p486 = scmp.eq.s32.totalorder %s35, 0
      %p487 = por %p485, %p486
      %s489 = sadd.s32 %s488, 1
      %p492 = scmp.eq.s32.totalorder %s29, 1
      %p493 = scmp.ne.s32.totalorder %s488, %s490
      %p494 = scmp.eq.s32.totalorder %s29, 0
      %p495 = por %p493, %p494
      %p496 = scmp.ne.s32.totalorder %s488, %s490
      %p497 = scmp.eq.s32.totalorder %s34, 1
      %p498 = por %p496, %p497
      %p499 = scmp.ne.s32.totalorder %s490, %s491
      %p500 = scmp.eq.s32.totalorder %s34, 0
      %p501 = por %p499, %p500
      %p502 = scmp.ne.s32.totalorder %s490, %s491
      %p503 = scmp.eq.s32.totalorder %s35, 1
      %p504 = por %p502, %p503
      %p506 = scmp.ne.s32.totalorder %s491, %s505
      %p507 = scmp.eq.s32.totalorder %s35, 0
      %p508 = por %p506, %p507
      %s509 = ssub.s32 %s29, %s36
      %p510 = scmp.eq.s32.totalorder %s509, 0
      %s512 = sadd.s32 %s511, 1
      %s513 = scalar_select %p510, %s511, %s512
      %p516 = pneg %p510
      %p517 = scmp.eq.s32.totalorder %s29, 1
      %p518 = por %p516, %p517
      %p519 = scmp.ne.s32.totalorder %s511, %s514
      %p520 = scmp.eq.s32.totalorder %s29, 0
      %p521 = por %p519, %p520
      %p522 = scmp.ne.s32.totalorder %s511, %s514
      %p523 = scmp.eq.s32.totalorder %s34, 1
      %p524 = por %p522, %p523
      %p525 = scmp.ne.s32.totalorder %s514, %s515
      %p526 = scmp.eq.s32.totalorder %s34, 0
      %p527 = por %p525, %p526
      %p528 = scmp.ne.s32.totalorder %s514, %s515
      %p529 = scmp.eq.s32.totalorder %s35, 1
      %p530 = por %p528, %p529
      %p532 = scmp.ne.s32.totalorder %s515, %s531
      %p533 = scmp.eq.s32.totalorder %s35, 0
      %p534 = por %p532, %p533
      %p535 = scmp.le.s32.totalorder 1, %s29
      %p536 = scmp.lt.s32.totalorder %s29, 3
      %p537 = pnand %p535, %p536
      %p538 = pneg %p537
      // Predicated region
      $region9: #{transformer_forward.6} parent=5 // pred_check
        _
      $region10: #{transformer_forward.6} parent=5 // pred_check_branch
        %540 = sbr.rel (%p537) target = $region12
      $region11: #{transformer_forward.6} parent=5 // pred_region
        %s541 = ssub.s32 %s29, 1
        // Predicated region
        $region13: #{transformer_forward.6} parent=11 // pred_check
          %p542 = pneg %p102
        $region14: #{transformer_forward.6} parent=11 // pred_check_branch
          %544 = sbr.rel (%p542) target = $region16
        $region15: #{transformer_forward.6} parent=11 // pred_region
          _
        $region16: #{transformer_forward.6} parent=11 // pred_fallthru
          _
        // Predicated region
        $region17: #{transformer_forward.6} parent=11 // pred_check
          %p545 = pneg %p123
        $region18: #{transformer_forward.6} parent=11 // pred_check_branch
          %547 = sbr.rel (%p545) target = $region20
        $region19: #{transformer_forward.6} parent=11 // pred_region
          _
        $region20: #{transformer_forward.6} parent=11 // pred_fallthru
          _
        // Predicated region
        $region21: #{transformer_forward.6} parent=11 // pred_check
          %p548 = pneg %p144
        $region22: #{transformer_forward.6} parent=11 // pred_check_branch
          %550 = sbr.rel (%p548) target = $region24
        $region23: #{transformer_forward.6} parent=11 // pred_region
          _
        $region24: #{transformer_forward.6} parent=11 // pred_fallthru
          _
        // Predicated region
        $region25: #{transformer_forward.6} parent=11 // pred_check
          %p551 = pneg %p165
        $region26: #{transformer_forward.6} parent=11 // pred_check_branch
          %553 = sbr.rel (%p551) target = $region28
        $region27: #{transformer_forward.6} parent=11 // pred_region
          _
        $region28: #{transformer_forward.6} parent=11 // pred_fallthru
          _
        // Predicated region
        $region29: #{transformer_forward.6} parent=11 // pred_check
          %p554 = pneg %p186
        $region30: #{transformer_forward.6} parent=11 // pred_check_branch
          %556 = sbr.rel (%p554) target = $region32
        $region31: #{transformer_forward.6} parent=11 // pred_region
          _
        $region32: #{transformer_forward.6} parent=11 // pred_fallthru
          _
        // Predicated region
        $region33: #{transformer_forward.6} parent=11 // pred_check
          %p557 = pneg %p207
        $region34: #{transformer_forward.6} parent=11 // pred_check_branch
          %559 = sbr.rel (%p557) target = $region36
        $region35: #{transformer_forward.6} parent=11 // pred_region
          _
        $region36: #{transformer_forward.6} parent=11 // pred_fallthru
          _
        // Predicated region
        $region37: #{transformer_forward.6} parent=11 // pred_check
          %p560 = pneg %p228
        $region38: #{transformer_forward.6} parent=11 // pred_check_branch
          %562 = sbr.rel (%p560) target = $region40
        $region39: #{transformer_forward.6} parent=11 // pred_region
          _
        $region40: #{transformer_forward.6} parent=11 // pred_fallthru
          _
        // Predicated region
        $region41: #{transformer_forward.6} parent=11 // pred_check
          %p563 = pneg %p249
        $region42: #{transformer_forward.6} parent=11 // pred_check_branch
          %565 = sbr.rel (%p563) target = $region44
        $region43: #{transformer_forward.6} parent=11 // pred_region
          _
        $region44: #{transformer_forward.6} parent=11 // pred_fallthru
          _
        // Predicated region
        $region45: #{transformer_forward.6} parent=11 // pred_check
          %p566 = pneg %p270
        $region46: #{transformer_forward.6} parent=11 // pred_check_branch
          %568 = sbr.rel (%p566) target = $region48
        $region47: #{transformer_forward.6} parent=11 // pred_region
          _
        $region48: #{transformer_forward.6} parent=11 // pred_fallthru
          _
        // Predicated region
        $region49: #{transformer_forward.6} parent=11 // pred_check
          %p569 = pneg %p291
        $region50: #{transformer_forward.6} parent=11 // pred_check_branch
          %571 = sbr.rel (%p569) target = $region52
        $region51: #{transformer_forward.6} parent=11 // pred_region
          _
        $region52: #{transformer_forward.6} parent=11 // pred_fallthru
          _
        // Predicated region
        $region53: #{transformer_forward.6} parent=11 // pred_check
          %p572 = pneg %p312
        $region54: #{transformer_forward.6} parent=11 // pred_check_branch
          %574 = sbr.rel (%p572) target = $region56
        $region55: #{transformer_forward.6} parent=11 // pred_region
          _
        $region56: #{transformer_forward.6} parent=11 // pred_fallthru
          _
        // Predicated region
        $region57: #{transformer_forward.6} parent=11 // pred_check
          %p575 = pneg %p333
        $region58: #{transformer_forward.6} parent=11 // pred_check_branch
          %577 = sbr.rel (%p575) target = $region60
        $region59: #{transformer_forward.6} parent=11 // pred_region
          _
        $region60: #{transformer_forward.6} parent=11 // pred_fallthru
          _
        // Predicated region
        $region61: #{transformer_forward.6} parent=11 // pred_check
          %p578 = pneg %p354
        $region62: #{transformer_forward.6} parent=11 // pred_check_branch
          %580 = sbr.rel (%p578) target = $region64
        $region63: #{transformer_forward.6} parent=11 // pred_region
          _
        $region64: #{transformer_forward.6} parent=11 // pred_fallthru
          _
        // Predicated region
        $region65: #{transformer_forward.6} parent=11 // pred_check
          %p581 = pneg %p375
        $region66: #{transformer_forward.6} parent=11 // pred_check_branch
          %583 = sbr.rel (%p581) target = $region68
        $region67: #{transformer_forward.6} parent=11 // pred_region
          _
        $region68: #{transformer_forward.6} parent=11 // pred_fallthru
          _
        // Predicated region
        $region69: #{transformer_forward.6} parent=11 // pred_check
          %p584 = pneg %p396
        $region70: #{transformer_forward.6} parent=11 // pred_check_branch
          %586 = sbr.rel (%p584) target = $region72
        $region71: #{transformer_forward.6} parent=11 // pred_region
          _
        $region72: #{transformer_forward.6} parent=11 // pred_fallthru
          _
        // Predicated region
        $region73: #{transformer_forward.6} parent=11 // pred_check
          %p587 = pneg %p417
        $region74: #{transformer_forward.6} parent=11 // pred_check_branch
          %589 = sbr.rel (%p587) target = $region76
        $region75: #{transformer_forward.6} parent=11 // pred_region
          _
        $region76: #{transformer_forward.6} parent=11 // pred_fallthru
          _
        // Predicated region
        $region77: #{transformer_forward.6} parent=11 // pred_check
          %p590 = pneg %p438
        $region78: #{transformer_forward.6} parent=11 // pred_check_branch
          %592 = sbr.rel (%p590) target = $region80
        $region79: #{transformer_forward.6} parent=11 // pred_region
          _
        $region80: #{transformer_forward.6} parent=11 // pred_fallthru
          _
        // Predicated region
        $region81: #{transformer_forward.6} parent=11 // pred_check
          %p593 = pneg %p459
        $region82: #{transformer_forward.6} parent=11 // pred_check_branch
          %595 = sbr.rel (%p593) target = $region84
        $region83: #{transformer_forward.6} parent=11 // pred_region
          _
        $region84: #{transformer_forward.6} parent=11 // pred_fallthru
          _
        // Predicated region
        $region85: #{transformer_forward.6} parent=11 // pred_check
          %p596 = pneg %p480
        $region86: #{transformer_forward.6} parent=11 // pred_check_branch
          %598 = sbr.rel (%p596) target = $region88
        $region87: #{transformer_forward.6} parent=11 // pred_region
          _
        $region88: #{transformer_forward.6} parent=11 // pred_fallthru
          _
        // Predicated region
        $region89: #{transformer_forward.6} parent=11 // pred_check
          %p599 = pneg %p501
        $region90: #{transformer_forward.6} parent=11 // pred_check_branch
          %601 = sbr.rel (%p599) target = $region92
        $region91: #{transformer_forward.6} parent=11 // pred_region
          %s603 = ssub.s32 16, 16
          %604 = vsyncadd [#allocation3], %s603
          %s606 = sshll.u32 [#allocation2], 4
          %s607 = int_to_ptr.vmem [resolvable:$true] %s606
          %609 = dma.hbm_to_vmem [thread:$0]  %s21, 16, %s607, [#allocation3]
        $region92: #{transformer_forward.6} parent=11 // pred_fallthru
          _
      $region12: #{transformer_forward.6} parent=5 // pred_fallthru
        _
      %p610 = scmp.lt.s32.totalorder %s29, 2
      // Predicated region
      $region93: #{transformer_forward.6} parent=5 // pred_check
        %p611 = pneg %p610
      $region94: #{transformer_forward.6} parent=5 // pred_check_branch
        %613 = sbr.rel (%p611) target = $region96
      $region95: #{transformer_forward.6} parent=5 // pred_region
        // Predicated region
        $region97: #{transformer_forward.6} parent=95 // pred_check
          %p614 = pneg %p49
        $region98: #{transformer_forward.6} parent=95 // pred_check_branch
          %616 = sbr.rel (%p614) target = $region100
        $region99: #{transformer_forward.6} parent=95 // pred_region
          %p617 = scmp.lt.s32.totalorder %s29, 1
          %s618 = scalar_select %p617, %s29, 1
          %s619 = smul.addr %s618, 8
          %s620 = scalar_lea.vmem %s0, %s619
        $region100: #{transformer_forward.6} parent=95 // pred_fallthru
          _
        // Predicated region
        $region101: #{transformer_forward.6} parent=95 // pred_check
          %p621 = pneg %p75
        $region102: #{transformer_forward.6} parent=95 // pred_check_branch
          %623 = sbr.rel (%p621) target = $region104
        $region103: #{transformer_forward.6} parent=95 // pred_region
          %p624 = scmp.lt.s32.totalorder %s29, 1
          %s625 = scalar_select %p624, %s29, 1
          %s626 = smul.addr %s625, 32
          %s627 = smul.addr %s626, 8
          %s628 = scalar_lea.vmem %s1, %s627
        $region104: #{transformer_forward.6} parent=95 // pred_fallthru
          _
      $region96: #{transformer_forward.6} parent=5 // pred_fallthru
        _
      %p629 = scmp.le.s32.totalorder 1, %s29
      %p630 = scmp.lt.s32.totalorder %s29, 3
      %p631 = pnand %p629, %p630
      %p632 = pneg %p631
      // Predicated region
      $region105: #{transformer_forward.6} parent=5 // pred_check
        _
      $region106: #{transformer_forward.6} parent=5 // pred_check_branch
        %634 = sbr.rel (%p631) target = $region108
      $region107: #{transformer_forward.6} parent=5 // pred_region
        %s635 = ssub.s32 %s29, 1
        // Predicated region
        $region109: #{transformer_forward.6} parent=107 // pred_check
          %p636 = pneg %p501
        $region110: #{transformer_forward.6} parent=107 // pred_check_branch
          %638 = sbr.rel (%p636) target = $region112
        $region111: #{transformer_forward.6} parent=107 // pred_region
          %639 = dma.done [#allocation3], 16
        $region112: #{transformer_forward.6} parent=107 // pred_fallthru
          _
        %p640 = scmp.lt.s32.totalorder %s34, 1
        %s641 = scalar_select %p640, %s34, 1
        %s642 = smul.addr %s641, 8
        %s643 = scalar_lea.vmem %s0, %s642
        %p644 = pneg %p55
        %p645 = pneg %p52
        %p646 = scmp.lt.s32.totalorder %s34, 1
        %s647 = scalar_select %p646, %s34, 1
        %s648 = smul.addr %s647, 32
        %s649 = smul.addr %s648, 8
        %s650 = scalar_lea.vmem %s1, %s649
        %p651 = pneg %p81
        %p652 = pneg %p78
        %p653 = pneg %p102
        %p654 = pneg %p99
        %p655 = pneg %p123
        %p656 = pneg %p120
        %p657 = pneg %p144
        %p658 = pneg %p141
        %p659 = pneg %p165
        %p660 = pneg %p162
        %p661 = pneg %p186
        %p662 = pneg %p183
        %p663 = pneg %p207
        %p664 = pneg %p204
        %p665 = pneg %p228
        %p666 = pneg %p225
        %p667 = pneg %p249
        %p668 = pneg %p246
        %p669 = pneg %p270
        %p670 = pneg %p267
        %p671 = pneg %p291
        %p672 = pneg %p288
        %p673 = pneg %p312
        %p674 = pneg %p309
        %p675 = pneg %p333
        %p676 = pneg %p330
        %p677 = pneg %p354
        %p678 = pneg %p351
        %p679 = pneg %p375
        %p680 = pneg %p372
        %p681 = pneg %p396
        %p682 = pneg %p393
        %p683 = pneg %p417
        %p684 = pneg %p414
        %p685 = pneg %p438
        %p686 = pneg %p435
        %p687 = pneg %p459
        %p688 = pneg %p456
        %p689 = pneg %p480
        %p690 = pneg %p477
        %p691 = pneg %p501
        %p692 = pneg %p498
        %p693 = pneg %p527
        %p694 = pneg %p524
        %p695 = scmp.lt.s32.totalorder %s34, 1
        %s696 = scalar_select %p695, %s34, 1
        %s697 = smul.addr %s696, 8
        %s698 = scalar_lea.vmem %s22, %s697
        %p699 = scmp.lt.s32.totalorder %s34, 1
        %s700 = scalar_select %p699, %s34, 1
        %s701 = smul.addr %s700, 8
        %s702 = scalar_lea.vmem %s0, %s701
        %p703 = scmp.lt.s32.totalorder %s34, 1
        %s704 = scalar_select %p703, %s34, 1
        %s705 = smul.addr %s704, 32
        %s706 = smul.addr %s705, 8
        %s707 = scalar_lea.vmem %s1, %s706
        %p708 = scmp.lt.s32.totalorder %s34, 1
        %s709 = scalar_select %p708, %s34, 1
        %s710 = smul.addr %s709, 8
        %s711 = scalar_lea.vmem %s22, %s710
        %v712 = vld [vmem:[%s702] sm:$0xff]
        %v713 = vld [vmem:[%s707] sm:$0xff]
        %v714 = vld [vmem:[%s707 + $0x8] sm:$0xff]
        %v715 = vld [vmem:[%s707 + $0x10] sm:$0xff]
        %v716 = vld [vmem:[%s707 + $0x18] sm:$0xff]
        %v717 = vld [vmem:[%s707 + $0x20] sm:$0xff]
        %v718 = vld [vmem:[%s707 + $0x28] sm:$0xff]
        %v719 = vld [vmem:[%s707 + $0x30] sm:$0xff]
        %v720 = vld [vmem:[%s707 + $0x38] sm:$0xff]
        %v721 = vld [vmem:[%s707 + $0x40] sm:$0xff]
        %v722 = vld [vmem:[%s707 + $0x48] sm:$0xff]
        %v723 = vld [vmem:[%s707 + $0x50] sm:$0xff]
        %v724 = vld [vmem:[%s707 + $0x58] sm:$0xff]
        %v725 = vld [vmem:[%s707 + $0x60] sm:$0xff]
        %v726 = vld [vmem:[%s707 + $0x68] sm:$0xff]
        %v727 = vld [vmem:[%s707 + $0x70] sm:$0xff]
        %v728 = vld [vmem:[%s707 + $0x78] sm:$0xff]
        %v729 = vld [vmem:[%s707 + $0x80] sm:$0xff]
        %v730 = vld [vmem:[%s707 + $0x88] sm:$0xff]
        %v731 = vld [vmem:[%s707 + $0x90] sm:$0xff]
        %v732 = vld [vmem:[%s707 + $0x98] sm:$0xff]
        %v733 = vld [vmem:[%s707 + $0xa0] sm:$0xff]
        %v734 = vld [vmem:[%s707 + $0xa8] sm:$0xff]
        %v735 = vld [vmem:[%s707 + $0xb0] sm:$0xff]
        %v736 = vld [vmem:[%s707 + $0xb8] sm:$0xff]
        %v737 = vld [vmem:[%s707 + $0xc0] sm:$0xff]
        %v738 = vld [vmem:[%s707 + $0xc8] sm:$0xff]
        %v739 = vld [vmem:[%s707 + $0xd0] sm:$0xff]
        %v740 = vld [vmem:[%s707 + $0xd8] sm:$0xff]
        %v741 = vld [vmem:[%s707 + $0xe0] sm:$0xff]
        %v742 = vld [vmem:[%s707 + $0xe8] sm:$0xff]
        %v743 = vld [vmem:[%s707 + $0xf0] sm:$0xff]
        %v744 = vld [vmem:[%s707 + $0xf8] sm:$0xff]
        %v745 = vld [vmem:[%s2] sm:$0xff]
        %v746 = vld [vmem:[%s2 + $0x8] sm:$0xff]
        %v747 = vld [vmem:[%s2 + $0x10] sm:$0xff]
        %v748 = vld [vmem:[%s2 + $0x18] sm:$0xff]
        %v749 = vld [vmem:[%s3] sm:$0x1]
        %v751 = vlaneseq
        %v752 = vshrl.u32 %v751, 7
        %v753 = vsub.s32 0, %v752
        %v754 = vrot.slane %v749, %v753
        %vm756 = vcmask 261120
        %v758 = vsel %vm756, %v712, 0
        %760 = vmatprep.subr.mxu0 0.0
        %761 = vmatpush1.msra.mxu0 %v745
        %762 = vmatprep.subr.mxu0 0.0
        %763 = vmatpush1.msra.mxu0 %v746
        %764 = vmatprep.subr.mxu0 0.0
        %765 = vmatpush1.msra.mxu0 %v747
        %766 = vmatprep.subr.mxu0 0.0
        %767 = vmatpush1.msra.mxu0 %v748
        %768 = vmatprep.subr.mxu0 0.0
        %769 = vmatpush1.msra.mxu0 0.0
        %770 = vmatprep.subr.mxu0 0.0
        %771 = vmatpush1.msra.mxu0 0.0
        %772 = vmatprep.subr.mxu0 0.0
        %773 = vmatpush1.msra.mxu0 0.0
        %774 = vmatprep.subr.mxu0 0.0
        %775 = vmatpush1.msra.mxu0 0.0
        %776 = vmatprep.subr.mxu0 0.0
        %777 = vmatpush1.msra.mxu0 0.0
        %778 = vmatprep.subr.mxu0 0.0
        %779 = vmatpush1.msra.mxu0 0.0
        %780 = vmatprep.subr.mxu0 0.0
        %781 = vmatpush1.msra.mxu0 0.0
        %782 = vmatprep.subr.mxu0 0.0
        %783 = vmatpush1.msra.mxu0 0.0
        %784 = vmatprep.subr.mxu0 0.0
        %785 = vmatpush1.msra.mxu0 0.0
        %786 = vmatprep.subr.mxu0 0.0
        %787 = vmatpush1.msra.mxu0 0.0
        %788 = vmatprep.subr.mxu0 0.0
        %789 = vmatpush1.msra.mxu0 0.0
        %790 = vmatprep.subr.mxu0 0.0
        %791 = vmatpush1.msra.mxu0 0.0
        %792 = vmatprep.subr.mxu0 0.0
        %793 = vmatpush1.msra.mxu0 0.0
        %794 = vmatprep.subr.mxu0 0.0
        %795 = vmatpush1.msra.mxu0 0.0
        %796 = vmatprep.subr.mxu0 0.0
        %797 = vmatpush1.msra.mxu0 0.0
        %798 = vmatprep.subr.mxu0 0.0
        %799 = vmatpush1.msra.mxu0 0.0
        %800 = vmatprep.subr.mxu0 0.0
        %801 = vmatpush1.msra.mxu0 0.0
        %802 = vmatprep.subr.mxu0 0.0
        %803 = vmatpush1.msra.mxu0 0.0
        %804 = vmatprep.subr.mxu0 0.0
        %805 = vmatpush1.msra.mxu0 0.0
        %806 = vmatprep.subr.mxu0 0.0
        %807 = vmatpush1.msra.mxu0 0.0
        %808 = vmatprep.subr.mxu0 0.0
        %809 = vmatpush1.msra.mxu0 0.0
        %810 = vmatprep.subr.mxu0 0.0
        %811 = vmatpush1.msra.mxu0 0.0
        %812 = vmatprep.subr.mxu0 0.0
        %813 = vmatpush1.msra.mxu0 0.0
        %814 = vmatprep.subr.mxu0 0.0
        %815 = vmatpush1.msra.mxu0 0.0
        %816 = vmatprep.subr.mxu0 0.0
        %817 = vmatpush1.msra.mxu0 0.0
        %818 = vmatprep.subr.mxu0 0.0
        %819 = vmatpush1.msra.mxu0 0.0
        %820 = vmatprep.subr.mxu0 0.0
        %821 = vmatpush1.msra.mxu0 0.0
        %822 = vmatprep.subr.mxu0 0.0
        %823 = vmatpush1.msra.mxu0 0.0
        %824 = vmatprep.mubr.f32.mxu0 0.0
        %825 = vmatmul.mubr.f32.gmra.mrb[0].mxu0 %v758
        %v826 = vpop.f32.mrb[0].mxu0
        %v827 = vadd.f32 %v754, %v826
        %v828 = vpop.f32.mrb[0].mxu0
        %829 = vdwg.mxu0
        %v830 = vld [vmem:[%s4] sm:$0xff]
        %v831 = vld [vmem:[%s4 + $0x8] sm:$0xff]
        %v832 = vld [vmem:[%s4 + $0x10] sm:$0xff]
        %v833 = vld [vmem:[%s4 + $0x18] sm:$0xff]
        %v834 = vld [vmem:[%s5] sm:$0x1]
        %836 = vrot.lane.b32.xlu0 %v827, 96
        %v837 = vpop.permute.xlu0 %836
        %vm838 = vcmask 64512
        %v839 = vsel %vm838, %v827, 0
        %v841 = vsel %vm838, %v837, 0
        %843 = vmatprep.subr.mxu0 0.0
        %844 = vmatpush1.xpose.msra.mxu0 %v841
        %845 = vmatprep.subr.mxu0 0.0
        %846 = vmatpush1.xpose.msra.mxu0 0.0
        %847 = vmatprep.subr.mxu0 0.0
        %848 = vmatpush1.xpose.msra.mxu0 0.0
        %849 = vmatprep.subr.mxu0 0.0
        %850 = vmatpush1.xpose.msra.mxu0 0.0
        %851 = vmatprep.subr.mxu0 0.0
        %852 = vmatpush1.xpose.msra.mxu0 0.0
        %853 = vmatprep.subr.mxu0 0.0
        %854 = vmatpush1.xpose.msra.mxu0 0.0
        %855 = vmatprep.subr.mxu0 0.0
        %856 = vmatpush1.xpose.msra.mxu0 0.0
        %857 = vmatprep.subr.mxu0 0.0
        %858 = vmatpush1.xpose.msra.mxu0 0.0
        %859 = vmatprep.subr.mxu0 0.0
        %860 = vmatpush1.xpose.msra.mxu0 0.0
        %861 = vmatprep.subr.mxu0 0.0
        %862 = vmatpush1.xpose.msra.mxu0 0.0
        %863 = vmatprep.subr.mxu0 0.0
        %864 = vmatpush1.xpose.msra.mxu0 0.0
        %865 = vmatprep.subr.mxu0 0.0
        %866 = vmatpush1.xpose.msra.mxu0 0.0
        %867 = vmatprep.subr.mxu0 0.0
        %868 = vmatpush1.xpose.msra.mxu0 0.0
        %869 = vmatprep.subr.mxu0 0.0
        %870 = vmatpush1.xpose.msra.mxu0 0.0
        %871 = vmatprep.subr.mxu0 0.0
        %872 = vmatpush1.xpose.msra.mxu0 0.0
        %873 = vmatprep.subr.mxu0 0.0
        %874 = vmatpush1.xpose.msra.mxu0 0.0
        %875 = vmatprep.subr.mxu0 0.0
        %876 = vmatpush1.xpose.msra.mxu0 0.0
        %877 = vmatprep.subr.mxu0 0.0
        %878 = vmatpush1.xpose.msra.mxu0 0.0
        %879 = vmatprep.subr.mxu0 0.0
        %880 = vmatpush1.xpose.msra.mxu0 0.0
        %881 = vmatprep.subr.mxu0 0.0
        %882 = vmatpush1.xpose.msra.mxu0 0.0
        %883 = vmatprep.subr.mxu0 0.0
        %884 = vmatpush1.xpose.msra.mxu0 0.0
        %885 = vmatprep.subr.mxu0 0.0
        %886 = vmatpush1.xpose.msra.mxu0 0.0
        %887 = vmatprep.subr.mxu0 0.0
        %888 = vmatpush1.xpose.msra.mxu0 0.0
        %889 = vmatprep.subr.mxu0 0.0
        %890 = vmatpush1.xpose.msra.mxu0 0.0
        %891 = vmatprep.subr.mxu0 0.0
        %892 = vmatpush1.xpose.msra.mxu0 0.0
        %893 = vmatprep.subr.mxu0 0.0
        %894 = vmatpush1.xpose.msra.mxu0 0.0
        %895 = vmatprep.subr.mxu0 0.0
        %896 = vmatpush1.xpose.msra.mxu0 0.0
        %897 = vmatprep.subr.mxu0 0.0
        %898 = vmatpush1.xpose.msra.mxu0 0.0
        %899 = vmatprep.subr.mxu0 0.0
        %900 = vmatpush1.xpose.msra.mxu0 0.0
        %901 = vmatprep.subr.mxu0 0.0
        %902 = vmatpush1.xpose.msra.mxu0 0.0
        %903 = vmatprep.subr.mxu0 0.0
        %904 = vmatpush1.xpose.msra.mxu0 0.0
        %905 = vmatprep.subr.mxu0 0.0
        %906 = vmatpush1.xpose.msra.mxu0 0.0
        %907 = vmatprep.mubr.f32.mxu0 0.0
        %908 = vmatmul.mubr.f32.gmra.mrb[0].mxu0 %v839
        %v909 = vpop.f32.mrb[0].mxu0
        %v910 = vadd.f32 0.0, %v909
        %v911 = vpop.f32.mrb[0].mxu0
        %912 = vdwg.mxu0
        %v913 = vmul.f32 %v910, 0.35355338
        %v914 = vsel %vm838, %v913, -inf
        %915 = vmax.xlane.f32.xlu0 %v914
        %v916 = vpop.xlane.xlu0 %915
        %v917 = vsub.f32 %v913, %v916
        %v918 = vmul.f32 %v917, 1.442695
        %v919 = vpow.pop %v918
        %v920 = vsel %vm838, %v919, 0.0
        %921 = vadd.xlane.f32.xlu0 %v920
        %v922 = vpop.xlane.xlu0 %921
        %v923 = vrcp.pop %v922
        %v924 = vmul.f32 %v919, %v923
        %925 = vrot.lane.b32.xlu0 %v827, 64
        %v926 = vpop.permute.xlu0 %925
        %v929 = vsel %vm838, %v924, 0
        %931 = vmatprep.subr.mxu0 0.0
        %932 = vmatpush1.msra.mxu0 %v926
        %933 = vmatprep.subr.mxu0 0.0
        %934 = vmatpush1.msra.mxu0 0.0
        %935 = vmatprep.subr.mxu0 0.0
        %936 = vmatpush1.msra.mxu0 0.0
        %937 = vmatprep.subr.mxu0 0.0
        %938 = vmatpush1.msra.mxu0 0.0
        %939 = vmatprep.subr.mxu0 0.0
        %940 = vmatpush1.msra.mxu0 0.0
        %941 = vmatprep.subr.mxu0 0.0
        %942 = vmatpush1.msra.mxu0 0.0
        %943 = vmatprep.subr.mxu0 0.0
        %944 = vmatpush1.msra.mxu0 0.0
        %945 = vmatprep.subr.mxu0 0.0
        %946 = vmatpush1.msra.mxu0 0.0
        %947 = vmatprep.subr.mxu0 0.0
        %948 = vmatpush1.msra.mxu0 0.0
        %949 = vmatprep.subr.mxu0 0.0
        %950 = vmatpush1.msra.mxu0 0.0
        %951 = vmatprep.subr.mxu0 0.0
        %952 = vmatpush1.msra.mxu0 0.0
        %953 = vmatprep.subr.mxu0 0.0
        %954 = vmatpush1.msra.mxu0 0.0
        %955 = vmatprep.subr.mxu0 0.0
        %956 = vmatpush1.msra.mxu0 0.0
        %957 = vmatprep.subr.mxu0 0.0
        %958 = vmatpush1.msra.mxu0 0.0
        %959 = vmatprep.subr.mxu0 0.0
        %960 = vmatpush1.msra.mxu0 0.0
        %961 = vmatprep.subr.mxu0 0.0
        %962 = vmatpush1.msra.mxu0 0.0
        %963 = vmatprep.subr.mxu0 0.0
        %964 = vmatpush1.msra.mxu0 0.0
        %965 = vmatprep.subr.mxu0 0.0
        %966 = vmatpush1.msra.mxu0 0.0
        %967 = vmatprep.subr.mxu0 0.0
        %968 = vmatpush1.msra.mxu0 0.0
        %969 = vmatprep.subr.mxu0 0.0
        %970 = vmatpush1.msra.mxu0 0.0
        %971 = vmatprep.subr.mxu0 0.0
        %972 = vmatpush1.msra.mxu0 0.0
        %973 = vmatprep.subr.mxu0 0.0
        %974 = vmatpush1.msra.mxu0 0.0
        %975 = vmatprep.subr.mxu0 0.0
        %976 = vmatpush1.msra.mxu0 0.0
        %977 = vmatprep.subr.mxu0 0.0
        %978 = vmatpush1.msra.mxu0 0.0
        %979 = vmatprep.subr.mxu0 0.0
        %980 = vmatpush1.msra.mxu0 0.0
        %981 = vmatprep.subr.mxu0 0.0
        %982 = vmatpush1.msra.mxu0 0.0
        %983 = vmatprep.subr.mxu0 0.0
        %984 = vmatpush1.msra.mxu0 0.0
        %985 = vmatprep.subr.mxu0 0.0
        %986 = vmatpush1.msra.mxu0 0.0
        %987 = vmatprep.subr.mxu0 0.0
        %988 = vmatpush1.msra.mxu0 0.0
        %989 = vmatprep.subr.mxu0 0.0
        %990 = vmatpush1.msra.mxu0 0.0
        %991 = vmatprep.subr.mxu0 0.0
        %992 = vmatpush1.msra.mxu0 0.0
        %993 = vmatprep.subr.mxu0 0.0
        %994 = vmatpush1.msra.mxu0 0.0
        %995 = vmatprep.mubr.f32.mxu0 0.0
        %996 = vmatmul.mubr.f32.gmra.mrb[0].mxu0 %v929
        %v997 = vpop.f32.mrb[0].mxu0
        %v998 = vadd.f32 0.0, %v997
        %v999 = vpop.f32.mrb[0].mxu0
        %1000 = vdwg.mxu0
        %1001 = vrot.lane.b32.xlu0 %v827, 120
        %v1002 = vpop.permute.xlu0 %1001
        %1003 = vrot.lane.b32.xlu0 %v827, 88
        %v1004 = vpop.permute.xlu0 %1003
        %v1005 = vsel %vm838, %v1002, 0
        %v1007 = vsel %vm838, %v1004, 0
        %1009 = vmatprep.subr.mxu0 0.0
        %1010 = vmatpush1.xpose.msra.mxu0 %v1007
        %1011 = vmatprep.subr.mxu0 0.0
        %1012 = vmatpush1.xpose.msra.mxu0 0.0
        %1013 = vmatprep.subr.mxu0 0.0
        %1014 = vmatpush1.xpose.msra.mxu0 0.0
        %1015 = vmatprep.subr.mxu0 0.0
        %1016 = vmatpush1.xpose.msra.mxu0 0.0
        %1017 = vmatprep.subr.mxu0 0.0
        %1018 = vmatpush1.xpose.msra.mxu0 0.0
        %1019 = vmatprep.subr.mxu0 0.0
        %1020 = vmatpush1.xpose.msra.mxu0 0.0
        %1021 = vmatprep.subr.mxu0 0.0
        %1022 = vmatpush1.xpose.msra.mxu0 0.0
        %1023 = vmatprep.subr.mxu0 0.0
        %1024 = vmatpush1.xpose.msra.mxu0 0.0
        %1025 = vmatprep.subr.mxu0 0.0
        %1026 = vmatpush1.xpose.msra.mxu0 0.0
        %1027 = vmatprep.subr.mxu0 0.0
        %1028 = vmatpush1.xpose.msra.mxu0 0.0
        %1029 = vmatprep.subr.mxu0 0.0
        %1030 = vmatpush1.xpose.msra.mxu0 0.0
        %1031 = vmatprep.subr.mxu0 0.0
        %1032 = vmatpush1.xpose.msra.mxu0 0.0
        %1033 = vmatprep.subr.mxu0 0.0
        %1034 = vmatpush1.xpose.msra.mxu0 0.0
        %1035 = vmatprep.subr.mxu0 0.0
        %1036 = vmatpush1.xpose.msra.mxu0 0.0
        %1037 = vmatprep.subr.mxu0 0.0
        %1038 = vmatpush1.xpose.msra.mxu0 0.0
        %1039 = vmatprep.subr.mxu0 0.0
        %1040 = vmatpush1.xpose.msra.mxu0 0.0
        %1041 = vmatprep.subr.mxu0 0.0
        %1042 = vmatpush1.xpose.msra.mxu0 0.0
        %1043 = vmatprep.subr.mxu0 0.0
        %1044 = vmatpush1.xpose.msra.mxu0 0.0
        %1045 = vmatprep.subr.mxu0 0.0
        %1046 = vmatpush1.xpose.msra.mxu0 0.0
        %1047 = vmatprep.subr.mxu0 0.0
        %1048 = vmatpush1.xpose.msra.mxu0 0.0
        %1049 = vmatprep.subr.mxu0 0.0
        %1050 = vmatpush1.xpose.msra.mxu0 0.0
        %1051 = vmatprep.subr.mxu0 0.0
        %1052 = vmatpush1.xpose.msra.mxu0 0.0
        %1053 = vmatprep.subr.mxu0 0.0
        %1054 = vmatpush1.xpose.msra.mxu0 0.0
        %1055 = vmatprep.subr.mxu0 0.0
        %1056 = vmatpush1.xpose.msra.mxu0 0.0
        %1057 = vmatprep.subr.mxu0 0.0
        %1058 = vmatpush1.xpose.msra.mxu0 0.0
        %1059 = vmatprep.subr.mxu0 0.0
        %1060 = vmatpush1.xpose.msra.mxu0 0.0
        %1061 = vmatprep.subr.mxu0 0.0
        %1062 = vmatpush1.xpose.msra.mxu0 0.0
        %1063 = vmatprep.subr.mxu0 0.0
        %1064 = vmatpush1.xpose.msra.mxu0 0.0
        %1065 = vmatprep.subr.mxu0 0.0
        %1066 = vmatpush1.xpose.msra.mxu0 0.0
        %1067 = vmatprep.subr.mxu0 0.0
        %1068 = vmatpush1.xpose.msra.mxu0 0.0
        %1069 = vmatprep.subr.mxu0 0.0
        %1070 = vmatpush1.xpose.msra.mxu0 0.0
        %1071 = vmatprep.subr.mxu0 0.0
        %1072 = vmatpush1.xpose.msra.mxu0 0.0
        %1073 = vmatprep.mubr.f32.mxu0 0.0
        %1074 = vmatmul.mubr.f32.gmra.mrb[0].mxu0 %v1005
        %v1075 = vpop.f32.mrb[0].mxu0
        %v1076 = vadd.f32 0.0, %v1075
        %v1077 = vpop.f32.mrb[0].mxu0
        %1078 = vdwg.mxu0
        %v1079 = vmul.f32 %v1076, 0.35355338
        %v1080 = vsel %vm838, %v1079, -inf
        %1081 = vmax.xlane.f32.xlu0 %v1080
        %v1082 = vpop.xlane.xlu0 %1081
        %v1083 = vsub.f32 %v1079, %v1082
        %v1084 = vmul.f32 %v1083, 1.442695
        %v1085 = vpow.pop %v1084
        %v1086 = vsel %vm838, %v1085, 0.0
        %1087 = vadd.xlane.f32.xlu0 %v1086
        %v1088 = vpop.xlane.xlu0 %1087
        %v1089 = vrcp.pop %v1088
        %v1090 = vmul.f32 %v1085, %v1089
        %1091 = vrot.lane.b32.xlu0 %v827, 56
        %v1092 = vpop.permute.xlu0 %1091
        %v1095 = vsel %vm838, %v1090, 0
        %1097 = vmatprep.subr.mxu0 0.0
        %1098 = vmatpush1.msra.mxu0 %v1092
        %1099 = vmatprep.subr.mxu0 0.0
        %1100 = vmatpush1.msra.mxu0 0.0
        %1101 = vmatprep.subr.mxu0 0.0
        %1102 = vmatpush1.msra.mxu0 0.0
        %1103 = vmatprep.subr.mxu0 0.0
        %1104 = vmatpush1.msra.mxu0 0.0
        %1105 = vmatprep.subr.mxu0 0.0
        %1106 = vmatpush1.msra.mxu0 0.0
        %1107 = vmatprep.subr.mxu0 0.0
        %1108 = vmatpush1.msra.mxu0 0.0
        %1109 = vmatprep.subr.mxu0 0.0
        %1110 = vmatpush1.msra.mxu0 0.0
        %1111 = vmatprep.subr.mxu0 0.0
        %1112 = vmatpush1.msra.mxu0 0.0
        %1113 = vmatprep.subr.mxu0 0.0
        %1114 = vmatpush1.msra.mxu0 0.0
        %1115 = vmatprep.subr.mxu0 0.0
        %1116 = vmatpush1.msra.mxu0 0.0
        %1117 = vmatprep.subr.mxu0 0.0
        %1118 = vmatpush1.msra.mxu0 0.0
        %1119 = vmatprep.subr.mxu0 0.0
        %1120 = vmatpush1.msra.mxu0 0.0
        %1121 = vmatprep.subr.mxu0 0.0
        %1122 = vmatpush1.msra.mxu0 0.0
        %1123 = vmatprep.subr.mxu0 0.0
        %1124 = vmatpush1.msra.mxu0 0.0
        %1125 = vmatprep.subr.mxu0 0.0
        %1126 = vmatpush1.msra.mxu0 0.0
        %1127 = vmatprep.subr.mxu0 0.0
        %1128 = vmatpush1.msra.mxu0 0.0
        %1129 = vmatprep.subr.mxu0 0.0
        %1130 = vmatpush1.msra.mxu0 0.0
        %1131 = vmatprep.subr.mxu0 0.0
        %1132 = vmatpush1.msra.mxu0 0.0
        %1133 = vmatprep.subr.mxu0 0.0
        %1134 = vmatpush1.msra.mxu0 0.0
        %1135 = vmatprep.subr.mxu0 0.0
        %1136 = vmatpush1.msra.mxu0 0.0
        %1137 = vmatprep.subr.mxu0 0.0
        %1138 = vmatpush1.msra.mxu0 0.0
        %1139 = vmatprep.subr.mxu0 0.0
        %1140 = vmatpush1.msra.mxu0 0.0
        %1141 = vmatprep.subr.mxu0 0.0
        %1142 = vmatpush1.msra.mxu0 0.0
        %1143 = vmatprep.subr.mxu0 0.0
        %1144 = vmatpush1.msra.mxu0 0.0
        %1145 = vmatprep.subr.mxu0 0.0
        %1146 = vmatpush1.msra.mxu0 0.0
        %1147 = vmatprep.subr.mxu0 0.0
        %1148 = vmatpush1.msra.mxu0 0.0
        %1149 = vmatprep.subr.mxu0 0.0
        %1150 = vmatpush1.msra.mxu0 0.0
        %1151 = vmatprep.subr.mxu0 0.0
        %1152 = vmatpush1.msra.mxu0 0.0
        %1153 = vmatprep.subr.mxu0 0.0
        %1154 = vmatpush1.msra.mxu0 0.0
        %1155 = vmatprep.subr.mxu0 0.0
        %1156 = vmatpush1.msra.mxu0 0.0
        %1157 = vmatprep.subr.mxu0 0.0
        %1158 = vmatpush1.msra.mxu0 0.0
        %1159 = vmatprep.subr.mxu0 0.0
        %1160 = vmatpush1.msra.mxu0 0.0
        %1161 = vmatprep.mubr.f32.mxu0 0.0
        %1162 = vmatmul.mubr.f32.gmra.mrb[0].mxu0 %v1095
        %v1163 = vpop.f32.mrb[0].mxu0
        %v1164 = vadd.f32 0.0, %v1163
        %v1165 = vpop.f32.mrb[0].mxu0
        %1166 = vdwg.mxu0
        %v1168 = vsel %vm838, %v1164, 0
        %1170 = vmatprep.subr.mxu0 0.0
        %1171 = vmatpush1.msra.mxu0 %v831
        %1172 = vmatprep.subr.mxu0 0.0
        %1173 = vmatpush1.msra.mxu0 0.0
        %1174 = vmatprep.subr.mxu0 0.0
        %1175 = vmatpush1.msra.mxu0 0.0
        %1176 = vmatprep.subr.mxu0 0.0
        %1177 = vmatpush1.msra.mxu0 0.0
        %1178 = vmatprep.subr.mxu0 0.0
        %1179 = vmatpush1.msra.mxu0 0.0
        %1180 = vmatprep.subr.mxu0 0.0
        %1181 = vmatpush1.msra.mxu0 0.0
        %1182 = vmatprep.subr.mxu0 0.0
        %1183 = vmatpush1.msra.mxu0 0.0
        %1184 = vmatprep.subr.mxu0 0.0
        %1185 = vmatpush1.msra.mxu0 0.0
        %1186 = vmatprep.subr.mxu0 0.0
        %1187 = vmatpush1.msra.mxu0 0.0
        %1188 = vmatprep.subr.mxu0 0.0
        %1189 = vmatpush1.msra.mxu0 0.0
        %1190 = vmatprep.subr.mxu0 0.0
        %1191 = vmatpush1.msra.mxu0 0.0
        %1192 = vmatprep.subr.mxu0 0.0
        %1193 = vmatpush1.msra.mxu0 0.0
        %1194 = vmatprep.subr.mxu0 0.0
        %1195 = vmatpush1.msra.mxu0 0.0
        %1196 = vmatprep.subr.mxu0 0.0
        %1197 = vmatpush1.msra.mxu0 0.0
        %1198 = vmatprep.subr.mxu0 0.0
        %1199 = vmatpush1.msra.mxu0 0.0
        %1200 = vmatprep.subr.mxu0 0.0
        %1201 = vmatpush1.msra.mxu0 0.0
        %1202 = vmatprep.subr.mxu0 0.0
        %1203 = vmatpush1.msra.mxu0 0.0
        %1204 = vmatprep.subr.mxu0 0.0
        %1205 = vmatpush1.msra.mxu0 0.0
        %1206 = vmatprep.subr.mxu0 0.0
        %1207 = vmatpush1.msra.mxu0 0.0
        %1208 = vmatprep.subr.mxu0 0.0
        %1209 = vmatpush1.msra.mxu0 0.0
        %1210 = vmatprep.subr.mxu0 0.0
        %1211 = vmatpush1.msra.mxu0 0.0
        %1212 = vmatprep.subr.mxu0 0.0
        %1213 = vmatpush1.msra.mxu0 0.0
        %1214 = vmatprep.subr.mxu0 0.0
        %1215 = vmatpush1.msra.mxu0 0.0
        %1216 = vmatprep.subr.mxu0 0.0
        %1217 = vmatpush1.msra.mxu0 0.0
        %1218 = vmatprep.subr.mxu0 0.0
        %1219 = vmatpush1.msra.mxu0 0.0
        %1220 = vmatprep.subr.mxu0 0.0
        %1221 = vmatpush1.msra.mxu0 0.0
        %1222 = vmatprep.subr.mxu0 0.0
        %1223 = vmatpush1.msra.mxu0 0.0
        %1224 = vmatprep.subr.mxu0 0.0
        %1225 = vmatpush1.msra.mxu0 0.0
        %1226 = vmatprep.subr.mxu0 0.0
        %1227 = vmatpush1.msra.mxu0 0.0
        %1228 = vmatprep.subr.mxu0 0.0
        %1229 = vmatpush1.msra.mxu0 0.0
        %1230 = vmatprep.subr.mxu0 0.0
        %1231 = vmatpush1.msra.mxu0 0.0
        %1232 = vmatprep.subr.mxu0 0.0
        %1233 = vmatpush1.msra.mxu0 0.0
        %1234 = vmatprep.mubr.f32.mxu0 0.0
        %1235 = vmatmul.mubr.f32.gmra.mrb[0].mxu0 %v1168
        %v1236 = vpop.f32.mrb[0].mxu0
        %v1237 = vadd.f32 0.0, %v1236
        %v1238 = vpop.f32.mrb[0].mxu0
        %1239 = vdwg.mxu0
        %v1241 = vsel %vm838, %v998, 0
        %1243 = vmatprep.subr.mxu0 0.0
        %1244 = vmatpush1.msra.mxu0 %v830
        %1245 = vmatprep.subr.mxu0 0.0
        %1246 = vmatpush1.msra.mxu0 0.0
        %1247 = vmatprep.subr.mxu0 0.0
        %1248 = vmatpush1.msra.mxu0 0.0
        %1249 = vmatprep.subr.mxu0 0.0
        %1250 = vmatpush1.msra.mxu0 0.0
        %1251 = vmatprep.subr.mxu0 0.0
        %1252 = vmatpush1.msra.mxu0 0.0
        %1253 = vmatprep.subr.mxu0 0.0
        %1254 = vmatpush1.msra.mxu0 0.0
        %1255 = vmatprep.subr.mxu0 0.0
        %1256 = vmatpush1.msra.mxu0 0.0
        %1257 = vmatprep.subr.mxu0 0.0
        %1258 = vmatpush1.msra.mxu0 0.0
        %1259 = vmatprep.subr.mxu0 0.0
        %1260 = vmatpush1.msra.mxu0 0.0
        %1261 = vmatprep.subr.mxu0 0.0
        %1262 = vmatpush1.msra.mxu0 0.0
        %1263 = vmatprep.subr.mxu0 0.0
        %1264 = vmatpush1.msra.mxu0 0.0
        %1265 = vmatprep.subr.mxu0 0.0
        %1266 = vmatpush1.msra.mxu0 0.0
        %1267 = vmatprep.subr.mxu0 0.0
        %1268 = vmatpush1.msra.mxu0 0.0
        %1269 = vmatprep.subr.mxu0 0.0
        %1270 = vmatpush1.msra.mxu0 0.0
        %1271 = vmatprep.subr.mxu0 0.0
        %1272 = vmatpush1.msra.mxu0 0.0
        %1273 = vmatprep.subr.mxu0 0.0
        %1274 = vmatpush1.msra.mxu0 0.0
        %1275 = vmatprep.subr.mxu0 0.0
        %1276 = vmatpush1.msra.mxu0 0.0
        %1277 = vmatprep.subr.mxu0 0.0
        %1278 = vmatpush1.msra.mxu0 0.0
        %1279 = vmatprep.subr.mxu0 0.0
        %1280 = vmatpush1.msra.mxu0 0.0
        %1281 = vmatprep.subr.mxu0 0.0
        %1282 = vmatpush1.msra.mxu0 0.0
        %1283 = vmatprep.subr.mxu0 0.0
        %1284 = vmatpush1.msra.mxu0 0.0
        %1285 = vmatprep.subr.mxu0 0.0
        %1286 = vmatpush1.msra.mxu0 0.0
        %1287 = vmatprep.subr.mxu0 0.0
        %1288 = vmatpush1.msra.mxu0 0.0
        %1289 = vmatprep.subr.mxu0 0.0
        %1290 = vmatpush1.msra.mxu0 0.0
        %1291 = vmatprep.subr.mxu0 0.0
        %1292 = vmatpush1.msra.mxu0 0.0
        %1293 = vmatprep.subr.mxu0 0.0
        %1294 = vmatpush1.msra.mxu0 0.0
        %1295 = vmatprep.subr.mxu0 0.0
        %1296 = vmatpush1.msra.mxu0 0.0
        %1297 = vmatprep.subr.mxu0 0.0
        %1298 = vmatpush1.msra.mxu0 0.0
        %1299 = vmatprep.subr.mxu0 0.0
        %1300 = vmatpush1.msra.mxu0 0.0
        %1301 = vmatprep.subr.mxu0 0.0
        %1302 = vmatpush1.msra.mxu0 0.0
        %1303 = vmatprep.subr.mxu0 0.0
        %1304 = vmatpush1.msra.mxu0 0.0
        %1305 = vmatprep.subr.mxu0 0.0
        %1306 = vmatpush1.msra.mxu0 0.0
        %1307 = vmatprep.mubr.f32.mxu0 0.0
        %1308 = vmatmul.mubr.f32.gmra.mrb[0].mxu0 %v1241
        %v1309 = vpop.f32.mrb[0].mxu0
        %v1310 = vadd.f32 %v1237, %v1309
        %v1311 = vpop.f32.mrb[0].mxu0
        %1312 = vdwg.mxu0
        %1313 = vrot.lane.b32.xlu0 %v827, 112
        %v1314 = vpop.permute.xlu0 %1313
        %1315 = vrot.lane.b32.xlu0 %v827, 80
        %v1316 = vpop.permute.xlu0 %1315
        %v1317 = vsel %vm838, %v1314, 0
        %v1319 = vsel %vm838, %v1316, 0
        %1321 = vmatprep.subr.mxu0 0.0
        %1322 = vmatpush1.xpose.msra.mxu0 %v1319
        %1323 = vmatprep.subr.mxu0 0.0
        %1324 = vmatpush1.xpose.msra.mxu0 0.0
        %1325 = vmatprep.subr.mxu0 0.0
        %1326 = vmatpush1.xpose.msra.mxu0 0.0
        %1327 = vmatprep.subr.mxu0 0.0
        %1328 = vmatpush1.xpose.msra.mxu0 0.0
        %1329 = vmatprep.subr.mxu0 0.0
        %1330 = vmatpush1.xpose.msra.mxu0 0.0
        %1331 = vmatprep.subr.mxu0 0.0
        %1332 = vmatpush1.xpose.msra.mxu0 0.0
        %1333 = vmatprep.subr.mxu0 0.0
        %1334 = vmatpush1.xpose.msra.mxu0 0.0
        %1335 = vmatprep.subr.mxu0 0.0
        %1336 = vmatpush1.xpose.msra.mxu0 0.0
        %1337 = vmatprep.subr.mxu0 0.0
        %1338 = vmatpush1.xpose.msra.mxu0 0.0
        %1339 = vmatprep.subr.mxu0 0.0
        %1340 = vmatpush1.xpose.msra.mxu0 0.0
        %1341 = vmatprep.subr.mxu0 0.0
        %1342 = vmatpush1.xpose.msra.mxu0 0.0
        %1343 = vmatprep.subr.mxu0 0.0
        %1344 = vmatpush1.xpose.msra.mxu0 0.0
        %1345 = vmatprep.subr.mxu0 0.0
        %1346 = vmatpush1.xpose.msra.mxu0 0.0
        %1347 = vmatprep.subr.mxu0 0.0
        %1348 = vmatpush1.xpose.msra.mxu0 0.0
        %1349 = vmatprep.subr.mxu0 0.0
        %1350 = vmatpush1.xpose.msra.mxu0 0.0
        %1351 = vmatprep.subr.mxu0 0.0
        %1352 = vmatpush1.xpose.msra.mxu0 0.0
        %1353 = vmatprep.subr.mxu0 0.0
        %1354 = vmatpush1.xpose.msra.mxu0 0.0
        %1355 = vmatprep.subr.mxu0 0.0
        %1356 = vmatpush1.xpose.msra.mxu0 0.0
        %1357 = vmatprep.subr.mxu0 0.0
        %1358 = vmatpush1.xpose.msra.mxu0 0.0
        %1359 = vmatprep.subr.mxu0 0.0
        %1360 = vmatpush1.xpose.msra.mxu0 0.0
        %1361 = vmatprep.subr.mxu0 0.0
        %1362 = vmatpush1.xpose.msra.mxu0 0.0
        %1363 = vmatprep.subr.mxu0 0.0
        %1364 = vmatpush1.xpose.msra.mxu0 0.0
        %1365 = vmatprep.subr.mxu0 0.0
        %1366 = vmatpush1.xpose.msra.mxu0 0.0
        %1367 = vmatprep.subr.mxu0 0.0
        %1368 = vmatpush1.xpose.msra.mxu0 0.0
        %1369 = vmatprep.subr.mxu0 0.0
        %1370 = vmatpush1.xpose.msra.mxu0 0.0
        %1371 = vmatprep.subr.mxu0 0.0
        %1372 = vmatpush1.xpose.msra.mxu0 0.0
        %1373 = vmatprep.subr.mxu0 0.0
        %1374 = vmatpush1.xpose.msra.mxu0 0.0
        %1375 = vmatprep.subr.mxu0 0.0
        %1376 = vmatpush1.xpose.msra.mxu0 0.0
        %1377 = vmatprep.subr.mxu0 0.0
        %1378 = vmatpush1.xpose.msra.mxu0 0.0
        %1379 = vmatprep.subr.mxu0 0.0
        %1380 = vmatpush1.xpose.msra.mxu0 0.0
        %1381 = vmatprep.subr.mxu0 0.0
        %1382 = vmatpush1.xpose.msra.mxu0 0.0
        %1383 = vmatprep.subr.mxu0 0.0
        %1384 = vmatpush1.xpose.msra.mxu0 0.0
        %1385 = vmatprep.mubr.f32.mxu0 0.0
        %1386 = vmatmul.mubr.f32.gmra.mrb[0].mxu0 %v1317
        %v1387 = vpop.f32.mrb[0].mxu0
        %v1388 = vadd.f32 0.0, %v1387
        %v1389 = vpop.f32.mrb[0].mxu0
        %1390 = vdwg.mxu0
        %v1391 = vmul.f32 %v1388, 0.35355338
        %v1392 = vsel %vm838, %v1391, -inf
        %1393 = vmax.xlane.f32.xlu0 %v1392
        %v1394 = vpop.xlane.xlu0 %1393
        %v1395 = vsub.f32 %v1391, %v1394
        %v1396 = vmul.f32 %v1395, 1.442695
        %v1397 = vpow.pop %v1396
        %v1398 = vsel %vm838, %v1397, 0.0
        %1399 = vadd.xlane.f32.xlu0 %v1398
        %v1400 = vpop.xlane.xlu0 %1399
        %v1401 = vrcp.pop %v1400
        %v1402 = vmul.f32 %v1397, %v1401
        %1403 = vrot.lane.b32.xlu0 %v827, 48
        %v1404 = vpop.permute.xlu0 %1403
        %v1407 = vsel %vm838, %v1402, 0
        %1409 = vmatprep.subr.mxu0 0.0
        %1410 = vmatpush1.msra.mxu0 %v1404
        %1411 = vmatprep.subr.mxu0 0.0
        %1412 = vmatpush1.msra.mxu0 0.0
        %1413 = vmatprep.subr.mxu0 0.0
        %1414 = vmatpush1.msra.mxu0 0.0
        %1415 = vmatprep.subr.mxu0 0.0
        %1416 = vmatpush1.msra.mxu0 0.0
        %1417 = vmatprep.subr.mxu0 0.0
        %1418 = vmatpush1.msra.mxu0 0.0
        %1419 = vmatprep.subr.mxu0 0.0
        %1420 = vmatpush1.msra.mxu0 0.0
        %1421 = vmatprep.subr.mxu0 0.0
        %1422 = vmatpush1.msra.mxu0 0.0
        %1423 = vmatprep.subr.mxu0 0.0
        %1424 = vmatpush1.msra.mxu0 0.0
        %1425 = vmatprep.subr.mxu0 0.0
        %1426 = vmatpush1.msra.mxu0 0.0
        %1427 = vmatprep.subr.mxu0 0.0
        %1428 = vmatpush1.msra.mxu0 0.0
        %1429 = vmatprep.subr.mxu0 0.0
        %1430 = vmatpush1.msra.mxu0 0.0
        %1431 = vmatprep.subr.mxu0 0.0
        %1432 = vmatpush1.msra.mxu0 0.0
        %1433 = vmatprep.subr.mxu0 0.0
        %1434 = vmatpush1.msra.mxu0 0.0
        %1435 = vmatprep.subr.mxu0 0.0
        %1436 = vmatpush1.msra.mxu0 0.0
        %1437 = vmatprep.subr.mxu0 0.0
        %1438 = vmatpush1.msra.mxu0 0.0
        %1439 = vmatprep.subr.mxu0 0.0
        %1440 = vmatpush1.msra.mxu0 0.0
        %1441 = vmatprep.subr.mxu0 0.0
        %1442 = vmatpush1.msra.mxu0 0.0
        %1443 = vmatprep.subr.mxu0 0.0
        %1444 = vmatpush1.msra.mxu0 0.0
        %1445 = vmatprep.subr.mxu0 0.0
        %1446 = vmatpush1.msra.mxu0 0.0
        %1447 = vmatprep.subr.mxu0 0.0
        %1448 = vmatpush1.msra.mxu0 0.0
        %1449 = vmatprep.subr.mxu0 0.0
        %1450 = vmatpush1.msra.mxu0 0.0
        %1451 = vmatprep.subr.mxu0 0.0
        %1452 = vmatpush1.msra.mxu0 0.0
        %1453 = vmatprep.subr.mxu0 0.0
        %1454 = vmatpush1.msra.mxu0 0.0
        %1455 = vmatprep.subr.mxu0 0.0
        %1456 = vmatpush1.msra.mxu0 0.0
        %1457 = vmatprep.subr.mxu0 0.0
        %1458 = vmatpush1.msra.mxu0 0.0
        %1459 = vmatprep.subr.mxu0 0.0
        %1460 = vmatpush1.msra.mxu0 0.0
        %1461 = vmatprep.subr.mxu0 0.0
        %1462 = vmatpush1.msra.mxu0 0.0
        %1463 = vmatprep.subr.mxu0 0.0
        %1464 = vmatpush1.msra.mxu0 0.0
        %1465 = vmatprep.subr.mxu0 0.0
        %1466 = vmatpush1.msra.mxu0 0.0
        %1467 = vmatprep.subr.mxu0 0.0
        %1468 = vmatpush1.msra.mxu0 0.0
        %1469 = vmatprep.subr.mxu0 0.0
        %1470 = vmatpush1.msra.mxu0 0.0
        %1471 = vmatprep.subr.mxu0 0.0
        %1472 = vmatpush1.msra.mxu0 0.0
        %1473 = vmatprep.mubr.f32.mxu0 0.0
        %1474 = vmatmul.mubr.f32.gmra.mrb[0].mxu0 %v1407
        %v1475 = vpop.f32.mrb[0].mxu0
        %v1476 = vadd.f32 0.0, %v1475
        %v1477 = vpop.f32.mrb[0].mxu0
        %1478 = vdwg.mxu0
        %v1480 = vsel %vm838, %v1476, 0
        %1482 = vmatprep.subr.mxu0 0.0
        %1483 = vmatpush1.msra.mxu0 %v832
        %1484 = vmatprep.subr.mxu0 0.0
        %1485 = vmatpush1.msra.mxu0 0.0
        %1486 = vmatprep.subr.mxu0 0.0
        %1487 = vmatpush1.msra.mxu0 0.0
        %1488 = vmatprep.subr.mxu0 0.0
        %1489 = vmatpush1.msra.mxu0 0.0
        %1490 = vmatprep.subr.mxu0 0.0
        %1491 = vmatpush1.msra.mxu0 0.0
        %1492 = vmatprep.subr.mxu0 0.0
        %1493 = vmatpush1.msra.mxu0 0.0
        %1494 = vmatprep.subr.mxu0 0.0
        %1495 = vmatpush1.msra.mxu0 0.0
        %1496 = vmatprep.subr.mxu0 0.0
        %1497 = vmatpush1.msra.mxu0 0.0
        %1498 = vmatprep.subr.mxu0 0.0
        %1499 = vmatpush1.msra.mxu0 0.0
        %1500 = vmatprep.subr.mxu0 0.0
        %1501 = vmatpush1.msra.mxu0 0.0
        %1502 = vmatprep.subr.mxu0 0.0
        %1503 = vmatpush1.msra.mxu0 0.0
        %1504 = vmatprep.subr.mxu0 0.0
        %1505 = vmatpush1.msra.mxu0 0.0
        %1506 = vmatprep.subr.mxu0 0.0
        %1507 = vmatpush1.msra.mxu0 0.0
        %1508 = vmatprep.subr.mxu0 0.0
        %1509 = vmatpush1.msra.mxu0 0.0
        %1510 = vmatprep.subr.mxu0 0.0
        %1511 = vmatpush1.msra.mxu0 0.0
        %1512 = vmatprep.subr.mxu0 0.0
        %1513 = vmatpush1.msra.mxu0 0.0
        %1514 = vmatprep.subr.mxu0 0.0
        %1515 = vmatpush1.msra.mxu0 0.0
        %1516 = vmatprep.subr.mxu0 0.0
        %1517 = vmatpush1.msra.mxu0 0.0
        %1518 = vmatprep.subr.mxu0 0.0
        %1519 = vmatpush1.msra.mxu0 0.0
        %1520 = vmatprep.subr.mxu0 0.0
        %1521 = vmatpush1.msra.mxu0 0.0
        %1522 = vmatprep.subr.mxu0 0.0
        %1523 = vmatpush1.msra.mxu0 0.0
        %1524 = vmatprep.subr.mxu0 0.0
        %1525 = vmatpush1.msra.mxu0 0.0
        %1526 = vmatprep.subr.mxu0 0.0
        %1527 = vmatpush1.msra.mxu0 0.0
        %1528 = vmatprep.subr.mxu0 0.0
        %1529 = vmatpush1.msra.mxu0 0.0
        %1530 = vmatprep.subr.mxu0 0.0
        %1531 = vmatpush1.msra.mxu0 0.0
        %1532 = vmatprep.subr.mxu0 0.0
        %1533 = vmatpush1.msra.mxu0 0.0
        %1534 = vmatprep.subr.mxu0 0.0
        %1535 = vmatpush1.msra.mxu0 0.0
        %1536 = vmatprep.subr.mxu0 0.0
        %1537 = vmatpush1.msra.mxu0 0.0
        %1538 = vmatprep.subr.mxu0 0.0
        %1539 = vmatpush1.msra.mxu0 0.0
        %1540 = vmatprep.subr.mxu0 0.0
        %1541 = vmatpush1.msra.mxu0 0.0
        %1542 = vmatprep.subr.mxu0 0.0
        %1543 = vmatpush1.msra.mxu0 0.0
        %1544 = vmatprep.subr.mxu0 0.0
        %1545 = vmatpush1.msra.mxu0 0.0
        %1546 = vmatprep.mubr.f32.mxu0 0.0
        %1547 = vmatmul.mubr.f32.gmra.mrb[0].mxu0 %v1480
        %v1548 = vpop.f32.mrb[0].mxu0
        %v1549 = vadd.f32 0.0, %v1548
        %v1550 = vpop.f32.mrb[0].mxu0
        %1551 = vdwg.mxu0
        %v1552 = vadd.f32 %v1310, %v1549
        %1553 = vrot.lane.b32.xlu0 %v827, 104
        %v1554 = vpop.permute.xlu0 %1553
        %1555 = vrot.lane.b32.xlu0 %v827, 72
        %v1556 = vpop.permute.xlu0 %1555
        %v1557 = vsel %vm838, %v1554, 0
        %v1559 = vsel %vm838, %v1556, 0
        %1561 = vmatprep.subr.mxu0 0.0
        %1562 = vmatpush1.xpose.msra.mxu0 %v1559
        %1563 = vmatprep.subr.mxu0 0.0
        %1564 = vmatpush1.xpose.msra.mxu0 0.0
        %1565 = vmatprep.subr.mxu0 0.0
        %1566 = vmatpush1.xpose.msra.mxu0 0.0
        %1567 = vmatprep.subr.mxu0 0.0
        %1568 = vmatpush1.xpose.msra.mxu0 0.0
        %1569 = vmatprep.subr.mxu0 0.0
        %1570 = vmatpush1.xpose.msra.mxu0 0.0
        %1571 = vmatprep.subr.mxu0 0.0
        %1572 = vmatpush1.xpose.msra.mxu0 0.0
        %1573 = vmatprep.subr.mxu0 0.0
        %1574 = vmatpush1.xpose.msra.mxu0 0.0
        %1575 = vmatprep.subr.mxu0 0.0
        %1576 = vmatpush1.xpose.msra.mxu0 0.0
        %1577 = vmatprep.subr.mxu0 0.0
        %1578 = vmatpush1.xpose.msra.mxu0 0.0
        %1579 = vmatprep.subr.mxu0 0.0
        %1580 = vmatpush1.xpose.msra.mxu0 0.0
        %1581 = vmatprep.subr.mxu0 0.0
        %1582 = vmatpush1.xpose.msra.mxu0 0.0
        %1583 = vmatprep.subr.mxu0 0.0
        %1584 = vmatpush1.xpose.msra.mxu0 0.0
        %1585 = vmatprep.subr.mxu0 0.0
        %1586 = vmatpush1.xpose.msra.mxu0 0.0
        %1587 = vmatprep.subr.mxu0 0.0
        %1588 = vmatpush1.xpose.msra.mxu0 0.0
        %1589 = vmatprep.subr.mxu0 0.0
        %1590 = vmatpush1.xpose.msra.mxu0 0.0
        %1591 = vmatprep.subr.mxu0 0.0
        %1592 = vmatpush1.xpose.msra.mxu0 0.0
        %1593 = vmatprep.subr.mxu0 0.0
        %1594 = vmatpush1.xpose.msra.mxu0 0.0
        %1595 = vmatprep.subr.mxu0 0.0
        %1596 = vmatpush1.xpose.msra.mxu0 0.0
        %1597 = vmatprep.subr.mxu0 0.0
        %1598 = vmatpush1.xpose.msra.mxu0 0.0
        %1599 = vmatprep.subr.mxu0 0.0
        %1600 = vmatpush1.xpose.msra.mxu0 0.0
        %1601 = vmatprep.subr.mxu0 0.0
        %1602 = vmatpush1.xpose.msra.mxu0 0.0
        %1603 = vmatprep.subr.mxu0 0.0
        %1604 = vmatpush1.xpose.msra.mxu0 0.0
        %1605 = vmatprep.subr.mxu0 0.0
        %1606 = vmatpush1.xpose.msra.mxu0 0.0
        %1607 = vmatprep.subr.mxu0 0.0
        %1608 = vmatpush1.xpose.msra.mxu0 0.0
        %1609 = vmatprep.subr.mxu0 0.0
        %1610 = vmatpush1.xpose.msra.mxu0 0.0
        %1611 = vmatprep.subr.mxu0 0.0
        %1612 = vmatpush1.xpose.msra.mxu0 0.0
        %1613 = vmatprep.subr.mxu0 0.0
        %1614 = vmatpush1.xpose.msra.mxu0 0.0
        %1615 = vmatprep.subr.mxu0 0.0
        %1616 = vmatpush1.xpose.msra.mxu0 0.0
        %1617 = vmatprep.subr.mxu0 0.0
        %1618 = vmatpush1.xpose.msra.mxu0 0.0
        %1619 = vmatprep.subr.mxu0 0.0
        %1620 = vmatpush1.xpose.msra.mxu0 0.0
        %1621 = vmatprep.subr.mxu0 0.0
        %1622 = vmatpush1.xpose.msra.mxu0 0.0
        %1623 = vmatprep.subr.mxu0 0.0
        %1624 = vmatpush1.xpose.msra.mxu0 0.0
        %1625 = vmatprep.mubr.f32.mxu0 0.0
        %1626 = vmatmul.mubr.f32.gmra.mrb[0].mxu0 %v1557
        %v1627 = vpop.f32.mrb[0].mxu0
        %v1628 = vadd.f32 0.0, %v1627
        %v1629 = vpop.f32.mrb[0].mxu0
        %1630 = vdwg.mxu0
        %v1631 = vmul.f32 %v1628, 0.35355338
        %v1632 = vsel %vm838, %v1631, -inf
        %1633 = vmax.xlane.f32.xlu0 %v1632
        %v1634 = vpop.xlane.xlu0 %1633
        %v1635 = vsub.f32 %v1631, %v1634
        %v1636 = vmul.f32 %v1635, 1.442695
        %v1637 = vpow.pop %v1636
        %v1638 = vsel %vm838, %v1637, 0.0
        %1639 = vadd.xlane.f32.xlu0 %v1638
        %v1640 = vpop.xlane.xlu0 %1639
        %v1641 = vrcp.pop %v1640
        %v1642 = vmul.f32 %v1637, %v1641
        %1643 = vrot.lane.b32.xlu0 %v827, 40
        %v1644 = vpop.permute.xlu0 %1643
        %v1647 = vsel %vm838, %v1642, 0
        %1649 = vmatprep.subr.mxu0 0.0
        %1650 = vmatpush1.msra.mxu0 %v1644
        %1651 = vmatprep.subr.mxu0 0.0
        %1652 = vmatpush1.msra.mxu0 0.0
        %1653 = vmatprep.subr.mxu0 0.0
        %1654 = vmatpush1.msra.mxu0 0.0
        %1655 = vmatprep.subr.mxu0 0.0
        %1656 = vmatpush1.msra.mxu0 0.0
        %1657 = vmatprep.subr.mxu0 0.0
        %1658 = vmatpush1.msra.mxu0 0.0
        %1659 = vmatprep.subr.mxu0 0.0
        %1660 = vmatpush1.msra.mxu0 0.0
        %1661 = vmatprep.subr.mxu0 0.0
        %1662 = vmatpush1.msra.mxu0 0.0
        %1663 = vmatprep.subr.mxu0 0.0
        %1664 = vmatpush1.msra.mxu0 0.0
        %1665 = vmatprep.subr.mxu0 0.0
        %1666 = vmatpush1.msra.mxu0 0.0
        %1667 = vmatprep.subr.mxu0 0.0
        %1668 = vmatpush1.msra.mxu0 0.0
        %1669 = vmatprep.subr.mxu0 0.0
        %1670 = vmatpush1.msra.mxu0 0.0
        %1671 = vmatprep.subr.mxu0 0.0
        %1672 = vmatpush1.msra.mxu0 0.0
        %1673 = vmatprep.subr.mxu0 0.0
        %1674 = vmatpush1.msra.mxu0 0.0
        %1675 = vmatprep.subr.mxu0 0.0
        %1676 = vmatpush1.msra.mxu0 0.0
        %1677 = vmatprep.subr.mxu0 0.0
        %1678 = vmatpush1.msra.mxu0 0.0
        %1679 = vmatprep.subr.mxu0 0.0
        %1680 = vmatpush1.msra.mxu0 0.0
        %1681 = vmatprep.subr.mxu0 0.0
        %1682 = vmatpush1.msra.mxu0 0.0
        %1683 = vmatprep.subr.mxu0 0.0
        %1684 = vmatpush1.msra.mxu0 0.0
        %1685 = vmatprep.subr.mxu0 0.0
        %1686 = vmatpush1.msra.mxu0 0.0
        %1687 = vmatprep.subr.mxu0 0.0
        %1688 = vmatpush1.msra.mxu0 0.0
        %1689 = vmatprep.subr.mxu0 0.0
        %1690 = vmatpush1.msra.mxu0 0.0
        %1691 = vmatprep.subr.mxu0 0.0
        %1692 = vmatpush1.msra.mxu0 0.0
        %1693 = vmatprep.subr.mxu0 0.0
        %1694 = vmatpush1.msra.mxu0 0.0
        %1695 = vmatprep.subr.mxu0 0.0
        %1696 = vmatpush1.msra.mxu0 0.0
        %1697 = vmatprep.subr.mxu0 0.0
        %1698 = vmatpush1.msra.mxu0 0.0
        %1699 = vmatprep.subr.mxu0 0.0
        %1700 = vmatpush1.msra.mxu0 0.0
        %1701 = vmatprep.subr.mxu0 0.0
        %1702 = vmatpush1.msra.mxu0 0.0
        %1703 = vmatprep.subr.mxu0 0.0
        %1704 = vmatpush1.msra.mxu0 0.0
        %1705 = vmatprep.subr.mxu0 0.0
        %1706 = vmatpush1.msra.mxu0 0.0
        %1707 = vmatprep.subr.mxu0 0.0
        %1708 = vmatpush1.msra.mxu0 0.0
        %1709 = vmatprep.subr.mxu0 0.0
        %1710 = vmatpush1.msra.mxu0 0.0
        %1711 = vmatprep.subr.mxu0 0.0
        %1712 = vmatpush1.msra.mxu0 0.0
        %1713 = vmatprep.mubr.f32.mxu0 0.0
        %1714 = vmatmul.mubr.f32.gmra.mrb[0].mxu0 %v1647
        %v1715 = vpop.f32.mrb[0].mxu0
        %v1716 = vadd.f32 0.0, %v1715
        %v1717 = vpop.f32.mrb[0].mxu0
        %1718 = vdwg.mxu0
        %v1720 = vsel %vm838, %v1716, 0
        %1722 = vmatprep.subr.mxu0 0.0
        %1723 = vmatpush1.msra.mxu0 %v833
        %1724 = vmatprep.subr.mxu0 0.0
        %1725 = vmatpush1.msra.mxu0 0.0
        %1726 = vmatprep.subr.mxu0 0.0
        %1727 = vmatpush1.msra.mxu0 0.0
        %1728 = vmatprep.subr.mxu0 0.0
        %1729 = vmatpush1.msra.mxu0 0.0
        %1730 = vmatprep.subr.mxu0 0.0
        %1731 = vmatpush1.msra.mxu0 0.0
        %1732 = vmatprep.subr.mxu0 0.0
        %1733 = vmatpush1.msra.mxu0 0.0
        %1734 = vmatprep.subr.mxu0 0.0
        %1735 = vmatpush1.msra.mxu0 0.0
        %1736 = vmatprep.subr.mxu0 0.0
        %1737 = vmatpush1.msra.mxu0 0.0
        %1738 = vmatprep.subr.mxu0 0.0
        %1739 = vmatpush1.msra.mxu0 0.0
        %1740 = vmatprep.subr.mxu0 0.0
        %1741 = vmatpush1.msra.mxu0 0.0
        %1742 = vmatprep.subr.mxu0 0.0
        %1743 = vmatpush1.msra.mxu0 0.0
        %1744 = vmatprep.subr.mxu0 0.0
        %1745 = vmatpush1.msra.mxu0 0.0
        %1746 = vmatprep.subr.mxu0 0.0
        %1747 = vmatpush1.msra.mxu0 0.0
        %1748 = vmatprep.subr.mxu0 0.0
        %1749 = vmatpush1.msra.mxu0 0.0
        %1750 = vmatprep.subr.mxu0 0.0
        %1751 = vmatpush1.msra.mxu0 0.0
        %1752 = vmatprep.subr.mxu0 0.0
        %1753 = vmatpush1.msra.mxu0 0.0
        %1754 = vmatprep.subr.mxu0 0.0
        %1755 = vmatpush1.msra.mxu0 0.0
        %1756 = vmatprep.subr.mxu0 0.0
        %1757 = vmatpush1.msra.mxu0 0.0
        %1758 = vmatprep.subr.mxu0 0.0
        %1759 = vmatpush1.msra.mxu0 0.0
        %1760 = vmatprep.subr.mxu0 0.0
        %1761 = vmatpush1.msra.mxu0 0.0
        %1762 = vmatprep.subr.mxu0 0.0
        %1763 = vmatpush1.msra.mxu0 0.0
        %1764 = vmatprep.subr.mxu0 0.0
        %1765 = vmatpush1.msra.mxu0 0.0
        %1766 = vmatprep.subr.mxu0 0.0
        %1767 = vmatpush1.msra.mxu0 0.0
        %1768 = vmatprep.subr.mxu0 0.0
        %1769 = vmatpush1.msra.mxu0 0.0
        %1770 = vmatprep.subr.mxu0 0.0
        %1771 = vmatpush1.msra.mxu0 0.0
        %1772 = vmatprep.subr.mxu0 0.0
        %1773 = vmatpush1.msra.mxu0 0.0
        %1774 = vmatprep.subr.mxu0 0.0
        %1775 = vmatpush1.msra.mxu0 0.0
        %1776 = vmatprep.subr.mxu0 0.0
        %1777 = vmatpush1.msra.mxu0 0.0
        %1778 = vmatprep.subr.mxu0 0.0
        %1779 = vmatpush1.msra.mxu0 0.0
        %1780 = vmatprep.subr.mxu0 0.0
        %1781 = vmatpush1.msra.mxu0 0.0
        %1782 = vmatprep.subr.mxu0 0.0
        %1783 = vmatpush1.msra.mxu0 0.0
        %1784 = vmatprep.subr.mxu0 0.0
        %1785 = vmatpush1.msra.mxu0 0.0
        %1786 = vmatprep.mubr.f32.mxu0 0.0
        %1787 = vmatmul.mubr.f32.gmra.mrb[0].mxu0 %v1720
        %v1788 = vpop.f32.mrb[0].mxu0
        %v1789 = vadd.f32 0.0, %v1788
        %v1790 = vpop.f32.mrb[0].mxu0
        %1791 = vdwg.mxu0
        %v1792 = vadd.f32 %v1552, %v1789
        %v1794 = vlaneseq
        %v1795 = vshrl.u32 %v1794, 7
        %v1796 = vsub.s32 0, %v1795
        %v1797 = vrot.slane %v834, %v1796
        %v1799 = vadd.f32 %v1792, %v1797
        %v1800 = vld [vmem:[%s6] sm:$0x1]
        %v1801 = vld [vmem:[%s7] sm:$0x1]
        %v1802 = vadd.f32 %v712, %v1799
        %v1803 = vsel %vm756, %v1802, 0.0
        %1804 = vadd.xlane.f32.xlu0 %v1803
        %v1805 = vpop.xlane.xlu0 %1804
        %v1806 = vrcp.pop 32.0
        %v1807 = vmul.f32 %v1805, %v1806
        %v1808 = vsub.f32 %v1802, %v1807
        %v1809 = vmul.f32 %v1808, %v1808
        %v1810 = vsel %vm756, %v1809, 0.0
        %1811 = vadd.xlane.f32.xlu0 %v1810
        %v1812 = vpop.xlane.xlu0 %1811
        %v1813 = vmul.f32 %v1812, %v1806
        %v1814 = vadd.f32 %v1813, 1e-05
        %v1815 = vrsqrt.pop %v1814
        %v1816 = vmul.f32 %v1808, %v1815
        %v1818 = vlaneseq
        %v1819 = vshrl.u32 %v1818, 7
        %v1820 = vsub.s32 0, %v1819
        %v1821 = vrot.slane %v1800, %v1820
        %v1823 = vmul.f32 %v1816, %v1821
        %v1825 = vlaneseq
        %v1826 = vshrl.u32 %v1825, 7
        %v1827 = vsub.s32 0, %v1826
        %v1828 = vrot.slane %v1801, %v1827
        %v1830 = vadd.f32 %v1823, %v1828
        %v1831 = vld [vmem:[%s8] sm:$0xff]
        %v1832 = vld [vmem:[%s8 + $0x8] sm:$0xff]
        %v1833 = vld [vmem:[%s8 + $0x10] sm:$0xff]
        %v1834 = vld [vmem:[%s8 + $0x18] sm:$0xff]
        %v1835 = vld [vmem:[%s9] sm:$0x1]
        %v1837 = vlaneseq
        %v1838 = vshrl.u32 %v1837, 7
        %v1839 = vsub.s32 0, %v1838
        %v1840 = vrot.slane %v1835, %v1839
        %v1843 = vsel %vm756, %v1830, 0
        %1845 = vmatprep.subr.mxu0 0.0
        %1846 = vmatpush1.msra.mxu0 %v1831
        %1847 = vmatprep.subr.mxu0 0.0
        %1848 = vmatpush1.msra.mxu0 %v1832
        %1849 = vmatprep.subr.mxu0 0.0
        %1850 = vmatpush1.msra.mxu0 %v1833
        %1851 = vmatprep.subr.mxu0 0.0
        %1852 = vmatpush1.msra.mxu0 %v1834
        %1853 = vmatprep.subr.mxu0 0.0
        %1854 = vmatpush1.msra.mxu0 0.0
        %1855 = vmatprep.subr.mxu0 0.0
        %1856 = vmatpush1.msra.mxu0 0.0
        %1857 = vmatprep.subr.mxu0 0.0
        %1858 = vmatpush1.msra.mxu0 0.0
        %1859 = vmatprep.subr.mxu0 0.0
        %1860 = vmatpush1.msra.mxu0 0.0
        %1861 = vmatprep.subr.mxu0 0.0
        %1862 = vmatpush1.msra.mxu0 0.0
        %1863 = vmatprep.subr.mxu0 0.0
        %1864 = vmatpush1.msra.mxu0 0.0
        %1865 = vmatprep.subr.mxu0 0.0
        %1866 = vmatpush1.msra.mxu0 0.0
        %1867 = vmatprep.subr.mxu0 0.0
        %1868 = vmatpush1.msra.mxu0 0.0
        %1869 = vmatprep.subr.mxu0 0.0
        %1870 = vmatpush1.msra.mxu0 0.0
        %1871 = vmatprep.subr.mxu0 0.0
        %1872 = vmatpush1.msra.mxu0 0.0
        %1873 = vmatprep.subr.mxu0 0.0
        %1874 = vmatpush1.msra.mxu0 0.0
        %1875 = vmatprep.subr.mxu0 0.0
        %1876 = vmatpush1.msra.mxu0 0.0
        %1877 = vmatprep.subr.mxu0 0.0
        %1878 = vmatpush1.msra.mxu0 0.0
        %1879 = vmatprep.subr.mxu0 0.0
        %1880 = vmatpush1.msra.mxu0 0.0
        %1881 = vmatprep.subr.mxu0 0.0
        %1882 = vmatpush1.msra.mxu0 0.0
        %1883 = vmatprep.subr.mxu0 0.0
        %1884 = vmatpush1.msra.mxu0 0.0
        %1885 = vmatprep.subr.mxu0 0.0
        %1886 = vmatpush1.msra.mxu0 0.0
        %1887 = vmatprep.subr.mxu0 0.0
        %1888 = vmatpush1.msra.mxu0 0.0
        %1889 = vmatprep.subr.mxu0 0.0
        %1890 = vmatpush1.msra.mxu0 0.0
        %1891 = vmatprep.subr.mxu0 0.0
        %1892 = vmatpush1.msra.mxu0 0.0
        %1893 = vmatprep.subr.mxu0 0.0
        %1894 = vmatpush1.msra.mxu0 0.0
        %1895 = vmatprep.subr.mxu0 0.0
        %1896 = vmatpush1.msra.mxu0 0.0
        %1897 = vmatprep.subr.mxu0 0.0
        %1898 = vmatpush1.msra.mxu0 0.0
        %1899 = vmatprep.subr.mxu0 0.0
        %1900 = vmatpush1.msra.mxu0 0.0
        %1901 = vmatprep.subr.mxu0 0.0
        %1902 = vmatpush1.msra.mxu0 0.0
        %1903 = vmatprep.subr.mxu0 0.0
        %1904 = vmatpush1.msra.mxu0 0.0
        %1905 = vmatprep.subr.mxu0 0.0
        %1906 = vmatpush1.msra.mxu0 0.0
        %1907 = vmatprep.subr.mxu0 0.0
        %1908 = vmatpush1.msra.mxu0 0.0
        %1909 = vmatprep.mubr.f32.mxu0 0.0
        %1910 = vmatmul.mubr.f32.gmra.mrb[0].mxu0 %v1843
        %v1911 = vpop.f32.mrb[0].mxu0
        %v1912 = vadd.f32 %v1840, %v1911
        %v1913 = vpop.f32.mrb[0].mxu0
        %1914 = vdwg.mxu0
        %v1915 = vld [vmem:[%s10] sm:$0xff]
        %v1916 = vld [vmem:[%s10 + $0x8] sm:$0xff]
        %v1917 = vld [vmem:[%s10 + $0x10] sm:$0xff]
        %v1918 = vld [vmem:[%s10 + $0x18] sm:$0xff]
        %v1919 = vld [vmem:[%s11] sm:$0x1]
        %v1921 = vlaneseq
        %v1922 = vshrl.u32 %v1921, 7
        %v1923 = vsub.s32 0, %v1922
        %v1924 = vrot.slane %v1919, %v1923
        %v1927 = vsel %vm756, %v713, 0
        %v1930 = vsel %vm756, %v714, 0
        %v1933 = vsel %vm756, %v715, 0
        %v1936 = vsel %vm756, %v716, 0
        %v1939 = vsel %vm756, %v717, 0
        %v1942 = vsel %vm756, %v718, 0
        %v1945 = vsel %vm756, %v719, 0
        %v1948 = vsel %vm756, %v720, 0
        %v1951 = vsel %vm756, %v721, 0
        %v1954 = vsel %vm756, %v722, 0
        %v1957 = vsel %vm756, %v723, 0
        %v1960 = vsel %vm756, %v724, 0
        %v1963 = vsel %vm756, %v725, 0
        %v1966 = vsel %vm756, %v726, 0
        %v1969 = vsel %vm756, %v727, 0
        %v1972 = vsel %vm756, %v728, 0
        %v1975 = vsel %vm756, %v729, 0
        %v1978 = vsel %vm756, %v730, 0
        %v1981 = vsel %vm756, %v731, 0
        %v1984 = vsel %vm756, %v732, 0
        %v1987 = vsel %vm756, %v733, 0
        %v1990 = vsel %vm756, %v734, 0
        %v1993 = vsel %vm756, %v735, 0
        %v1996 = vsel %vm756, %v736, 0
        %v1999 = vsel %vm756, %v737, 0
        %v2002 = vsel %vm756, %v738, 0
        %v2005 = vsel %vm756, %v739, 0
        %v2008 = vsel %vm756, %v740, 0
        %v2011 = vsel %vm756, %v741, 0
        %v2014 = vsel %vm756, %v742, 0
        %v2017 = vsel %vm756, %v743, 0
        %v2020 = vsel %vm756, %v744, 0
        %2022 = vmatprep.subr.mxu0 0.0
        %2023 = vmatpush1.msra.mxu0 %v1915
        %2024 = vmatprep.subr.mxu0 0.0
        %2025 = vmatpush1.msra.mxu0 %v1916
        %2026 = vmatprep.subr.mxu0 0.0
        %2027 = vmatpush1.msra.mxu0 %v1917
        %2028 = vmatprep.subr.mxu0 0.0
        %2029 = vmatpush1.msra.mxu0 %v1918
        %2030 = vmatprep.subr.mxu0 0.0
        %2031 = vmatpush1.msra.mxu0 0.0
        %2032 = vmatprep.subr.mxu0 0.0
        %2033 = vmatpush1.msra.mxu0 0.0
        %2034 = vmatprep.subr.mxu0 0.0
        %2035 = vmatpush1.msra.mxu0 0.0
        %2036 = vmatprep.subr.mxu0 0.0
        %2037 = vmatpush1.msra.mxu0 0.0
        %2038 = vmatprep.subr.mxu0 0.0
        %2039 = vmatpush1.msra.mxu0 0.0
        %2040 = vmatprep.subr.mxu0 0.0
        %2041 = vmatpush1.msra.mxu0 0.0
        %2042 = vmatprep.subr.mxu0 0.0
        %2043 = vmatpush1.msra.mxu0 0.0
        %2044 = vmatprep.subr.mxu0 0.0
        %2045 = vmatpush1.msra.mxu0 0.0
        %2046 = vmatprep.subr.mxu0 0.0
        %2047 = vmatpush1.msra.mxu0 0.0
        %2048 = vmatprep.subr.mxu0 0.0
        %2049 = vmatpush1.msra.mxu0 0.0
        %2050 = vmatprep.subr.mxu0 0.0
        %2051 = vmatpush1.msra.mxu0 0.0
        %2052 = vmatprep.subr.mxu0 0.0
        %2053 = vmatpush1.msra.mxu0 0.0
        %2054 = vmatprep.subr.mxu0 0.0
        %2055 = vmatpush1.msra.mxu0 0.0
        %2056 = vmatprep.subr.mxu0 0.0
        %2057 = vmatpush1.msra.mxu0 0.0
        %2058 = vmatprep.subr.mxu0 0.0
        %2059 = vmatpush1.msra.mxu0 0.0
        %2060 = vmatprep.subr.mxu0 0.0
        %2061 = vmatpush1.msra.mxu0 0.0
        %2062 = vmatprep.subr.mxu0 0.0
        %2063 = vmatpush1.msra.mxu0 0.0
        %2064 = vmatprep.subr.mxu0 0.0
        %2065 = vmatpush1.msra.mxu0 0.0
        %2066 = vmatprep.subr.mxu0 0.0
        %2067 = vmatpush1.msra.mxu0 0.0
        %2068 = vmatprep.subr.mxu0 0.0
        %2069 = vmatpush1.msra.mxu0 0.0
        %2070 = vmatprep.subr.mxu0 0.0
        %2071 = vmatpush1.msra.mxu0 0.0
        %2072 = vmatprep.subr.mxu0 0.0
        %2073 = vmatpush1.msra.mxu0 0.0
        %2074 = vmatprep.subr.mxu0 0.0
        %2075 = vmatpush1.msra.mxu0 0.0
        %2076 = vmatprep.subr.mxu0 0.0
        %2077 = vmatpush1.msra.mxu0 0.0
        %2078 = vmatprep.subr.mxu0 0.0
        %2079 = vmatpush1.msra.mxu0 0.0
        %2080 = vmatprep.subr.mxu0 0.0
        %2081 = vmatpush1.msra.mxu0 0.0
        %2082 = vmatprep.subr.mxu0 0.0
        %2083 = vmatpush1.msra.mxu0 0.0
        %2084 = vmatprep.subr.mxu0 0.0
        %2085 = vmatpush1.msra.mxu0 0.0
        %2086 = vmatprep.mubr.f32.mxu0 0.0
        %2087 = vmatmul.mubr.f32.gmra.mrb[0].mxu0 %v1927
        %v2088 = vpop.f32.mrb[0].mxu0
        %v2089 = vadd.f32 %v1924, %v2088
        %v2090 = vpop.f32.mrb[0].mxu0
        %2091 = vmatprep.mubr.f32.mxu0 0.0
        %2092 = vmatmul.mubr.f32.gmra.mrb[0].mxu0 %v1930
        %v2093 = vpop.f32.mrb[0].mxu0
        %v2094 = vadd.f32 %v1924, %v2093
        %v2095 = vpop.f32.mrb[0].mxu0
        %2096 = vmatprep.mubr.f32.mxu0 0.0
        %2097 = vmatmul.mubr.f32.gmra.mrb[0].mxu0 %v1933
        %v2098 = vpop.f32.mrb[0].mxu0
        %v2099 = vadd.f32 %v1924, %v2098
        %v2100 = vpop.f32.mrb[0].mxu0
        %2101 = vmatprep.mubr.f32.mxu0 0.0
        %2102 = vmatmul.mubr.f32.gmra.mrb[0].mxu0 %v1936
        %v2103 = vpop.f32.mrb[0].mxu0
        %v2104 = vadd.f32 %v1924, %v2103
        %v2105 = vpop.f32.mrb[0].mxu0
        %2106 = vmatprep.mubr.f32.mxu0 0.0
        %2107 = vmatmul.mubr.f32.gmra.mrb[0].mxu0 %v1939
        %v2108 = vpop.f32.mrb[0].mxu0
        %v2109 = vadd.f32 %v1924, %v2108
        %v2110 = vpop.f32.mrb[0].mxu0
        %2111 = vmatprep.mubr.f32.mxu0 0.0
        %2112 = vmatmul.mubr.f32.gmra.mrb[0].mxu0 %v1942
        %v2113 = vpop.f32.mrb[0].mxu0
        %v2114 = vadd.f32 %v1924, %v2113
        %v2115 = vpop.f32.mrb[0].mxu0
        %2116 = vmatprep.mubr.f32.mxu0 0.0
        %2117 = vmatmul.mubr.f32.gmra.mrb[0].mxu0 %v1945
        %v2118 = vpop.f32.mrb[0].mxu0
        %v2119 = vadd.f32 %v1924, %v2118
        %v2120 = vpop.f32.mrb[0].mxu0
        %2121 = vmatprep.mubr.f32.mxu0 0.0
        %2122 = vmatmul.mubr.f32.gmra.mrb[0].mxu0 %v1948
        %v2123 = vpop.f32.mrb[0].mxu0
        %v2124 = vadd.f32 %v1924, %v2123
        %v2125 = vpop.f32.mrb[0].mxu0
        %2126 = vmatprep.mubr.f32.mxu0 0.0
        %2127 = vmatmul.mubr.f32.gmra.mrb[0].mxu0 %v1951
        %v2128 = vpop.f32.mrb[0].mxu0
        %v2129 = vadd.f32 %v1924, %v2128
        %v2130 = vpop.f32.mrb[0].mxu0
        %2131 = vmatprep.mubr.f32.mxu0 0.0
        %2132 = vmatmul.mubr.f32.gmra.mrb[0].mxu0 %v1954
        %v2133 = vpop.f32.mrb[0].mxu0
        %v2134 = vadd.f32 %v1924, %v2133
        %v2135 = vpop.f32.mrb[0].mxu0
        %2136 = vmatprep.mubr.f32.mxu0 0.0
        %2137 = vmatmul.mubr.f32.gmra.mrb[0].mxu0 %v1957
        %v2138 = vpop.f32.mrb[0].mxu0
        %v2139 = vadd.f32 %v1924, %v2138
        %v2140 = vpop.f32.mrb[0].mxu0
        %2141 = vmatprep.mubr.f32.mxu0 0.0
        %2142 = vmatmul.mubr.f32.gmra.mrb[0].mxu0 %v1960
        %v2143 = vpop.f32.mrb[0].mxu0
        %v2144 = vadd.f32 %v1924, %v2143
        %v2145 = vpop.f32.mrb[0].mxu0
        %2146 = vmatprep.mubr.f32.mxu0 0.0
        %2147 = vmatmul.mubr.f32.gmra.mrb[0].mxu0 %v1963
        %v2148 = vpop.f32.mrb[0].mxu0
        %v2149 = vadd.f32 %v1924, %v2148
        %v2150 = vpop.f32.mrb[0].mxu0
        %2151 = vmatprep.mubr.f32.mxu0 0.0
        %2152 = vmatmul.mubr.f32.gmra.mrb[0].mxu0 %v1966
        %v2153 = vpop.f32.mrb[0].mxu0
        %v2154 = vadd.f32 %v1924, %v2153
        %v2155 = vpop.f32.mrb[0].mxu0
        %2156 = vmatprep.mubr.f32.mxu0 0.0
        %2157 = vmatmul.mubr.f32.gmra.mrb[0].mxu0 %v1969
        %v2158 = vpop.f32.mrb[0].mxu0
        %v2159 = vadd.f32 %v1924, %v2158
        %v2160 = vpop.f32.mrb[0].mxu0
        %2161 = vmatprep.mubr.f32.mxu0 0.0
        %2162 = vmatmul.mubr.f32.gmra.mrb[0].mxu0 %v1972
        %v2163 = vpop.f32.mrb[0].mxu0
        %v2164 = vadd.f32 %v1924, %v2163
        %v2165 = vpop.f32.mrb[0].mxu0
        %2166 = vmatprep.mubr.f32.mxu0 0.0
        %2167 = vmatmul.mubr.f32.gmra.mrb[0].mxu0 %v1975
        %v2168 = vpop.f32.mrb[0].mxu0
        %v2169 = vadd.f32 %v1924, %v2168
        %v2170 = vpop.f32.mrb[0].mxu0
        %2171 = vmatprep.mubr.f32.mxu0 0.0
        %2172 = vmatmul.mubr.f32.gmra.mrb[0].mxu0 %v1978
        %v2173 = vpop.f32.mrb[0].mxu0
        %v2174 = vadd.f32 %v1924, %v2173
        %v2175 = vpop.f32.mrb[0].mxu0
        %2176 = vmatprep.mubr.f32.mxu0 0.0
        %2177 = vmatmul.mubr.f32.gmra.mrb[0].mxu0 %v1981
        %v2178 = vpop.f32.mrb[0].mxu0
        %v2179 = vadd.f32 %v1924, %v2178
        %v2180 = vpop.f32.mrb[0].mxu0
        %2181 = vmatprep.mubr.f32.mxu0 0.0
        %2182 = vmatmul.mubr.f32.gmra.mrb[0].mxu0 %v1984
        %v2183 = vpop.f32.mrb[0].mxu0
        %v2184 = vadd.f32 %v1924, %v2183
        %v2185 = vpop.f32.mrb[0].mxu0
        %2186 = vmatprep.mubr.f32.mxu0 0.0
        %2187 = vmatmul.mubr.f32.gmra.mrb[0].mxu0 %v1987
        %v2188 = vpop.f32.mrb[0].mxu0
        %v2189 = vadd.f32 %v1924, %v2188
        %v2190 = vpop.f32.mrb[0].mxu0
        %2191 = vmatprep.mubr.f32.mxu0 0.0
        %2192 = vmatmul.mubr.f32.gmra.mrb[0].mxu0 %v1990
        %v2193 = vpop.f32.mrb[0].mxu0
        %v2194 = vadd.f32 %v1924, %v2193
        %v2195 = vpop.f32.mrb[0].mxu0
        %2196 = vmatprep.mubr.f32.mxu0 0.0
        %2197 = vmatmul.mubr.f32.gmra.mrb[0].mxu0 %v1993
        %v2198 = vpop.f32.mrb[0].mxu0
        %v2199 = vadd.f32 %v1924, %v2198
        %v2200 = vpop.f32.mrb[0].mxu0
        %2201 = vmatprep.mubr.f32.mxu0 0.0
        %2202 = vmatmul.mubr.f32.gmra.mrb[0].mxu0 %v1996
        %v2203 = vpop.f32.mrb[0].mxu0
        %v2204 = vadd.f32 %v1924, %v2203
        %v2205 = vpop.f32.mrb[0].mxu0
        %2206 = vmatprep.mubr.f32.mxu0 0.0
        %2207 = vmatmul.mubr.f32.gmra.mrb[0].mxu0 %v1999
        %v2208 = vpop.f32.mrb[0].mxu0
        %v2209 = vadd.f32 %v1924, %v2208
        %v2210 = vpop.f32.mrb[0].mxu0
        %2211 = vmatprep.mubr.f32.mxu0 0.0
        %2212 = vmatmul.mubr.f32.gmra.mrb[0].mxu0 %v2002
        %v2213 = vpop.f32.mrb[0].mxu0
        %v2214 = vadd.f32 %v1924, %v2213
        %v2215 = vpop.f32.mrb[0].mxu0
        %2216 = vmatprep.mubr.f32.mxu0 0.0
        %2217 = vmatmul.mubr.f32.gmra.mrb[0].mxu0 %v2005
        %v2218 = vpop.f32.mrb[0].mxu0
        %v2219 = vadd.f32 %v1924, %v2218
        %v2220 = vpop.f32.mrb[0].mxu0
        %2221 = vmatprep.mubr.f32.mxu0 0.0
        %2222 = vmatmul.mubr.f32.gmra.mrb[0].mxu0 %v2008
        %v2223 = vpop.f32.mrb[0].mxu0
        %v2224 = vadd.f32 %v1924, %v2223
        %v2225 = vpop.f32.mrb[0].mxu0
        %2226 = vmatprep.mubr.f32.mxu0 0.0
        %2227 = vmatmul.mubr.f32.gmra.mrb[0].mxu0 %v2011
        %v2228 = vpop.f32.mrb[0].mxu0
        %v2229 = vadd.f32 %v1924, %v2228
        %v2230 = vpop.f32.mrb[0].mxu0
        %2231 = vmatprep.mubr.f32.mxu0 0.0
        %2232 = vmatmul.mubr.f32.gmra.mrb[0].mxu0 %v2014
        %v2233 = vpop.f32.mrb[0].mxu0
        %v2234 = vadd.f32 %v1924, %v2233
        %v2235 = vpop.f32.mrb[0].mxu0
        %2236 = vmatprep.mubr.f32.mxu0 0.0
        %2237 = vmatmul.mubr.f32.gmra.mrb[0].mxu0 %v2017
        %v2238 = vpop.f32.mrb[0].mxu0
        %v2239 = vadd.f32 %v1924, %v2238
        %v2240 = vpop.f32.mrb[0].mxu0
        %2241 = vmatprep.mubr.f32.mxu0 0.0
        %2242 = vmatmul.mubr.f32.gmra.mrb[0].mxu0 %v2020
        %v2243 = vpop.f32.mrb[0].mxu0
        %v2244 = vadd.f32 %v1924, %v2243
        %v2245 = vpop.f32.mrb[0].mxu0
        %2246 = vdwg.mxu0
        %v2247 = vld [vmem:[%s12] sm:$0xff]
        %v2248 = vld [vmem:[%s12 + $0x8] sm:$0xff]
        %v2249 = vld [vmem:[%s12 + $0x10] sm:$0xff]
        %v2250 = vld [vmem:[%s12 + $0x18] sm:$0xff]
        %v2251 = vld [vmem:[%s13] sm:$0x1]
        %v2253 = vsel %vm838, %v1912, 0
        %v2256 = vsel %vm838, %v2089, 0
        %v2259 = vsel %vm838, %v2094, 0
        %v2262 = vsel %vm838, %v2099, 0
        %v2265 = vsel %vm838, %v2104, 0
        %v2268 = vsel %vm838, %v2109, 0
        %v2271 = vsel %vm838, %v2114, 0
        %v2274 = vsel %vm838, %v2119, 0
        %v2277 = vsel %vm838, %v2124, 0
        %v2280 = vsel %vm838, %v2129, 0
        %v2283 = vsel %vm838, %v2134, 0
        %v2286 = vsel %vm838, %v2139, 0
        %v2289 = vsel %vm838, %v2144, 0
        %v2292 = vsel %vm838, %v2149, 0
        %v2295 = vsel %vm838, %v2154, 0
        %v2298 = vsel %vm838, %v2159, 0
        %v2301 = vsel %vm838, %v2164, 0
        %v2304 = vsel %vm838, %v2169, 0
        %v2307 = vsel %vm838, %v2174, 0
        %v2310 = vsel %vm838, %v2179, 0
        %v2313 = vsel %vm838, %v2184, 0
        %v2316 = vsel %vm838, %v2189, 0
        %v2319 = vsel %vm838, %v2194, 0
        %v2322 = vsel %vm838, %v2199, 0
        %v2325 = vsel %vm838, %v2204, 0
        %v2328 = vsel %vm838, %v2209, 0
        %v2331 = vsel %vm838, %v2214, 0
        %v2334 = vsel %vm838, %v2219, 0
        %v2337 = vsel %vm838, %v2224, 0
        %v2340 = vsel %vm838, %v2229, 0
        %v2343 = vsel %vm838, %v2234, 0
        %v2346 = vsel %vm838, %v2239, 0
        %v2349 = vsel %vm838, %v2244, 0
        %2351 = vmatprep.subr.mxu0 0.0
        %2352 = vmatpush1.xpose.msra.mxu0 %v2256
        %2353 = vmatprep.subr.mxu0 0.0
        %2354 = vmatpush1.xpose.msra.mxu0 %v2259
        %2355 = vmatprep.subr.mxu0 0.0
        %2356 = vmatpush1.xpose.msra.mxu0 %v2262
        %2357 = vmatprep.subr.mxu0 0.0
        %2358 = vmatpush1.xpose.msra.mxu0 %v2265
        %2359 = vmatprep.subr.mxu0 0.0
        %2360 = vmatpush1.xpose.msra.mxu0 %v2268
        %2361 = vmatprep.subr.mxu0 0.0
        %2362 = vmatpush1.xpose.msra.mxu0 %v2271
        %2363 = vmatprep.subr.mxu0 0.0
        %2364 = vmatpush1.xpose.msra.mxu0 %v2274
        %2365 = vmatprep.subr.mxu0 0.0
        %2366 = vmatpush1.xpose.msra.mxu0 %v2277
        %2367 = vmatprep.subr.mxu0 0.0
        %2368 = vmatpush1.xpose.msra.mxu0 %v2280
        %2369 = vmatprep.subr.mxu0 0.0
        %2370 = vmatpush1.xpose.msra.mxu0 %v2283
        %2371 = vmatprep.subr.mxu0 0.0
        %2372 = vmatpush1.xpose.msra.mxu0 %v2286
        %2373 = vmatprep.subr.mxu0 0.0
        %2374 = vmatpush1.xpose.msra.mxu0 %v2289
        %2375 = vmatprep.subr.mxu0 0.0
        %2376 = vmatpush1.xpose.msra.mxu0 %v2292
        %2377 = vmatprep.subr.mxu0 0.0
        %2378 = vmatpush1.xpose.msra.mxu0 %v2295
        %2379 = vmatprep.subr.mxu0 0.0
        %2380 = vmatpush1.xpose.msra.mxu0 %v2298
        %2381 = vmatprep.subr.mxu0 0.0
        %2382 = vmatpush1.xpose.msra.mxu0 %v2301
        %2383 = vmatprep.subr.mxu0 0.0
        %2384 = vmatpush1.xpose.msra.mxu0 %v2304
        %2385 = vmatprep.subr.mxu0 0.0
        %2386 = vmatpush1.xpose.msra.mxu0 %v2307
        %2387 = vmatprep.subr.mxu0 0.0
        %2388 = vmatpush1.xpose.msra.mxu0 %v2310
        %2389 = vmatprep.subr.mxu0 0.0
        %2390 = vmatpush1.xpose.msra.mxu0 %v2313
        %2391 = vmatprep.subr.mxu0 0.0
        %2392 = vmatpush1.xpose.msra.mxu0 %v2316
        %2393 = vmatprep.subr.mxu0 0.0
        %2394 = vmatpush1.xpose.msra.mxu0 %v2319
        %2395 = vmatprep.subr.mxu0 0.0
        %2396 = vmatpush1.xpose.msra.mxu0 %v2322
        %2397 = vmatprep.subr.mxu0 0.0
        %2398 = vmatpush1.xpose.msra.mxu0 %v2325
        %2399 = vmatprep.subr.mxu0 0.0
        %2400 = vmatpush1.xpose.msra.mxu0 %v2328
        %2401 = vmatprep.subr.mxu0 0.0
        %2402 = vmatpush1.xpose.msra.mxu0 %v2331
        %2403 = vmatprep.subr.mxu0 0.0
        %2404 = vmatpush1.xpose.msra.mxu0 %v2334
        %2405 = vmatprep.subr.mxu0 0.0
        %2406 = vmatpush1.xpose.msra.mxu0 %v2337
        %2407 = vmatprep.subr.mxu0 0.0
        %2408 = vmatpush1.xpose.msra.mxu0 %v2340
        %2409 = vmatprep.subr.mxu0 0.0
        %2410 = vmatpush1.xpose.msra.mxu0 %v2343
        %2411 = vmatprep.subr.mxu0 0.0
        %2412 = vmatpush1.xpose.msra.mxu0 %v2346
        %2413 = vmatprep.subr.mxu0 0.0
        %2414 = vmatpush1.xpose.msra.mxu0 %v2349
        %2415 = vmatprep.mubr.f32.mxu0 0.0
        %2416 = vmatmul.mubr.f32.gmra.mrb[0].mxu0 %v2253
        %v2417 = vpop.f32.mrb[0].mxu0
        %v2418 = vadd.f32 0.0, %v2417
        %v2419 = vpop.f32.mrb[0].mxu0
        %v2420 = vadd.f32 0.0, %v2419
        %2421 = vdwg.mxu0
        %v2422 = vmul.f32 %v2418, 0.35355338
        %v2423 = vmul.f32 %v2420, 0.35355338
        %v2424 = vmax.f32 %v2422, %v2423
        %2425 = vmax.xlane.f32.xlu0 %v2424
        %v2426 = vpop.xlane.xlu0 %2425
        %v2427 = vsub.f32 %v2422, %v2426
        %v2428 = vsub.f32 %v2423, %v2426
        %v2429 = vmul.f32 %v2427, 1.442695
        %v2430 = vpow.pop %v2429
        %v2431 = vmul.f32 %v2428, 1.442695
        %v2432 = vpow.pop %v2431
        %v2433 = vadd.f32 %v2430, %v2432
        %2434 = vadd.xlane.f32.xlu0 %v2433
        %v2435 = vpop.xlane.xlu0 %2434
        %v2436 = vrcp.pop %v2435
        %v2437 = vmul.f32 %v2430, %v2436
        %v2438 = vmul.f32 %v2432, %v2436
        %2439 = vrot.lane.b32.xlu0 %v2089, 96
        %v2440 = vpop.permute.xlu0 %2439
        %2441 = vrot.lane.b32.xlu0 %v2094, 96
        %v2442 = vpop.permute.xlu0 %2441
        %2443 = vrot.lane.b32.xlu0 %v2099, 96
        %v2444 = vpop.permute.xlu0 %2443
        %2445 = vrot.lane.b32.xlu0 %v2104, 96
        %v2446 = vpop.permute.xlu0 %2445
        %2447 = vrot.lane.b32.xlu0 %v2109, 96
        %v2448 = vpop.permute.xlu0 %2447
        %2449 = vrot.lane.b32.xlu0 %v2114, 96
        %v2450 = vpop.permute.xlu0 %2449
        %2451 = vrot.lane.b32.xlu0 %v2119, 96
        %v2452 = vpop.permute.xlu0 %2451
        %2453 = vrot.lane.b32.xlu0 %v2124, 96
        %v2454 = vpop.permute.xlu0 %2453
        %2455 = vrot.lane.b32.xlu0 %v2129, 96
        %v2456 = vpop.permute.xlu0 %2455
        %2457 = vrot.lane.b32.xlu0 %v2134, 96
        %v2458 = vpop.permute.xlu0 %2457
        %2459 = vrot.lane.b32.xlu0 %v2139, 96
        %v2460 = vpop.permute.xlu0 %2459
        %2461 = vrot.lane.b32.xlu0 %v2144, 96
        %v2462 = vpop.permute.xlu0 %2461
        %2463 = vrot.lane.b32.xlu0 %v2149, 96
        %v2464 = vpop.permute.xlu0 %2463
        %2465 = vrot.lane.b32.xlu0 %v2154, 96
        %v2466 = vpop.permute.xlu0 %2465
        %2467 = vrot.lane.b32.xlu0 %v2159, 96
        %v2468 = vpop.permute.xlu0 %2467
        %2469 = vrot.lane.b32.xlu0 %v2164, 96
        %v2470 = vpop.permute.xlu0 %2469
        %2471 = vrot.lane.b32.xlu0 %v2169, 96
        %v2472 = vpop.permute.xlu0 %2471
        %2473 = vrot.lane.b32.xlu0 %v2174, 96
        %v2474 = vpop.permute.xlu0 %2473
        %2475 = vrot.lane.b32.xlu0 %v2179, 96
        %v2476 = vpop.permute.xlu0 %2475
        %2477 = vrot.lane.b32.xlu0 %v2184, 96
        %v2478 = vpop.permute.xlu0 %2477
        %2479 = vrot.lane.b32.xlu0 %v2189, 96
        %v2480 = vpop.permute.xlu0 %2479
        %2481 = vrot.lane.b32.xlu0 %v2194, 96
        %v2482 = vpop.permute.xlu0 %2481
        %2483 = vrot.lane.b32.xlu0 %v2199, 96
        %v2484 = vpop.permute.xlu0 %2483
        %2485 = vrot.lane.b32.xlu0 %v2204, 96
        %v2486 = vpop.permute.xlu0 %2485
        %2487 = vrot.lane.b32.xlu0 %v2209, 96
        %v2488 = vpop.permute.xlu0 %2487
        %2489 = vrot.lane.b32.xlu0 %v2214, 96
        %v2490 = vpop.permute.xlu0 %2489
        %2491 = vrot.lane.b32.xlu0 %v2219, 96
        %v2492 = vpop.permute.xlu0 %2491
        %2493 = vrot.lane.b32.xlu0 %v2224, 96
        %v2494 = vpop.permute.xlu0 %2493
        %2495 = vrot.lane.b32.xlu0 %v2229, 96
        %v2496 = vpop.permute.xlu0 %2495
        %2497 = vrot.lane.b32.xlu0 %v2234, 96
        %v2498 = vpop.permute.xlu0 %2497
        %2499 = vrot.lane.b32.xlu0 %v2239, 96
        %v2500 = vpop.permute.xlu0 %2499
        %2501 = vrot.lane.b32.xlu0 %v2244, 96
        %v2502 = vpop.permute.xlu0 %2501
        %2535 = vmatprep.subr.mxu0 0.0
        %2536 = vmatpush1.msra.mxu0 %v2440
        %2537 = vmatprep.subr.mxu0 0.0
        %2538 = vmatpush1.msra.mxu0 %v2442
        %2539 = vmatprep.subr.mxu0 0.0
        %2540 = vmatpush1.msra.mxu0 %v2444
        %2541 = vmatprep.subr.mxu0 0.0
        %2542 = vmatpush1.msra.mxu0 %v2446
        %2543 = vmatprep.subr.mxu0 0.0
        %2544 = vmatpush1.msra.mxu0 %v2448
        %2545 = vmatprep.subr.mxu0 0.0
        %2546 = vmatpush1.msra.mxu0 %v2450
        %2547 = vmatprep.subr.mxu0 0.0
        %2548 = vmatpush1.msra.mxu0 %v2452
        %2549 = vmatprep.subr.mxu0 0.0
        %2550 = vmatpush1.msra.mxu0 %v2454
        %2551 = vmatprep.subr.mxu0 0.0
        %2552 = vmatpush1.msra.mxu0 %v2456
        %2553 = vmatprep.subr.mxu0 0.0
        %2554 = vmatpush1.msra.mxu0 %v2458
        %2555 = vmatprep.subr.mxu0 0.0
        %2556 = vmatpush1.msra.mxu0 %v2460
        %2557 = vmatprep.subr.mxu0 0.0
        %2558 = vmatpush1.msra.mxu0 %v2462
        %2559 = vmatprep.subr.mxu0 0.0
        %2560 = vmatpush1.msra.mxu0 %v2464
        %2561 = vmatprep.subr.mxu0 0.0
        %2562 = vmatpush1.msra.mxu0 %v2466
        %2563 = vmatprep.subr.mxu0 0.0
        %2564 = vmatpush1.msra.mxu0 %v2468
        %2565 = vmatprep.subr.mxu0 0.0
        %2566 = vmatpush1.msra.mxu0 %v2470
        %2567 = vmatprep.subr.mxu0 0.0
        %2568 = vmatpush1.msra.mxu0 %v2472
        %2569 = vmatprep.subr.mxu0 0.0
        %2570 = vmatpush1.msra.mxu0 %v2474
        %2571 = vmatprep.subr.mxu0 0.0
        %2572 = vmatpush1.msra.mxu0 %v2476
        %2573 = vmatprep.subr.mxu0 0.0
        %2574 = vmatpush1.msra.mxu0 %v2478
        %2575 = vmatprep.subr.mxu0 0.0
        %2576 = vmatpush1.msra.mxu0 %v2480
        %2577 = vmatprep.subr.mxu0 0.0
        %2578 = vmatpush1.msra.mxu0 %v2482
        %2579 = vmatprep.subr.mxu0 0.0
        %2580 = vmatpush1.msra.mxu0 %v2484
        %2581 = vmatprep.subr.mxu0 0.0
        %2582 = vmatpush1.msra.mxu0 %v2486
        %2583 = vmatprep.subr.mxu0 0.0
        %2584 = vmatpush1.msra.mxu0 %v2488
        %2585 = vmatprep.subr.mxu0 0.0
        %2586 = vmatpush1.msra.mxu0 %v2490
        %2587 = vmatprep.subr.mxu0 0.0
        %2588 = vmatpush1.msra.mxu0 %v2492
        %2589 = vmatprep.subr.mxu0 0.0
        %2590 = vmatpush1.msra.mxu0 %v2494
        %2591 = vmatprep.subr.mxu0 0.0
        %2592 = vmatpush1.msra.mxu0 %v2496
        %2593 = vmatprep.subr.mxu0 0.0
        %2594 = vmatpush1.msra.mxu0 %v2498
        %2595 = vmatprep.subr.mxu0 0.0
        %2596 = vmatpush1.msra.mxu0 %v2500
        %2597 = vmatprep.subr.mxu0 0.0
        %2598 = vmatpush1.msra.mxu0 %v2502
        %2599 = vmatprep.mubr.f32.mxu0 %v2438
        %2600 = vmatmul.mubr.f32.gmra.mrb[0].mxu0 %v2437
        %v2601 = vpop.f32.mrb[0].mxu0
        %v2602 = vadd.f32 0.0, %v2601
        %v2603 = vpop.f32.mrb[0].mxu0
        %2604 = vdwg.mxu0
        %2605 = vrot.lane.b32.xlu0 %v1912, 120
        %v2606 = vpop.permute.xlu0 %2605
        %2607 = vrot.lane.b32.xlu0 %v2089, 120
        %v2608 = vpop.permute.xlu0 %2607
        %2609 = vrot.lane.b32.xlu0 %v2094, 120
        %v2610 = vpop.permute.xlu0 %2609
        %2611 = vrot.lane.b32.xlu0 %v2099, 120
        %v2612 = vpop.permute.xlu0 %2611
        %2613 = vrot.lane.b32.xlu0 %v2104, 120
        %v2614 = vpop.permute.xlu0 %2613
        %2615 = vrot.lane.b32.xlu0 %v2109, 120
        %v2616 = vpop.permute.xlu0 %2615
        %2617 = vrot.lane.b32.xlu0 %v2114, 120
        %v2618 = vpop.permute.xlu0 %2617
        %2619 = vrot.lane.b32.xlu0 %v2119, 120
        %v2620 = vpop.permute.xlu0 %2619
        %2621 = vrot.lane.b32.xlu0 %v2124, 120
        %v2622 = vpop.permute.xlu0 %2621
        %2623 = vrot.lane.b32.xlu0 %v2129, 120
        %v2624 = vpop.permute.xlu0 %2623
        %2625 = vrot.lane.b32.xlu0 %v2134, 120
        %v2626 = vpop.permute.xlu0 %2625
        %2627 = vrot.lane.b32.xlu0 %v2139, 120
        %v2628 = vpop.permute.xlu0 %2627
        %2629 = vrot.lane.b32.xlu0 %v2144, 120
        %v2630 = vpop.permute.xlu0 %2629
        %2631 = vrot.lane.b32.xlu0 %v2149, 120
        %v2632 = vpop.permute.xlu0 %2631
        %2633 = vrot.lane.b32.xlu0 %v2154, 120
        %v2634 = vpop.permute.xlu0 %2633
        %2635 = vrot.lane.b32.xlu0 %v2159, 120
        %v2636 = vpop.permute.xlu0 %2635
        %2637 = vrot.lane.b32.xlu0 %v2164, 120
        %v2638 = vpop.permute.xlu0 %2637
        %2639 = vrot.lane.b32.xlu0 %v2169, 120
        %v2640 = vpop.permute.xlu0 %2639
        %2641 = vrot.lane.b32.xlu0 %v2174, 120
        %v2642 = vpop.permute.xlu0 %2641
        %2643 = vrot.lane.b32.xlu0 %v2179, 120
        %v2644 = vpop.permute.xlu0 %2643
        %2645 = vrot.lane.b32.xlu0 %v2184, 120
        %v2646 = vpop.permute.xlu0 %2645
        %2647 = vrot.lane.b32.xlu0 %v2189, 120
        %v2648 = vpop.permute.xlu0 %2647
        %2649 = vrot.lane.b32.xlu0 %v2194, 120
        %v2650 = vpop.permute.xlu0 %2649
        %2651 = vrot.lane.b32.xlu0 %v2199, 120
        %v2652 = vpop.permute.xlu0 %2651
        %2653 = vrot.lane.b32.xlu0 %v2204, 120
        %v2654 = vpop.permute.xlu0 %2653
        %2655 = vrot.lane.b32.xlu0 %v2209, 120
        %v2656 = vpop.permute.xlu0 %2655
        %2657 = vrot.lane.b32.xlu0 %v2214, 120
        %v2658 = vpop.permute.xlu0 %2657
        %2659 = vrot.lane.b32.xlu0 %v2219, 120
        %v2660 = vpop.permute.xlu0 %2659
        %2661 = vrot.lane.b32.xlu0 %v2224, 120
        %v2662 = vpop.permute.xlu0 %2661
        %2663 = vrot.lane.b32.xlu0 %v2229, 120
        %v2664 = vpop.permute.xlu0 %2663
        %2665 = vrot.lane.b32.xlu0 %v2234, 120
        %v2666 = vpop.permute.xlu0 %2665
        %2667 = vrot.lane.b32.xlu0 %v2239, 120
        %v2668 = vpop.permute.xlu0 %2667
        %2669 = vrot.lane.b32.xlu0 %v2244, 120
        %v2670 = vpop.permute.xlu0 %2669
        %v2671 = vsel %vm838, %v2606, 0
        %v2673 = vsel %vm838, %v2608, 0
        %v2675 = vsel %vm838, %v2610, 0
        %v2677 = vsel %vm838, %v2612, 0
        %v2679 = vsel %vm838, %v2614, 0
        %v2681 = vsel %vm838, %v2616, 0
        %v2683 = vsel %vm838, %v2618, 0
        %v2685 = vsel %vm838, %v2620, 0
        %v2687 = vsel %vm838, %v2622, 0
        %v2689 = vsel %vm838, %v2624, 0
        %v2691 = vsel %vm838, %v2626, 0
        %v2693 = vsel %vm838, %v2628, 0
        %v2695 = vsel %vm838, %v2630, 0
        %v2697 = vsel %vm838, %v2632, 0
        %v2699 = vsel %vm838, %v2634, 0
        %v2701 = vsel %vm838, %v2636, 0
        %v2703 = vsel %vm838, %v2638, 0
        %v2705 = vsel %vm838, %v2640, 0
        %v2707 = vsel %vm838, %v2642, 0
        %v2709 = vsel %vm838, %v2644, 0
        %v2711 = vsel %vm838, %v2646, 0
        %v2713 = vsel %vm838, %v2648, 0
        %v2715 = vsel %vm838, %v2650, 0
        %v2717 = vsel %vm838, %v2652, 0
        %v2719 = vsel %vm838, %v2654, 0
        %v2721 = vsel %vm838, %v2656, 0
        %v2723 = vsel %vm838, %v2658, 0
        %v2725 = vsel %vm838, %v2660, 0
        %v2727 = vsel %vm838, %v2662, 0
        %v2729 = vsel %vm838, %v2664, 0
        %v2731 = vsel %vm838, %v2666, 0
        %v2733 = vsel %vm838, %v2668, 0
        %v2735 = vsel %vm838, %v2670, 0
        %2737 = vmatprep.subr.mxu0 0.0
        %2738 = vmatpush1.xpose.msra.mxu0 %v2673
        %2739 = vmatprep.subr.mxu0 0.0
        %2740 = vmatpush1.xpose.msra.mxu0 %v2675
        %2741 = vmatprep.subr.mxu0 0.0
        %2742 = vmatpush1.xpose.msra.mxu0 %v2677
        %2743 = vmatprep.subr.mxu0 0.0
        %2744 = vmatpush1.xpose.msra.mxu0 %v2679
        %2745 = vmatprep.subr.mxu0 0.0
        %2746 = vmatpush1.xpose.msra.mxu0 %v2681
        %2747 = vmatprep.subr.mxu0 0.0
        %2748 = vmatpush1.xpose.msra.mxu0 %v2683
        %2749 = vmatprep.subr.mxu0 0.0
        %2750 = vmatpush1.xpose.msra.mxu0 %v2685
        %2751 = vmatprep.subr.mxu0 0.0
        %2752 = vmatpush1.xpose.msra.mxu0 %v2687
        %2753 = vmatprep.subr.mxu0 0.0
        %2754 = vmatpush1.xpose.msra.mxu0 %v2689
        %2755 = vmatprep.subr.mxu0 0.0
        %2756 = vmatpush1.xpose.msra.mxu0 %v2691
        %2757 = vmatprep.subr.mxu0 0.0
        %2758 = vmatpush1.xpose.msra.mxu0 %v2693
        %2759 = vmatprep.subr.mxu0 0.0
        %2760 = vmatpush1.xpose.msra.mxu0 %v2695
        %2761 = vmatprep.subr.mxu0 0.0
        %2762 = vmatpush1.xpose.msra.mxu0 %v2697
        %2763 = vmatprep.subr.mxu0 0.0
        %2764 = vmatpush1.xpose.msra.mxu0 %v2699
        %2765 = vmatprep.subr.mxu0 0.0
        %2766 = vmatpush1.xpose.msra.mxu0 %v2701
        %2767 = vmatprep.subr.mxu0 0.0
        %2768 = vmatpush1.xpose.msra.mxu0 %v2703
        %2769 = vmatprep.subr.mxu0 0.0
        %2770 = vmatpush1.xpose.msra.mxu0 %v2705
        %2771 = vmatprep.subr.mxu0 0.0
        %2772 = vmatpush1.xpose.msra.mxu0 %v2707
        %2773 = vmatprep.subr.mxu0 0.0
        %2774 = vmatpush1.xpose.msra.mxu0 %v2709
        %2775 = vmatprep.subr.mxu0 0.0
        %2776 = vmatpush1.xpose.msra.mxu0 %v2711
        %2777 = vmatprep.subr.mxu0 0.0
        %2778 = vmatpush1.xpose.msra.mxu0 %v2713
        %2779 = vmatprep.subr.mxu0 0.0
        %2780 = vmatpush1.xpose.msra.mxu0 %v2715
        %2781 = vmatprep.subr.mxu0 0.0
        %2782 = vmatpush1.xpose.msra.mxu0 %v2717
        %2783 = vmatprep.subr.mxu0 0.0
        %2784 = vmatpush1.xpose.msra.mxu0 %v2719
        %2785 = vmatprep.subr.mxu0 0.0
        %2786 = vmatpush1.xpose.msra.mxu0 %v2721
        %2787 = vmatprep.subr.mxu0 0.0
        %2788 = vmatpush1.xpose.msra.mxu0 %v2723
        %2789 = vmatprep.subr.mxu0 0.0
        %2790 = vmatpush1.xpose.msra.mxu0 %v2725
        %2791 = vmatprep.subr.mxu0 0.0
        %2792 = vmatpush1.xpose.msra.mxu0 %v2727
        %2793 = vmatprep.subr.mxu0 0.0
        %2794 = vmatpush1.xpose.msra.mxu0 %v2729
        %2795 = vmatprep.subr.mxu0 0.0
        %2796 = vmatpush1.xpose.msra.mxu0 %v2731
        %2797 = vmatprep.subr.mxu0 0.0
        %2798 = vmatpush1.xpose.msra.mxu0 %v2733
        %2799 = vmatprep.subr.mxu0 0.0
        %2800 = vmatpush1.xpose.msra.mxu0 %v2735
        %2801 = vmatprep.mubr.f32.mxu0 0.0
        %2802 = vmatmul.mubr.f32.gmra.mrb[0].mxu0 %v2671
        %v2803 = vpop.f32.mrb[0].mxu0
        %v2804 = vadd.f32 0.0, %v2803
        %v2805 = vpop.f32.mrb[0].mxu0
        %v2806 = vadd.f32 0.0, %v2805
        %2807 = vdwg.mxu0
        %v2808 = vmul.f32 %v2804, 0.35355338
        %v2809 = vmul.f32 %v2806, 0.35355338
        %v2810 = vmax.f32 %v2808, %v2809
        %2811 = vmax.xlane.f32.xlu0 %v2810
        %v2812 = vpop.xlane.xlu0 %2811
        %v2813 = vsub.f32 %v2808, %v2812
        %v2814 = vsub.f32 %v2809, %v2812
        %v2815 = vmul.f32 %v2813, 1.442695
        %v2816 = vpow.pop %v2815
        %v2817 = vmul.f32 %v2814, 1.442695
        %v2818 = vpow.pop %v2817
        %v2819 = vadd.f32 %v2816, %v2818
        %2820 = vadd.xlane.f32.xlu0 %v2819
        %v2821 = vpop.xlane.xlu0 %2820
        %v2822 = vrcp.pop %v2821
        %v2823 = vmul.f32 %v2816, %v2822
        %v2824 = vmul.f32 %v2818, %v2822
        %2825 = vrot.lane.b32.xlu0 %v2089, 88
        %v2826 = vpop.permute.xlu0 %2825
        %2827 = vrot.lane.b32.xlu0 %v2094, 88
        %v2828 = vpop.permute.xlu0 %2827
        %2829 = vrot.lane.b32.xlu0 %v2099, 88
        %v2830 = vpop.permute.xlu0 %2829
        %2831 = vrot.lane.b32.xlu0 %v2104, 88
        %v2832 = vpop.permute.xlu0 %2831
        %2833 = vrot.lane.b32.xlu0 %v2109, 88
        %v2834 = vpop.permute.xlu0 %2833
        %2835 = vrot.lane.b32.xlu0 %v2114, 88
        %v2836 = vpop.permute.xlu0 %2835
        %2837 = vrot.lane.b32.xlu0 %v2119, 88
        %v2838 = vpop.permute.xlu0 %2837
        %2839 = vrot.lane.b32.xlu0 %v2124, 88
        %v2840 = vpop.permute.xlu0 %2839
        %2841 = vrot.lane.b32.xlu0 %v2129, 88
        %v2842 = vpop.permute.xlu0 %2841
        %2843 = vrot.lane.b32.xlu0 %v2134, 88
        %v2844 = vpop.permute.xlu0 %2843
        %2845 = vrot.lane.b32.xlu0 %v2139, 88
        %v2846 = vpop.permute.xlu0 %2845
        %2847 = vrot.lane.b32.xlu0 %v2144, 88
        %v2848 = vpop.permute.xlu0 %2847
        %2849 = vrot.lane.b32.xlu0 %v2149, 88
        %v2850 = vpop.permute.xlu0 %2849
        %2851 = vrot.lane.b32.xlu0 %v2154, 88
        %v2852 = vpop.permute.xlu0 %2851
        %2853 = vrot.lane.b32.xlu0 %v2159, 88
        %v2854 = vpop.permute.xlu0 %2853
        %2855 = vrot.lane.b32.xlu0 %v2164, 88
        %v2856 = vpop.permute.xlu0 %2855
        %2857 = vrot.lane.b32.xlu0 %v2169, 88
        %v2858 = vpop.permute.xlu0 %2857
        %2859 = vrot.lane.b32.xlu0 %v2174, 88
        %v2860 = vpop.permute.xlu0 %2859
        %2861 = vrot.lane.b32.xlu0 %v2179, 88
        %v2862 = vpop.permute.xlu0 %2861
        %2863 = vrot.lane.b32.xlu0 %v2184, 88
        %v2864 = vpop.permute.xlu0 %2863
        %2865 = vrot.lane.b32.xlu0 %v2189, 88
        %v2866 = vpop.permute.xlu0 %2865
        %2867 = vrot.lane.b32.xlu0 %v2194, 88
        %v2868 = vpop.permute.xlu0 %2867
        %2869 = vrot.lane.b32.xlu0 %v2199, 88
        %v2870 = vpop.permute.xlu0 %2869
        %2871 = vrot.lane.b32.xlu0 %v2204, 88
        %v2872 = vpop.permute.xlu0 %2871
        %2873 = vrot.lane.b32.xlu0 %v2209, 88
        %v2874 = vpop.permute.xlu0 %2873
        %2875 = vrot.lane.b32.xlu0 %v2214, 88
        %v2876 = vpop.permute.xlu0 %2875
        %2877 = vrot.lane.b32.xlu0 %v2219, 88
        %v2878 = vpop.permute.xlu0 %2877
        %2879 = vrot.lane.b32.xlu0 %v2224, 88
        %v2880 = vpop.permute.xlu0 %2879
        %2881 = vrot.lane.b32.xlu0 %v2229, 88
        %v2882 = vpop.permute.xlu0 %2881
        %2883 = vrot.lane.b32.xlu0 %v2234, 88
        %v2884 = vpop.permute.xlu0 %2883
        %2885 = vrot.lane.b32.xlu0 %v2239, 88
        %v2886 = vpop.permute.xlu0 %2885
        %2887 = vrot.lane.b32.xlu0 %v2244, 88
        %v2888 = vpop.permute.xlu0 %2887
        %2921 = vmatprep.subr.mxu0 0.0
        %2922 = vmatpush1.msra.mxu0 %v2826
        %2923 = vmatprep.subr.mxu0 0.0
        %2924 = vmatpush1.msra.mxu0 %v2828
        %2925 = vmatprep.subr.mxu0 0.0
        %2926 = vmatpush1.msra.mxu0 %v2830
        %2927 = vmatprep.subr.mxu0 0.0
        %2928 = vmatpush1.msra.mxu0 %v2832
        %2929 = vmatprep.subr.mxu0 0.0
        %2930 = vmatpush1.msra.mxu0 %v2834
        %2931 = vmatprep.subr.mxu0 0.0
        %2932 = vmatpush1.msra.mxu0 %v2836
        %2933 = vmatprep.subr.mxu0 0.0
        %2934 = vmatpush1.msra.mxu0 %v2838
        %2935 = vmatprep.subr.mxu0 0.0
        %2936 = vmatpush1.msra.mxu0 %v2840
        %2937 = vmatprep.subr.mxu0 0.0
        %2938 = vmatpush1.msra.mxu0 %v2842
        %2939 = vmatprep.subr.mxu0 0.0
        %2940 = vmatpush1.msra.mxu0 %v2844
        %2941 = vmatprep.subr.mxu0 0.0
        %2942 = vmatpush1.msra.mxu0 %v2846
        %2943 = vmatprep.subr.mxu0 0.0
        %2944 = vmatpush1.msra.mxu0 %v2848
        %2945 = vmatprep.subr.mxu0 0.0
        %2946 = vmatpush1.msra.mxu0 %v2850
        %2947 = vmatprep.subr.mxu0 0.0
        %2948 = vmatpush1.msra.mxu0 %v2852
        %2949 = vmatprep.subr.mxu0 0.0
        %2950 = vmatpush1.msra.mxu0 %v2854
        %2951 = vmatprep.subr.mxu0 0.0
        %2952 = vmatpush1.msra.mxu0 %v2856
        %2953 = vmatprep.subr.mxu0 0.0
        %2954 = vmatpush1.msra.mxu0 %v2858
        %2955 = vmatprep.subr.mxu0 0.0
        %2956 = vmatpush1.msra.mxu0 %v2860
        %2957 = vmatprep.subr.mxu0 0.0
        %2958 = vmatpush1.msra.mxu0 %v2862
        %2959 = vmatprep.subr.mxu0 0.0
        %2960 = vmatpush1.msra.mxu0 %v2864
        %2961 = vmatprep.subr.mxu0 0.0
        %2962 = vmatpush1.msra.mxu0 %v2866
        %2963 = vmatprep.subr.mxu0 0.0
        %2964 = vmatpush1.msra.mxu0 %v2868
        %2965 = vmatprep.subr.mxu0 0.0
        %2966 = vmatpush1.msra.mxu0 %v2870
        %2967 = vmatprep.subr.mxu0 0.0
        %2968 = vmatpush1.msra.mxu0 %v2872
        %2969 = vmatprep.subr.mxu0 0.0
        %2970 = vmatpush1.msra.mxu0 %v2874
        %2971 = vmatprep.subr.mxu0 0.0
        %2972 = vmatpush1.msra.mxu0 %v2876
        %2973 = vmatprep.subr.mxu0 0.0
        %2974 = vmatpush1.msra.mxu0 %v2878
        %2975 = vmatprep.subr.mxu0 0.0
        %2976 = vmatpush1.msra.mxu0 %v2880
        %2977 = vmatprep.subr.mxu0 0.0
        %2978 = vmatpush1.msra.mxu0 %v2882
        %2979 = vmatprep.subr.mxu0 0.0
        %2980 = vmatpush1.msra.mxu0 %v2884
        %2981 = vmatprep.subr.mxu0 0.0
        %2982 = vmatpush1.msra.mxu0 %v2886
        %2983 = vmatprep.subr.mxu0 0.0
        %2984 = vmatpush1.msra.mxu0 %v2888
        %2985 = vmatprep.mubr.f32.mxu0 %v2824
        %2986 = vmatmul.mubr.f32.gmra.mrb[0].mxu0 %v2823
        %v2987 = vpop.f32.mrb[0].mxu0
        %v2988 = vadd.f32 0.0, %v2987
        %v2989 = vpop.f32.mrb[0].mxu0
        %2990 = vdwg.mxu0
        %v2992 = vsel %vm838, %v2988, 0
        %2994 = vmatprep.subr.mxu0 0.0
        %2995 = vmatpush1.msra.mxu0 %v2248
        %2996 = vmatprep.subr.mxu0 0.0
        %2997 = vmatpush1.msra.mxu0 0.0
        %2998 = vmatprep.subr.mxu0 0.0
        %2999 = vmatpush1.msra.mxu0 0.0
        %3000 = vmatprep.subr.mxu0 0.0
        %3001 = vmatpush1.msra.mxu0 0.0
        %3002 = vmatprep.subr.mxu0 0.0
        %3003 = vmatpush1.msra.mxu0 0.0
        %3004 = vmatprep.subr.mxu0 0.0
        %3005 = vmatpush1.msra.mxu0 0.0
        %3006 = vmatprep.subr.mxu0 0.0
        %3007 = vmatpush1.msra.mxu0 0.0
        %3008 = vmatprep.subr.mxu0 0.0
        %3009 = vmatpush1.msra.mxu0 0.0
        %3010 = vmatprep.subr.mxu0 0.0
        %3011 = vmatpush1.msra.mxu0 0.0
        %3012 = vmatprep.subr.mxu0 0.0
        %3013 = vmatpush1.msra.mxu0 0.0
        %3014 = vmatprep.subr.mxu0 0.0
        %3015 = vmatpush1.msra.mxu0 0.0
        %3016 = vmatprep.subr.mxu0 0.0
        %3017 = vmatpush1.msra.mxu0 0.0
        %3018 = vmatprep.subr.mxu0 0.0
        %3019 = vmatpush1.msra.mxu0 0.0
        %3020 = vmatprep.subr.mxu0 0.0
        %3021 = vmatpush1.msra.mxu0 0.0
        %3022 = vmatprep.subr.mxu0 0.0
        %3023 = vmatpush1.msra.mxu0 0.0
        %3024 = vmatprep.subr.mxu0 0.0
        %3025 = vmatpush1.msra.mxu0 0.0
        %3026 = vmatprep.subr.mxu0 0.0
        %3027 = vmatpush1.msra.mxu0 0.0
        %3028 = vmatprep.subr.mxu0 0.0
        %3029 = vmatpush1.msra.mxu0 0.0
        %3030 = vmatprep.subr.mxu0 0.0
        %3031 = vmatpush1.msra.mxu0 0.0
        %3032 = vmatprep.subr.mxu0 0.0
        %3033 = vmatpush1.msra.mxu0 0.0
        %3034 = vmatprep.subr.mxu0 0.0
        %3035 = vmatpush1.msra.mxu0 0.0
        %3036 = vmatprep.subr.mxu0 0.0
        %3037 = vmatpush1.msra.mxu0 0.0
        %3038 = vmatprep.subr.mxu0 0.0
        %3039 = vmatpush1.msra.mxu0 0.0
        %3040 = vmatprep.subr.mxu0 0.0
        %3041 = vmatpush1.msra.mxu0 0.0
        %3042 = vmatprep.subr.mxu0 0.0
        %3043 = vmatpush1.msra.mxu0 0.0
        %3044 = vmatprep.subr.mxu0 0.0
        %3045 = vmatpush1.msra.mxu0 0.0
        %3046 = vmatprep.subr.mxu0 0.0
        %3047 = vmatpush1.msra.mxu0 0.0
        %3048 = vmatprep.subr.mxu0 0.0
        %3049 = vmatpush1.msra.mxu0 0.0
        %3050 = vmatprep.subr.mxu0 0.0
        %3051 = vmatpush1.msra.mxu0 0.0
        %3052 = vmatprep.subr.mxu0 0.0
        %3053 = vmatpush1.msra.mxu0 0.0
        %3054 = vmatprep.subr.mxu0 0.0
        %3055 = vmatpush1.msra.mxu0 0.0
        %3056 = vmatprep.subr.mxu0 0.0
        %3057 = vmatpush1.msra.mxu0 0.0
        %3058 = vmatprep.mubr.f32.mxu0 0.0
        %3059 = vmatmul.mubr.f32.gmra.mrb[0].mxu0 %v2992
        %v3060 = vpop.f32.mrb[0].mxu0
        %v3061 = vadd.f32 0.0, %v3060
        %v3062 = vpop.f32.mrb[0].mxu0
        %3063 = vdwg.mxu0
        %v3065 = vsel %vm838, %v2602, 0
        %3067 = vmatprep.subr.mxu0 0.0
        %3068 = vmatpush1.msra.mxu0 %v2247
        %3069 = vmatprep.subr.mxu0 0.0
        %3070 = vmatpush1.msra.mxu0 0.0
        %3071 = vmatprep.subr.mxu0 0.0
        %3072 = vmatpush1.msra.mxu0 0.0
        %3073 = vmatprep.subr.mxu0 0.0
        %3074 = vmatpush1.msra.mxu0 0.0
        %3075 = vmatprep.subr.mxu0 0.0
        %3076 = vmatpush1.msra.mxu0 0.0
        %3077 = vmatprep.subr.mxu0 0.0
        %3078 = vmatpush1.msra.mxu0 0.0
        %3079 = vmatprep.subr.mxu0 0.0
        %3080 = vmatpush1.msra.mxu0 0.0
        %3081 = vmatprep.subr.mxu0 0.0
        %3082 = vmatpush1.msra.mxu0 0.0
        %3083 = vmatprep.subr.mxu0 0.0
        %3084 = vmatpush1.msra.mxu0 0.0
        %3085 = vmatprep.subr.mxu0 0.0
        %3086 = vmatpush1.msra.mxu0 0.0
        %3087 = vmatprep.subr.mxu0 0.0
        %3088 = vmatpush1.msra.mxu0 0.0
        %3089 = vmatprep.subr.mxu0 0.0
        %3090 = vmatpush1.msra.mxu0 0.0
        %3091 = vmatprep.subr.mxu0 0.0
        %3092 = vmatpush1.msra.mxu0 0.0
        %3093 = vmatprep.subr.mxu0 0.0
        %3094 = vmatpush1.msra.mxu0 0.0
        %3095 = vmatprep.subr.mxu0 0.0
        %3096 = vmatpush1.msra.mxu0 0.0
        %3097 = vmatprep.subr.mxu0 0.0
        %3098 = vmatpush1.msra.mxu0 0.0
        %3099 = vmatprep.subr.mxu0 0.0
        %3100 = vmatpush1.msra.mxu0 0.0
        %3101 = vmatprep.subr.mxu0 0.0
        %3102 = vmatpush1.msra.mxu0 0.0
        %3103 = vmatprep.subr.mxu0 0.0
        %3104 = vmatpush1.msra.mxu0 0.0
        %3105 = vmatprep.subr.mxu0 0.0
        %3106 = vmatpush1.msra.mxu0 0.0
        %3107 = vmatprep.subr.mxu0 0.0
        %3108 = vmatpush1.msra.mxu0 0.0
        %3109 = vmatprep.subr.mxu0 0.0
        %3110 = vmatpush1.msra.mxu0 0.0
        %3111 = vmatprep.subr.mxu0 0.0
        %3112 = vmatpush1.msra.mxu0 0.0
        %3113 = vmatprep.subr.mxu0 0.0
        %3114 = vmatpush1.msra.mxu0 0.0
        %3115 = vmatprep.subr.mxu0 0.0
        %3116 = vmatpush1.msra.mxu0 0.0
        %3117 = vmatprep.subr.mxu0 0.0
        %3118 = vmatpush1.msra.mxu0 0.0
        %3119 = vmatprep.subr.mxu0 0.0
        %3120 = vmatpush1.msra.mxu0 0.0
        %3121 = vmatprep.subr.mxu0 0.0
        %3122 = vmatpush1.msra.mxu0 0.0
        %3123 = vmatprep.subr.mxu0 0.0
        %3124 = vmatpush1.msra.mxu0 0.0
        %3125 = vmatprep.subr.mxu0 0.0
        %3126 = vmatpush1.msra.mxu0 0.0
        %3127 = vmatprep.subr.mxu0 0.0
        %3128 = vmatpush1.msra.mxu0 0.0
        %3129 = vmatprep.subr.mxu0 0.0
        %3130 = vmatpush1.msra.mxu0 0.0
        %3131 = vmatprep.mubr.f32.mxu0 0.0
        %3132 = vmatmul.mubr.f32.gmra.mrb[0].mxu0 %v3065
        %v3133 = vpop.f32.mrb[0].mxu0
        %v3134 = vadd.f32 %v3061, %v3133
        %v3135 = vpop.f32.mrb[0].mxu0
        %3136 = vdwg.mxu0
        %3137 = vrot.lane.b32.xlu0 %v1912, 112
        %v3138 = vpop.permute.xlu0 %3137
        %3139 = vrot.lane.b32.xlu0 %v2089, 112
        %v3140 = vpop.permute.xlu0 %3139
        %3141 = vrot.lane.b32.xlu0 %v2094, 112
        %v3142 = vpop.permute.xlu0 %3141
        %3143 = vrot.lane.b32.xlu0 %v2099, 112
        %v3144 = vpop.permute.xlu0 %3143
        %3145 = vrot.lane.b32.xlu0 %v2104, 112
        %v3146 = vpop.permute.xlu0 %3145
        %3147 = vrot.lane.b32.xlu0 %v2109, 112
        %v3148 = vpop.permute.xlu0 %3147
        %3149 = vrot.lane.b32.xlu0 %v2114, 112
        %v3150 = vpop.permute.xlu0 %3149
        %3151 = vrot.lane.b32.xlu0 %v2119, 112
        %v3152 = vpop.permute.xlu0 %3151
        %3153 = vrot.lane.b32.xlu0 %v2124, 112
        %v3154 = vpop.permute.xlu0 %3153
        %3155 = vrot.lane.b32.xlu0 %v2129, 112
        %v3156 = vpop.permute.xlu0 %3155
        %3157 = vrot.lane.b32.xlu0 %v2134, 112
        %v3158 = vpop.permute.xlu0 %3157
        %3159 = vrot.lane.b32.xlu0 %v2139, 112
        %v3160 = vpop.permute.xlu0 %3159
        %3161 = vrot.lane.b32.xlu0 %v2144, 112
        %v3162 = vpop.permute.xlu0 %3161
        %3163 = vrot.lane.b32.xlu0 %v2149, 112
        %v3164 = vpop.permute.xlu0 %3163
        %3165 = vrot.lane.b32.xlu0 %v2154, 112
        %v3166 = vpop.permute.xlu0 %3165
        %3167 = vrot.lane.b32.xlu0 %v2159, 112
        %v3168 = vpop.permute.xlu0 %3167
        %3169 = vrot.lane.b32.xlu0 %v2164, 112
        %v3170 = vpop.permute.xlu0 %3169
        %3171 = vrot.lane.b32.xlu0 %v2169, 112
        %v3172 = vpop.permute.xlu0 %3171
        %3173 = vrot.lane.b32.xlu0 %v2174, 112
        %v3174 = vpop.permute.xlu0 %3173
        %3175 = vrot.lane.b32.xlu0 %v2179, 112
        %v3176 = vpop.permute.xlu0 %3175
        %3177 = vrot.lane.b32.xlu0 %v2184, 112
        %v3178 = vpop.permute.xlu0 %3177
        %3179 = vrot.lane.b32.xlu0 %v2189, 112
        %v3180 = vpop.permute.xlu0 %3179
        %3181 = vrot.lane.b32.xlu0 %v2194, 112
        %v3182 = vpop.permute.xlu0 %3181
        %3183 = vrot.lane.b32.xlu0 %v2199, 112
        %v3184 = vpop.permute.xlu0 %3183
        %3185 = vrot.lane.b32.xlu0 %v2204, 112
        %v3186 = vpop.permute.xlu0 %3185
        %3187 = vrot.lane.b32.xlu0 %v2209, 112
        %v3188 = vpop.permute.xlu0 %3187
        %3189 = vrot.lane.b32.xlu0 %v2214, 112
        %v3190 = vpop.permute.xlu0 %3189
        %3191 = vrot.lane.b32.xlu0 %v2219, 112
        %v3192 = vpop.permute.xlu0 %3191
        %3193 = vrot.lane.b32.xlu0 %v2224, 112
        %v3194 = vpop.permute.xlu0 %3193
        %3195 = vrot.lane.b32.xlu0 %v2229, 112
        %v3196 = vpop.permute.xlu0 %3195
        %3197 = vrot.lane.b32.xlu0 %v2234, 112
        %v3198 = vpop.permute.xlu0 %3197
        %3199 = vrot.lane.b32.xlu0 %v2239, 112
        %v3200 = vpop.permute.xlu0 %3199
        %3201 = vrot.lane.b32.xlu0 %v2244, 112
        %v3202 = vpop.permute.xlu0 %3201
        %v3203 = vsel %vm838, %v3138, 0
        %v3205 = vsel %vm838, %v3140, 0
        %v3207 = vsel %vm838, %v3142, 0
        %v3209 = vsel %vm838, %v3144, 0
        %v3211 = vsel %vm838, %v3146, 0
        %v3213 = vsel %vm838, %v3148, 0
        %v3215 = vsel %vm838, %v3150, 0
        %v3217 = vsel %vm838, %v3152, 0
        %v3219 = vsel %vm838, %v3154, 0
        %v3221 = vsel %vm838, %v3156, 0
        %v3223 = vsel %vm838, %v3158, 0
        %v3225 = vsel %vm838, %v3160, 0
        %v3227 = vsel %vm838, %v3162, 0
        %v3229 = vsel %vm838, %v3164, 0
        %v3231 = vsel %vm838, %v3166, 0
        %v3233 = vsel %vm838, %v3168, 0
        %v3235 = vsel %vm838, %v3170, 0
        %v3237 = vsel %vm838, %v3172, 0
        %v3239 = vsel %vm838, %v3174, 0
        %v3241 = vsel %vm838, %v3176, 0
        %v3243 = vsel %vm838, %v3178, 0
        %v3245 = vsel %vm838, %v3180, 0
        %v3247 = vsel %vm838, %v3182, 0
        %v3249 = vsel %vm838, %v3184, 0
        %v3251 = vsel %vm838, %v3186, 0
        %v3253 = vsel %vm838, %v3188, 0
        %v3255 = vsel %vm838, %v3190, 0
        %v3257 = vsel %vm838, %v3192, 0
        %v3259 = vsel %vm838, %v3194, 0
        %v3261 = vsel %vm838, %v3196, 0
        %v3263 = vsel %vm838, %v3198, 0
        %v3265 = vsel %vm838, %v3200, 0
        %v3267 = vsel %vm838, %v3202, 0
        %3269 = vmatprep.subr.mxu0 0.0
        %3270 = vmatpush1.xpose.msra.mxu0 %v3205
        %3271 = vmatprep.subr.mxu0 0.0
        %3272 = vmatpush1.xpose.msra.mxu0 %v3207
        %3273 = vmatprep.subr.mxu0 0.0
        %3274 = vmatpush1.xpose.msra.mxu0 %v3209
        %3275 = vmatprep.subr.mxu0 0.0
        %3276 = vmatpush1.xpose.msra.mxu0 %v3211
        %3277 = vmatprep.subr.mxu0 0.0
        %3278 = vmatpush1.xpose.msra.mxu0 %v3213
        %3279 = vmatprep.subr.mxu0 0.0
        %3280 = vmatpush1.xpose.msra.mxu0 %v3215
        %3281 = vmatprep.subr.mxu0 0.0
        %3282 = vmatpush1.xpose.msra.mxu0 %v3217
        %3283 = vmatprep.subr.mxu0 0.0
        %3284 = vmatpush1.xpose.msra.mxu0 %v3219
        %3285 = vmatprep.subr.mxu0 0.0
        %3286 = vmatpush1.xpose.msra.mxu0 %v3221
        %3287 = vmatprep.subr.mxu0 0.0
        %3288 = vmatpush1.xpose.msra.mxu0 %v3223
        %3289 = vmatprep.subr.mxu0 0.0
        %3290 = vmatpush1.xpose.msra.mxu0 %v3225
        %3291 = vmatprep.subr.mxu0 0.0
        %3292 = vmatpush1.xpose.msra.mxu0 %v3227
        %3293 = vmatprep.subr.mxu0 0.0
        %3294 = vmatpush1.xpose.msra.mxu0 %v3229
        %3295 = vmatprep.subr.mxu0 0.0
        %3296 = vmatpush1.xpose.msra.mxu0 %v3231
        %3297 = vmatprep.subr.mxu0 0.0
        %3298 = vmatpush1.xpose.msra.mxu0 %v3233
        %3299 = vmatprep.subr.mxu0 0.0
        %3300 = vmatpush1.xpose.msra.mxu0 %v3235
        %3301 = vmatprep.subr.mxu0 0.0
        %3302 = vmatpush1.xpose.msra.mxu0 %v3237
        %3303 = vmatprep.subr.mxu0 0.0
        %3304 = vmatpush1.xpose.msra.mxu0 %v3239
        %3305 = vmatprep.subr.mxu0 0.0
        %3306 = vmatpush1.xpose.msra.mxu0 %v3241
        %3307 = vmatprep.subr.mxu0 0.0
        %3308 = vmatpush1.xpose.msra.mxu0 %v3243
        %3309 = vmatprep.subr.mxu0 0.0
        %3310 = vmatpush1.xpose.msra.mxu0 %v3245
        %3311 = vmatprep.subr.mxu0 0.0
        %3312 = vmatpush1.xpose.msra.mxu0 %v3247
        %3313 = vmatprep.subr.mxu0 0.0
        %3314 = vmatpush1.xpose.msra.mxu0 %v3249
        %3315 = vmatprep.subr.mxu0 0.0
        %3316 = vmatpush1.xpose.msra.mxu0 %v3251
        %3317 = vmatprep.subr.mxu0 0.0
        %3318 = vmatpush1.xpose.msra.mxu0 %v3253
        %3319 = vmatprep.subr.mxu0 0.0
        %3320 = vmatpush1.xpose.msra.mxu0 %v3255
        %3321 = vmatprep.subr.mxu0 0.0
        %3322 = vmatpush1.xpose.msra.mxu0 %v3257
        %3323 = vmatprep.subr.mxu0 0.0
        %3324 = vmatpush1.xpose.msra.mxu0 %v3259
        %3325 = vmatprep.subr.mxu0 0.0
        %3326 = vmatpush1.xpose.msra.mxu0 %v3261
        %3327 = vmatprep.subr.mxu0 0.0
        %3328 = vmatpush1.xpose.msra.mxu0 %v3263
        %3329 = vmatprep.subr.mxu0 0.0
        %3330 = vmatpush1.xpose.msra.mxu0 %v3265
        %3331 = vmatprep.subr.mxu0 0.0
        %3332 = vmatpush1.xpose.msra.mxu0 %v3267
        %3333 = vmatprep.mubr.f32.mxu0 0.0
        %3334 = vmatmul.mubr.f32.gmra.mrb[0].mxu0 %v3203
        %v3335 = vpop.f32.mrb[0].mxu0
        %v3336 = vadd.f32 0.0, %v3335
        %v3337 = vpop.f32.mrb[0].mxu0
        %v3338 = vadd.f32 0.0, %v3337
        %3339 = vdwg.mxu0
        %v3340 = vmul.f32 %v3336, 0.35355338
        %v3341 = vmul.f32 %v3338, 0.35355338
        %v3342 = vmax.f32 %v3340, %v3341
        %3343 = vmax.xlane.f32.xlu0 %v3342
        %v3344 = vpop.xlane.xlu0 %3343
        %v3345 = vsub.f32 %v3340, %v3344
        %v3346 = vsub.f32 %v3341, %v3344
        %v3347 = vmul.f32 %v3345, 1.442695
        %v3348 = vpow.pop %v3347
        %v3349 = vmul.f32 %v3346, 1.442695
        %v3350 = vpow.pop %v3349
        %v3351 = vadd.f32 %v3348, %v3350
        %3352 = vadd.xlane.f32.xlu0 %v3351
        %v3353 = vpop.xlane.xlu0 %3352
        %v3354 = vrcp.pop %v3353
        %v3355 = vmul.f32 %v3348, %v3354
        %v3356 = vmul.f32 %v3350, %v3354
        %3357 = vrot.lane.b32.xlu0 %v2089, 80
        %v3358 = vpop.permute.xlu0 %3357
        %3359 = vrot.lane.b32.xlu0 %v2094, 80
        %v3360 = vpop.permute.xlu0 %3359
        %3361 = vrot.lane.b32.xlu0 %v2099, 80
        %v3362 = vpop.permute.xlu0 %3361
        %3363 = vrot.lane.b32.xlu0 %v2104, 80
        %v3364 = vpop.permute.xlu0 %3363
        %3365 = vrot.lane.b32.xlu0 %v2109, 80
        %v3366 = vpop.permute.xlu0 %3365
        %3367 = vrot.lane.b32.xlu0 %v2114, 80
        %v3368 = vpop.permute.xlu0 %3367
        %3369 = vrot.lane.b32.xlu0 %v2119, 80
        %v3370 = vpop.permute.xlu0 %3369
        %3371 = vrot.lane.b32.xlu0 %v2124, 80
        %v3372 = vpop.permute.xlu0 %3371
        %3373 = vrot.lane.b32.xlu0 %v2129, 80
        %v3374 = vpop.permute.xlu0 %3373
        %3375 = vrot.lane.b32.xlu0 %v2134, 80
        %v3376 = vpop.permute.xlu0 %3375
        %3377 = vrot.lane.b32.xlu0 %v2139, 80
        %v3378 = vpop.permute.xlu0 %3377
        %3379 = vrot.lane.b32.xlu0 %v2144, 80
        %v3380 = vpop.permute.xlu0 %3379
        %3381 = vrot.lane.b32.xlu0 %v2149, 80
        %v3382 = vpop.permute.xlu0 %3381
        %3383 = vrot.lane.b32.xlu0 %v2154, 80
        %v3384 = vpop.permute.xlu0 %3383
        %3385 = vrot.lane.b32.xlu0 %v2159, 80
        %v3386 = vpop.permute.xlu0 %3385
        %3387 = vrot.lane.b32.xlu0 %v2164, 80
        %v3388 = vpop.permute.xlu0 %3387
        %3389 = vrot.lane.b32.xlu0 %v2169, 80
        %v3390 = vpop.permute.xlu0 %3389
        %3391 = vrot.lane.b32.xlu0 %v2174, 80
        %v3392 = vpop.permute.xlu0 %3391
        %3393 = vrot.lane.b32.xlu0 %v2179, 80
        %v3394 = vpop.permute.xlu0 %3393
        %3395 = vrot.lane.b32.xlu0 %v2184, 80
        %v3396 = vpop.permute.xlu0 %3395
        %3397 = vrot.lane.b32.xlu0 %v2189, 80
        %v3398 = vpop.permute.xlu0 %3397
        %3399 = vrot.lane.b32.xlu0 %v2194, 80
        %v3400 = vpop.permute.xlu0 %3399
        %3401 = vrot.lane.b32.xlu0 %v2199, 80
        %v3402 = vpop.permute.xlu0 %3401
        %3403 = vrot.lane.b32.xlu0 %v2204, 80
        %v3404 = vpop.permute.xlu0 %3403
        %3405 = vrot.lane.b32.xlu0 %v2209, 80
        %v3406 = vpop.permute.xlu0 %3405
        %3407 = vrot.lane.b32.xlu0 %v2214, 80
        %v3408 = vpop.permute.xlu0 %3407
        %3409 = vrot.lane.b32.xlu0 %v2219, 80
        %v3410 = vpop.permute.xlu0 %3409
        %3411 = vrot.lane.b32.xlu0 %v2224, 80
        %v3412 = vpop.permute.xlu0 %3411
        %3413 = vrot.lane.b32.xlu0 %v2229, 80
        %v3414 = vpop.permute.xlu0 %3413
        %3415 = vrot.lane.b32.xlu0 %v2234, 80
        %v3416 = vpop.permute.xlu0 %3415
        %3417 = vrot.lane.b32.xlu0 %v2239, 80
        %v3418 = vpop.permute.xlu0 %3417
        %3419 = vrot.lane.b32.xlu0 %v2244, 80
        %v3420 = vpop.permute.xlu0 %3419
        %3453 = vmatprep.subr.mxu0 0.0
        %3454 = vmatpush1.msra.mxu0 %v3358
        %3455 = vmatprep.subr.mxu0 0.0
        %3456 = vmatpush1.msra.mxu0 %v3360
        %3457 = vmatprep.subr.mxu0 0.0
        %3458 = vmatpush1.msra.mxu0 %v3362
        %3459 = vmatprep.subr.mxu0 0.0
        %3460 = vmatpush1.msra.mxu0 %v3364
        %3461 = vmatprep.subr.mxu0 0.0
        %3462 = vmatpush1.msra.mxu0 %v3366
        %3463 = vmatprep.subr.mxu0 0.0
        %3464 = vmatpush1.msra.mxu0 %v3368
        %3465 = vmatprep.subr.mxu0 0.0
        %3466 = vmatpush1.msra.mxu0 %v3370
        %3467 = vmatprep.subr.mxu0 0.0
        %3468 = vmatpush1.msra.mxu0 %v3372
        %3469 = vmatprep.subr.mxu0 0.0
        %3470 = vmatpush1.msra.mxu0 %v3374
        %3471 = vmatprep.subr.mxu0 0.0
        %3472 = vmatpush1.msra.mxu0 %v3376
        %3473 = vmatprep.subr.mxu0 0.0
        %3474 = vmatpush1.msra.mxu0 %v3378
        %3475 = vmatprep.subr.mxu0 0.0
        %3476 = vmatpush1.msra.mxu0 %v3380
        %3477 = vmatprep.subr.mxu0 0.0
        %3478 = vmatpush1.msra.mxu0 %v3382
        %3479 = vmatprep.subr.mxu0 0.0
        %3480 = vmatpush1.msra.mxu0 %v3384
        %3481 = vmatprep.subr.mxu0 0.0
        %3482 = vmatpush1.msra.mxu0 %v3386
        %3483 = vmatprep.subr.mxu0 0.0
        %3484 = vmatpush1.msra.mxu0 %v3388
        %3485 = vmatprep.subr.mxu0 0.0
        %3486 = vmatpush1.msra.mxu0 %v3390
        %3487 = vmatprep.subr.mxu0 0.0
        %3488 = vmatpush1.msra.mxu0 %v3392
        %3489 = vmatprep.subr.mxu0 0.0
        %3490 = vmatpush1.msra.mxu0 %v3394
        %3491 = vmatprep.subr.mxu0 0.0
        %3492 = vmatpush1.msra.mxu0 %v3396
        %3493 = vmatprep.subr.mxu0 0.0
        %3494 = vmatpush1.msra.mxu0 %v3398
        %3495 = vmatprep.subr.mxu0 0.0
        %3496 = vmatpush1.msra.mxu0 %v3400
        %3497 = vmatprep.subr.mxu0 0.0
        %3498 = vmatpush1.msra.mxu0 %v3402
        %3499 = vmatprep.subr.mxu0 0.0
        %3500 = vmatpush1.msra.mxu0 %v3404
        %3501 = vmatprep.subr.mxu0 0.0
        %3502 = vmatpush1.msra.mxu0 %v3406
        %3503 = vmatprep.subr.mxu0 0.0
        %3504 = vmatpush1.msra.mxu0 %v3408
        %3505 = vmatprep.subr.mxu0 0.0
        %3506 = vmatpush1.msra.mxu0 %v3410
        %3507 = vmatprep.subr.mxu0 0.0
        %3508 = vmatpush1.msra.mxu0 %v3412
        %3509 = vmatprep.subr.mxu0 0.0
        %3510 = vmatpush1.msra.mxu0 %v3414
        %3511 = vmatprep.subr.mxu0 0.0
        %3512 = vmatpush1.msra.mxu0 %v3416
        %3513 = vmatprep.subr.mxu0 0.0
        %3514 = vmatpush1.msra.mxu0 %v3418
        %3515 = vmatprep.subr.mxu0 0.0
        %3516 = vmatpush1.msra.mxu0 %v3420
        %3517 = vmatprep.mubr.f32.mxu0 %v3356
        %3518 = vmatmul.mubr.f32.gmra.mrb[0].mxu0 %v3355
        %v3519 = vpop.f32.mrb[0].mxu0
        %v3520 = vadd.f32 0.0, %v3519
        %v3521 = vpop.f32.mrb[0].mxu0
        %3522 = vdwg.mxu0
        %v3524 = vsel %vm838, %v3520, 0
        %3526 = vmatprep.subr.mxu0 0.0
        %3527 = vmatpush1.msra.mxu0 %v2249
        %3528 = vmatprep.subr.mxu0 0.0
        %3529 = vmatpush1.msra.mxu0 0.0
        %3530 = vmatprep.subr.mxu0 0.0
        %3531 = vmatpush1.msra.mxu0 0.0
        %3532 = vmatprep.subr.mxu0 0.0
        %3533 = vmatpush1.msra.mxu0 0.0
        %3534 = vmatprep.subr.mxu0 0.0
        %3535 = vmatpush1.msra.mxu0 0.0
        %3536 = vmatprep.subr.mxu0 0.0
        %3537 = vmatpush1.msra.mxu0 0.0
        %3538 = vmatprep.subr.mxu0 0.0
        %3539 = vmatpush1.msra.mxu0 0.0
        %3540 = vmatprep.subr.mxu0 0.0
        %3541 = vmatpush1.msra.mxu0 0.0
        %3542 = vmatprep.subr.mxu0 0.0
        %3543 = vmatpush1.msra.mxu0 0.0
        %3544 = vmatprep.subr.mxu0 0.0
        %3545 = vmatpush1.msra.mxu0 0.0
        %3546 = vmatprep.subr.mxu0 0.0
        %3547 = vmatpush1.msra.mxu0 0.0
        %3548 = vmatprep.subr.mxu0 0.0
        %3549 = vmatpush1.msra.mxu0 0.0
        %3550 = vmatprep.subr.mxu0 0.0
        %3551 = vmatpush1.msra.mxu0 0.0
        %3552 = vmatprep.subr.mxu0 0.0
        %3553 = vmatpush1.msra.mxu0 0.0
        %3554 = vmatprep.subr.mxu0 0.0
        %3555 = vmatpush1.msra.mxu0 0.0
        %3556 = vmatprep.subr.mxu0 0.0
        %3557 = vmatpush1.msra.mxu0 0.0
        %3558 = vmatprep.subr.mxu0 0.0
        %3559 = vmatpush1.msra.mxu0 0.0
        %3560 = vmatprep.subr.mxu0 0.0
        %3561 = vmatpush1.msra.mxu0 0.0
        %3562 = vmatprep.subr.mxu0 0.0
        %3563 = vmatpush1.msra.mxu0 0.0
        %3564 = vmatprep.subr.mxu0 0.0
        %3565 = vmatpush1.msra.mxu0 0.0
        %3566 = vmatprep.subr.mxu0 0.0
        %3567 = vmatpush1.msra.mxu0 0.0
        %3568 = vmatprep.subr.mxu0 0.0
        %3569 = vmatpush1.msra.mxu0 0.0
        %3570 = vmatprep.subr.mxu0 0.0
        %3571 = vmatpush1.msra.mxu0 0.0
        %3572 = vmatprep.subr.mxu0 0.0
        %3573 = vmatpush1.msra.mxu0 0.0
        %3574 = vmatprep.subr.mxu0 0.0
        %3575 = vmatpush1.msra.mxu0 0.0
        %3576 = vmatprep.subr.mxu0 0.0
        %3577 = vmatpush1.msra.mxu0 0.0
        %3578 = vmatprep.subr.mxu0 0.0
        %3579 = vmatpush1.msra.mxu0 0.0
        %3580 = vmatprep.subr.mxu0 0.0
        %3581 = vmatpush1.msra.mxu0 0.0
        %3582 = vmatprep.subr.mxu0 0.0
        %3583 = vmatpush1.msra.mxu0 0.0
        %3584 = vmatprep.subr.mxu0 0.0
        %3585 = vmatpush1.msra.mxu0 0.0
        %3586 = vmatprep.subr.mxu0 0.0
        %3587 = vmatpush1.msra.mxu0 0.0
        %3588 = vmatprep.subr.mxu0 0.0
        %3589 = vmatpush1.msra.mxu0 0.0
        %3590 = vmatprep.mubr.f32.mxu0 0.0
        %3591 = vmatmul.mubr.f32.gmra.mrb[0].mxu0 %v3524
        %v3592 = vpop.f32.mrb[0].mxu0
        %v3593 = vadd.f32 0.0, %v3592
        %v3594 = vpop.f32.mrb[0].mxu0
        %3595 = vdwg.mxu0
        %v3596 = vadd.f32 %v3134, %v3593
        %3597 = vrot.lane.b32.xlu0 %v1912, 104
        %v3598 = vpop.permute.xlu0 %3597
        %3599 = vrot.lane.b32.xlu0 %v2089, 104
        %v3600 = vpop.permute.xlu0 %3599
        %3601 = vrot.lane.b32.xlu0 %v2094, 104
        %v3602 = vpop.permute.xlu0 %3601
        %3603 = vrot.lane.b32.xlu0 %v2099, 104
        %v3604 = vpop.permute.xlu0 %3603
        %3605 = vrot.lane.b32.xlu0 %v2104, 104
        %v3606 = vpop.permute.xlu0 %3605
        %3607 = vrot.lane.b32.xlu0 %v2109, 104
        %v3608 = vpop.permute.xlu0 %3607
        %3609 = vrot.lane.b32.xlu0 %v2114, 104
        %v3610 = vpop.permute.xlu0 %3609
        %3611 = vrot.lane.b32.xlu0 %v2119, 104
        %v3612 = vpop.permute.xlu0 %3611
        %3613 = vrot.lane.b32.xlu0 %v2124, 104
        %v3614 = vpop.permute.xlu0 %3613
        %3615 = vrot.lane.b32.xlu0 %v2129, 104
        %v3616 = vpop.permute.xlu0 %3615
        %3617 = vrot.lane.b32.xlu0 %v2134, 104
        %v3618 = vpop.permute.xlu0 %3617
        %3619 = vrot.lane.b32.xlu0 %v2139, 104
        %v3620 = vpop.permute.xlu0 %3619
        %3621 = vrot.lane.b32.xlu0 %v2144, 104
        %v3622 = vpop.permute.xlu0 %3621
        %3623 = vrot.lane.b32.xlu0 %v2149, 104
        %v3624 = vpop.permute.xlu0 %3623
        %3625 = vrot.lane.b32.xlu0 %v2154, 104
        %v3626 = vpop.permute.xlu0 %3625
        %3627 = vrot.lane.b32.xlu0 %v2159, 104
        %v3628 = vpop.permute.xlu0 %3627
        %3629 = vrot.lane.b32.xlu0 %v2164, 104
        %v3630 = vpop.permute.xlu0 %3629
        %3631 = vrot.lane.b32.xlu0 %v2169, 104
        %v3632 = vpop.permute.xlu0 %3631
        %3633 = vrot.lane.b32.xlu0 %v2174, 104
        %v3634 = vpop.permute.xlu0 %3633
        %3635 = vrot.lane.b32.xlu0 %v2179, 104
        %v3636 = vpop.permute.xlu0 %3635
        %3637 = vrot.lane.b32.xlu0 %v2184, 104
        %v3638 = vpop.permute.xlu0 %3637
        %3639 = vrot.lane.b32.xlu0 %v2189, 104
        %v3640 = vpop.permute.xlu0 %3639
        %3641 = vrot.lane.b32.xlu0 %v2194, 104
        %v3642 = vpop.permute.xlu0 %3641
        %3643 = vrot.lane.b32.xlu0 %v2199, 104
        %v3644 = vpop.permute.xlu0 %3643
        %3645 = vrot.lane.b32.xlu0 %v2204, 104
        %v3646 = vpop.permute.xlu0 %3645
        %3647 = vrot.lane.b32.xlu0 %v2209, 104
        %v3648 = vpop.permute.xlu0 %3647
        %3649 = vrot.lane.b32.xlu0 %v2214, 104
        %v3650 = vpop.permute.xlu0 %3649
        %3651 = vrot.lane.b32.xlu0 %v2219, 104
        %v3652 = vpop.permute.xlu0 %3651
        %3653 = vrot.lane.b32.xlu0 %v2224, 104
        %v3654 = vpop.permute.xlu0 %3653
        %3655 = vrot.lane.b32.xlu0 %v2229, 104
        %v3656 = vpop.permute.xlu0 %3655
        %3657 = vrot.lane.b32.xlu0 %v2234, 104
        %v3658 = vpop.permute.xlu0 %3657
        %3659 = vrot.lane.b32.xlu0 %v2239, 104
        %v3660 = vpop.permute.xlu0 %3659
        %3661 = vrot.lane.b32.xlu0 %v2244, 104
        %v3662 = vpop.permute.xlu0 %3661
        %v3663 = vsel %vm838, %v3598, 0
        %v3665 = vsel %vm838, %v3600, 0
        %v3667 = vsel %vm838, %v3602, 0
        %v3669 = vsel %vm838, %v3604, 0
        %v3671 = vsel %vm838, %v3606, 0
        %v3673 = vsel %vm838, %v3608, 0
        %v3675 = vsel %vm838, %v3610, 0
        %v3677 = vsel %vm838, %v3612, 0
        %v3679 = vsel %vm838, %v3614, 0
        %v3681 = vsel %vm838, %v3616, 0
        %v3683 = vsel %vm838, %v3618, 0
        %v3685 = vsel %vm838, %v3620, 0
        %v3687 = vsel %vm838, %v3622, 0
        %v3689 = vsel %vm838, %v3624, 0
        %v3691 = vsel %vm838, %v3626, 0
        %v3693 = vsel %vm838, %v3628, 0
        %v3695 = vsel %vm838, %v3630, 0
        %v3697 = vsel %vm838, %v3632, 0
        %v3699 = vsel %vm838, %v3634, 0
        %v3701 = vsel %vm838, %v3636, 0
        %v3703 = vsel %vm838, %v3638, 0
        %v3705 = vsel %vm838, %v3640, 0
        %v3707 = vsel %vm838, %v3642, 0
        %v3709 = vsel %vm838, %v3644, 0
        %v3711 = vsel %vm838, %v3646, 0
        %v3713 = vsel %vm838, %v3648, 0
        %v3715 = vsel %vm838, %v3650, 0
        %v3717 = vsel %vm838, %v3652, 0
        %v3719 = vsel %vm838, %v3654, 0
        %v3721 = vsel %vm838, %v3656, 0
        %v3723 = vsel %vm838, %v3658, 0
        %v3725 = vsel %vm838, %v3660, 0
        %v3727 = vsel %vm838, %v3662, 0
        %3729 = vmatprep.subr.mxu0 0.0
        %3730 = vmatpush1.xpose.msra.mxu0 %v3665
        %3731 = vmatprep.subr.mxu0 0.0
        %3732 = vmatpush1.xpose.msra.mxu0 %v3667
        %3733 = vmatprep.subr.mxu0 0.0
        %3734 = vmatpush1.xpose.msra.mxu0 %v3669
        %3735 = vmatprep.subr.mxu0 0.0
        %3736 = vmatpush1.xpose.msra.mxu0 %v3671
        %3737 = vmatprep.subr.mxu0 0.0
        %3738 = vmatpush1.xpose.msra.mxu0 %v3673
        %3739 = vmatprep.subr.mxu0 0.0
        %3740 = vmatpush1.xpose.msra.mxu0 %v3675
        %3741 = vmatprep.subr.mxu0 0.0
        %3742 = vmatpush1.xpose.msra.mxu0 %v3677
        %3743 = vmatprep.subr.mxu0 0.0
        %3744 = vmatpush1.xpose.msra.mxu0 %v3679
        %3745 = vmatprep.subr.mxu0 0.0
        %3746 = vmatpush1.xpose.msra.mxu0 %v3681
        %3747 = vmatprep.subr.mxu0 0.0
        %3748 = vmatpush1.xpose.msra.mxu0 %v3683
        %3749 = vmatprep.subr.mxu0 0.0
        %3750 = vmatpush1.xpose.msra.mxu0 %v3685
        %3751 = vmatprep.subr.mxu0 0.0
        %3752 = vmatpush1.xpose.msra.mxu0 %v3687
        %3753 = vmatprep.subr.mxu0 0.0
        %3754 = vmatpush1.xpose.msra.mxu0 %v3689
        %3755 = vmatprep.subr.mxu0 0.0
        %3756 = vmatpush1.xpose.msra.mxu0 %v3691
        %3757 = vmatprep.subr.mxu0 0.0
        %3758 = vmatpush1.xpose.msra.mxu0 %v3693
        %3759 = vmatprep.subr.mxu0 0.0
        %3760 = vmatpush1.xpose.msra.mxu0 %v3695
        %3761 = vmatprep.subr.mxu0 0.0
        %3762 = vmatpush1.xpose.msra.mxu0 %v3697
        %3763 = vmatprep.subr.mxu0 0.0
        %3764 = vmatpush1.xpose.msra.mxu0 %v3699
        %3765 = vmatprep.subr.mxu0 0.0
        %3766 = vmatpush1.xpose.msra.mxu0 %v3701
        %3767 = vmatprep.subr.mxu0 0.0
        %3768 = vmatpush1.xpose.msra.mxu0 %v3703
        %3769 = vmatprep.subr.mxu0 0.0
        %3770 = vmatpush1.xpose.msra.mxu0 %v3705
        %3771 = vmatprep.subr.mxu0 0.0
        %3772 = vmatpush1.xpose.msra.mxu0 %v3707
        %3773 = vmatprep.subr.mxu0 0.0
        %3774 = vmatpush1.xpose.msra.mxu0 %v3709
        %3775 = vmatprep.subr.mxu0 0.0
        %3776 = vmatpush1.xpose.msra.mxu0 %v3711
        %3777 = vmatprep.subr.mxu0 0.0
        %3778 = vmatpush1.xpose.msra.mxu0 %v3713
        %3779 = vmatprep.subr.mxu0 0.0
        %3780 = vmatpush1.xpose.msra.mxu0 %v3715
        %3781 = vmatprep.subr.mxu0 0.0
        %3782 = vmatpush1.xpose.msra.mxu0 %v3717
        %3783 = vmatprep.subr.mxu0 0.0
        %3784 = vmatpush1.xpose.msra.mxu0 %v3719
        %3785 = vmatprep.subr.mxu0 0.0
        %3786 = vmatpush1.xpose.msra.mxu0 %v3721
        %3787 = vmatprep.subr.mxu0 0.0
        %3788 = vmatpush1.xpose.msra.mxu0 %v3723
        %3789 = vmatprep.subr.mxu0 0.0
        %3790 = vmatpush1.xpose.msra.mxu0 %v3725
        %3791 = vmatprep.subr.mxu0 0.0
        %3792 = vmatpush1.xpose.msra.mxu0 %v3727
        %3793 = vmatprep.mubr.f32.mxu0 0.0
        %3794 = vmatmul.mubr.f32.gmra.mrb[0].mxu0 %v3663
        %v3795 = vpop.f32.mrb[0].mxu0
        %v3796 = vadd.f32 0.0, %v3795
        %v3797 = vpop.f32.mrb[0].mxu0
        %v3798 = vadd.f32 0.0, %v3797
        %3799 = vdwg.mxu0
        %v3800 = vmul.f32 %v3796, 0.35355338
        %v3801 = vmul.f32 %v3798, 0.35355338
        %v3802 = vmax.f32 %v3800, %v3801
        %3803 = vmax.xlane.f32.xlu0 %v3802
        %v3804 = vpop.xlane.xlu0 %3803
        %v3805 = vsub.f32 %v3800, %v3804
        %v3806 = vsub.f32 %v3801, %v3804
        %v3807 = vmul.f32 %v3805, 1.442695
        %v3808 = vpow.pop %v3807
        %v3809 = vmul.f32 %v3806, 1.442695
        %v3810 = vpow.pop %v3809
        %v3811 = vadd.f32 %v3808, %v3810
        %3812 = vadd.xlane.f32.xlu0 %v3811
        %v3813 = vpop.xlane.xlu0 %3812
        %v3814 = vrcp.pop %v3813
        %v3815 = vmul.f32 %v3808, %v3814
        %v3816 = vmul.f32 %v3810, %v3814
        %3817 = vrot.lane.b32.xlu0 %v2089, 72
        %v3818 = vpop.permute.xlu0 %3817
        %3819 = vrot.lane.b32.xlu0 %v2094, 72
        %v3820 = vpop.permute.xlu0 %3819
        %3821 = vrot.lane.b32.xlu0 %v2099, 72
        %v3822 = vpop.permute.xlu0 %3821
        %3823 = vrot.lane.b32.xlu0 %v2104, 72
        %v3824 = vpop.permute.xlu0 %3823
        %3825 = vrot.lane.b32.xlu0 %v2109, 72
        %v3826 = vpop.permute.xlu0 %3825
        %3827 = vrot.lane.b32.xlu0 %v2114, 72
        %v3828 = vpop.permute.xlu0 %3827
        %3829 = vrot.lane.b32.xlu0 %v2119, 72
        %v3830 = vpop.permute.xlu0 %3829
        %3831 = vrot.lane.b32.xlu0 %v2124, 72
        %v3832 = vpop.permute.xlu0 %3831
        %3833 = vrot.lane.b32.xlu0 %v2129, 72
        %v3834 = vpop.permute.xlu0 %3833
        %3835 = vrot.lane.b32.xlu0 %v2134, 72
        %v3836 = vpop.permute.xlu0 %3835
        %3837 = vrot.lane.b32.xlu0 %v2139, 72
        %v3838 = vpop.permute.xlu0 %3837
        %3839 = vrot.lane.b32.xlu0 %v2144, 72
        %v3840 = vpop.permute.xlu0 %3839
        %3841 = vrot.lane.b32.xlu0 %v2149, 72
        %v3842 = vpop.permute.xlu0 %3841
        %3843 = vrot.lane.b32.xlu0 %v2154, 72
        %v3844 = vpop.permute.xlu0 %3843
        %3845 = vrot.lane.b32.xlu0 %v2159, 72
        %v3846 = vpop.permute.xlu0 %3845
        %3847 = vrot.lane.b32.xlu0 %v2164, 72
        %v3848 = vpop.permute.xlu0 %3847
        %3849 = vrot.lane.b32.xlu0 %v2169, 72
        %v3850 = vpop.permute.xlu0 %3849
        %3851 = vrot.lane.b32.xlu0 %v2174, 72
        %v3852 = vpop.permute.xlu0 %3851
        %3853 = vrot.lane.b32.xlu0 %v2179, 72
        %v3854 = vpop.permute.xlu0 %3853
        %3855 = vrot.lane.b32.xlu0 %v2184, 72
        %v3856 = vpop.permute.xlu0 %3855
        %3857 = vrot.lane.b32.xlu0 %v2189, 72
        %v3858 = vpop.permute.xlu0 %3857
        %3859 = vrot.lane.b32.xlu0 %v2194, 72
        %v3860 = vpop.permute.xlu0 %3859
        %3861 = vrot.lane.b32.xlu0 %v2199, 72
        %v3862 = vpop.permute.xlu0 %3861
        %3863 = vrot.lane.b32.xlu0 %v2204, 72
        %v3864 = vpop.permute.xlu0 %3863
        %3865 = vrot.lane.b32.xlu0 %v2209, 72
        %v3866 = vpop.permute.xlu0 %3865
        %3867 = vrot.lane.b32.xlu0 %v2214, 72
        %v3868 = vpop.permute.xlu0 %3867
        %3869 = vrot.lane.b32.xlu0 %v2219, 72
        %v3870 = vpop.permute.xlu0 %3869
        %3871 = vrot.lane.b32.xlu0 %v2224, 72
        %v3872 = vpop.permute.xlu0 %3871
        %3873 = vrot.lane.b32.xlu0 %v2229, 72
        %v3874 = vpop.permute.xlu0 %3873
        %3875 = vrot.lane.b32.xlu0 %v2234, 72
        %v3876 = vpop.permute.xlu0 %3875
        %3877 = vrot.lane.b32.xlu0 %v2239, 72
        %v3878 = vpop.permute.xlu0 %3877
        %3879 = vrot.lane.b32.xlu0 %v2244, 72
        %v3880 = vpop.permute.xlu0 %3879
        %3913 = vmatprep.subr.mxu0 0.0
        %3914 = vmatpush1.msra.mxu0 %v3818
        %3915 = vmatprep.subr.mxu0 0.0
        %3916 = vmatpush1.msra.mxu0 %v3820
        %3917 = vmatprep.subr.mxu0 0.0
        %3918 = vmatpush1.msra.mxu0 %v3822
        %3919 = vmatprep.subr.mxu0 0.0
        %3920 = vmatpush1.msra.mxu0 %v3824
        %3921 = vmatprep.subr.mxu0 0.0
        %3922 = vmatpush1.msra.mxu0 %v3826
        %3923 = vmatprep.subr.mxu0 0.0
        %3924 = vmatpush1.msra.mxu0 %v3828
        %3925 = vmatprep.subr.mxu0 0.0
        %3926 = vmatpush1.msra.mxu0 %v3830
        %3927 = vmatprep.subr.mxu0 0.0
        %3928 = vmatpush1.msra.mxu0 %v3832
        %3929 = vmatprep.subr.mxu0 0.0
        %3930 = vmatpush1.msra.mxu0 %v3834
        %3931 = vmatprep.subr.mxu0 0.0
        %3932 = vmatpush1.msra.mxu0 %v3836
        %3933 = vmatprep.subr.mxu0 0.0
        %3934 = vmatpush1.msra.mxu0 %v3838
        %3935 = vmatprep.subr.mxu0 0.0
        %3936 = vmatpush1.msra.mxu0 %v3840
        %3937 = vmatprep.subr.mxu0 0.0
        %3938 = vmatpush1.msra.mxu0 %v3842
        %3939 = vmatprep.subr.mxu0 0.0
        %3940 = vmatpush1.msra.mxu0 %v3844
        %3941 = vmatprep.subr.mxu0 0.0
        %3942 = vmatpush1.msra.mxu0 %v3846
        %3943 = vmatprep.subr.mxu0 0.0
        %3944 = vmatpush1.msra.mxu0 %v3848
        %3945 = vmatprep.subr.mxu0 0.0
        %3946 = vmatpush1.msra.mxu0 %v3850
        %3947 = vmatprep.subr.mxu0 0.0
        %3948 = vmatpush1.msra.mxu0 %v3852
        %3949 = vmatprep.subr.mxu0 0.0
        %3950 = vmatpush1.msra.mxu0 %v3854
        %3951 = vmatprep.subr.mxu0 0.0
        %3952 = vmatpush1.msra.mxu0 %v3856
        %3953 = vmatprep.subr.mxu0 0.0
        %3954 = vmatpush1.msra.mxu0 %v3858
        %3955 = vmatprep.subr.mxu0 0.0
        %3956 = vmatpush1.msra.mxu0 %v3860
        %3957 = vmatprep.subr.mxu0 0.0
        %3958 = vmatpush1.msra.mxu0 %v3862
        %3959 = vmatprep.subr.mxu0 0.0
        %3960 = vmatpush1.msra.mxu0 %v3864
        %3961 = vmatprep.subr.mxu0 0.0
        %3962 = vmatpush1.msra.mxu0 %v3866
        %3963 = vmatprep.subr.mxu0 0.0
        %3964 = vmatpush1.msra.mxu0 %v3868
        %3965 = vmatprep.subr.mxu0 0.0
        %3966 = vmatpush1.msra.mxu0 %v3870
        %3967 = vmatprep.subr.mxu0 0.0
        %3968 = vmatpush1.msra.mxu0 %v3872
        %3969 = vmatprep.subr.mxu0 0.0
        %3970 = vmatpush1.msra.mxu0 %v3874
        %3971 = vmatprep.subr.mxu0 0.0
        %3972 = vmatpush1.msra.mxu0 %v3876
        %3973 = vmatprep.subr.mxu0 0.0
        %3974 = vmatpush1.msra.mxu0 %v3878
        %3975 = vmatprep.subr.mxu0 0.0
        %3976 = vmatpush1.msra.mxu0 %v3880
        %3977 = vmatprep.mubr.f32.mxu0 %v3816
        %3978 = vmatmul.mubr.f32.gmra.mrb[0].mxu0 %v3815
        %v3979 = vpop.f32.mrb[0].mxu0
        %v3980 = vadd.f32 0.0, %v3979
        %v3981 = vpop.f32.mrb[0].mxu0
        %3982 = vdwg.mxu0
        %v3984 = vsel %vm838, %v3980, 0
        %3986 = vmatprep.subr.mxu0 0.0
        %3987 = vmatpush1.msra.mxu0 %v2250
        %3988 = vmatprep.subr.mxu0 0.0
        %3989 = vmatpush1.msra.mxu0 0.0
        %3990 = vmatprep.subr.mxu0 0.0
        %3991 = vmatpush1.msra.mxu0 0.0
        %3992 = vmatprep.subr.mxu0 0.0
        %3993 = vmatpush1.msra.mxu0 0.0
        %3994 = vmatprep.subr.mxu0 0.0
        %3995 = vmatpush1.msra.mxu0 0.0
        %3996 = vmatprep.subr.mxu0 0.0
        %3997 = vmatpush1.msra.mxu0 0.0
        %3998 = vmatprep.subr.mxu0 0.0
        %3999 = vmatpush1.msra.mxu0 0.0
        %4000 = vmatprep.subr.mxu0 0.0
        %4001 = vmatpush1.msra.mxu0 0.0
        %4002 = vmatprep.subr.mxu0 0.0
        %4003 = vmatpush1.msra.mxu0 0.0
        %4004 = vmatprep.subr.mxu0 0.0
        %4005 = vmatpush1.msra.mxu0 0.0
        %4006 = vmatprep.subr.mxu0 0.0
        %4007 = vmatpush1.msra.mxu0 0.0
        %4008 = vmatprep.subr.mxu0 0.0
        %4009 = vmatpush1.msra.mxu0 0.0
        %4010 = vmatprep.subr.mxu0 0.0
        %4011 = vmatpush1.msra.mxu0 0.0
        %4012 = vmatprep.subr.mxu0 0.0
        %4013 = vmatpush1.msra.mxu0 0.0
        %4014 = vmatprep.subr.mxu0 0.0
        %4015 = vmatpush1.msra.mxu0 0.0
        %4016 = vmatprep.subr.mxu0 0.0
        %4017 = vmatpush1.msra.mxu0 0.0
        %4018 = vmatprep.subr.mxu0 0.0
        %4019 = vmatpush1.msra.mxu0 0.0
        %4020 = vmatprep.subr.mxu0 0.0
        %4021 = vmatpush1.msra.mxu0 0.0
        %4022 = vmatprep.subr.mxu0 0.0
        %4023 = vmatpush1.msra.mxu0 0.0
        %4024 = vmatprep.subr.mxu0 0.0
        %4025 = vmatpush1.msra.mxu0 0.0
        %4026 = vmatprep.subr.mxu0 0.0
        %4027 = vmatpush1.msra.mxu0 0.0
        %4028 = vmatprep.subr.mxu0 0.0
        %4029 = vmatpush1.msra.mxu0 0.0
        %4030 = vmatprep.subr.mxu0 0.0
        %4031 = vmatpush1.msra.mxu0 0.0
        %4032 = vmatprep.subr.mxu0 0.0
        %4033 = vmatpush1.msra.mxu0 0.0
        %4034 = vmatprep.subr.mxu0 0.0
        %4035 = vmatpush1.msra.mxu0 0.0
        %4036 = vmatprep.subr.mxu0 0.0
        %4037 = vmatpush1.msra.mxu0 0.0
        %4038 = vmatprep.subr.mxu0 0.0
        %4039 = vmatpush1.msra.mxu0 0.0
        %4040 = vmatprep.subr.mxu0 0.0
        %4041 = vmatpush1.msra.mxu0 0.0
        %4042 = vmatprep.subr.mxu0 0.0
        %4043 = vmatpush1.msra.mxu0 0.0
        %4044 = vmatprep.subr.mxu0 0.0
        %4045 = vmatpush1.msra.mxu0 0.0
        %4046 = vmatprep.subr.mxu0 0.0
        %4047 = vmatpush1.msra.mxu0 0.0
        %4048 = vmatprep.subr.mxu0 0.0
        %4049 = vmatpush1.msra.mxu0 0.0
        %4050 = vmatprep.mubr.f32.mxu0 0.0
        %4051 = vmatmul.mubr.f32.gmra.mrb[0].mxu0 %v3984
        %v4052 = vpop.f32.mrb[0].mxu0
        %v4053 = vadd.f32 0.0, %v4052
        %v4054 = vpop.f32.mrb[0].mxu0
        %4055 = vdwg.mxu0
        %v4056 = vadd.f32 %v3596, %v4053
        %v4058 = vlaneseq
        %v4059 = vshrl.u32 %v4058, 7
        %v4060 = vsub.s32 0, %v4059
        %v4061 = vrot.slane %v2251, %v4060
        %v4063 = vadd.f32 %v4056, %v4061
        %v4064 = vld [vmem:[%s14] sm:$0x1]
        %v4065 = vld [vmem:[%s15] sm:$0x1]
        %v4066 = vadd.f32 %v1830, %v4063
        %v4067 = vsel %vm756, %v4066, 0.0
        %4068 = vadd.xlane.f32.xlu0 %v4067
        %v4069 = vpop.xlane.xlu0 %4068
        %v4070 = vmul.f32 %v4069, %v1806
        %v4071 = vsub.f32 %v4066, %v4070
        %v4072 = vmul.f32 %v4071, %v4071
        %v4073 = vsel %vm756, %v4072, 0.0
        %4074 = vadd.xlane.f32.xlu0 %v4073
        %v4075 = vpop.xlane.xlu0 %4074
        %v4076 = vmul.f32 %v4075, %v1806
        %v4077 = vadd.f32 %v4076, 1e-05
        %v4078 = vrsqrt.pop %v4077
        %v4079 = vmul.f32 %v4071, %v4078
        %v4081 = vlaneseq
        %v4082 = vshrl.u32 %v4081, 7
        %v4083 = vsub.s32 0, %v4082
        %v4084 = vrot.slane %v4064, %v4083
        %v4086 = vmul.f32 %v4079, %v4084
        %v4088 = vlaneseq
        %v4089 = vshrl.u32 %v4088, 7
        %v4090 = vsub.s32 0, %v4089
        %v4091 = vrot.slane %v4065, %v4090
        %v4093 = vadd.f32 %v4086, %v4091
        %v4094 = vld [vmem:[%s16] sm:$0xff]
        %v4095 = vld [vmem:[%s16 + $0x8] sm:$0xff]
        %v4096 = vld [vmem:[%s16 + $0x10] sm:$0xff]
        %v4097 = vld [vmem:[%s16 + $0x18] sm:$0xff]
        %v4098 = vld [vmem:[%s17] sm:$0x1]
        %v4100 = vlaneseq
        %v4101 = vshrl.u32 %v4100, 7
        %v4102 = vsub.s32 0, %v4101
        %v4103 = vrot.slane %v4098, %v4102
        %v4106 = vsel %vm756, %v4093, 0
        %4108 = vmatprep.subr.mxu0 0.0
        %4109 = vmatpush1.msra.mxu0 %v4094
        %4110 = vmatprep.subr.mxu0 0.0
        %4111 = vmatpush1.msra.mxu0 %v4095
        %4112 = vmatprep.subr.mxu0 0.0
        %4113 = vmatpush1.msra.mxu0 %v4096
        %4114 = vmatprep.subr.mxu0 0.0
        %4115 = vmatpush1.msra.mxu0 %v4097
        %4116 = vmatprep.subr.mxu0 0.0
        %4117 = vmatpush1.msra.mxu0 0.0
        %4118 = vmatprep.subr.mxu0 0.0
        %4119 = vmatpush1.msra.mxu0 0.0
        %4120 = vmatprep.subr.mxu0 0.0
        %4121 = vmatpush1.msra.mxu0 0.0
        %4122 = vmatprep.subr.mxu0 0.0
        %4123 = vmatpush1.msra.mxu0 0.0
        %4124 = vmatprep.subr.mxu0 0.0
        %4125 = vmatpush1.msra.mxu0 0.0
        %4126 = vmatprep.subr.mxu0 0.0
        %4127 = vmatpush1.msra.mxu0 0.0
        %4128 = vmatprep.subr.mxu0 0.0
        %4129 = vmatpush1.msra.mxu0 0.0
        %4130 = vmatprep.subr.mxu0 0.0
        %4131 = vmatpush1.msra.mxu0 0.0
        %4132 = vmatprep.subr.mxu0 0.0
        %4133 = vmatpush1.msra.mxu0 0.0
        %4134 = vmatprep.subr.mxu0 0.0
        %4135 = vmatpush1.msra.mxu0 0.0
        %4136 = vmatprep.subr.mxu0 0.0
        %4137 = vmatpush1.msra.mxu0 0.0
        %4138 = vmatprep.subr.mxu0 0.0
        %4139 = vmatpush1.msra.mxu0 0.0
        %4140 = vmatprep.subr.mxu0 0.0
        %4141 = vmatpush1.msra.mxu0 0.0
        %4142 = vmatprep.subr.mxu0 0.0
        %4143 = vmatpush1.msra.mxu0 0.0
        %4144 = vmatprep.subr.mxu0 0.0
        %4145 = vmatpush1.msra.mxu0 0.0
        %4146 = vmatprep.subr.mxu0 0.0
        %4147 = vmatpush1.msra.mxu0 0.0
        %4148 = vmatprep.subr.mxu0 0.0
        %4149 = vmatpush1.msra.mxu0 0.0
        %4150 = vmatprep.subr.mxu0 0.0
        %4151 = vmatpush1.msra.mxu0 0.0
        %4152 = vmatprep.subr.mxu0 0.0
        %4153 = vmatpush1.msra.mxu0 0.0
        %4154 = vmatprep.subr.mxu0 0.0
        %4155 = vmatpush1.msra.mxu0 0.0
        %4156 = vmatprep.subr.mxu0 0.0
        %4157 = vmatpush1.msra.mxu0 0.0
        %4158 = vmatprep.subr.mxu0 0.0
        %4159 = vmatpush1.msra.mxu0 0.0
        %4160 = vmatprep.subr.mxu0 0.0
        %4161 = vmatpush1.msra.mxu0 0.0
        %4162 = vmatprep.subr.mxu0 0.0
        %4163 = vmatpush1.msra.mxu0 0.0
        %4164 = vmatprep.subr.mxu0 0.0
        %4165 = vmatpush1.msra.mxu0 0.0
        %4166 = vmatprep.subr.mxu0 0.0
        %4167 = vmatpush1.msra.mxu0 0.0
        %4168 = vmatprep.subr.mxu0 0.0
        %4169 = vmatpush1.msra.mxu0 0.0
        %4170 = vmatprep.subr.mxu0 0.0
        %4171 = vmatpush1.msra.mxu0 0.0
        %4172 = vmatprep.mubr.f32.mxu0 0.0
        %4173 = vmatmul.mubr.f32.gmra.mrb[0].mxu0 %v4106
        %v4174 = vpop.f32.mrb[0].mxu0
        %v4175 = vadd.f32 %v4103, %v4174
        %v4176 = vpop.f32.mrb[0].mxu0
        %4177 = vdwg.mxu0
        %v4178 = vmax.f32 %v4175, 0.0
        %v4179 = vld [vmem:[%s18] sm:$0xff]
        %v4180 = vld [vmem:[%s18 + $0x8] sm:$0xff]
        %v4181 = vld [vmem:[%s18 + $0x10] sm:$0xff]
        %v4182 = vld [vmem:[%s18 + $0x18] sm:$0xff]
        %v4183 = vld [vmem:[%s18 + $0x20] sm:$0xff]
        %v4184 = vld [vmem:[%s18 + $0x28] sm:$0xff]
        %v4185 = vld [vmem:[%s18 + $0x30] sm:$0xff]
        %v4186 = vld [vmem:[%s18 + $0x38] sm:$0xff]
        %v4187 = vld [vmem:[%s19] sm:$0x1]
        %v4189 = vlaneseq
        %v4190 = vshrl.u32 %v4189, 7
        %v4191 = vsub.s32 0, %v4190
        %v4192 = vrot.slane %v4187, %v4191
        %vm4194 = vcmask 523264
        %v4196 = vsel %vm4194, %v4178, 0
        %4198 = vmatprep.subr.mxu0 0.0
        %4199 = vmatpush1.msra.mxu0 %v4179
        %4200 = vmatprep.subr.mxu0 0.0
        %4201 = vmatpush1.msra.mxu0 %v4180
        %4202 = vmatprep.subr.mxu0 0.0
        %4203 = vmatpush1.msra.mxu0 %v4181
        %4204 = vmatprep.subr.mxu0 0.0
        %4205 = vmatpush1.msra.mxu0 %v4182
        %4206 = vmatprep.subr.mxu0 0.0
        %4207 = vmatpush1.msra.mxu0 %v4183
        %4208 = vmatprep.subr.mxu0 0.0
        %4209 = vmatpush1.msra.mxu0 %v4184
        %4210 = vmatprep.subr.mxu0 0.0
        %4211 = vmatpush1.msra.mxu0 %v4185
        %4212 = vmatprep.subr.mxu0 0.0
        %4213 = vmatpush1.msra.mxu0 %v4186
        %4214 = vmatprep.subr.mxu0 0.0
        %4215 = vmatpush1.msra.mxu0 0.0
        %4216 = vmatprep.subr.mxu0 0.0
        %4217 = vmatpush1.msra.mxu0 0.0
        %4218 = vmatprep.subr.mxu0 0.0
        %4219 = vmatpush1.msra.mxu0 0.0
        %4220 = vmatprep.subr.mxu0 0.0
        %4221 = vmatpush1.msra.mxu0 0.0
        %4222 = vmatprep.subr.mxu0 0.0
        %4223 = vmatpush1.msra.mxu0 0.0
        %4224 = vmatprep.subr.mxu0 0.0
        %4225 = vmatpush1.msra.mxu0 0.0
        %4226 = vmatprep.subr.mxu0 0.0
        %4227 = vmatpush1.msra.mxu0 0.0
        %4228 = vmatprep.subr.mxu0 0.0
        %4229 = vmatpush1.msra.mxu0 0.0
        %4230 = vmatprep.subr.mxu0 0.0
        %4231 = vmatpush1.msra.mxu0 0.0
        %4232 = vmatprep.subr.mxu0 0.0
        %4233 = vmatpush1.msra.mxu0 0.0
        %4234 = vmatprep.subr.mxu0 0.0
        %4235 = vmatpush1.msra.mxu0 0.0
        %4236 = vmatprep.subr.mxu0 0.0
        %4237 = vmatpush1.msra.mxu0 0.0
        %4238 = vmatprep.subr.mxu0 0.0
        %4239 = vmatpush1.msra.mxu0 0.0
        %4240 = vmatprep.subr.mxu0 0.0
        %4241 = vmatpush1.msra.mxu0 0.0
        %4242 = vmatprep.subr.mxu0 0.0
        %4243 = vmatpush1.msra.mxu0 0.0
        %4244 = vmatprep.subr.mxu0 0.0
        %4245 = vmatpush1.msra.mxu0 0.0
        %4246 = vmatprep.subr.mxu0 0.0
        %4247 = vmatpush1.msra.mxu0 0.0
        %4248 = vmatprep.subr.mxu0 0.0
        %4249 = vmatpush1.msra.mxu0 0.0
        %4250 = vmatprep.subr.mxu0 0.0
        %4251 = vmatpush1.msra.mxu0 0.0
        %4252 = vmatprep.subr.mxu0 0.0
        %4253 = vmatpush1.msra.mxu0 0.0
        %4254 = vmatprep.subr.mxu0 0.0
        %4255 = vmatpush1.msra.mxu0 0.0
        %4256 = vmatprep.subr.mxu0 0.0
        %4257 = vmatpush1.msra.mxu0 0.0
        %4258 = vmatprep.subr.mxu0 0.0
        %4259 = vmatpush1.msra.mxu0 0.0
        %4260 = vmatprep.subr.mxu0 0.0
        %4261 = vmatpush1.msra.mxu0 0.0
        %4262 = vmatprep.mubr.f32.mxu0 0.0
        %4263 = vmatmul.mubr.f32.gmra.mrb[0].mxu0 %v4196
        %v4264 = vpop.f32.mrb[0].mxu0
        %v4265 = vadd.f32 %v4192, %v4264
        %v4266 = vpop.f32.mrb[0].mxu0
        %4267 = vdwg.mxu0
        %v4268 = vld [vmem:[%s20] sm:$0x1]
        %v4269 = vld [vmem:[#allocation2] sm:$0x1]
        %v4270 = vadd.f32 %v4093, %v4265
        %v4271 = vsel %vm756, %v4270, 0.0
        %4272 = vadd.xlane.f32.xlu0 %v4271
        %v4273 = vpop.xlane.xlu0 %4272
        %v4274 = vmul.f32 %v4273, %v1806
        %v4275 = vsub.f32 %v4270, %v4274
        %v4276 = vmul.f32 %v4275, %v4275
        %v4277 = vsel %vm756, %v4276, 0.0
        %4278 = vadd.xlane.f32.xlu0 %v4277
        %v4279 = vpop.xlane.xlu0 %4278
        %v4280 = vmul.f32 %v4279, %v1806
        %v4281 = vadd.f32 %v4280, 1e-05
        %v4282 = vrsqrt.pop %v4281
        %v4283 = vmul.f32 %v4275, %v4282
        %v4285 = vlaneseq
        %v4286 = vshrl.u32 %v4285, 7
        %v4287 = vsub.s32 0, %v4286
        %v4288 = vrot.slane %v4268, %v4287
        %v4290 = vmul.f32 %v4283, %v4288
        %v4292 = vlaneseq
        %v4293 = vshrl.u32 %v4292, 7
        %v4294 = vsub.s32 0, %v4293
        %v4295 = vrot.slane %v4269, %v4294
        %v4297 = vadd.f32 %v4290, %v4295
        %4298 = vst.msk [vmem:[%s711] sm:$0xff] %vm756, %v4297
        %p4299 = scmp.lt.s32.totalorder %s34, 1
        %s4300 = scalar_select %p4299, %s34, 1
        %s4301 = smul.addr %s4300, 8
        %s4302 = scalar_lea.vmem %s22, %s4301
        // Predicated region
        $region113: #{transformer_forward.6} parent=107 // pred_check
          %p4303 = pneg %p524
        $region114: #{transformer_forward.6} parent=107 // pred_check_branch
          %4305 = sbr.rel (%p4303) target = $region116
        $region115: #{transformer_forward.6} parent=107 // pred_region
          _
        $region116: #{transformer_forward.6} parent=107 // pred_fallthru
          _
      $region108: #{transformer_forward.6} parent=5 // pred_fallthru
        _
      %p4306 = scmp.le.s32.totalorder 2, %s29
      // Predicated region
      $region117: #{transformer_forward.6} parent=5 // pred_check
        %p4307 = pneg %p4306
      $region118: #{transformer_forward.6} parent=5 // pred_check_branch
        %4309 = sbr.rel (%p4307) target = $region120
      $region119: #{transformer_forward.6} parent=5 // pred_region
        %s4310 = ssub.s32 %s29, 2
        // Predicated region
        $region121: #{transformer_forward.6} parent=119 // pred_check
          %p4311 = pneg %p530
        $region122: #{transformer_forward.6} parent=119 // pred_check_branch
          %4313 = sbr.rel (%p4311) target = $region124
        $region123: #{transformer_forward.6} parent=119 // pred_region
          %p4314 = scmp.lt.s32.totalorder %s35, 1
          %s4315 = scalar_select %p4314, %s35, 1
          %s4316 = smul.addr %s4315, 8
          %s4317 = scalar_lea.vmem %s22, %s4316
        $region124: #{transformer_forward.6} parent=119 // pred_fallthru
          _
      $region120: #{transformer_forward.6} parent=5 // pred_fallthru
        _
    $region6: #{transformer_forward.6} parent=1 // loop_footer
      %s33 = sadd.s32 1, %s29
    $region7: #{transformer_forward.6} parent=1 // loop_footer_branch
      %28 = sbr.rel target = $region3
    $region8: #{transformer_forward.6} parent=1 // loop_exit
      _
    %4318 = vsyncpa [#allocation3], 1
    %s4319 = scalar_lea.sflag [#allocation3], 1
    %4320 = vsyncpa %s4319, 1

</llo_original>
